<compile_context>
chip_gen: v5e
topology: v5e:2x2
jax: 0.10.0
libtpu: 0.0.40
codegen_flags: <defaults>
</compile_context>

<pallas_src>
import jax
import jax.numpy as jnp
from jax import lax
from jax.experimental import pallas as pl
from jax.experimental.pallas import tpu as pltpu


def _gru_encoder_kernel(x_ref,      # (T, H)   bf16  pre-gathered embedding rows
                        h0_ref,     # (1, H)   f32   initial hidden state
                        wx_ref,     # (H, 3H)  bf16  input->gates weights (cols: r|z|n)
                        wh_ref,     # (H, 3H)  bf16  hidden->gates weights (cols: r|z|n)
                        bih_ref,    # (1, 3H)  f32   input-side bias
                        bhh_ref,    # (1, 3H)  f32   hidden-side bias
                        out_ref,    # (T, H)   f32   per-step outputs (== hidden states)
                        gi_scratch  # (T, 3H)  f32   VMEM: batched input-side gate pre-acts
                        ):
    T = x_ref.shape[0]
    H = h0_ref.shape[-1]

    # Input-side gate pre-activations for ALL steps in one MXU call — they do
    # not depend on the recurrence:  (T, H) @ (H, 3H) -> (T, 3H) f32.
    gi_scratch[...] = (
        jnp.dot(x_ref[...], wx_ref[...], preferred_element_type=jnp.float32)
        + bih_ref[...])

    def step(t, h):                       # h: (1, H) f32, carried in vregs
        gi = gi_scratch[pl.ds(t, 1), :]                                   # (1, 3H) f32
        gh = jnp.dot(h.astype(jnp.bfloat16), wh_ref[...],
                     preferred_element_type=jnp.float32) + bhh_ref[...]   # (1, 3H) f32
        r = jax.nn.sigmoid(gi[:, 0:H] + gh[:, 0:H])
        z = jax.nn.sigmoid(gi[:, H:2 * H] + gh[:, H:2 * H])
        n = jnp.tanh(gi[:, 2 * H:3 * H] + r * gh[:, 2 * H:3 * H])
        h_new = (1.0 - z) * n + z * h                                     # (1, H) f32
        out_ref[pl.ds(t, 1), :] = h_new    # store into the resident (T, H) block
        return h_new

    lax.fori_loop(0, T, step, h0_ref[...], unroll=True)


def encoder_rnn_forward_seq(tokens, hidden, kparams):
    """Run the EncoderRNN over a token sequence in ONE pallas_call.

    tokens: (T,) int32; hidden: (1, 1, H) f32.
    Returns (outputs (T, 1, H), final_hidden (1, 1, H)) — identical to calling
    the PyTorch forward T times and stacking the outputs.
    """
    emb, wx, wh, bih, bhh = (kparams["emb"], kparams["wx"], kparams["wh"],
                             kparams["bih"], kparams["bhh"])
    H = wx.shape[0]
    T = tokens.shape[0]

    # Pre-gather the embedding rows: one aligned (T, H) bf16 DMA into VMEM.
    x_emb = jnp.take(emb, tokens, axis=0)                 # (T, H) bf16
    h0 = hidden.reshape(1, H).astype(jnp.float32)

    outputs = pl.pallas_call(
        _gru_encoder_kernel,
        grid=(1,),                                        # whole sequence in one step
        in_specs=[
            pl.BlockSpec((T, H), lambda i: (0, 0)),
            pl.BlockSpec((1, H), lambda i: (0, 0)),
            pl.BlockSpec((H, 3 * H), lambda i: (0, 0)),
            pl.BlockSpec((H, 3 * H), lambda i: (0, 0)),
            pl.BlockSpec((1, 3 * H), lambda i: (0, 0)),
            pl.BlockSpec((1, 3 * H), lambda i: (0, 0)),
        ],
        out_specs=pl.BlockSpec((T, H), lambda i: (0, 0)),
        out_shape=jax.ShapeDtypeStruct((T, H), jnp.float32),
        scratch_shapes=[pltpu.VMEM((T, 3 * H), jnp.float32)],
        compiler_params=pltpu.CompilerParams(
            dimension_semantics=("arbitrary",)),          # recurrence: sequential
    )(x_emb, h0, wx, wh, bih, bhh)

    out_seq = outputs.reshape(T, 1, H)
    final_hidden = outputs[T - 1].reshape(1, 1, H)
    return out_seq, final_hidden


def encoder_rnn_forward(token, hidden, kparams):
    """Single-step API matching EncoderRNN.forward: returns (output, hidden), both (1,1,H)."""
    out_seq, new_hidden = encoder_rnn_forward_seq(token.reshape(1), hidden, kparams)
    return out_seq.reshape(1, 1, -1), new_hidden


# ----------------------------------------------------------------------------
# Parameter construction / packing
# ----------------------------------------------------------------------------
def init_raw_params(key, input_size, hidden_size):
    """Synthetic parameters with PyTorch layouts: w_ih/w_hh (3H, H), b_* (3H,)."""
    k_emb, k_wih, k_whh, k_bih, k_bhh = jax.random.split(key, 5)
    H = hidden_size
    scale = 1.0 / jnp.sqrt(H)
    return {
        "embedding": jax.random.normal(k_emb, (input_size, H), jnp.float32),
        "w_ih": jax.random.uniform(k_wih, (3 * H, H), jnp.float32, -scale, scale),
        "w_hh": jax.random.uniform(k_whh, (3 * H, H), jnp.float32, -scale, scale),
        "b_ih": jax.random.uniform(k_bih, (3 * H,), jnp.float32, -scale, scale),
        "b_hh": jax.random.uniform(k_bhh, (3 * H,), jnp.float32, -scale, scale),
    }


def pack_params(raw):
    """Kernel-side layouts: W_x/W_h as (H, 3H) bf16 (gate columns r|z|n), f32 biases."""
    H = raw["w_hh"].shape[1]
    return {
        "emb": raw["embedding"].astype(jnp.bfloat16),              # (V, H)
        "wx": raw["w_ih"].T.astype(jnp.bfloat16),                  # (H, 3H)
        "wh": raw["w_hh"].T.astype(jnp.bfloat16),                  # (H, 3H)
        "bih": raw["b_ih"].reshape(1, 3 * H).astype(jnp.float32),  # (1, 3H)
        "bhh": raw["b_hh"].reshape(1, 3 * H).astype(jnp.float32),  # (1, 3H)
    }


# ----------------------------------------------------------------------------
# Pure-JAX reference (PyTorch GRU-cell structure, same bf16 matmul precision)
# ----------------------------------------------------------------------------
def reference_step(tok, h, raw):
    H = h.shape[-1]
    x = raw["embedding"].astype(jnp.bfloat16)[tok].reshape(1, H)
    wih = raw["w_ih"].astype(jnp.bfloat16)
    whh = raw["w_hh"].astype(jnp.bfloat16)
    gi = jnp.dot(x, wih.T, preferred_element_type=jnp.float32) + raw["b_ih"]
    gh = jnp.dot(h.astype(jnp.bfloat16), whh.T,
                 preferred_element_type=jnp.float32) + raw["b_hh"]
    r = jax.nn.sigmoid(gi[:, 0:H] + gh[:, 0:H])
    z = jax.nn.sigmoid(gi[:, H:2 * H] + gh[:, H:2 * H])
    n = jnp.tanh(gi[:, 2 * H:3 * H] + r * gh[:, 2 * H:3 * H])
    return (1.0 - z) * n + z * h


def reference_forward_seq(tokens, hidden, raw):
    H = hidden.shape[-1]
    h = hidden.reshape(1, H)
    outs = []
    for t in range(tokens.shape[0]):
        h = reference_step(tokens[t], h, raw)
        outs.append(h)
    return jnp.stack(outs, axis=0).reshape(-1, 1, H), h.reshape(1, 1, H)


if __name__ == "__main__":
    input_size = 32        # vocabulary size
    hidden_size = 256      # matches the spec's hidden_size; multiple of 128 (lane-dense)
    seq_len = 8

    key = jax.random.PRNGKey(0)
    k_params, k_tok = jax.random.split(key)
    raw_params = init_raw_params(k_params, input_size, hidden_size)
    kernel_params = pack_params(raw_params)

    tokens = jax.random.randint(k_tok, (seq_len,), 0, input_size, dtype=jnp.int32)
    hidden0 = jnp.zeros((1, 1, hidden_size), dtype=jnp.float32)   # initHidden()

    # Whole-sequence pass (one pallas_call, one grid step, in-kernel recurrence).
    out_seq, final_hidden = encoder_rnn_forward_seq(tokens, hidden0, kernel_params)
    out_seq = jax.block_until_ready(out_seq)
    final_hidden = jax.block_until_ready(final_hidden)

    ref_seq, ref_hidden = reference_forward_seq(tokens, hidden0, raw_params)
    assert jnp.allclose(out_seq, ref_seq, atol=2e-3, rtol=2e-3), "sequence output mismatch"
    assert jnp.allclose(final_hidden, ref_hidden, atol=2e-3, rtol=2e-3), "final hidden mismatch"

    # Single-step API (original EncoderRNN.forward semantics: output == hidden).
    one_tok = tokens[:1]
    step_out, step_hidden = encoder_rnn_forward(one_tok, hidden0, kernel_params)
    step_out = jax.block_until_ready(step_out)
    ref_step_h = reference_step(one_tok[0], hidden0.reshape(1, hidden_size), raw_params)
    assert jnp.allclose(step_out.reshape(1, hidden_size), ref_step_h, atol=2e-3, rtol=2e-3)
    assert jnp.allclose(step_hidden.reshape(1, hidden_size), ref_step_h, atol=2e-3, rtol=2e-3)

    print("KERNEL_OK")
</pallas_src>

<mosaic_0001>
module attributes {stable_mosaic.version = 11 : i64} {
  func.func @_gru_encoder_kernel(%arg0: i32, %arg1: memref<8x256xbf16, #tpu.memory_space<vmem>>, %arg2: memref<1x256xf32, #tpu.memory_space<vmem>>, %arg3: memref<256x768xbf16, #tpu.memory_space<vmem>>, %arg4: memref<256x768xbf16, #tpu.memory_space<vmem>>, %arg5: memref<1x768xf32, #tpu.memory_space<vmem>>, %arg6: memref<1x768xf32, #tpu.memory_space<vmem>>, %arg7: memref<8x256xf32, #tpu.memory_space<vmem>>, %arg8: memref<8x768xf32, #tpu.memory_space<vmem>>) attributes {dimension_semantics = [#tpu.dimension_semantics<arbitrary>], iteration_bounds = array<i64: 1>, scalar_prefetch = 0 : i64, scratch_operands = 1 : i64, tpu.core_type = #tpu.core_type<tc>, window_params = [{pipeline_mode = #tpu.pipeline_mode<synchronous>, transform_indices = @transform_0, window_bounds = array<i64: 8, 256>}, {pipeline_mode = #tpu.pipeline_mode<synchronous>, transform_indices = @transform_1, window_bounds = array<i64: 1, 256>}, {pipeline_mode = #tpu.pipeline_mode<synchronous>, transform_indices = @transform_2, window_bounds = array<i64: 256, 768>}, {pipeline_mode = #tpu.pipeline_mode<synchronous>, transform_indices = @transform_3, window_bounds = array<i64: 256, 768>}, {pipeline_mode = #tpu.pipeline_mode<synchronous>, transform_indices = @transform_4, window_bounds = array<i64: 1, 768>}, {pipeline_mode = #tpu.pipeline_mode<synchronous>, transform_indices = @transform_5, window_bounds = array<i64: 1, 768>}, {pipeline_mode = #tpu.pipeline_mode<synchronous>, transform_indices = @transform_6, window_bounds = array<i64: 8, 256>}]} {
    %c0 = arith.constant 0 : index
    %c0_0 = arith.constant 0 : index
    %0 = vector.load %arg1[%c0, %c0_0] : memref<8x256xbf16, #tpu.memory_space<vmem>>, vector<8x256xbf16>
    %c0_1 = arith.constant 0 : index
    %c0_2 = arith.constant 0 : index
    %1 = vector.load %arg3[%c0_1, %c0_2] : memref<256x768xbf16, #tpu.memory_space<vmem>>, vector<256x768xbf16>
    %cst = arith.constant dense<0.000000e+00> : vector<8x768xf32>
    %2 = tpu.matmul %0, %1, %cst {dimension_numbers = #tpu.dot_dimension_numbers<[1], [0], [0], [1], [0, 0, 1, 1], [], []>} : vector<8x256xbf16>, vector<256x768xbf16>, vector<8x768xf32> -> vector<8x768xf32>
    %c0_3 = arith.constant 0 : index
    %c0_4 = arith.constant 0 : index
    %3 = vector.load %arg5[%c0_3, %c0_4] : memref<1x768xf32, #tpu.memory_space<vmem>>, vector<1x768xf32>
    %4 = vector.broadcast %3 : vector<1x768xf32> to vector<8x768xf32>
    %5 = arith.addf %2, %4 : vector<8x768xf32>
    %c0_5 = arith.constant 0 : index
    %c0_6 = arith.constant 0 : index
    %6 = vector.load %arg8[%c0_5, %c0_6] : memref<8x768xf32, #tpu.memory_space<vmem>>, vector<8x768xf32>
    tpu.vector_store %arg8[%c0_5, %c0_6], %5 {strides = array<i32>} : memref<8x768xf32, #tpu.memory_space<vmem>>, vector<8x768xf32>,
    %c0_7 = arith.constant 0 : index
    %c0_8 = arith.constant 0 : index
    %7 = vector.load %arg2[%c0_7, %c0_8] : memref<1x256xf32, #tpu.memory_space<vmem>>, vector<1x256xf32>
    %c0_i32 = arith.constant 0 : i32
    %8 = arith.index_cast %c0_i32 : i32 to index
    %c0_9 = arith.constant 0 : index
    %9 = vector.load %arg8[%8, %c0_9] : memref<8x768xf32, #tpu.memory_space<vmem>>, vector<1x768xf32>
    %10 = arith.truncf %7 : vector<1x256xf32> to vector<1x256xbf16>
    %c0_10 = arith.constant 0 : index
    %c0_11 = arith.constant 0 : index
    %11 = vector.load %arg4[%c0_10, %c0_11] : memref<256x768xbf16, #tpu.memory_space<vmem>>, vector<256x768xbf16>
    %cst_12 = arith.constant dense<0.000000e+00> : vector<1x768xf32>
    %12 = tpu.matmul %10, %11, %cst_12 {dimension_numbers = #tpu.dot_dimension_numbers<[1], [0], [0], [1], [0, 0, 1, 1], [], []>} : vector<1x256xbf16>, vector<256x768xbf16>, vector<1x768xf32> -> vector<1x768xf32>
    %c0_13 = arith.constant 0 : index
    %c0_14 = arith.constant 0 : index
    %13 = vector.load %arg6[%c0_13, %c0_14] : memref<1x768xf32, #tpu.memory_space<vmem>>, vector<1x768xf32>
    %14 = arith.addf %12, %13 : vector<1x768xf32>
    %15 = vector.extract_strided_slice %9 {offsets = [0, 0], sizes = [1, 256], strides = [1, 1]} : vector<1x768xf32> to vector<1x256xf32>
    %16 = vector.extract_strided_slice %14 {offsets = [0, 0], sizes = [1, 256], strides = [1, 1]} : vector<1x768xf32> to vector<1x256xf32>
    %17 = arith.addf %15, %16 : vector<1x256xf32>
    %18 = arith.negf %17 : vector<1x256xf32>
    %19 = math.exp %18 : vector<1x256xf32>
    %cst_15 = arith.constant 1.000000e+00 : f32
    %20 = vector.broadcast %cst_15 : f32 to vector<1x256xf32>
    %21 = arith.addf %20, %19 : vector<1x256xf32>
    %22 = arith.divf %20, %21 : vector<1x256xf32>
    %23 = vector.extract_strided_slice %9 {offsets = [0, 256], sizes = [1, 256], strides = [1, 1]} : vector<1x768xf32> to vector<1x256xf32>
    %24 = vector.extract_strided_slice %14 {offsets = [0, 256], sizes = [1, 256], strides = [1, 1]} : vector<1x768xf32> to vector<1x256xf32>
    %25 = arith.addf %23, %24 : vector<1x256xf32>
    %26 = arith.negf %25 : vector<1x256xf32>
    %27 = math.exp %26 : vector<1x256xf32>
    %cst_16 = arith.constant 1.000000e+00 : f32
    %28 = vector.broadcast %cst_16 : f32 to vector<1x256xf32>
    %29 = arith.addf %28, %27 : vector<1x256xf32>
    %30 = arith.divf %28, %29 : vector<1x256xf32>
    %31 = vector.extract_strided_slice %9 {offsets = [0, 512], sizes = [1, 256], strides = [1, 1]} : vector<1x768xf32> to vector<1x256xf32>
    %32 = vector.extract_strided_slice %14 {offsets = [0, 512], sizes = [1, 256], strides = [1, 1]} : vector<1x768xf32> to vector<1x256xf32>
    %33 = arith.mulf %22, %32 : vector<1x256xf32>
    %34 = arith.addf %31, %33 : vector<1x256xf32>
    %35 = math.tanh %34 : vector<1x256xf32>
    %cst_17 = arith.constant 1.000000e+00 : f32
    %36 = vector.broadcast %cst_17 : f32 to vector<1x256xf32>
    %37 = arith.subf %36, %30 : vector<1x256xf32>
    %38 = arith.mulf %37, %35 : vector<1x256xf32>
    %39 = arith.mulf %30, %7 : vector<1x256xf32>
    %40 = arith.addf %38, %39 : vector<1x256xf32>
    %41 = arith.index_cast %c0_i32 : i32 to index
    %c0_18 = arith.constant 0 : index
    %42 = vector.load %arg7[%41, %c0_18] : memref<8x256xf32, #tpu.memory_space<vmem>>, vector<1x256xf32>
    tpu.vector_store %arg7[%41, %c0_18], %40 {strides = array<i32>} : memref<8x256xf32, #tpu.memory_space<vmem>>, vector<1x256xf32>,
    %c1_i32 = arith.constant 1 : i32
    %43 = arith.index_cast %c1_i32 : i32 to index
    %c0_19 = arith.constant 0 : index
    %44 = vector.load %arg8[%43, %c0_19] : memref<8x768xf32, #tpu.memory_space<vmem>>, vector<1x768xf32>
    %45 = arith.truncf %40 : vector<1x256xf32> to vector<1x256xbf16>
    %c0_20 = arith.constant 0 : index
    %c0_21 = arith.constant 0 : index
    %46 = vector.load %arg4[%c0_20, %c0_21] : memref<256x768xbf16, #tpu.memory_space<vmem>>, vector<256x768xbf16>
    %cst_22 = arith.constant dense<0.000000e+00> : vector<1x768xf32>
    %47 = tpu.matmul %45, %46, %cst_22 {dimension_numbers = #tpu.dot_dimension_numbers<[1], [0], [0], [1], [0, 0, 1, 1], [], []>} : vector<1x256xbf16>, vector<256x768xbf16>, vector<1x768xf32> -> vector<1x768xf32>
    %c0_23 = arith.constant 0 : index
    %c0_24 = arith.constant 0 : index
    %48 = vector.load %arg6[%c0_23, %c0_24] : memref<1x768xf32, #tpu.memory_space<vmem>>, vector<1x768xf32>
    %49 = arith.addf %47, %48 : vector<1x768xf32>
    %50 = vector.extract_strided_slice %44 {offsets = [0, 0], sizes = [1, 256], strides = [1, 1]} : vector<1x768xf32> to vector<1x256xf32>
    %51 = vector.extract_strided_slice %49 {offsets = [0, 0], sizes = [1, 256], strides = [1, 1]} : vector<1x768xf32> to vector<1x256xf32>
    %52 = arith.addf %50, %51 : vector<1x256xf32>
    %53 = arith.negf %52 : vector<1x256xf32>
    %54 = math.exp %53 : vector<1x256xf32>
    %cst_25 = arith.constant 1.000000e+00 : f32
    %55 = vector.broadcast %cst_25 : f32 to vector<1x256xf32>
    %56 = arith.addf %55, %54 : vector<1x256xf32>
    %57 = arith.divf %55, %56 : vector<1x256xf32>
    %58 = vector.extract_strided_slice %44 {offsets = [0, 256], sizes = [1, 256], strides = [1, 1]} : vector<1x768xf32> to vector<1x256xf32>
    %59 = vector.extract_strided_slice %49 {offsets = [0, 256], sizes = [1, 256], strides = [1, 1]} : vector<1x768xf32> to vector<1x256xf32>
    %60 = arith.addf %58, %59 : vector<1x256xf32>
    %61 = arith.negf %60 : vector<1x256xf32>
    %62 = math.exp %61 : vector<1x256xf32>
    %cst_26 = arith.constant 1.000000e+00 : f32
    %63 = vector.broadcast %cst_26 : f32 to vector<1x256xf32>
    %64 = arith.addf %63, %62 : vector<1x256xf32>
    %65 = arith.divf %63, %64 : vector<1x256xf32>
    %66 = vector.extract_strided_slice %44 {offsets = [0, 512], sizes = [1, 256], strides = [1, 1]} : vector<1x768xf32> to vector<1x256xf32>
    %67 = vector.extract_strided_slice %49 {offsets = [0, 512], sizes = [1, 256], strides = [1, 1]} : vector<1x768xf32> to vector<1x256xf32>
    %68 = arith.mulf %57, %67 : vector<1x256xf32>
    %69 = arith.addf %66, %68 : vector<1x256xf32>
    %70 = math.tanh %69 : vector<1x256xf32>
    %cst_27 = arith.constant 1.000000e+00 : f32
    %71 = vector.broadcast %cst_27 : f32 to vector<1x256xf32>
    %72 = arith.subf %71, %65 : vector<1x256xf32>
    %73 = arith.mulf %72, %70 : vector<1x256xf32>
    %74 = arith.mulf %65, %40 : vector<1x256xf32>
    %75 = arith.addf %73, %74 : vector<1x256xf32>
    %76 = arith.index_cast %c1_i32 : i32 to index
    %c0_28 = arith.constant 0 : index
    %77 = vector.load %arg7[%76, %c0_28] : memref<8x256xf32, #tpu.memory_space<vmem>>, vector<1x256xf32>
    tpu.vector_store %arg7[%76, %c0_28], %75 {strides = array<i32>} : memref<8x256xf32, #tpu.memory_space<vmem>>, vector<1x256xf32>,
    %c2_i32 = arith.constant 2 : i32
    %78 = arith.index_cast %c2_i32 : i32 to index
    %c0_29 = arith.constant 0 : index
    %79 = vector.load %arg8[%78, %c0_29] : memref<8x768xf32, #tpu.memory_space<vmem>>, vector<1x768xf32>
    %80 = arith.truncf %75 : vector<1x256xf32> to vector<1x256xbf16>
    %c0_30 = arith.constant 0 : index
    %c0_31 = arith.constant 0 : index
    %81 = vector.load %arg4[%c0_30, %c0_31] : memref<256x768xbf16, #tpu.memory_space<vmem>>, vector<256x768xbf16>
    %cst_32 = arith.constant dense<0.000000e+00> : vector<1x768xf32>
    %82 = tpu.matmul %80, %81, %cst_32 {dimension_numbers = #tpu.dot_dimension_numbers<[1], [0], [0], [1], [0, 0, 1, 1], [], []>} : vector<1x256xbf16>, vector<256x768xbf16>, vector<1x768xf32> -> vector<1x768xf32>
    %c0_33 = arith.constant 0 : index
    %c0_34 = arith.constant 0 : index
    %83 = vector.load %arg6[%c0_33, %c0_34] : memref<1x768xf32, #tpu.memory_space<vmem>>, vector<1x768xf32>
    %84 = arith.addf %82, %83 : vector<1x768xf32>
    %85 = vector.extract_strided_slice %79 {offsets = [0, 0], sizes = [1, 256], strides = [1, 1]} : vector<1x768xf32> to vector<1x256xf32>
    %86 = vector.extract_strided_slice %84 {offsets = [0, 0], sizes = [1, 256], strides = [1, 1]} : vector<1x768xf32> to vector<1x256xf32>
    %87 = arith.addf %85, %86 : vector<1x256xf32>
    %88 = arith.negf %87 : vector<1x256xf32>
    %89 = math.exp %88 : vector<1x256xf32>
    %cst_35 = arith.constant 1.000000e+00 : f32
    %90 = vector.broadcast %cst_35 : f32 to vector<1x256xf32>
    %91 = arith.addf %90, %89 : vector<1x256xf32>
    %92 = arith.divf %90, %91 : vector<1x256xf32>
    %93 = vector.extract_strided_slice %79 {offsets = [0, 256], sizes = [1, 256], strides = [1, 1]} : vector<1x768xf32> to vector<1x256xf32>
    %94 = vector.extract_strided_slice %84 {offsets = [0, 256], sizes = [1, 256], strides = [1, 1]} : vector<1x768xf32> to vector<1x256xf32>
    %95 = arith.addf %93, %94 : vector<1x256xf32>
    %96 = arith.negf %95 : vector<1x256xf32>
    %97 = math.exp %96 : vector<1x256xf32>
    %cst_36 = arith.constant 1.000000e+00 : f32
    %98 = vector.broadcast %cst_36 : f32 to vector<1x256xf32>
    %99 = arith.addf %98, %97 : vector<1x256xf32>
    %100 = arith.divf %98, %99 : vector<1x256xf32>
    %101 = vector.extract_strided_slice %79 {offsets = [0, 512], sizes = [1, 256], strides = [1, 1]} : vector<1x768xf32> to vector<1x256xf32>
    %102 = vector.extract_strided_slice %84 {offsets = [0, 512], sizes = [1, 256], strides = [1, 1]} : vector<1x768xf32> to vector<1x256xf32>
    %103 = arith.mulf %92, %102 : vector<1x256xf32>
    %104 = arith.addf %101, %103 : vector<1x256xf32>
    %105 = math.tanh %104 : vector<1x256xf32>
    %cst_37 = arith.constant 1.000000e+00 : f32
    %106 = vector.broadcast %cst_37 : f32 to vector<1x256xf32>
    %107 = arith.subf %106, %100 : vector<1x256xf32>
    %108 = arith.mulf %107, %105 : vector<1x256xf32>
    %109 = arith.mulf %100, %75 : vector<1x256xf32>
    %110 = arith.addf %108, %109 : vector<1x256xf32>
    %111 = arith.index_cast %c2_i32 : i32 to index
    %c0_38 = arith.constant 0 : index
    %112 = vector.load %arg7[%111, %c0_38] : memref<8x256xf32, #tpu.memory_space<vmem>>, vector<1x256xf32>
    tpu.vector_store %arg7[%111, %c0_38], %110 {strides = array<i32>} : memref<8x256xf32, #tpu.memory_space<vmem>>, vector<1x256xf32>,
    %c3_i32 = arith.constant 3 : i32
    %113 = arith.index_cast %c3_i32 : i32 to index
    %c0_39 = arith.constant 0 : index
    %114 = vector.load %arg8[%113, %c0_39] : memref<8x768xf32, #tpu.memory_space<vmem>>, vector<1x768xf32>
    %115 = arith.truncf %110 : vector<1x256xf32> to vector<1x256xbf16>
    %c0_40 = arith.constant 0 : index
    %c0_41 = arith.constant 0 : index
    %116 = vector.load %arg4[%c0_40, %c0_41] : memref<256x768xbf16, #tpu.memory_space<vmem>>, vector<256x768xbf16>
    %cst_42 = arith.constant dense<0.000000e+00> : vector<1x768xf32>
    %117 = tpu.matmul %115, %116, %cst_42 {dimension_numbers = #tpu.dot_dimension_numbers<[1], [0], [0], [1], [0, 0, 1, 1], [], []>} : vector<1x256xbf16>, vector<256x768xbf16>, vector<1x768xf32> -> vector<1x768xf32>
    %c0_43 = arith.constant 0 : index
    %c0_44 = arith.constant 0 : index
    %118 = vector.load %arg6[%c0_43, %c0_44] : memref<1x768xf32, #tpu.memory_space<vmem>>, vector<1x768xf32>
    %119 = arith.addf %117, %118 : vector<1x768xf32>
    %120 = vector.extract_strided_slice %114 {offsets = [0, 0], sizes = [1, 256], strides = [1, 1]} : vector<1x768xf32> to vector<1x256xf32>
    %121 = vector.extract_strided_slice %119 {offsets = [0, 0], sizes = [1, 256], strides = [1, 1]} : vector<1x768xf32> to vector<1x256xf32>
    %122 = arith.addf %120, %121 : vector<1x256xf32>
    %123 = arith.negf %122 : vector<1x256xf32>
    %124 = math.exp %123 : vector<1x256xf32>
    %cst_45 = arith.constant 1.000000e+00 : f32
    %125 = vector.broadcast %cst_45 : f32 to vector<1x256xf32>
    %126 = arith.addf %125, %124 : vector<1x256xf32>
    %127 = arith.divf %125, %126 : vector<1x256xf32>
    %128 = vector.extract_strided_slice %114 {offsets = [0, 256], sizes = [1, 256], strides = [1, 1]} : vector<1x768xf32> to vector<1x256xf32>
    %129 = vector.extract_strided_slice %119 {offsets = [0, 256], sizes = [1, 256], strides = [1, 1]} : vector<1x768xf32> to vector<1x256xf32>
    %130 = arith.addf %128, %129 : vector<1x256xf32>
    %131 = arith.negf %130 : vector<1x256xf32>
    %132 = math.exp %131 : vector<1x256xf32>
    %cst_46 = arith.constant 1.000000e+00 : f32
    %133 = vector.broadcast %cst_46 : f32 to vector<1x256xf32>
    %134 = arith.addf %133, %132 : vector<1x256xf32>
    %135 = arith.divf %133, %134 : vector<1x256xf32>
    %136 = vector.extract_strided_slice %114 {offsets = [0, 512], sizes = [1, 256], strides = [1, 1]} : vector<1x768xf32> to vector<1x256xf32>
    %137 = vector.extract_strided_slice %119 {offsets = [0, 512], sizes = [1, 256], strides = [1, 1]} : vector<1x768xf32> to vector<1x256xf32>
    %138 = arith.mulf %127, %137 : vector<1x256xf32>
    %139 = arith.addf %136, %138 : vector<1x256xf32>
    %140 = math.tanh %139 : vector<1x256xf32>
    %cst_47 = arith.constant 1.000000e+00 : f32
    %141 = vector.broadcast %cst_47 : f32 to vector<1x256xf32>
    %142 = arith.subf %141, %135 : vector<1x256xf32>
    %143 = arith.mulf %142, %140 : vector<1x256xf32>
    %144 = arith.mulf %135, %110 : vector<1x256xf32>
    %145 = arith.addf %143, %144 : vector<1x256xf32>
    %146 = arith.index_cast %c3_i32 : i32 to index
    %c0_48 = arith.constant 0 : index
    %147 = vector.load %arg7[%146, %c0_48] : memref<8x256xf32, #tpu.memory_space<vmem>>, vector<1x256xf32>
    tpu.vector_store %arg7[%146, %c0_48], %145 {strides = array<i32>} : memref<8x256xf32, #tpu.memory_space<vmem>>, vector<1x256xf32>,
    %c4_i32 = arith.constant 4 : i32
    %148 = arith.index_cast %c4_i32 : i32 to index
    %c0_49 = arith.constant 0 : index
    %149 = vector.load %arg8[%148, %c0_49] : memref<8x768xf32, #tpu.memory_space<vmem>>, vector<1x768xf32>
    %150 = arith.truncf %145 : vector<1x256xf32> to vector<1x256xbf16>
    %c0_50 = arith.constant 0 : index
    %c0_51 = arith.constant 0 : index
    %151 = vector.load %arg4[%c0_50, %c0_51] : memref<256x768xbf16, #tpu.memory_space<vmem>>, vector<256x768xbf16>
    %cst_52 = arith.constant dense<0.000000e+00> : vector<1x768xf32>
    %152 = tpu.matmul %150, %151, %cst_52 {dimension_numbers = #tpu.dot_dimension_numbers<[1], [0], [0], [1], [0, 0, 1, 1], [], []>} : vector<1x256xbf16>, vector<256x768xbf16>, vector<1x768xf32> -> vector<1x768xf32>
    %c0_53 = arith.constant 0 : index
    %c0_54 = arith.constant 0 : index
    %153 = vector.load %arg6[%c0_53, %c0_54] : memref<1x768xf32, #tpu.memory_space<vmem>>, vector<1x768xf32>
    %154 = arith.addf %152, %153 : vector<1x768xf32>
    %155 = vector.extract_strided_slice %149 {offsets = [0, 0], sizes = [1, 256], strides = [1, 1]} : vector<1x768xf32> to vector<1x256xf32>
    %156 = vector.extract_strided_slice %154 {offsets = [0, 0], sizes = [1, 256], strides = [1, 1]} : vector<1x768xf32> to vector<1x256xf32>
    %157 = arith.addf %155, %156 : vector<1x256xf32>
    %158 = arith.negf %157 : vector<1x256xf32>
    %159 = math.exp %158 : vector<1x256xf32>
    %cst_55 = arith.constant 1.000000e+00 : f32
    %160 = vector.broadcast %cst_55 : f32 to vector<1x256xf32>
    %161 = arith.addf %160, %159 : vector<1x256xf32>
    %162 = arith.divf %160, %161 : vector<1x256xf32>
    %163 = vector.extract_strided_slice %149 {offsets = [0, 256], sizes = [1, 256], strides = [1, 1]} : vector<1x768xf32> to vector<1x256xf32>
    %164 = vector.extract_strided_slice %154 {offsets = [0, 256], sizes = [1, 256], strides = [1, 1]} : vector<1x768xf32> to vector<1x256xf32>
    %165 = arith.addf %163, %164 : vector<1x256xf32>
    %166 = arith.negf %165 : vector<1x256xf32>
    %167 = math.exp %166 : vector<1x256xf32>
    %cst_56 = arith.constant 1.000000e+00 : f32
    %168 = vector.broadcast %cst_56 : f32 to vector<1x256xf32>
    %169 = arith.addf %168, %167 : vector<1x256xf32>
    %170 = arith.divf %168, %169 : vector<1x256xf32>
    %171 = vector.extract_strided_slice %149 {offsets = [0, 512], sizes = [1, 256], strides = [1, 1]} : vector<1x768xf32> to vector<1x256xf32>
    %172 = vector.extract_strided_slice %154 {offsets = [0, 512], sizes = [1, 256], strides = [1, 1]} : vector<1x768xf32> to vector<1x256xf32>
    %173 = arith.mulf %162, %172 : vector<1x256xf32>
    %174 = arith.addf %171, %173 : vector<1x256xf32>
    %175 = math.tanh %174 : vector<1x256xf32>
    %cst_57 = arith.constant 1.000000e+00 : f32
    %176 = vector.broadcast %cst_57 : f32 to vector<1x256xf32>
    %177 = arith.subf %176, %170 : vector<1x256xf32>
    %178 = arith.mulf %177, %175 : vector<1x256xf32>
    %179 = arith.mulf %170, %145 : vector<1x256xf32>
    %180 = arith.addf %178, %179 : vector<1x256xf32>
    %181 = arith.index_cast %c4_i32 : i32 to index
    %c0_58 = arith.constant 0 : index
    %182 = vector.load %arg7[%181, %c0_58] : memref<8x256xf32, #tpu.memory_space<vmem>>, vector<1x256xf32>
    tpu.vector_store %arg7[%181, %c0_58], %180 {strides = array<i32>} : memref<8x256xf32, #tpu.memory_space<vmem>>, vector<1x256xf32>,
    %c5_i32 = arith.constant 5 : i32
    %183 = arith.index_cast %c5_i32 : i32 to index
    %c0_59 = arith.constant 0 : index
    %184 = vector.load %arg8[%183, %c0_59] : memref<8x768xf32, #tpu.memory_space<vmem>>, vector<1x768xf32>
    %185 = arith.truncf %180 : vector<1x256xf32> to vector<1x256xbf16>
    %c0_60 = arith.constant 0 : index
    %c0_61 = arith.constant 0 : index
    %186 = vector.load %arg4[%c0_60, %c0_61] : memref<256x768xbf16, #tpu.memory_space<vmem>>, vector<256x768xbf16>
    %cst_62 = arith.constant dense<0.000000e+00> : vector<1x768xf32>
    %187 = tpu.matmul %185, %186, %cst_62 {dimension_numbers = #tpu.dot_dimension_numbers<[1], [0], [0], [1], [0, 0, 1, 1], [], []>} : vector<1x256xbf16>, vector<256x768xbf16>, vector<1x768xf32> -> vector<1x768xf32>
    %c0_63 = arith.constant 0 : index
    %c0_64 = arith.constant 0 : index
    %188 = vector.load %arg6[%c0_63, %c0_64] : memref<1x768xf32, #tpu.memory_space<vmem>>, vector<1x768xf32>
    %189 = arith.addf %187, %188 : vector<1x768xf32>
    %190 = vector.extract_strided_slice %184 {offsets = [0, 0], sizes = [1, 256], strides = [1, 1]} : vector<1x768xf32> to vector<1x256xf32>
    %191 = vector.extract_strided_slice %189 {offsets = [0, 0], sizes = [1, 256], strides = [1, 1]} : vector<1x768xf32> to vector<1x256xf32>
    %192 = arith.addf %190, %191 : vector<1x256xf32>
    %193 = arith.negf %192 : vector<1x256xf32>
    %194 = math.exp %193 : vector<1x256xf32>
    %cst_65 = arith.constant 1.000000e+00 : f32
    %195 = vector.broadcast %cst_65 : f32 to vector<1x256xf32>
    %196 = arith.addf %195, %194 : vector<1x256xf32>
    %197 = arith.divf %195, %196 : vector<1x256xf32>
    %198 = vector.extract_strided_slice %184 {offsets = [0, 256], sizes = [1, 256], strides = [1, 1]} : vector<1x768xf32> to vector<1x256xf32>
    %199 = vector.extract_strided_slice %189 {offsets = [0, 256], sizes = [1, 256], strides = [1, 1]} : vector<1x768xf32> to vector<1x256xf32>
    %200 = arith.addf %198, %199 : vector<1x256xf32>
    %201 = arith.negf %200 : vector<1x256xf32>
    %202 = math.exp %201 : vector<1x256xf32>
    %cst_66 = arith.constant 1.000000e+00 : f32
    %203 = vector.broadcast %cst_66 : f32 to vector<1x256xf32>
    %204 = arith.addf %203, %202 : vector<1x256xf32>
    %205 = arith.divf %203, %204 : vector<1x256xf32>
    %206 = vector.extract_strided_slice %184 {offsets = [0, 512], sizes = [1, 256], strides = [1, 1]} : vector<1x768xf32> to vector<1x256xf32>
    %207 = vector.extract_strided_slice %189 {offsets = [0, 512], sizes = [1, 256], strides = [1, 1]} : vector<1x768xf32> to vector<1x256xf32>
    %208 = arith.mulf %197, %207 : vector<1x256xf32>
    %209 = arith.addf %206, %208 : vector<1x256xf32>
    %210 = math.tanh %209 : vector<1x256xf32>
    %cst_67 = arith.constant 1.000000e+00 : f32
    %211 = vector.broadcast %cst_67 : f32 to vector<1x256xf32>
    %212 = arith.subf %211, %205 : vector<1x256xf32>
    %213 = arith.mulf %212, %210 : vector<1x256xf32>
    %214 = arith.mulf %205, %180 : vector<1x256xf32>
    %215 = arith.addf %213, %214 : vector<1x256xf32>
    %216 = arith.index_cast %c5_i32 : i32 to index
    %c0_68 = arith.constant 0 : index
    %217 = vector.load %arg7[%216, %c0_68] : memref<8x256xf32, #tpu.memory_space<vmem>>, vector<1x256xf32>
    tpu.vector_store %arg7[%216, %c0_68], %215 {strides = array<i32>} : memref<8x256xf32, #tpu.memory_space<vmem>>, vector<1x256xf32>,
    %c6_i32 = arith.constant 6 : i32
    %218 = arith.index_cast %c6_i32 : i32 to index
    %c0_69 = arith.constant 0 : index
    %219 = vector.load %arg8[%218, %c0_69] : memref<8x768xf32, #tpu.memory_space<vmem>>, vector<1x768xf32>
    %220 = arith.truncf %215 : vector<1x256xf32> to vector<1x256xbf16>
    %c0_70 = arith.constant 0 : index
    %c0_71 = arith.constant 0 : index
    %221 = vector.load %arg4[%c0_70, %c0_71] : memref<256x768xbf16, #tpu.memory_space<vmem>>, vector<256x768xbf16>
    %cst_72 = arith.constant dense<0.000000e+00> : vector<1x768xf32>
    %222 = tpu.matmul %220, %221, %cst_72 {dimension_numbers = #tpu.dot_dimension_numbers<[1], [0], [0], [1], [0, 0, 1, 1], [], []>} : vector<1x256xbf16>, vector<256x768xbf16>, vector<1x768xf32> -> vector<1x768xf32>
    %c0_73 = arith.constant 0 : index
    %c0_74 = arith.constant 0 : index
    %223 = vector.load %arg6[%c0_73, %c0_74] : memref<1x768xf32, #tpu.memory_space<vmem>>, vector<1x768xf32>
    %224 = arith.addf %222, %223 : vector<1x768xf32>
    %225 = vector.extract_strided_slice %219 {offsets = [0, 0], sizes = [1, 256], strides = [1, 1]} : vector<1x768xf32> to vector<1x256xf32>
    %226 = vector.extract_strided_slice %224 {offsets = [0, 0], sizes = [1, 256], strides = [1, 1]} : vector<1x768xf32> to vector<1x256xf32>
    %227 = arith.addf %225, %226 : vector<1x256xf32>
    %228 = arith.negf %227 : vector<1x256xf32>
    %229 = math.exp %228 : vector<1x256xf32>
    %cst_75 = arith.constant 1.000000e+00 : f32
    %230 = vector.broadcast %cst_75 : f32 to vector<1x256xf32>
    %231 = arith.addf %230, %229 : vector<1x256xf32>
    %232 = arith.divf %230, %231 : vector<1x256xf32>
    %233 = vector.extract_strided_slice %219 {offsets = [0, 256], sizes = [1, 256], strides = [1, 1]} : vector<1x768xf32> to vector<1x256xf32>
    %234 = vector.extract_strided_slice %224 {offsets = [0, 256], sizes = [1, 256], strides = [1, 1]} : vector<1x768xf32> to vector<1x256xf32>
    %235 = arith.addf %233, %234 : vector<1x256xf32>
    %236 = arith.negf %235 : vector<1x256xf32>
    %237 = math.exp %236 : vector<1x256xf32>
    %cst_76 = arith.constant 1.000000e+00 : f32
    %238 = vector.broadcast %cst_76 : f32 to vector<1x256xf32>
    %239 = arith.addf %238, %237 : vector<1x256xf32>
    %240 = arith.divf %238, %239 : vector<1x256xf32>
    %241 = vector.extract_strided_slice %219 {offsets = [0, 512], sizes = [1, 256], strides = [1, 1]} : vector<1x768xf32> to vector<1x256xf32>
    %242 = vector.extract_strided_slice %224 {offsets = [0, 512], sizes = [1, 256], strides = [1, 1]} : vector<1x768xf32> to vector<1x256xf32>
    %243 = arith.mulf %232, %242 : vector<1x256xf32>
    %244 = arith.addf %241, %243 : vector<1x256xf32>
    %245 = math.tanh %244 : vector<1x256xf32>
    %cst_77 = arith.constant 1.000000e+00 : f32
    %246 = vector.broadcast %cst_77 : f32 to vector<1x256xf32>
    %247 = arith.subf %246, %240 : vector<1x256xf32>
    %248 = arith.mulf %247, %245 : vector<1x256xf32>
    %249 = arith.mulf %240, %215 : vector<1x256xf32>
    %250 = arith.addf %248, %249 : vector<1x256xf32>
    %251 = arith.index_cast %c6_i32 : i32 to index
    %c0_78 = arith.constant 0 : index
    %252 = vector.load %arg7[%251, %c0_78] : memref<8x256xf32, #tpu.memory_space<vmem>>, vector<1x256xf32>
    tpu.vector_store %arg7[%251, %c0_78], %250 {strides = array<i32>} : memref<8x256xf32, #tpu.memory_space<vmem>>, vector<1x256xf32>,
    %c7_i32 = arith.constant 7 : i32
    %253 = arith.index_cast %c7_i32 : i32 to index
    %c0_79 = arith.constant 0 : index
    %254 = vector.load %arg8[%253, %c0_79] : memref<8x768xf32, #tpu.memory_space<vmem>>, vector<1x768xf32>
    %255 = arith.truncf %250 : vector<1x256xf32> to vector<1x256xbf16>
    %c0_80 = arith.constant 0 : index
    %c0_81 = arith.constant 0 : index
    %256 = vector.load %arg4[%c0_80, %c0_81] : memref<256x768xbf16, #tpu.memory_space<vmem>>, vector<256x768xbf16>
    %cst_82 = arith.constant dense<0.000000e+00> : vector<1x768xf32>
    %257 = tpu.matmul %255, %256, %cst_82 {dimension_numbers = #tpu.dot_dimension_numbers<[1], [0], [0], [1], [0, 0, 1, 1], [], []>} : vector<1x256xbf16>, vector<256x768xbf16>, vector<1x768xf32> -> vector<1x768xf32>
    %c0_83 = arith.constant 0 : index
    %c0_84 = arith.constant 0 : index
    %258 = vector.load %arg6[%c0_83, %c0_84] : memref<1x768xf32, #tpu.memory_space<vmem>>, vector<1x768xf32>
    %259 = arith.addf %257, %258 : vector<1x768xf32>
    %260 = vector.extract_strided_slice %254 {offsets = [0, 0], sizes = [1, 256], strides = [1, 1]} : vector<1x768xf32> to vector<1x256xf32>
    %261 = vector.extract_strided_slice %259 {offsets = [0, 0], sizes = [1, 256], strides = [1, 1]} : vector<1x768xf32> to vector<1x256xf32>
    %262 = arith.addf %260, %261 : vector<1x256xf32>
    %263 = arith.negf %262 : vector<1x256xf32>
    %264 = math.exp %263 : vector<1x256xf32>
    %cst_85 = arith.constant 1.000000e+00 : f32
    %265 = vector.broadcast %cst_85 : f32 to vector<1x256xf32>
    %266 = arith.addf %265, %264 : vector<1x256xf32>
    %267 = arith.divf %265, %266 : vector<1x256xf32>
    %268 = vector.extract_strided_slice %254 {offsets = [0, 256], sizes = [1, 256], strides = [1, 1]} : vector<1x768xf32> to vector<1x256xf32>
    %269 = vector.extract_strided_slice %259 {offsets = [0, 256], sizes = [1, 256], strides = [1, 1]} : vector<1x768xf32> to vector<1x256xf32>
    %270 = arith.addf %268, %269 : vector<1x256xf32>
    %271 = arith.negf %270 : vector<1x256xf32>
    %272 = math.exp %271 : vector<1x256xf32>
    %cst_86 = arith.constant 1.000000e+00 : f32
    %273 = vector.broadcast %cst_86 : f32 to vector<1x256xf32>
    %274 = arith.addf %273, %272 : vector<1x256xf32>
    %275 = arith.divf %273, %274 : vector<1x256xf32>
    %276 = vector.extract_strided_slice %254 {offsets = [0, 512], sizes = [1, 256], strides = [1, 1]} : vector<1x768xf32> to vector<1x256xf32>
    %277 = vector.extract_strided_slice %259 {offsets = [0, 512], sizes = [1, 256], strides = [1, 1]} : vector<1x768xf32> to vector<1x256xf32>
    %278 = arith.mulf %267, %277 : vector<1x256xf32>
    %279 = arith.addf %276, %278 : vector<1x256xf32>
    %280 = math.tanh %279 : vector<1x256xf32>
    %cst_87 = arith.constant 1.000000e+00 : f32
    %281 = vector.broadcast %cst_87 : f32 to vector<1x256xf32>
    %282 = arith.subf %281, %275 : vector<1x256xf32>
    %283 = arith.mulf %282, %280 : vector<1x256xf32>
    %284 = arith.mulf %275, %250 : vector<1x256xf32>
    %285 = arith.addf %283, %284 : vector<1x256xf32>
    %286 = arith.index_cast %c7_i32 : i32 to index
    %c0_88 = arith.constant 0 : index
    %287 = vector.load %arg7[%286, %c0_88] : memref<8x256xf32, #tpu.memory_space<vmem>>, vector<1x256xf32>
    tpu.vector_store %arg7[%286, %c0_88], %285 {strides = array<i32>} : memref<8x256xf32, #tpu.memory_space<vmem>>, vector<1x256xf32>,
    %c8_i32 = arith.constant 8 : i32
    return
  }
  func.func @transform_0(%arg0: i32) -> (i32, i32) {
    %c0_i32 = arith.constant 0 : i32
    %c0_i32_0 = arith.constant 0 : i32
    %c0_i32_1 = arith.constant 0 : i32
    return %c0_i32, %c0_i32_0 : i32, i32
  }
  func.func @transform_1(%arg0: i32) -> (i32, i32) {
    %c0_i32 = arith.constant 0 : i32
    %c0_i32_0 = arith.constant 0 : i32
    %c0_i32_1 = arith.constant 0 : i32
    return %c0_i32, %c0_i32_0 : i32, i32
  }
  func.func @transform_2(%arg0: i32) -> (i32, i32) {
    %c0_i32 = arith.constant 0 : i32
    %c0_i32_0 = arith.constant 0 : i32
    %c0_i32_1 = arith.constant 0 : i32
    return %c0_i32, %c0_i32_0 : i32, i32
  }
  func.func @transform_3(%arg0: i32) -> (i32, i32) {
    %c0_i32 = arith.constant 0 : i32
    %c0_i32_0 = arith.constant 0 : i32
    %c0_i32_1 = arith.constant 0 : i32
    return %c0_i32, %c0_i32_0 : i32, i32
  }
  func.func @transform_4(%arg0: i32) -> (i32, i32) {
    %c0_i32 = arith.constant 0 : i32
    %c0_i32_0 = arith.constant 0 : i32
    %c0_i32_1 = arith.constant 0 : i32
    return %c0_i32, %c0_i32_0 : i32, i32
  }
  func.func @transform_5(%arg0: i32) -> (i32, i32) {
    %c0_i32 = arith.constant 0 : i32
    %c0_i32_0 = arith.constant 0 : i32
    %c0_i32_1 = arith.constant 0 : i32
    return %c0_i32, %c0_i32_0 : i32, i32
  }
  func.func @transform_6(%arg0: i32) -> (i32, i32) {
    %c0_i32 = arith.constant 0 : i32
    %c0_i32_0 = arith.constant 0 : i32
    %c0_i32_1 = arith.constant 0 : i32
    return %c0_i32, %c0_i32_0 : i32, i32
  }
}

</mosaic_0001>

<llo_original>
// kernel: tpu_custom_call.1
$region0: #{tpu_custom_call.1}
  #allocation0 [shape = 'u32[]', space=smem, size = 0x4, offset = 0x4, fixed_abs, tag = 'smem constant byte address 0x4 - core index']
  #allocation1 [shape = 'u32[72,128]{1,0:T(1,128)}', space=vmem, size = 0x9000, scoped, tag = 'internal scratch']
  #allocation2 [shape = 'f32[8,768]{1,0:T(8,128)}', space=vmem, size = 0x6000, scoped, tag = 'scratch operand']
  %s0 = inlined_call_operand.hbm [shape: bf16[8,256], index: 0, kind: input, shape index: {}]
  %s1 = inlined_call_operand.hbm [shape: f32[1,256], index: 1, kind: input, shape index: {}]
  %s2 = inlined_call_operand.hbm [shape: bf16[256,768], index: 2, kind: input, shape index: {}]
  %s3 = inlined_call_operand.hbm [shape: bf16[256,768], index: 3, kind: input, shape index: {}]
  %s4 = inlined_call_operand.hbm [shape: f32[1,768], index: 4, kind: input, shape index: {}]
  %s5 = inlined_call_operand.hbm [shape: f32[1,768], index: 5, kind: input, shape index: {}]
  %s6 = inlined_call_operand.hbm [shape: f32[8,256], index: 6, kind: output, shape index: {}]
  %s7 = sld [smem:[#allocation0]]
  $region58: #{tpu_custom_call.1} parent=0
    _
  %s9 = ssub.s32 1, %s7
  %s10 = scalar_select 0, %s9, %s7
  $region1: #{tpu_custom_call.1} parent=0
    #allocation3 [shape = 'u8[4096]{0}', space=vmem, size = 0x1000, scoped, tag = 'input window, operand 0, single buffered']
    #allocation4 [shape = 's32[1]{0}', space=sflag, size = 0x4, scoped, tag = 'scoped memory for tpu_custom_call.1']
    #allocation5 [shape = 's32[1]{0}', space=sflag, size = 0x4, scoped, tag = 'scoped memory for tpu_custom_call.1']
    #allocation6 [shape = 'u8[1024]{0}', space=vmem, size = 0x400, scoped, tag = 'input window, operand 1, single buffered']
    #allocation7 [shape = 's32[1]{0}', space=sflag, size = 0x4, scoped, tag = 'scoped memory for tpu_custom_call.1']
    #allocation8 [shape = 'u8[393216]{0}', space=vmem, size = 0x60000, scoped, tag = 'input window, operand 2, single buffered']
    #allocation9 [shape = 'u8[393216]{0}', space=vmem, size = 0x60000, scoped, tag = 'input window, operand 3, single buffered']
    #allocation10 [shape = 's32[1]{0}', space=sflag, size = 0x4, scoped, tag = 'scoped memory for tpu_custom_call.1']
    #allocation11 [shape = 'u8[3072]{0}', space=vmem, size = 0xc00, scoped, tag = 'input window, operand 4, single buffered']
    #allocation12 [shape = 'u8[3072]{0}', space=vmem, size = 0xc00, scoped, tag = 'input window, operand 5, single buffered']
    #allocation13 [shape = 's32[1]{0}', space=sflag, size = 0x4, scoped, tag = 'scoped memory for tpu_custom_call.1']
    #allocation14 [shape = 'u8[8192]{0}', space=vmem, size = 0x2000, scoped, tag = 'output window, operand 0, single buffered']
    %11 = vsyncpa [#allocation4], 0
    %12 = vsyncpa [#allocation7], 0
    %13 = vsyncpa [#allocation10], 0
    %14 = vsyncpa [#allocation13], 0
    %15 = vsyncpa [#allocation5], 0
    // Predicated region
    $region2: #{tpu_custom_call.1} parent=1 // pred_check
      _
    $region3: #{tpu_custom_call.1} parent=1 // pred_check_branch
      %17 = sbr.rel (0) target = $region5
    $region4: #{tpu_custom_call.1} parent=1 // pred_region
      %19 = vsyncadd [#allocation4], 0
      %s21 = sshll.u32 %s0, 4
      %s22 = int_to_ptr.hbm [resolvable:$true] %s21
      %s23 = sshll.u32 [#allocation3], 4
      %s24 = int_to_ptr.vmem [resolvable:$true] %s23
      %26 = dma.hbm_to_vmem [thread:$0]  %s22, 128, %s24, [#allocation4]
    $region5: #{tpu_custom_call.1} parent=1 // pred_fallthru
      _
    // Predicated region
    $region6: #{tpu_custom_call.1} parent=1 // pred_check
      _
    $region7: #{tpu_custom_call.1} parent=1 // pred_check_branch
      %28 = sbr.rel (0) target = $region9
    $region8: #{tpu_custom_call.1} parent=1 // pred_region
      %30 = vsyncadd [#allocation7], 0
      %s32 = sshll.u32 %s1, 4
      %s33 = int_to_ptr.hbm [resolvable:$true] %s32
      %s34 = sshll.u32 [#allocation6], 4
      %s35 = int_to_ptr.vmem [resolvable:$true] %s34
      %37 = dma.hbm_to_vmem [thread:$0]  %s33, 32, %s35, [#allocation7]
    $region9: #{tpu_custom_call.1} parent=1 // pred_fallthru
      _
    // Predicated region
    $region10: #{tpu_custom_call.1} parent=1 // pred_check
      _
    $region11: #{tpu_custom_call.1} parent=1 // pred_check_branch
      %39 = sbr.rel (0) target = $region13
    $region12: #{tpu_custom_call.1} parent=1 // pred_region
      %41 = vsyncadd [#allocation7], 0
      %s42 = sshll.u32 %s2, 4
      %s43 = int_to_ptr.hbm [resolvable:$true] %s42
      %s44 = sshll.u32 [#allocation8], 4
      %s45 = int_to_ptr.vmem [resolvable:$true] %s44
      %50 = dma.hbm_to_vmem [thread:$0]  %s43, 12288, %s45, [#allocation7], 384, 384, 24
    $region13: #{tpu_custom_call.1} parent=1 // pred_fallthru
      _
    // Predicated region
    $region14: #{tpu_custom_call.1} parent=1 // pred_check
      _
    $region15: #{tpu_custom_call.1} parent=1 // pred_check_branch
      %52 = sbr.rel (0) target = $region17
    $region16: #{tpu_custom_call.1} parent=1 // pred_region
      %54 = vsyncadd [#allocation10], 0
      %s55 = sshll.u32 %s3, 4
      %s56 = int_to_ptr.hbm [resolvable:$true] %s55
      %s57 = sshll.u32 [#allocation9], 4
      %s58 = int_to_ptr.vmem [resolvable:$true] %s57
      %63 = dma.hbm_to_vmem [thread:$0]  %s56, 12288, %s58, [#allocation10], 384, 384, 24
    $region17: #{tpu_custom_call.1} parent=1 // pred_fallthru
      _
    // Predicated region
    $region18: #{tpu_custom_call.1} parent=1 // pred_check
      _
    $region19: #{tpu_custom_call.1} parent=1 // pred_check_branch
      %65 = sbr.rel (0) target = $region21
    $region20: #{tpu_custom_call.1} parent=1 // pred_region
      %67 = vsyncadd [#allocation10], 0
      %s69 = sshll.u32 %s4, 4
      %s70 = int_to_ptr.hbm [resolvable:$true] %s69
      %s71 = sshll.u32 [#allocation11], 4
      %s72 = int_to_ptr.vmem [resolvable:$true] %s71
      %74 = dma.hbm_to_vmem [thread:$0]  %s70, 96, %s72, [#allocation10]
    $region21: #{tpu_custom_call.1} parent=1 // pred_fallthru
      _
    // Predicated region
    $region22: #{tpu_custom_call.1} parent=1 // pred_check
      _
    $region23: #{tpu_custom_call.1} parent=1 // pred_check_branch
      %76 = sbr.rel (0) target = $region25
    $region24: #{tpu_custom_call.1} parent=1 // pred_region
      %78 = vsyncadd [#allocation13], 0
      %s80 = sshll.u32 %s5, 4
      %s81 = int_to_ptr.hbm [resolvable:$true] %s80
      %s82 = sshll.u32 [#allocation12], 4
      %s83 = int_to_ptr.vmem [resolvable:$true] %s82
      %85 = dma.hbm_to_vmem [thread:$0]  %s81, 96, %s83, [#allocation13]
    $region25: #{tpu_custom_call.1} parent=1 // pred_fallthru
      _
    // Predicated region
    $region26: #{tpu_custom_call.1} parent=1 // pred_check
      _
    $region27: #{tpu_custom_call.1} parent=1 // pred_check_branch
      %87 = sbr.rel (0) target = $region29
    $region28: #{tpu_custom_call.1} parent=1 // pred_region
      %89 = dma.done [#allocation4], 128
    $region29: #{tpu_custom_call.1} parent=1 // pred_fallthru
      _
    // Predicated region
    $region30: #{tpu_custom_call.1} parent=1 // pred_check
      _
    $region31: #{tpu_custom_call.1} parent=1 // pred_check_branch
      %91 = sbr.rel (0) target = $region33
    $region32: #{tpu_custom_call.1} parent=1 // pred_region
      %93 = dma.done [#allocation7], 32
    $region33: #{tpu_custom_call.1} parent=1 // pred_fallthru
      _
    // Predicated region
    $region34: #{tpu_custom_call.1} parent=1 // pred_check
      _
    $region35: #{tpu_custom_call.1} parent=1 // pred_check_branch
      %95 = sbr.rel (0) target = $region37
    $region36: #{tpu_custom_call.1} parent=1 // pred_region
      %97 = dma.done [#allocation7], 12288
    $region37: #{tpu_custom_call.1} parent=1 // pred_fallthru
      _
    // Predicated region
    $region38: #{tpu_custom_call.1} parent=1 // pred_check
      _
    $region39: #{tpu_custom_call.1} parent=1 // pred_check_branch
      %99 = sbr.rel (0) target = $region41
    $region40: #{tpu_custom_call.1} parent=1 // pred_region
      %101 = dma.done [#allocation10], 12288
    $region41: #{tpu_custom_call.1} parent=1 // pred_fallthru
      _
    // Predicated region
    $region42: #{tpu_custom_call.1} parent=1 // pred_check
      _
    $region43: #{tpu_custom_call.1} parent=1 // pred_check_branch
      %103 = sbr.rel (0) target = $region45
    $region44: #{tpu_custom_call.1} parent=1 // pred_region
      %105 = dma.done [#allocation10], 96
    $region45: #{tpu_custom_call.1} parent=1 // pred_fallthru
      _
    // Predicated region
    $region46: #{tpu_custom_call.1} parent=1 // pred_check
      _
    $region47: #{tpu_custom_call.1} parent=1 // pred_check_branch
      %107 = sbr.rel (0) target = $region49
    $region48: #{tpu_custom_call.1} parent=1 // pred_region
      %109 = dma.done [#allocation13], 96
    $region49: #{tpu_custom_call.1} parent=1 // pred_fallthru
      _
    %v110 = vld [vmem:[#allocation3] sm:$0xff]
    %v111 = vld [vmem:[#allocation8] sm:$0xff]
    %v112 = vld [vmem:[#allocation8 + $0x8] sm:$0xff]
    %v113 = vld [vmem:[#allocation8 + $0x10] sm:$0xff]
    %v114 = vld [vmem:[#allocation8 + $0x18] sm:$0xff]
    %v115 = vld [vmem:[#allocation8 + $0x20] sm:$0xff]
    %v116 = vld [vmem:[#allocation8 + $0x28] sm:$0xff]
    %v117 = vld [vmem:[#allocation8 + $0x30] sm:$0xff]
    %v118 = vld [vmem:[#allocation8 + $0x38] sm:$0xff]
    %v119 = vld [vmem:[#allocation8 + $0x40] sm:$0xff]
    %v120 = vld [vmem:[#allocation8 + $0x48] sm:$0xff]
    %v121 = vld [vmem:[#allocation8 + $0x50] sm:$0xff]
    %v122 = vld [vmem:[#allocation8 + $0x58] sm:$0xff]
    %v123 = vld [vmem:[#allocation8 + $0x60] sm:$0xff]
    %v124 = vld [vmem:[#allocation8 + $0x68] sm:$0xff]
    %v125 = vld [vmem:[#allocation8 + $0x70] sm:$0xff]
    %v126 = vld [vmem:[#allocation8 + $0x78] sm:$0xff]
    %v127 = vld [vmem:[#allocation8 + $0x80] sm:$0xff]
    %v128 = vld [vmem:[#allocation8 + $0x88] sm:$0xff]
    %v129 = vld [vmem:[#allocation8 + $0x90] sm:$0xff]
    %v130 = vld [vmem:[#allocation8 + $0x98] sm:$0xff]
    %v131 = vld [vmem:[#allocation8 + $0xa0] sm:$0xff]
    %v132 = vld [vmem:[#allocation8 + $0xa8] sm:$0xff]
    %v133 = vld [vmem:[#allocation8 + $0xb0] sm:$0xff]
    %v134 = vld [vmem:[#allocation8 + $0xb8] sm:$0xff]
    %v135 = vld [vmem:[#allocation8 + $0xc0] sm:$0xff]
    %v136 = vld [vmem:[#allocation8 + $0xc8] sm:$0xff]
    %v137 = vld [vmem:[#allocation8 + $0xd0] sm:$0xff]
    %v138 = vld [vmem:[#allocation8 + $0xd8] sm:$0xff]
    %v139 = vld [vmem:[#allocation8 + $0xe0] sm:$0xff]
    %v140 = vld [vmem:[#allocation8 + $0xe8] sm:$0xff]
    %v141 = vld [vmem:[#allocation8 + $0xf0] sm:$0xff]
    %v142 = vld [vmem:[#allocation8 + $0xf8] sm:$0xff]
    %v143 = vld [vmem:[#allocation8 + $0x100] sm:$0xff]
    %v144 = vld [vmem:[#allocation8 + $0x108] sm:$0xff]
    %v145 = vld [vmem:[#allocation8 + $0x110] sm:$0xff]
    %v146 = vld [vmem:[#allocation8 + $0x118] sm:$0xff]
    %v147 = vld [vmem:[#allocation8 + $0x120] sm:$0xff]
    %v148 = vld [vmem:[#allocation8 + $0x128] sm:$0xff]
    %v149 = vld [vmem:[#allocation8 + $0x130] sm:$0xff]
    %v150 = vld [vmem:[#allocation8 + $0x138] sm:$0xff]
    %v151 = vld [vmem:[#allocation8 + $0x140] sm:$0xff]
    %v152 = vld [vmem:[#allocation8 + $0x148] sm:$0xff]
    %v153 = vld [vmem:[#allocation8 + $0x150] sm:$0xff]
    %v154 = vld [vmem:[#allocation8 + $0x158] sm:$0xff]
    %v155 = vld [vmem:[#allocation8 + $0x160] sm:$0xff]
    %v156 = vld [vmem:[#allocation8 + $0x168] sm:$0xff]
    %v157 = vld [vmem:[#allocation8 + $0x170] sm:$0xff]
    %v158 = vld [vmem:[#allocation8 + $0x178] sm:$0xff]
    %v159 = vld [vmem:[#allocation8 + $0x180] sm:$0xff]
    %v160 = vld [vmem:[#allocation8 + $0x188] sm:$0xff]
    %v161 = vld [vmem:[#allocation8 + $0x190] sm:$0xff]
    %v162 = vld [vmem:[#allocation8 + $0x198] sm:$0xff]
    %v163 = vld [vmem:[#allocation8 + $0x1a0] sm:$0xff]
    %v164 = vld [vmem:[#allocation8 + $0x1a8] sm:$0xff]
    %v165 = vld [vmem:[#allocation8 + $0x1b0] sm:$0xff]
    %v166 = vld [vmem:[#allocation8 + $0x1b8] sm:$0xff]
    %v167 = vld [vmem:[#allocation8 + $0x1c0] sm:$0xff]
    %v168 = vld [vmem:[#allocation8 + $0x1c8] sm:$0xff]
    %v169 = vld [vmem:[#allocation8 + $0x1d0] sm:$0xff]
    %v170 = vld [vmem:[#allocation8 + $0x1d8] sm:$0xff]
    %v171 = vld [vmem:[#allocation8 + $0x1e0] sm:$0xff]
    %v172 = vld [vmem:[#allocation8 + $0x1e8] sm:$0xff]
    %v173 = vld [vmem:[#allocation8 + $0x1f0] sm:$0xff]
    %v174 = vld [vmem:[#allocation8 + $0x1f8] sm:$0xff]
    %v175 = vld [vmem:[#allocation8 + $0x200] sm:$0xff]
    %v176 = vld [vmem:[#allocation8 + $0x208] sm:$0xff]
    %v177 = vld [vmem:[#allocation8 + $0x210] sm:$0xff]
    %v178 = vld [vmem:[#allocation8 + $0x218] sm:$0xff]
    %v179 = vld [vmem:[#allocation8 + $0x220] sm:$0xff]
    %v180 = vld [vmem:[#allocation8 + $0x228] sm:$0xff]
    %v181 = vld [vmem:[#allocation8 + $0x230] sm:$0xff]
    %v182 = vld [vmem:[#allocation8 + $0x238] sm:$0xff]
    %v183 = vld [vmem:[#allocation8 + $0x240] sm:$0xff]
    %v184 = vld [vmem:[#allocation8 + $0x248] sm:$0xff]
    %v185 = vld [vmem:[#allocation8 + $0x250] sm:$0xff]
    %v186 = vld [vmem:[#allocation8 + $0x258] sm:$0xff]
    %v187 = vld [vmem:[#allocation8 + $0x260] sm:$0xff]
    %v188 = vld [vmem:[#allocation8 + $0x268] sm:$0xff]
    %v189 = vld [vmem:[#allocation8 + $0x270] sm:$0xff]
    %v190 = vld [vmem:[#allocation8 + $0x278] sm:$0xff]
    %v191 = vld [vmem:[#allocation8 + $0x280] sm:$0xff]
    %v192 = vld [vmem:[#allocation8 + $0x288] sm:$0xff]
    %v193 = vld [vmem:[#allocation8 + $0x290] sm:$0xff]
    %v194 = vld [vmem:[#allocation8 + $0x298] sm:$0xff]
    %v195 = vld [vmem:[#allocation8 + $0x2a0] sm:$0xff]
    %v196 = vld [vmem:[#allocation8 + $0x2a8] sm:$0xff]
    %v197 = vld [vmem:[#allocation8 + $0x2b0] sm:$0xff]
    %v198 = vld [vmem:[#allocation8 + $0x2b8] sm:$0xff]
    %v199 = vld [vmem:[#allocation8 + $0x2c0] sm:$0xff]
    %v200 = vld [vmem:[#allocation8 + $0x2c8] sm:$0xff]
    %v201 = vld [vmem:[#allocation8 + $0x2d0] sm:$0xff]
    %v202 = vld [vmem:[#allocation8 + $0x2d8] sm:$0xff]
    %v203 = vld [vmem:[#allocation8 + $0x2e0] sm:$0xff]
    %v204 = vld [vmem:[#allocation8 + $0x2e8] sm:$0xff]
    %v205 = vld [vmem:[#allocation8 + $0x2f0] sm:$0xff]
    %v206 = vld [vmem:[#allocation8 + $0x2f8] sm:$0xff]
    %v207 = vld [vmem:[#allocation11] sm:$0x3f]
    %v209 = vperm.slane %v207, 0
    %v210 = vperm.slane %v207, 1
    %v211 = vperm.slane %v207, 2
    %v212 = vperm.slane %v207, 3
    %v213 = vperm.slane %v207, 4
    %v214 = vperm.slane %v207, 5
    %v222 = vunpack.c.l.b16 %v110
    %v223 = vunpack.c.h.b16 %v110
    %v224 = vpack.c.b16 %v222, %v222
    %v225 = vpack.c.b16 %v223, %v223
    %v324 = vunpack.c.l.b16 %v111
    %v325 = vunpack.c.h.b16 %v111
    %v326 = vunpack.c.l.b16 %v112
    %v327 = vunpack.c.h.b16 %v112
    %v328 = vunpack.c.l.b16 %v113
    %v329 = vunpack.c.h.b16 %v113
    %v330 = vunpack.c.l.b16 %v114
    %v331 = vunpack.c.h.b16 %v114
    %v332 = vunpack.c.l.b16 %v115
    %v333 = vunpack.c.h.b16 %v115
    %v334 = vunpack.c.l.b16 %v116
    %v335 = vunpack.c.h.b16 %v116
    %v336 = vunpack.c.l.b16 %v117
    %v337 = vunpack.c.h.b16 %v117
    %v338 = vunpack.c.l.b16 %v118
    %v339 = vunpack.c.h.b16 %v118
    %v340 = vunpack.c.l.b16 %v119
    %v341 = vunpack.c.h.b16 %v119
    %v342 = vunpack.c.l.b16 %v120
    %v343 = vunpack.c.h.b16 %v120
    %v344 = vunpack.c.l.b16 %v121
    %v345 = vunpack.c.h.b16 %v121
    %v346 = vunpack.c.l.b16 %v122
    %v347 = vunpack.c.h.b16 %v122
    %v348 = vunpack.c.l.b16 %v123
    %v349 = vunpack.c.h.b16 %v123
    %v350 = vunpack.c.l.b16 %v124
    %v351 = vunpack.c.h.b16 %v124
    %v352 = vunpack.c.l.b16 %v125
    %v353 = vunpack.c.h.b16 %v125
    %v354 = vunpack.c.l.b16 %v126
    %v355 = vunpack.c.h.b16 %v126
    %v356 = vunpack.c.l.b16 %v127
    %v357 = vunpack.c.h.b16 %v127
    %v358 = vunpack.c.l.b16 %v128
    %v359 = vunpack.c.h.b16 %v128
    %v360 = vunpack.c.l.b16 %v129
    %v361 = vunpack.c.h.b16 %v129
    %v362 = vunpack.c.l.b16 %v130
    %v363 = vunpack.c.h.b16 %v130
    %v364 = vunpack.c.l.b16 %v131
    %v365 = vunpack.c.h.b16 %v131
    %v366 = vunpack.c.l.b16 %v132
    %v367 = vunpack.c.h.b16 %v132
    %v368 = vunpack.c.l.b16 %v133
    %v369 = vunpack.c.h.b16 %v133
    %v370 = vunpack.c.l.b16 %v134
    %v371 = vunpack.c.h.b16 %v134
    %v372 = vunpack.c.l.b16 %v135
    %v373 = vunpack.c.h.b16 %v135
    %v374 = vunpack.c.l.b16 %v136
    %v375 = vunpack.c.h.b16 %v136
    %v376 = vunpack.c.l.b16 %v137
    %v377 = vunpack.c.h.b16 %v137
    %v378 = vunpack.c.l.b16 %v138
    %v379 = vunpack.c.h.b16 %v138
    %v380 = vunpack.c.l.b16 %v139
    %v381 = vunpack.c.h.b16 %v139
    %v382 = vunpack.c.l.b16 %v140
    %v383 = vunpack.c.h.b16 %v140
    %v384 = vunpack.c.l.b16 %v141
    %v385 = vunpack.c.h.b16 %v141
    %v386 = vunpack.c.l.b16 %v142
    %v387 = vunpack.c.h.b16 %v142
    %v388 = vunpack.c.l.b16 %v143
    %v389 = vunpack.c.h.b16 %v143
    %v390 = vunpack.c.l.b16 %v144
    %v391 = vunpack.c.h.b16 %v144
    %v392 = vunpack.c.l.b16 %v145
    %v393 = vunpack.c.h.b16 %v145
    %v394 = vunpack.c.l.b16 %v146
    %v395 = vunpack.c.h.b16 %v146
    %v396 = vunpack.c.l.b16 %v147
    %v397 = vunpack.c.h.b16 %v147
    %v398 = vunpack.c.l.b16 %v148
    %v399 = vunpack.c.h.b16 %v148
    %v400 = vunpack.c.l.b16 %v149
    %v401 = vunpack.c.h.b16 %v149
    %v402 = vunpack.c.l.b16 %v150
    %v403 = vunpack.c.h.b16 %v150
    %v404 = vunpack.c.l.b16 %v151
    %v405 = vunpack.c.h.b16 %v151
    %v406 = vunpack.c.l.b16 %v152
    %v407 = vunpack.c.h.b16 %v152
    %v408 = vunpack.c.l.b16 %v153
    %v409 = vunpack.c.h.b16 %v153
    %v410 = vunpack.c.l.b16 %v154
    %v411 = vunpack.c.h.b16 %v154
    %v412 = vunpack.c.l.b16 %v155
    %v413 = vunpack.c.h.b16 %v155
    %v414 = vunpack.c.l.b16 %v156
    %v415 = vunpack.c.h.b16 %v156
    %v416 = vunpack.c.l.b16 %v157
    %v417 = vunpack.c.h.b16 %v157
    %v418 = vunpack.c.l.b16 %v158
    %v419 = vunpack.c.h.b16 %v158
    %v420 = vunpack.c.l.b16 %v159
    %v421 = vunpack.c.h.b16 %v159
    %v422 = vunpack.c.l.b16 %v160
    %v423 = vunpack.c.h.b16 %v160
    %v424 = vunpack.c.l.b16 %v161
    %v425 = vunpack.c.h.b16 %v161
    %v426 = vunpack.c.l.b16 %v162
    %v427 = vunpack.c.h.b16 %v162
    %v428 = vunpack.c.l.b16 %v163
    %v429 = vunpack.c.h.b16 %v163
    %v430 = vunpack.c.l.b16 %v164
    %v431 = vunpack.c.h.b16 %v164
    %v432 = vunpack.c.l.b16 %v165
    %v433 = vunpack.c.h.b16 %v165
    %v434 = vunpack.c.l.b16 %v166
    %v435 = vunpack.c.h.b16 %v166
    %v436 = vunpack.c.l.b16 %v167
    %v437 = vunpack.c.h.b16 %v167
    %v438 = vunpack.c.l.b16 %v168
    %v439 = vunpack.c.h.b16 %v168
    %v440 = vunpack.c.l.b16 %v169
    %v441 = vunpack.c.h.b16 %v169
    %v442 = vunpack.c.l.b16 %v170
    %v443 = vunpack.c.h.b16 %v170
    %v444 = vunpack.c.l.b16 %v171
    %v445 = vunpack.c.h.b16 %v171
    %v446 = vunpack.c.l.b16 %v172
    %v447 = vunpack.c.h.b16 %v172
    %v448 = vunpack.c.l.b16 %v173
    %v449 = vunpack.c.h.b16 %v173
    %v450 = vunpack.c.l.b16 %v174
    %v451 = vunpack.c.h.b16 %v174
    %v452 = vunpack.c.l.b16 %v175
    %v453 = vunpack.c.h.b16 %v175
    %v454 = vunpack.c.l.b16 %v176
    %v455 = vunpack.c.h.b16 %v176
    %v456 = vunpack.c.l.b16 %v177
    %v457 = vunpack.c.h.b16 %v177
    %v458 = vunpack.c.l.b16 %v178
    %v459 = vunpack.c.h.b16 %v178
    %v460 = vunpack.c.l.b16 %v179
    %v461 = vunpack.c.h.b16 %v179
    %v462 = vunpack.c.l.b16 %v180
    %v463 = vunpack.c.h.b16 %v180
    %v464 = vunpack.c.l.b16 %v181
    %v465 = vunpack.c.h.b16 %v181
    %v466 = vunpack.c.l.b16 %v182
    %v467 = vunpack.c.h.b16 %v182
    %v468 = vunpack.c.l.b16 %v183
    %v469 = vunpack.c.h.b16 %v183
    %v470 = vunpack.c.l.b16 %v184
    %v471 = vunpack.c.h.b16 %v184
    %v472 = vunpack.c.l.b16 %v185
    %v473 = vunpack.c.h.b16 %v185
    %v474 = vunpack.c.l.b16 %v186
    %v475 = vunpack.c.h.b16 %v186
    %v476 = vunpack.c.l.b16 %v187
    %v477 = vunpack.c.h.b16 %v187
    %v478 = vunpack.c.l.b16 %v188
    %v479 = vunpack.c.h.b16 %v188
    %v480 = vunpack.c.l.b16 %v189
    %v481 = vunpack.c.h.b16 %v189
    %v482 = vunpack.c.l.b16 %v190
    %v483 = vunpack.c.h.b16 %v190
    %v484 = vunpack.c.l.b16 %v191
    %v485 = vunpack.c.h.b16 %v191
    %v486 = vunpack.c.l.b16 %v192
    %v487 = vunpack.c.h.b16 %v192
    %v488 = vunpack.c.l.b16 %v193
    %v489 = vunpack.c.h.b16 %v193
    %v490 = vunpack.c.l.b16 %v194
    %v491 = vunpack.c.h.b16 %v194
    %v492 = vunpack.c.l.b16 %v195
    %v493 = vunpack.c.h.b16 %v195
    %v494 = vunpack.c.l.b16 %v196
    %v495 = vunpack.c.h.b16 %v196
    %v496 = vunpack.c.l.b16 %v197
    %v497 = vunpack.c.h.b16 %v197
    %v498 = vunpack.c.l.b16 %v198
    %v499 = vunpack.c.h.b16 %v198
    %v500 = vunpack.c.l.b16 %v199
    %v501 = vunpack.c.h.b16 %v199
    %v502 = vunpack.c.l.b16 %v200
    %v503 = vunpack.c.h.b16 %v200
    %v504 = vunpack.c.l.b16 %v201
    %v505 = vunpack.c.h.b16 %v201
    %v506 = vunpack.c.l.b16 %v202
    %v507 = vunpack.c.h.b16 %v202
    %v508 = vunpack.c.l.b16 %v203
    %v509 = vunpack.c.h.b16 %v203
    %v510 = vunpack.c.l.b16 %v204
    %v511 = vunpack.c.h.b16 %v204
    %v512 = vunpack.c.l.b16 %v205
    %v513 = vunpack.c.h.b16 %v205
    %v514 = vunpack.c.l.b16 %v206
    %v515 = vunpack.c.h.b16 %v206
    %v516 = vpack.c.b16 %v330, %v324
    %v517 = vpack.c.b16 %v331, %v325
    %v518 = vpack.c.b16 %v332, %v326
    %v519 = vpack.c.b16 %v333, %v327
    %v520 = vpack.c.b16 %v334, %v328
    %v521 = vpack.c.b16 %v335, %v329
    %v522 = vpack.c.b16 %v342, %v336
    %v523 = vpack.c.b16 %v343, %v337
    %v524 = vpack.c.b16 %v344, %v338
    %v525 = vpack.c.b16 %v345, %v339
    %v526 = vpack.c.b16 %v346, %v340
    %v527 = vpack.c.b16 %v347, %v341
    %v528 = vpack.c.b16 %v354, %v348
    %v529 = vpack.c.b16 %v355, %v349
    %v530 = vpack.c.b16 %v356, %v350
    %v531 = vpack.c.b16 %v357, %v351
    %v532 = vpack.c.b16 %v358, %v352
    %v533 = vpack.c.b16 %v359, %v353
    %v534 = vpack.c.b16 %v366, %v360
    %v535 = vpack.c.b16 %v367, %v361
    %v536 = vpack.c.b16 %v368, %v362
    %v537 = vpack.c.b16 %v369, %v363
    %v538 = vpack.c.b16 %v370, %v364
    %v539 = vpack.c.b16 %v371, %v365
    %v540 = vpack.c.b16 %v378, %v372
    %v541 = vpack.c.b16 %v379, %v373
    %v542 = vpack.c.b16 %v380, %v374
    %v543 = vpack.c.b16 %v381, %v375
    %v544 = vpack.c.b16 %v382, %v376
    %v545 = vpack.c.b16 %v383, %v377
    %v546 = vpack.c.b16 %v390, %v384
    %v547 = vpack.c.b16 %v391, %v385
    %v548 = vpack.c.b16 %v392, %v386
    %v549 = vpack.c.b16 %v393, %v387
    %v550 = vpack.c.b16 %v394, %v388
    %v551 = vpack.c.b16 %v395, %v389
    %v552 = vpack.c.b16 %v402, %v396
    %v553 = vpack.c.b16 %v403, %v397
    %v554 = vpack.c.b16 %v404, %v398
    %v555 = vpack.c.b16 %v405, %v399
    %v556 = vpack.c.b16 %v406, %v400
    %v557 = vpack.c.b16 %v407, %v401
    %v558 = vpack.c.b16 %v414, %v408
    %v559 = vpack.c.b16 %v415, %v409
    %v560 = vpack.c.b16 %v416, %v410
    %v561 = vpack.c.b16 %v417, %v411
    %v562 = vpack.c.b16 %v418, %v412
    %v563 = vpack.c.b16 %v419, %v413
    %v564 = vpack.c.b16 %v426, %v420
    %v565 = vpack.c.b16 %v427, %v421
    %v566 = vpack.c.b16 %v428, %v422
    %v567 = vpack.c.b16 %v429, %v423
    %v568 = vpack.c.b16 %v430, %v424
    %v569 = vpack.c.b16 %v431, %v425
    %v570 = vpack.c.b16 %v438, %v432
    %v571 = vpack.c.b16 %v439, %v433
    %v572 = vpack.c.b16 %v440, %v434
    %v573 = vpack.c.b16 %v441, %v435
    %v574 = vpack.c.b16 %v442, %v436
    %v575 = vpack.c.b16 %v443, %v437
    %v576 = vpack.c.b16 %v450, %v444
    %v577 = vpack.c.b16 %v451, %v445
    %v578 = vpack.c.b16 %v452, %v446
    %v579 = vpack.c.b16 %v453, %v447
    %v580 = vpack.c.b16 %v454, %v448
    %v581 = vpack.c.b16 %v455, %v449
    %v582 = vpack.c.b16 %v462, %v456
    %v583 = vpack.c.b16 %v463, %v457
    %v584 = vpack.c.b16 %v464, %v458
    %v585 = vpack.c.b16 %v465, %v459
    %v586 = vpack.c.b16 %v466, %v460
    %v587 = vpack.c.b16 %v467, %v461
    %v588 = vpack.c.b16 %v474, %v468
    %v589 = vpack.c.b16 %v475, %v469
    %v590 = vpack.c.b16 %v476, %v470
    %v591 = vpack.c.b16 %v477, %v471
    %v592 = vpack.c.b16 %v478, %v472
    %v593 = vpack.c.b16 %v479, %v473
    %v594 = vpack.c.b16 %v486, %v480
    %v595 = vpack.c.b16 %v487, %v481
    %v596 = vpack.c.b16 %v488, %v482
    %v597 = vpack.c.b16 %v489, %v483
    %v598 = vpack.c.b16 %v490, %v484
    %v599 = vpack.c.b16 %v491, %v485
    %v600 = vpack.c.b16 %v498, %v492
    %v601 = vpack.c.b16 %v499, %v493
    %v602 = vpack.c.b16 %v500, %v494
    %v603 = vpack.c.b16 %v501, %v495
    %v604 = vpack.c.b16 %v502, %v496
    %v605 = vpack.c.b16 %v503, %v497
    %v606 = vpack.c.b16 %v510, %v504
    %v607 = vpack.c.b16 %v511, %v505
    %v608 = vpack.c.b16 %v512, %v506
    %v609 = vpack.c.b16 %v513, %v507
    %v610 = vpack.c.b16 %v514, %v508
    %v611 = vpack.c.b16 %v515, %v509
    %708 = vmatpush.bf16.msra.mxu0 %v558
    %709 = vmatpush.bf16.msra.mxu0 %v552
    %710 = vmatpush.bf16.msra.mxu0 %v546
    %711 = vmatpush.bf16.msra.mxu0 %v540
    %712 = vmatpush.bf16.msra.mxu0 %v534
    %713 = vmatpush.bf16.msra.mxu0 %v528
    %714 = vmatpush.bf16.msra.mxu0 %v522
    %715 = vmatpush.bf16.msra.mxu0 %v516
    %716 = vmatmul.bf16.gmra.mxu0 %v224
    %v717 = vpop.f32.mrf.mxu0
    %v718 = vadd.f32 %v209, %v717
    %v719 = vpop.f32.mrf.mxu0
    %720 = vdwg.mxu0
    %721 = vmatpush.bf16.msra.mxu0 %v606
    %722 = vmatpush.bf16.msra.mxu0 %v600
    %723 = vmatpush.bf16.msra.mxu0 %v594
    %724 = vmatpush.bf16.msra.mxu0 %v588
    %725 = vmatpush.bf16.msra.mxu0 %v582
    %726 = vmatpush.bf16.msra.mxu0 %v576
    %727 = vmatpush.bf16.msra.mxu0 %v570
    %728 = vmatpush.bf16.msra.mxu0 %v564
    %729 = vmatmul.bf16.gmra.mxu0 %v225
    %v730 = vpop.f32.mrf.mxu0
    %v731 = vadd.f32 %v718, %v730
    %v732 = vpop.f32.mrf.mxu0
    %733 = vdwg.mxu0
    %734 = vmatpush.bf16.msra.mxu0 %v559
    %735 = vmatpush.bf16.msra.mxu0 %v553
    %736 = vmatpush.bf16.msra.mxu0 %v547
    %737 = vmatpush.bf16.msra.mxu0 %v541
    %738 = vmatpush.bf16.msra.mxu0 %v535
    %739 = vmatpush.bf16.msra.mxu0 %v529
    %740 = vmatpush.bf16.msra.mxu0 %v523
    %741 = vmatpush.bf16.msra.mxu0 %v517
    %742 = vmatmul.bf16.gmra.mxu0 %v224
    %v743 = vpop.f32.mrf.mxu0
    %v744 = vadd.f32 %v210, %v743
    %v745 = vpop.f32.mrf.mxu0
    %746 = vdwg.mxu0
    %747 = vmatpush.bf16.msra.mxu0 %v607
    %748 = vmatpush.bf16.msra.mxu0 %v601
    %749 = vmatpush.bf16.msra.mxu0 %v595
    %750 = vmatpush.bf16.msra.mxu0 %v589
    %751 = vmatpush.bf16.msra.mxu0 %v583
    %752 = vmatpush.bf16.msra.mxu0 %v577
    %753 = vmatpush.bf16.msra.mxu0 %v571
    %754 = vmatpush.bf16.msra.mxu0 %v565
    %755 = vmatmul.bf16.gmra.mxu0 %v225
    %v756 = vpop.f32.mrf.mxu0
    %v757 = vadd.f32 %v744, %v756
    %v758 = vpop.f32.mrf.mxu0
    %759 = vdwg.mxu0
    %760 = vmatpush.bf16.msra.mxu0 %v560
    %761 = vmatpush.bf16.msra.mxu0 %v554
    %762 = vmatpush.bf16.msra.mxu0 %v548
    %763 = vmatpush.bf16.msra.mxu0 %v542
    %764 = vmatpush.bf16.msra.mxu0 %v536
    %765 = vmatpush.bf16.msra.mxu0 %v530
    %766 = vmatpush.bf16.msra.mxu0 %v524
    %767 = vmatpush.bf16.msra.mxu0 %v518
    %768 = vmatmul.bf16.gmra.mxu0 %v224
    %v769 = vpop.f32.mrf.mxu0
    %v770 = vadd.f32 %v211, %v769
    %v771 = vpop.f32.mrf.mxu0
    %772 = vdwg.mxu0
    %773 = vmatpush.bf16.msra.mxu0 %v608
    %774 = vmatpush.bf16.msra.mxu0 %v602
    %775 = vmatpush.bf16.msra.mxu0 %v596
    %776 = vmatpush.bf16.msra.mxu0 %v590
    %777 = vmatpush.bf16.msra.mxu0 %v584
    %778 = vmatpush.bf16.msra.mxu0 %v578
    %779 = vmatpush.bf16.msra.mxu0 %v572
    %780 = vmatpush.bf16.msra.mxu0 %v566
    %781 = vmatmul.bf16.gmra.mxu0 %v225
    %v782 = vpop.f32.mrf.mxu0
    %v783 = vadd.f32 %v770, %v782
    %v784 = vpop.f32.mrf.mxu0
    %785 = vdwg.mxu0
    %786 = vmatpush.bf16.msra.mxu0 %v561
    %787 = vmatpush.bf16.msra.mxu0 %v555
    %788 = vmatpush.bf16.msra.mxu0 %v549
    %789 = vmatpush.bf16.msra.mxu0 %v543
    %790 = vmatpush.bf16.msra.mxu0 %v537
    %791 = vmatpush.bf16.msra.mxu0 %v531
    %792 = vmatpush.bf16.msra.mxu0 %v525
    %793 = vmatpush.bf16.msra.mxu0 %v519
    %794 = vmatmul.bf16.gmra.mxu0 %v224
    %v795 = vpop.f32.mrf.mxu0
    %v796 = vadd.f32 %v212, %v795
    %v797 = vpop.f32.mrf.mxu0
    %798 = vdwg.mxu0
    %799 = vmatpush.bf16.msra.mxu0 %v609
    %800 = vmatpush.bf16.msra.mxu0 %v603
    %801 = vmatpush.bf16.msra.mxu0 %v597
    %802 = vmatpush.bf16.msra.mxu0 %v591
    %803 = vmatpush.bf16.msra.mxu0 %v585
    %804 = vmatpush.bf16.msra.mxu0 %v579
    %805 = vmatpush.bf16.msra.mxu0 %v573
    %806 = vmatpush.bf16.msra.mxu0 %v567
    %807 = vmatmul.bf16.gmra.mxu0 %v225
    %v808 = vpop.f32.mrf.mxu0
    %v809 = vadd.f32 %v796, %v808
    %v810 = vpop.f32.mrf.mxu0
    %811 = vdwg.mxu0
    %812 = vmatpush.bf16.msra.mxu0 %v562
    %813 = vmatpush.bf16.msra.mxu0 %v556
    %814 = vmatpush.bf16.msra.mxu0 %v550
    %815 = vmatpush.bf16.msra.mxu0 %v544
    %816 = vmatpush.bf16.msra.mxu0 %v538
    %817 = vmatpush.bf16.msra.mxu0 %v532
    %818 = vmatpush.bf16.msra.mxu0 %v526
    %819 = vmatpush.bf16.msra.mxu0 %v520
    %820 = vmatmul.bf16.gmra.mxu0 %v224
    %v821 = vpop.f32.mrf.mxu0
    %v822 = vadd.f32 %v213, %v821
    %v823 = vpop.f32.mrf.mxu0
    %824 = vdwg.mxu0
    %825 = vmatpush.bf16.msra.mxu0 %v610
    %826 = vmatpush.bf16.msra.mxu0 %v604
    %827 = vmatpush.bf16.msra.mxu0 %v598
    %828 = vmatpush.bf16.msra.mxu0 %v592
    %829 = vmatpush.bf16.msra.mxu0 %v586
    %830 = vmatpush.bf16.msra.mxu0 %v580
    %831 = vmatpush.bf16.msra.mxu0 %v574
    %832 = vmatpush.bf16.msra.mxu0 %v568
    %833 = vmatmul.bf16.gmra.mxu0 %v225
    %v834 = vpop.f32.mrf.mxu0
    %v835 = vadd.f32 %v822, %v834
    %v836 = vpop.f32.mrf.mxu0
    %837 = vdwg.mxu0
    %838 = vmatpush.bf16.msra.mxu0 %v563
    %839 = vmatpush.bf16.msra.mxu0 %v557
    %840 = vmatpush.bf16.msra.mxu0 %v551
    %841 = vmatpush.bf16.msra.mxu0 %v545
    %842 = vmatpush.bf16.msra.mxu0 %v539
    %843 = vmatpush.bf16.msra.mxu0 %v533
    %844 = vmatpush.bf16.msra.mxu0 %v527
    %845 = vmatpush.bf16.msra.mxu0 %v521
    %846 = vmatmul.bf16.gmra.mxu0 %v224
    %v847 = vpop.f32.mrf.mxu0
    %v848 = vadd.f32 %v214, %v847
    %v849 = vpop.f32.mrf.mxu0
    %850 = vdwg.mxu0
    %851 = vmatpush.bf16.msra.mxu0 %v611
    %852 = vmatpush.bf16.msra.mxu0 %v605
    %853 = vmatpush.bf16.msra.mxu0 %v599
    %854 = vmatpush.bf16.msra.mxu0 %v593
    %855 = vmatpush.bf16.msra.mxu0 %v587
    %856 = vmatpush.bf16.msra.mxu0 %v581
    %857 = vmatpush.bf16.msra.mxu0 %v575
    %858 = vmatpush.bf16.msra.mxu0 %v569
    %859 = vmatmul.bf16.gmra.mxu0 %v225
    %v860 = vpop.f32.mrf.mxu0
    %v861 = vadd.f32 %v848, %v860
    %v862 = vpop.f32.mrf.mxu0
    %863 = vdwg.mxu0
    %864 = vst [vmem:[#allocation2] sm:$0xff] %v731
    %865 = vst [vmem:[#allocation2 + $0x8] sm:$0xff] %v757
    %866 = vst [vmem:[#allocation2 + $0x10] sm:$0xff] %v783
    %867 = vst [vmem:[#allocation2 + $0x18] sm:$0xff] %v809
    %868 = vst [vmem:[#allocation2 + $0x20] sm:$0xff] %v835
    %869 = vst [vmem:[#allocation2 + $0x28] sm:$0xff] %v861
    %v870 = vld [vmem:[#allocation6] sm:$0x3]
    %v871 = vld [vmem:[#allocation2] ss:$8 sm:$0xf]
    %v872 = vld [vmem:[#allocation2] ss:$8 sm:$0x30]
    %v873 = vor.u32 %v871, %v872
    %v875 = vperm.slane %v870, 0
    %v876 = vperm.slane %v870, 1
    %v879 = vpack.c.bf16 %v875, %v875
    %v880 = vpack.c.bf16 %v876, %v876
    %v881 = vld [vmem:[#allocation9] sm:$0xff]
    %v882 = vld [vmem:[#allocation9 + $0x8] sm:$0xff]
    %v883 = vld [vmem:[#allocation9 + $0x10] sm:$0xff]
    %v884 = vld [vmem:[#allocation9 + $0x18] sm:$0xff]
    %v885 = vld [vmem:[#allocation9 + $0x20] sm:$0xff]
    %v886 = vld [vmem:[#allocation9 + $0x28] sm:$0xff]
    %v887 = vld [vmem:[#allocation9 + $0x30] sm:$0xff]
    %v888 = vld [vmem:[#allocation9 + $0x38] sm:$0xff]
    %v889 = vld [vmem:[#allocation9 + $0x40] sm:$0xff]
    %v890 = vld [vmem:[#allocation9 + $0x48] sm:$0xff]
    %v891 = vld [vmem:[#allocation9 + $0x50] sm:$0xff]
    %v892 = vld [vmem:[#allocation9 + $0x58] sm:$0xff]
    %v893 = vld [vmem:[#allocation9 + $0x60] sm:$0xff]
    %v894 = vld [vmem:[#allocation9 + $0x68] sm:$0xff]
    %v895 = vld [vmem:[#allocation9 + $0x70] sm:$0xff]
    %v896 = vld [vmem:[#allocation9 + $0x78] sm:$0xff]
    %v897 = vld [vmem:[#allocation9 + $0x80] sm:$0xff]
    %v898 = vld [vmem:[#allocation9 + $0x88] sm:$0xff]
    %v899 = vld [vmem:[#allocation9 + $0x90] sm:$0xff]
    %v900 = vld [vmem:[#allocation9 + $0x98] sm:$0xff]
    %v901 = vld [vmem:[#allocation9 + $0xa0] sm:$0xff]
    %v902 = vld [vmem:[#allocation9 + $0xa8] sm:$0xff]
    %v903 = vld [vmem:[#allocation9 + $0xb0] sm:$0xff]
    %v904 = vld [vmem:[#allocation9 + $0xb8] sm:$0xff]
    %v905 = vld [vmem:[#allocation9 + $0xc0] sm:$0xff]
    %v906 = vld [vmem:[#allocation9 + $0xc8] sm:$0xff]
    %v907 = vld [vmem:[#allocation9 + $0xd0] sm:$0xff]
    %v908 = vld [vmem:[#allocation9 + $0xd8] sm:$0xff]
    %v909 = vld [vmem:[#allocation9 + $0xe0] sm:$0xff]
    %v910 = vld [vmem:[#allocation9 + $0xe8] sm:$0xff]
    %v911 = vld [vmem:[#allocation9 + $0xf0] sm:$0xff]
    %v912 = vld [vmem:[#allocation9 + $0xf8] sm:$0xff]
    %v913 = vld [vmem:[#allocation9 + $0x100] sm:$0xff]
    %v914 = vld [vmem:[#allocation9 + $0x108] sm:$0xff]
    %v915 = vld [vmem:[#allocation9 + $0x110] sm:$0xff]
    %v916 = vld [vmem:[#allocation9 + $0x118] sm:$0xff]
    %v917 = vld [vmem:[#allocation9 + $0x120] sm:$0xff]
    %v918 = vld [vmem:[#allocation9 + $0x128] sm:$0xff]
    %v919 = vld [vmem:[#allocation9 + $0x130] sm:$0xff]
    %v920 = vld [vmem:[#allocation9 + $0x138] sm:$0xff]
    %v921 = vld [vmem:[#allocation9 + $0x140] sm:$0xff]
    %v922 = vld [vmem:[#allocation9 + $0x148] sm:$0xff]
    %v923 = vld [vmem:[#allocation9 + $0x150] sm:$0xff]
    %v924 = vld [vmem:[#allocation9 + $0x158] sm:$0xff]
    %v925 = vld [vmem:[#allocation9 + $0x160] sm:$0xff]
    %v926 = vld [vmem:[#allocation9 + $0x168] sm:$0xff]
    %v927 = vld [vmem:[#allocation9 + $0x170] sm:$0xff]
    %v928 = vld [vmem:[#allocation9 + $0x178] sm:$0xff]
    %v929 = vld [vmem:[#allocation9 + $0x180] sm:$0xff]
    %v930 = vld [vmem:[#allocation9 + $0x188] sm:$0xff]
    %v931 = vld [vmem:[#allocation9 + $0x190] sm:$0xff]
    %v932 = vld [vmem:[#allocation9 + $0x198] sm:$0xff]
    %v933 = vld [vmem:[#allocation9 + $0x1a0] sm:$0xff]
    %v934 = vld [vmem:[#allocation9 + $0x1a8] sm:$0xff]
    %v935 = vld [vmem:[#allocation9 + $0x1b0] sm:$0xff]
    %v936 = vld [vmem:[#allocation9 + $0x1b8] sm:$0xff]
    %v937 = vld [vmem:[#allocation9 + $0x1c0] sm:$0xff]
    %v938 = vld [vmem:[#allocation9 + $0x1c8] sm:$0xff]
    %v939 = vld [vmem:[#allocation9 + $0x1d0] sm:$0xff]
    %v940 = vld [vmem:[#allocation9 + $0x1d8] sm:$0xff]
    %v941 = vld [vmem:[#allocation9 + $0x1e0] sm:$0xff]
    %v942 = vld [vmem:[#allocation9 + $0x1e8] sm:$0xff]
    %v943 = vld [vmem:[#allocation9 + $0x1f0] sm:$0xff]
    %v944 = vld [vmem:[#allocation9 + $0x1f8] sm:$0xff]
    %v945 = vld [vmem:[#allocation9 + $0x200] sm:$0xff]
    %v946 = vld [vmem:[#allocation9 + $0x208] sm:$0xff]
    %v947 = vld [vmem:[#allocation9 + $0x210] sm:$0xff]
    %v948 = vld [vmem:[#allocation9 + $0x218] sm:$0xff]
    %v949 = vld [vmem:[#allocation9 + $0x220] sm:$0xff]
    %v950 = vld [vmem:[#allocation9 + $0x228] sm:$0xff]
    %v951 = vld [vmem:[#allocation9 + $0x230] sm:$0xff]
    %v952 = vld [vmem:[#allocation9 + $0x238] sm:$0xff]
    %v953 = vld [vmem:[#allocation9 + $0x240] sm:$0xff]
    %v954 = vld [vmem:[#allocation9 + $0x248] sm:$0xff]
    %v955 = vld [vmem:[#allocation9 + $0x250] sm:$0xff]
    %v956 = vld [vmem:[#allocation9 + $0x258] sm:$0xff]
    %v957 = vld [vmem:[#allocation9 + $0x260] sm:$0xff]
    %v958 = vld [vmem:[#allocation9 + $0x268] sm:$0xff]
    %v959 = vld [vmem:[#allocation9 + $0x270] sm:$0xff]
    %v960 = vld [vmem:[#allocation9 + $0x278] sm:$0xff]
    %v961 = vld [vmem:[#allocation9 + $0x280] sm:$0xff]
    %v962 = vld [vmem:[#allocation9 + $0x288] sm:$0xff]
    %v963 = vld [vmem:[#allocation9 + $0x290] sm:$0xff]
    %v964 = vld [vmem:[#allocation9 + $0x298] sm:$0xff]
    %v965 = vld [vmem:[#allocation9 + $0x2a0] sm:$0xff]
    %v966 = vld [vmem:[#allocation9 + $0x2a8] sm:$0xff]
    %v967 = vld [vmem:[#allocation9 + $0x2b0] sm:$0xff]
    %v968 = vld [vmem:[#allocation9 + $0x2b8] sm:$0xff]
    %v969 = vld [vmem:[#allocation9 + $0x2c0] sm:$0xff]
    %v970 = vld [vmem:[#allocation9 + $0x2c8] sm:$0xff]
    %v971 = vld [vmem:[#allocation9 + $0x2d0] sm:$0xff]
    %v972 = vld [vmem:[#allocation9 + $0x2d8] sm:$0xff]
    %v973 = vld [vmem:[#allocation9 + $0x2e0] sm:$0xff]
    %v974 = vld [vmem:[#allocation9 + $0x2e8] sm:$0xff]
    %v975 = vld [vmem:[#allocation9 + $0x2f0] sm:$0xff]
    %v976 = vld [vmem:[#allocation9 + $0x2f8] sm:$0xff]
    %v977 = vld [vmem:[#allocation12] sm:$0x3f]
    %v1074 = vunpack.c.l.b16 %v881
    %v1075 = vunpack.c.h.b16 %v881
    %v1076 = vunpack.c.l.b16 %v882
    %v1077 = vunpack.c.h.b16 %v882
    %v1078 = vunpack.c.l.b16 %v883
    %v1079 = vunpack.c.h.b16 %v883
    %v1080 = vunpack.c.l.b16 %v884
    %v1081 = vunpack.c.h.b16 %v884
    %v1082 = vunpack.c.l.b16 %v885
    %v1083 = vunpack.c.h.b16 %v885
    %v1084 = vunpack.c.l.b16 %v886
    %v1085 = vunpack.c.h.b16 %v886
    %v1086 = vunpack.c.l.b16 %v887
    %v1087 = vunpack.c.h.b16 %v887
    %v1088 = vunpack.c.l.b16 %v888
    %v1089 = vunpack.c.h.b16 %v888
    %v1090 = vunpack.c.l.b16 %v889
    %v1091 = vunpack.c.h.b16 %v889
    %v1092 = vunpack.c.l.b16 %v890
    %v1093 = vunpack.c.h.b16 %v890
    %v1094 = vunpack.c.l.b16 %v891
    %v1095 = vunpack.c.h.b16 %v891
    %v1096 = vunpack.c.l.b16 %v892
    %v1097 = vunpack.c.h.b16 %v892
    %v1098 = vunpack.c.l.b16 %v893
    %v1099 = vunpack.c.h.b16 %v893
    %v1100 = vunpack.c.l.b16 %v894
    %v1101 = vunpack.c.h.b16 %v894
    %v1102 = vunpack.c.l.b16 %v895
    %v1103 = vunpack.c.h.b16 %v895
    %v1104 = vunpack.c.l.b16 %v896
    %v1105 = vunpack.c.h.b16 %v896
    %v1106 = vunpack.c.l.b16 %v897
    %v1107 = vunpack.c.h.b16 %v897
    %v1108 = vunpack.c.l.b16 %v898
    %v1109 = vunpack.c.h.b16 %v898
    %v1110 = vunpack.c.l.b16 %v899
    %v1111 = vunpack.c.h.b16 %v899
    %v1112 = vunpack.c.l.b16 %v900
    %v1113 = vunpack.c.h.b16 %v900
    %v1114 = vunpack.c.l.b16 %v901
    %v1115 = vunpack.c.h.b16 %v901
    %v1116 = vunpack.c.l.b16 %v902
    %v1117 = vunpack.c.h.b16 %v902
    %v1118 = vunpack.c.l.b16 %v903
    %v1119 = vunpack.c.h.b16 %v903
    %v1120 = vunpack.c.l.b16 %v904
    %v1121 = vunpack.c.h.b16 %v904
    %v1122 = vunpack.c.l.b16 %v905
    %v1123 = vunpack.c.h.b16 %v905
    %v1124 = vunpack.c.l.b16 %v906
    %v1125 = vunpack.c.h.b16 %v906
    %v1126 = vunpack.c.l.b16 %v907
    %v1127 = vunpack.c.h.b16 %v907
    %v1128 = vunpack.c.l.b16 %v908
    %v1129 = vunpack.c.h.b16 %v908
    %v1130 = vunpack.c.l.b16 %v909
    %v1131 = vunpack.c.h.b16 %v909
    %v1132 = vunpack.c.l.b16 %v910
    %v1133 = vunpack.c.h.b16 %v910
    %v1134 = vunpack.c.l.b16 %v911
    %v1135 = vunpack.c.h.b16 %v911
    %v1136 = vunpack.c.l.b16 %v912
    %v1137 = vunpack.c.h.b16 %v912
    %v1138 = vunpack.c.l.b16 %v913
    %v1139 = vunpack.c.h.b16 %v913
    %v1140 = vunpack.c.l.b16 %v914
    %v1141 = vunpack.c.h.b16 %v914
    %v1142 = vunpack.c.l.b16 %v915
    %v1143 = vunpack.c.h.b16 %v915
    %v1144 = vunpack.c.l.b16 %v916
    %v1145 = vunpack.c.h.b16 %v916
    %v1146 = vunpack.c.l.b16 %v917
    %v1147 = vunpack.c.h.b16 %v917
    %v1148 = vunpack.c.l.b16 %v918
    %v1149 = vunpack.c.h.b16 %v918
    %v1150 = vunpack.c.l.b16 %v919
    %v1151 = vunpack.c.h.b16 %v919
    %v1152 = vunpack.c.l.b16 %v920
    %v1153 = vunpack.c.h.b16 %v920
    %v1154 = vunpack.c.l.b16 %v921
    %v1155 = vunpack.c.h.b16 %v921
    %v1156 = vunpack.c.l.b16 %v922
    %v1157 = vunpack.c.h.b16 %v922
    %v1158 = vunpack.c.l.b16 %v923
    %v1159 = vunpack.c.h.b16 %v923
    %v1160 = vunpack.c.l.b16 %v924
    %v1161 = vunpack.c.h.b16 %v924
    %v1162 = vunpack.c.l.b16 %v925
    %v1163 = vunpack.c.h.b16 %v925
    %v1164 = vunpack.c.l.b16 %v926
    %v1165 = vunpack.c.h.b16 %v926
    %v1166 = vunpack.c.l.b16 %v927
    %v1167 = vunpack.c.h.b16 %v927
    %v1168 = vunpack.c.l.b16 %v928
    %v1169 = vunpack.c.h.b16 %v928
    %v1170 = vunpack.c.l.b16 %v929
    %v1171 = vunpack.c.h.b16 %v929
    %v1172 = vunpack.c.l.b16 %v930
    %v1173 = vunpack.c.h.b16 %v930
    %v1174 = vunpack.c.l.b16 %v931
    %v1175 = vunpack.c.h.b16 %v931
    %v1176 = vunpack.c.l.b16 %v932
    %v1177 = vunpack.c.h.b16 %v932
    %v1178 = vunpack.c.l.b16 %v933
    %v1179 = vunpack.c.h.b16 %v933
    %v1180 = vunpack.c.l.b16 %v934
    %v1181 = vunpack.c.h.b16 %v934
    %v1182 = vunpack.c.l.b16 %v935
    %v1183 = vunpack.c.h.b16 %v935
    %v1184 = vunpack.c.l.b16 %v936
    %v1185 = vunpack.c.h.b16 %v936
    %v1186 = vunpack.c.l.b16 %v937
    %v1187 = vunpack.c.h.b16 %v937
    %v1188 = vunpack.c.l.b16 %v938
    %v1189 = vunpack.c.h.b16 %v938
    %v1190 = vunpack.c.l.b16 %v939
    %v1191 = vunpack.c.h.b16 %v939
    %v1192 = vunpack.c.l.b16 %v940
    %v1193 = vunpack.c.h.b16 %v940
    %v1194 = vunpack.c.l.b16 %v941
    %v1195 = vunpack.c.h.b16 %v941
    %v1196 = vunpack.c.l.b16 %v942
    %v1197 = vunpack.c.h.b16 %v942
    %v1198 = vunpack.c.l.b16 %v943
    %v1199 = vunpack.c.h.b16 %v943
    %v1200 = vunpack.c.l.b16 %v944
    %v1201 = vunpack.c.h.b16 %v944
    %v1202 = vunpack.c.l.b16 %v945
    %v1203 = vunpack.c.h.b16 %v945
    %v1204 = vunpack.c.l.b16 %v946
    %v1205 = vunpack.c.h.b16 %v946
    %v1206 = vunpack.c.l.b16 %v947
    %v1207 = vunpack.c.h.b16 %v947
    %v1208 = vunpack.c.l.b16 %v948
    %v1209 = vunpack.c.h.b16 %v948
    %v1210 = vunpack.c.l.b16 %v949
    %v1211 = vunpack.c.h.b16 %v949
    %v1212 = vunpack.c.l.b16 %v950
    %v1213 = vunpack.c.h.b16 %v950
    %v1214 = vunpack.c.l.b16 %v951
    %v1215 = vunpack.c.h.b16 %v951
    %v1216 = vunpack.c.l.b16 %v952
    %v1217 = vunpack.c.h.b16 %v952
    %v1218 = vunpack.c.l.b16 %v953
    %v1219 = vunpack.c.h.b16 %v953
    %v1220 = vunpack.c.l.b16 %v954
    %v1221 = vunpack.c.h.b16 %v954
    %v1222 = vunpack.c.l.b16 %v955
    %v1223 = vunpack.c.h.b16 %v955
    %v1224 = vunpack.c.l.b16 %v956
    %v1225 = vunpack.c.h.b16 %v956
    %v1226 = vunpack.c.l.b16 %v957
    %v1227 = vunpack.c.h.b16 %v957
    %v1228 = vunpack.c.l.b16 %v958
    %v1229 = vunpack.c.h.b16 %v958
    %v1230 = vunpack.c.l.b16 %v959
    %v1231 = vunpack.c.h.b16 %v959
    %v1232 = vunpack.c.l.b16 %v960
    %v1233 = vunpack.c.h.b16 %v960
    %v1234 = vunpack.c.l.b16 %v961
    %v1235 = vunpack.c.h.b16 %v961
    %v1236 = vunpack.c.l.b16 %v962
    %v1237 = vunpack.c.h.b16 %v962
    %v1238 = vunpack.c.l.b16 %v963
    %v1239 = vunpack.c.h.b16 %v963
    %v1240 = vunpack.c.l.b16 %v964
    %v1241 = vunpack.c.h.b16 %v964
    %v1242 = vunpack.c.l.b16 %v965
    %v1243 = vunpack.c.h.b16 %v965
    %v1244 = vunpack.c.l.b16 %v966
    %v1245 = vunpack.c.h.b16 %v966
    %v1246 = vunpack.c.l.b16 %v967
    %v1247 = vunpack.c.h.b16 %v967
    %v1248 = vunpack.c.l.b16 %v968
    %v1249 = vunpack.c.h.b16 %v968
    %v1250 = vunpack.c.l.b16 %v969
    %v1251 = vunpack.c.h.b16 %v969
    %v1252 = vunpack.c.l.b16 %v970
    %v1253 = vunpack.c.h.b16 %v970
    %v1254 = vunpack.c.l.b16 %v971
    %v1255 = vunpack.c.h.b16 %v971
    %v1256 = vunpack.c.l.b16 %v972
    %v1257 = vunpack.c.h.b16 %v972
    %v1258 = vunpack.c.l.b16 %v973
    %v1259 = vunpack.c.h.b16 %v973
    %v1260 = vunpack.c.l.b16 %v974
    %v1261 = vunpack.c.h.b16 %v974
    %v1262 = vunpack.c.l.b16 %v975
    %v1263 = vunpack.c.h.b16 %v975
    %v1264 = vunpack.c.l.b16 %v976
    %v1265 = vunpack.c.h.b16 %v976
    %v1266 = vpack.c.b16 %v1080, %v1074
    %v1267 = vpack.c.b16 %v1081, %v1075
    %v1268 = vpack.c.b16 %v1082, %v1076
    %v1269 = vpack.c.b16 %v1083, %v1077
    %v1270 = vpack.c.b16 %v1084, %v1078
    %v1271 = vpack.c.b16 %v1085, %v1079
    %v1272 = vpack.c.b16 %v1092, %v1086
    %v1273 = vpack.c.b16 %v1093, %v1087
    %v1274 = vpack.c.b16 %v1094, %v1088
    %v1275 = vpack.c.b16 %v1095, %v1089
    %v1276 = vpack.c.b16 %v1096, %v1090
    %v1277 = vpack.c.b16 %v1097, %v1091
    %v1278 = vpack.c.b16 %v1104, %v1098
    %v1279 = vpack.c.b16 %v1105, %v1099
    %v1280 = vpack.c.b16 %v1106, %v1100
    %v1281 = vpack.c.b16 %v1107, %v1101
    %v1282 = vpack.c.b16 %v1108, %v1102
    %v1283 = vpack.c.b16 %v1109, %v1103
    %v1284 = vpack.c.b16 %v1116, %v1110
    %v1285 = vpack.c.b16 %v1117, %v1111
    %v1286 = vpack.c.b16 %v1118, %v1112
    %v1287 = vpack.c.b16 %v1119, %v1113
    %v1288 = vpack.c.b16 %v1120, %v1114
    %v1289 = vpack.c.b16 %v1121, %v1115
    %v1290 = vpack.c.b16 %v1128, %v1122
    %v1291 = vpack.c.b16 %v1129, %v1123
    %v1292 = vpack.c.b16 %v1130, %v1124
    %v1293 = vpack.c.b16 %v1131, %v1125
    %v1294 = vpack.c.b16 %v1132, %v1126
    %v1295 = vpack.c.b16 %v1133, %v1127
    %v1296 = vpack.c.b16 %v1140, %v1134
    %v1297 = vpack.c.b16 %v1141, %v1135
    %v1298 = vpack.c.b16 %v1142, %v1136
    %v1299 = vpack.c.b16 %v1143, %v1137
    %v1300 = vpack.c.b16 %v1144, %v1138
    %v1301 = vpack.c.b16 %v1145, %v1139
    %v1302 = vpack.c.b16 %v1152, %v1146
    %v1303 = vpack.c.b16 %v1153, %v1147
    %v1304 = vpack.c.b16 %v1154, %v1148
    %v1305 = vpack.c.b16 %v1155, %v1149
    %v1306 = vpack.c.b16 %v1156, %v1150
    %v1307 = vpack.c.b16 %v1157, %v1151
    %v1308 = vpack.c.b16 %v1164, %v1158
    %v1309 = vpack.c.b16 %v1165, %v1159
    %v1310 = vpack.c.b16 %v1166, %v1160
    %v1311 = vpack.c.b16 %v1167, %v1161
    %v1312 = vpack.c.b16 %v1168, %v1162
    %v1313 = vpack.c.b16 %v1169, %v1163
    %v1314 = vpack.c.b16 %v1176, %v1170
    %v1315 = vpack.c.b16 %v1177, %v1171
    %v1316 = vpack.c.b16 %v1178, %v1172
    %v1317 = vpack.c.b16 %v1179, %v1173
    %v1318 = vpack.c.b16 %v1180, %v1174
    %v1319 = vpack.c.b16 %v1181, %v1175
    %v1320 = vpack.c.b16 %v1188, %v1182
    %v1321 = vpack.c.b16 %v1189, %v1183
    %v1322 = vpack.c.b16 %v1190, %v1184
    %v1323 = vpack.c.b16 %v1191, %v1185
    %v1324 = vpack.c.b16 %v1192, %v1186
    %v1325 = vpack.c.b16 %v1193, %v1187
    %v1326 = vpack.c.b16 %v1200, %v1194
    %v1327 = vpack.c.b16 %v1201, %v1195
    %v1328 = vpack.c.b16 %v1202, %v1196
    %v1329 = vpack.c.b16 %v1203, %v1197
    %v1330 = vpack.c.b16 %v1204, %v1198
    %v1331 = vpack.c.b16 %v1205, %v1199
    %v1332 = vpack.c.b16 %v1212, %v1206
    %v1333 = vpack.c.b16 %v1213, %v1207
    %v1334 = vpack.c.b16 %v1214, %v1208
    %v1335 = vpack.c.b16 %v1215, %v1209
    %v1336 = vpack.c.b16 %v1216, %v1210
    %v1337 = vpack.c.b16 %v1217, %v1211
    %v1338 = vpack.c.b16 %v1224, %v1218
    %v1339 = vpack.c.b16 %v1225, %v1219
    %v1340 = vpack.c.b16 %v1226, %v1220
    %v1341 = vpack.c.b16 %v1227, %v1221
    %v1342 = vpack.c.b16 %v1228, %v1222
    %v1343 = vpack.c.b16 %v1229, %v1223
    %v1344 = vpack.c.b16 %v1236, %v1230
    %v1345 = vpack.c.b16 %v1237, %v1231
    %v1346 = vpack.c.b16 %v1238, %v1232
    %v1347 = vpack.c.b16 %v1239, %v1233
    %v1348 = vpack.c.b16 %v1240, %v1234
    %v1349 = vpack.c.b16 %v1241, %v1235
    %v1350 = vpack.c.b16 %v1248, %v1242
    %v1351 = vpack.c.b16 %v1249, %v1243
    %v1352 = vpack.c.b16 %v1250, %v1244
    %v1353 = vpack.c.b16 %v1251, %v1245
    %v1354 = vpack.c.b16 %v1252, %v1246
    %v1355 = vpack.c.b16 %v1253, %v1247
    %v1356 = vpack.c.b16 %v1260, %v1254
    %v1357 = vpack.c.b16 %v1261, %v1255
    %v1358 = vpack.c.b16 %v1262, %v1256
    %v1359 = vpack.c.b16 %v1263, %v1257
    %v1360 = vpack.c.b16 %v1264, %v1258
    %v1361 = vpack.c.b16 %v1265, %v1259
    %v1459 = vperm.slane %v977, 0
    %v1460 = vperm.slane %v977, 1
    %v1461 = vperm.slane %v977, 2
    %v1462 = vperm.slane %v977, 3
    %v1463 = vperm.slane %v977, 4
    %v1464 = vperm.slane %v977, 5
    %1471 = vmatpush.bf16.msra.mxu0 %v1308
    %1472 = vmatpush.bf16.msra.mxu0 %v1302
    %1473 = vmatpush.bf16.msra.mxu0 %v1296
    %1474 = vmatpush.bf16.msra.mxu0 %v1290
    %1475 = vmatpush.bf16.msra.mxu0 %v1284
    %1476 = vmatpush.bf16.msra.mxu0 %v1278
    %1477 = vmatpush.bf16.msra.mxu0 %v1272
    %1478 = vmatpush.bf16.msra.mxu0 %v1266
    %1479 = vmatmul.bf16.gmra.mxu0 %v879
    %v1480 = vpop.f32.mrf.mxu0
    %v1481 = vadd.f32 %v1459, %v1480
    %v1482 = vpop.f32.mrf.mxu0
    %1483 = vdwg.mxu0
    %1484 = vmatpush.bf16.msra.mxu0 %v1356
    %1485 = vmatpush.bf16.msra.mxu0 %v1350
    %1486 = vmatpush.bf16.msra.mxu0 %v1344
    %1487 = vmatpush.bf16.msra.mxu0 %v1338
    %1488 = vmatpush.bf16.msra.mxu0 %v1332
    %1489 = vmatpush.bf16.msra.mxu0 %v1326
    %1490 = vmatpush.bf16.msra.mxu0 %v1320
    %1491 = vmatpush.bf16.msra.mxu0 %v1314
    %1492 = vmatmul.bf16.gmra.mxu0 %v880
    %v1493 = vpop.f32.mrf.mxu0
    %v1494 = vadd.f32 %v1481, %v1493
    %v1495 = vpop.f32.mrf.mxu0
    %1496 = vdwg.mxu0
    %1497 = vmatpush.bf16.msra.mxu0 %v1309
    %1498 = vmatpush.bf16.msra.mxu0 %v1303
    %1499 = vmatpush.bf16.msra.mxu0 %v1297
    %1500 = vmatpush.bf16.msra.mxu0 %v1291
    %1501 = vmatpush.bf16.msra.mxu0 %v1285
    %1502 = vmatpush.bf16.msra.mxu0 %v1279
    %1503 = vmatpush.bf16.msra.mxu0 %v1273
    %1504 = vmatpush.bf16.msra.mxu0 %v1267
    %1505 = vmatmul.bf16.gmra.mxu0 %v879
    %v1506 = vpop.f32.mrf.mxu0
    %v1507 = vadd.f32 %v1460, %v1506
    %v1508 = vpop.f32.mrf.mxu0
    %1509 = vdwg.mxu0
    %1510 = vmatpush.bf16.msra.mxu0 %v1357
    %1511 = vmatpush.bf16.msra.mxu0 %v1351
    %1512 = vmatpush.bf16.msra.mxu0 %v1345
    %1513 = vmatpush.bf16.msra.mxu0 %v1339
    %1514 = vmatpush.bf16.msra.mxu0 %v1333
    %1515 = vmatpush.bf16.msra.mxu0 %v1327
    %1516 = vmatpush.bf16.msra.mxu0 %v1321
    %1517 = vmatpush.bf16.msra.mxu0 %v1315
    %1518 = vmatmul.bf16.gmra.mxu0 %v880
    %v1519 = vpop.f32.mrf.mxu0
    %v1520 = vadd.f32 %v1507, %v1519
    %v1521 = vpop.f32.mrf.mxu0
    %1522 = vdwg.mxu0
    %1523 = vmatpush.bf16.msra.mxu0 %v1310
    %1524 = vmatpush.bf16.msra.mxu0 %v1304
    %1525 = vmatpush.bf16.msra.mxu0 %v1298
    %1526 = vmatpush.bf16.msra.mxu0 %v1292
    %1527 = vmatpush.bf16.msra.mxu0 %v1286
    %1528 = vmatpush.bf16.msra.mxu0 %v1280
    %1529 = vmatpush.bf16.msra.mxu0 %v1274
    %1530 = vmatpush.bf16.msra.mxu0 %v1268
    %1531 = vmatmul.bf16.gmra.mxu0 %v879
    %v1532 = vpop.f32.mrf.mxu0
    %v1533 = vadd.f32 %v1461, %v1532
    %v1534 = vpop.f32.mrf.mxu0
    %1535 = vdwg.mxu0
    %1536 = vmatpush.bf16.msra.mxu0 %v1358
    %1537 = vmatpush.bf16.msra.mxu0 %v1352
    %1538 = vmatpush.bf16.msra.mxu0 %v1346
    %1539 = vmatpush.bf16.msra.mxu0 %v1340
    %1540 = vmatpush.bf16.msra.mxu0 %v1334
    %1541 = vmatpush.bf16.msra.mxu0 %v1328
    %1542 = vmatpush.bf16.msra.mxu0 %v1322
    %1543 = vmatpush.bf16.msra.mxu0 %v1316
    %1544 = vmatmul.bf16.gmra.mxu0 %v880
    %v1545 = vpop.f32.mrf.mxu0
    %v1546 = vadd.f32 %v1533, %v1545
    %v1547 = vpop.f32.mrf.mxu0
    %1548 = vdwg.mxu0
    %1549 = vmatpush.bf16.msra.mxu0 %v1311
    %1550 = vmatpush.bf16.msra.mxu0 %v1305
    %1551 = vmatpush.bf16.msra.mxu0 %v1299
    %1552 = vmatpush.bf16.msra.mxu0 %v1293
    %1553 = vmatpush.bf16.msra.mxu0 %v1287
    %1554 = vmatpush.bf16.msra.mxu0 %v1281
    %1555 = vmatpush.bf16.msra.mxu0 %v1275
    %1556 = vmatpush.bf16.msra.mxu0 %v1269
    %1557 = vmatmul.bf16.gmra.mxu0 %v879
    %v1558 = vpop.f32.mrf.mxu0
    %v1559 = vadd.f32 %v1462, %v1558
    %v1560 = vpop.f32.mrf.mxu0
    %1561 = vdwg.mxu0
    %1562 = vmatpush.bf16.msra.mxu0 %v1359
    %1563 = vmatpush.bf16.msra.mxu0 %v1353
    %1564 = vmatpush.bf16.msra.mxu0 %v1347
    %1565 = vmatpush.bf16.msra.mxu0 %v1341
    %1566 = vmatpush.bf16.msra.mxu0 %v1335
    %1567 = vmatpush.bf16.msra.mxu0 %v1329
    %1568 = vmatpush.bf16.msra.mxu0 %v1323
    %1569 = vmatpush.bf16.msra.mxu0 %v1317
    %1570 = vmatmul.bf16.gmra.mxu0 %v880
    %v1571 = vpop.f32.mrf.mxu0
    %v1572 = vadd.f32 %v1559, %v1571
    %v1573 = vpop.f32.mrf.mxu0
    %1574 = vdwg.mxu0
    %1575 = vmatpush.bf16.msra.mxu0 %v1312
    %1576 = vmatpush.bf16.msra.mxu0 %v1306
    %1577 = vmatpush.bf16.msra.mxu0 %v1300
    %1578 = vmatpush.bf16.msra.mxu0 %v1294
    %1579 = vmatpush.bf16.msra.mxu0 %v1288
    %1580 = vmatpush.bf16.msra.mxu0 %v1282
    %1581 = vmatpush.bf16.msra.mxu0 %v1276
    %1582 = vmatpush.bf16.msra.mxu0 %v1270
    %1583 = vmatmul.bf16.gmra.mxu0 %v879
    %v1584 = vpop.f32.mrf.mxu0
    %v1585 = vadd.f32 %v1463, %v1584
    %v1586 = vpop.f32.mrf.mxu0
    %1587 = vdwg.mxu0
    %1588 = vmatpush.bf16.msra.mxu0 %v1360
    %1589 = vmatpush.bf16.msra.mxu0 %v1354
    %1590 = vmatpush.bf16.msra.mxu0 %v1348
    %1591 = vmatpush.bf16.msra.mxu0 %v1342
    %1592 = vmatpush.bf16.msra.mxu0 %v1336
    %1593 = vmatpush.bf16.msra.mxu0 %v1330
    %1594 = vmatpush.bf16.msra.mxu0 %v1324
    %1595 = vmatpush.bf16.msra.mxu0 %v1318
    %1596 = vmatmul.bf16.gmra.mxu0 %v880
    %v1597 = vpop.f32.mrf.mxu0
    %v1598 = vadd.f32 %v1585, %v1597
    %v1599 = vpop.f32.mrf.mxu0
    %1600 = vdwg.mxu0
    %1601 = vmatpush.bf16.msra.mxu0 %v1313
    %1602 = vmatpush.bf16.msra.mxu0 %v1307
    %1603 = vmatpush.bf16.msra.mxu0 %v1301
    %1604 = vmatpush.bf16.msra.mxu0 %v1295
    %1605 = vmatpush.bf16.msra.mxu0 %v1289
    %1606 = vmatpush.bf16.msra.mxu0 %v1283
    %1607 = vmatpush.bf16.msra.mxu0 %v1277
    %1608 = vmatpush.bf16.msra.mxu0 %v1271
    %1609 = vmatmul.bf16.gmra.mxu0 %v879
    %v1610 = vpop.f32.mrf.mxu0
    %v1611 = vadd.f32 %v1464, %v1610
    %v1612 = vpop.f32.mrf.mxu0
    %1613 = vdwg.mxu0
    %1614 = vmatpush.bf16.msra.mxu0 %v1361
    %1615 = vmatpush.bf16.msra.mxu0 %v1355
    %1616 = vmatpush.bf16.msra.mxu0 %v1349
    %1617 = vmatpush.bf16.msra.mxu0 %v1343
    %1618 = vmatpush.bf16.msra.mxu0 %v1337
    %1619 = vmatpush.bf16.msra.mxu0 %v1331
    %1620 = vmatpush.bf16.msra.mxu0 %v1325
    %1621 = vmatpush.bf16.msra.mxu0 %v1319
    %1622 = vmatmul.bf16.gmra.mxu0 %v880
    %v1623 = vpop.f32.mrf.mxu0
    %v1624 = vadd.f32 %v1611, %v1623
    %v1625 = vpop.f32.mrf.mxu0
    %1626 = vdwg.mxu0
    %v1629 = vrot.slane %v1520, 7
    %vm1630 = vcmask 1040384
    %v1631 = vsel %vm1630, %v1494, %v1629
    %v1633 = vadd.f32 %v873, %v1631
    %v1634 = vxor.u32 %v1633, 2147483648
    %v1635 = vmul.f32 %v1634, 1.442695
    %v1636 = vpow.pop %v1635
    %v1637 = vadd.f32 %v1636, 1.0
    %v1638 = vrcp.pop %v1637
    %v1639 = vmul.f32 %v1637, %v1638
    %v1640 = vsub.f32 1.0, %v1639
    %v1641 = vmul.f32 %v1638, %v1640
    %v1642 = vadd.f32 %v1638, %v1641
    %vm1643 = vweird.f32 %v1637
    %vm1644 = vweird.f32 %v1638
    %vm1645 = vmor %vm1643, %vm1644
    %v1646 = vsel %vm1645, %v1638, %v1642
    %v1647 = vand.u32 2147483647, %v1637
    %vm1648 = vcmp.eq.f32.partialorder %v1647, 8.507059e+37
    %v1649 = vand.u32 %v1637, 2147483648
    %v1650 = vor.u32 1.1754944e-38, %v1649
    %v1651 = vsel %vm1648, %v1650, %v1646
    %v1652 = vmul.f32 1.0, %v1651
    %v1654 = vrot.slane %v873, 2
    %v1658 = vrot.slane %v1572, 7
    %v1659 = vsel %vm1630, %v1546, %v1658
    %v1661 = vadd.f32 %v1654, %v1659
    %v1662 = vxor.u32 %v1661, 2147483648
    %v1663 = vmul.f32 %v1662, 1.442695
    %v1664 = vpow.pop %v1663
    %v1665 = vadd.f32 %v1664, 1.0
    %v1666 = vrcp.pop %v1665
    %v1667 = vmul.f32 %v1665, %v1666
    %v1668 = vsub.f32 1.0, %v1667
    %v1669 = vmul.f32 %v1666, %v1668
    %v1670 = vadd.f32 %v1666, %v1669
    %vm1671 = vweird.f32 %v1665
    %vm1672 = vweird.f32 %v1666
    %vm1673 = vmor %vm1671, %vm1672
    %v1674 = vsel %vm1673, %v1666, %v1670
    %v1675 = vand.u32 2147483647, %v1665
    %vm1676 = vcmp.eq.f32.partialorder %v1675, 8.507059e+37
    %v1677 = vand.u32 %v1665, 2147483648
    %v1678 = vor.u32 1.1754944e-38, %v1677
    %v1679 = vsel %vm1676, %v1678, %v1674
    %v1680 = vmul.f32 1.0, %v1679
    %v1683 = vrot.slane %v1624, 7
    %v1684 = vsel %vm1630, %v1598, %v1683
    %v1686 = vmul.f32 %v1652, %v1684
    %v1687 = vrot.slane %v873, 4
    %v1689 = vadd.f32 %v1687, %v1686
    %v1690 = vtanh.pop %v1689
    %v1691 = vsub.f32 1.0, %v1680
    %v1692 = vmul.f32 %v1691, %v1690
    %v1693 = vmul.f32 %v1680, %v870
    %v1694 = vadd.f32 %v1692, %v1693
    %v1695 = vlaneseq
    %vm1696 = vcmp.ge.s32.totalorder %v1695, 0
    %vm1697 = vcmp.lt.s32.totalorder %v1695, 256
    %vm1698 = vmand %vm1696, %vm1697
    %1699 = vst.msk [vmem:[#allocation14] ss:$8 sm:$0x3] %vm1698, %v1694
    %1700 = vst.msk [vmem:[#allocation14] ss:$8 sm:$0x0] %vm1698, %v1694
    %s1701 = scalar_lea.vmem [#allocation2], 1
    %v1702 = vld [vmem:[%s1701] ss:$8 sm:$0xf]
    %v1703 = vld [vmem:[%s1701] ss:$8 sm:$0x30]
    %v1704 = vor.u32 %v1702, %v1703
    %v1706 = vperm.slane %v1694, 0
    %v1707 = vperm.slane %v1694, 1
    %v1710 = vpack.c.bf16 %v1706, %v1706
    %v1711 = vpack.c.bf16 %v1707, %v1707
    %v1712 = vld [vmem:[#allocation9] sm:$0xff]
    %v1713 = vld [vmem:[#allocation9 + $0x8] sm:$0xff]
    %v1714 = vld [vmem:[#allocation9 + $0x10] sm:$0xff]
    %v1715 = vld [vmem:[#allocation9 + $0x18] sm:$0xff]
    %v1716 = vld [vmem:[#allocation9 + $0x20] sm:$0xff]
    %v1717 = vld [vmem:[#allocation9 + $0x28] sm:$0xff]
    %v1718 = vld [vmem:[#allocation9 + $0x30] sm:$0xff]
    %v1719 = vld [vmem:[#allocation9 + $0x38] sm:$0xff]
    %v1720 = vld [vmem:[#allocation9 + $0x40] sm:$0xff]
    %v1721 = vld [vmem:[#allocation9 + $0x48] sm:$0xff]
    %v1722 = vld [vmem:[#allocation9 + $0x50] sm:$0xff]
    %v1723 = vld [vmem:[#allocation9 + $0x58] sm:$0xff]
    %v1724 = vld [vmem:[#allocation9 + $0x60] sm:$0xff]
    %v1725 = vld [vmem:[#allocation9 + $0x68] sm:$0xff]
    %v1726 = vld [vmem:[#allocation9 + $0x70] sm:$0xff]
    %v1727 = vld [vmem:[#allocation9 + $0x78] sm:$0xff]
    %v1728 = vld [vmem:[#allocation9 + $0x80] sm:$0xff]
    %v1729 = vld [vmem:[#allocation9 + $0x88] sm:$0xff]
    %v1730 = vld [vmem:[#allocation9 + $0x90] sm:$0xff]
    %v1731 = vld [vmem:[#allocation9 + $0x98] sm:$0xff]
    %v1732 = vld [vmem:[#allocation9 + $0xa0] sm:$0xff]
    %v1733 = vld [vmem:[#allocation9 + $0xa8] sm:$0xff]
    %v1734 = vld [vmem:[#allocation9 + $0xb0] sm:$0xff]
    %v1735 = vld [vmem:[#allocation9 + $0xb8] sm:$0xff]
    %v1736 = vld [vmem:[#allocation9 + $0xc0] sm:$0xff]
    %v1737 = vld [vmem:[#allocation9 + $0xc8] sm:$0xff]
    %v1738 = vld [vmem:[#allocation9 + $0xd0] sm:$0xff]
    %v1739 = vld [vmem:[#allocation9 + $0xd8] sm:$0xff]
    %v1740 = vld [vmem:[#allocation9 + $0xe0] sm:$0xff]
    %v1741 = vld [vmem:[#allocation9 + $0xe8] sm:$0xff]
    %v1742 = vld [vmem:[#allocation9 + $0xf0] sm:$0xff]
    %v1743 = vld [vmem:[#allocation9 + $0xf8] sm:$0xff]
    %v1744 = vld [vmem:[#allocation9 + $0x100] sm:$0xff]
    %v1745 = vld [vmem:[#allocation9 + $0x108] sm:$0xff]
    %v1746 = vld [vmem:[#allocation9 + $0x110] sm:$0xff]
    %v1747 = vld [vmem:[#allocation9 + $0x118] sm:$0xff]
    %v1748 = vld [vmem:[#allocation9 + $0x120] sm:$0xff]
    %v1749 = vld [vmem:[#allocation9 + $0x128] sm:$0xff]
    %v1750 = vld [vmem:[#allocation9 + $0x130] sm:$0xff]
    %v1751 = vld [vmem:[#allocation9 + $0x138] sm:$0xff]
    %v1752 = vld [vmem:[#allocation9 + $0x140] sm:$0xff]
    %v1753 = vld [vmem:[#allocation9 + $0x148] sm:$0xff]
    %v1754 = vld [vmem:[#allocation9 + $0x150] sm:$0xff]
    %v1755 = vld [vmem:[#allocation9 + $0x158] sm:$0xff]
    %v1756 = vld [vmem:[#allocation9 + $0x160] sm:$0xff]
    %v1757 = vld [vmem:[#allocation9 + $0x168] sm:$0xff]
    %v1758 = vld [vmem:[#allocation9 + $0x170] sm:$0xff]
    %v1759 = vld [vmem:[#allocation9 + $0x178] sm:$0xff]
    %v1760 = vld [vmem:[#allocation9 + $0x180] sm:$0xff]
    %v1761 = vld [vmem:[#allocation9 + $0x188] sm:$0xff]
    %v1762 = vld [vmem:[#allocation9 + $0x190] sm:$0xff]
    %v1763 = vld [vmem:[#allocation9 + $0x198] sm:$0xff]
    %v1764 = vld [vmem:[#allocation9 + $0x1a0] sm:$0xff]
    %v1765 = vld [vmem:[#allocation9 + $0x1a8] sm:$0xff]
    %v1766 = vld [vmem:[#allocation9 + $0x1b0] sm:$0xff]
    %v1767 = vld [vmem:[#allocation9 + $0x1b8] sm:$0xff]
    %v1768 = vld [vmem:[#allocation9 + $0x1c0] sm:$0xff]
    %v1769 = vld [vmem:[#allocation9 + $0x1c8] sm:$0xff]
    %v1770 = vld [vmem:[#allocation9 + $0x1d0] sm:$0xff]
    %v1771 = vld [vmem:[#allocation9 + $0x1d8] sm:$0xff]
    %v1772 = vld [vmem:[#allocation9 + $0x1e0] sm:$0xff]
    %v1773 = vld [vmem:[#allocation9 + $0x1e8] sm:$0xff]
    %v1774 = vld [vmem:[#allocation9 + $0x1f0] sm:$0xff]
    %v1775 = vld [vmem:[#allocation9 + $0x1f8] sm:$0xff]
    %v1776 = vld [vmem:[#allocation9 + $0x200] sm:$0xff]
    %v1777 = vld [vmem:[#allocation9 + $0x208] sm:$0xff]
    %v1778 = vld [vmem:[#allocation9 + $0x210] sm:$0xff]
    %v1779 = vld [vmem:[#allocation9 + $0x218] sm:$0xff]
    %v1780 = vld [vmem:[#allocation9 + $0x220] sm:$0xff]
    %v1781 = vld [vmem:[#allocation9 + $0x228] sm:$0xff]
    %v1782 = vld [vmem:[#allocation9 + $0x230] sm:$0xff]
    %v1783 = vld [vmem:[#allocation9 + $0x238] sm:$0xff]
    %v1784 = vld [vmem:[#allocation9 + $0x240] sm:$0xff]
    %v1785 = vld [vmem:[#allocation9 + $0x248] sm:$0xff]
    %v1786 = vld [vmem:[#allocation9 + $0x250] sm:$0xff]
    %v1787 = vld [vmem:[#allocation9 + $0x258] sm:$0xff]
    %v1788 = vld [vmem:[#allocation9 + $0x260] sm:$0xff]
    %v1789 = vld [vmem:[#allocation9 + $0x268] sm:$0xff]
    %v1790 = vld [vmem:[#allocation9 + $0x270] sm:$0xff]
    %v1791 = vld [vmem:[#allocation9 + $0x278] sm:$0xff]
    %v1792 = vld [vmem:[#allocation9 + $0x280] sm:$0xff]
    %v1793 = vld [vmem:[#allocation9 + $0x288] sm:$0xff]
    %v1794 = vld [vmem:[#allocation9 + $0x290] sm:$0xff]
    %v1795 = vld [vmem:[#allocation9 + $0x298] sm:$0xff]
    %v1796 = vld [vmem:[#allocation9 + $0x2a0] sm:$0xff]
    %v1797 = vld [vmem:[#allocation9 + $0x2a8] sm:$0xff]
    %v1798 = vld [vmem:[#allocation9 + $0x2b0] sm:$0xff]
    %v1799 = vld [vmem:[#allocation9 + $0x2b8] sm:$0xff]
    %v1800 = vld [vmem:[#allocation9 + $0x2c0] sm:$0xff]
    %v1801 = vld [vmem:[#allocation9 + $0x2c8] sm:$0xff]
    %v1802 = vld [vmem:[#allocation9 + $0x2d0] sm:$0xff]
    %v1803 = vld [vmem:[#allocation9 + $0x2d8] sm:$0xff]
    %v1804 = vld [vmem:[#allocation9 + $0x2e0] sm:$0xff]
    %v1805 = vld [vmem:[#allocation9 + $0x2e8] sm:$0xff]
    %v1806 = vld [vmem:[#allocation9 + $0x2f0] sm:$0xff]
    %v1807 = vld [vmem:[#allocation9 + $0x2f8] sm:$0xff]
    %v1808 = vld [vmem:[#allocation12] sm:$0x3f]
    %v1905 = vunpack.c.l.b16 %v1712
    %v1906 = vunpack.c.h.b16 %v1712
    %v1907 = vunpack.c.l.b16 %v1713
    %v1908 = vunpack.c.h.b16 %v1713
    %v1909 = vunpack.c.l.b16 %v1714
    %v1910 = vunpack.c.h.b16 %v1714
    %v1911 = vunpack.c.l.b16 %v1715
    %v1912 = vunpack.c.h.b16 %v1715
    %v1913 = vunpack.c.l.b16 %v1716
    %v1914 = vunpack.c.h.b16 %v1716
    %v1915 = vunpack.c.l.b16 %v1717
    %v1916 = vunpack.c.h.b16 %v1717
    %v1917 = vunpack.c.l.b16 %v1718
    %v1918 = vunpack.c.h.b16 %v1718
    %v1919 = vunpack.c.l.b16 %v1719
    %v1920 = vunpack.c.h.b16 %v1719
    %v1921 = vunpack.c.l.b16 %v1720
    %v1922 = vunpack.c.h.b16 %v1720
    %v1923 = vunpack.c.l.b16 %v1721
    %v1924 = vunpack.c.h.b16 %v1721
    %v1925 = vunpack.c.l.b16 %v1722
    %v1926 = vunpack.c.h.b16 %v1722
    %v1927 = vunpack.c.l.b16 %v1723
    %v1928 = vunpack.c.h.b16 %v1723
    %v1929 = vunpack.c.l.b16 %v1724
    %v1930 = vunpack.c.h.b16 %v1724
    %v1931 = vunpack.c.l.b16 %v1725
    %v1932 = vunpack.c.h.b16 %v1725
    %v1933 = vunpack.c.l.b16 %v1726
    %v1934 = vunpack.c.h.b16 %v1726
    %v1935 = vunpack.c.l.b16 %v1727
    %v1936 = vunpack.c.h.b16 %v1727
    %v1937 = vunpack.c.l.b16 %v1728
    %v1938 = vunpack.c.h.b16 %v1728
    %v1939 = vunpack.c.l.b16 %v1729
    %v1940 = vunpack.c.h.b16 %v1729
    %v1941 = vunpack.c.l.b16 %v1730
    %v1942 = vunpack.c.h.b16 %v1730
    %v1943 = vunpack.c.l.b16 %v1731
    %v1944 = vunpack.c.h.b16 %v1731
    %v1945 = vunpack.c.l.b16 %v1732
    %v1946 = vunpack.c.h.b16 %v1732
    %v1947 = vunpack.c.l.b16 %v1733
    %v1948 = vunpack.c.h.b16 %v1733
    %v1949 = vunpack.c.l.b16 %v1734
    %v1950 = vunpack.c.h.b16 %v1734
    %v1951 = vunpack.c.l.b16 %v1735
    %v1952 = vunpack.c.h.b16 %v1735
    %v1953 = vunpack.c.l.b16 %v1736
    %v1954 = vunpack.c.h.b16 %v1736
    %v1955 = vunpack.c.l.b16 %v1737
    %v1956 = vunpack.c.h.b16 %v1737
    %v1957 = vunpack.c.l.b16 %v1738
    %v1958 = vunpack.c.h.b16 %v1738
    %v1959 = vunpack.c.l.b16 %v1739
    %v1960 = vunpack.c.h.b16 %v1739
    %v1961 = vunpack.c.l.b16 %v1740
    %v1962 = vunpack.c.h.b16 %v1740
    %v1963 = vunpack.c.l.b16 %v1741
    %v1964 = vunpack.c.h.b16 %v1741
    %v1965 = vunpack.c.l.b16 %v1742
    %v1966 = vunpack.c.h.b16 %v1742
    %v1967 = vunpack.c.l.b16 %v1743
    %v1968 = vunpack.c.h.b16 %v1743
    %v1969 = vunpack.c.l.b16 %v1744
    %v1970 = vunpack.c.h.b16 %v1744
    %v1971 = vunpack.c.l.b16 %v1745
    %v1972 = vunpack.c.h.b16 %v1745
    %v1973 = vunpack.c.l.b16 %v1746
    %v1974 = vunpack.c.h.b16 %v1746
    %v1975 = vunpack.c.l.b16 %v1747
    %v1976 = vunpack.c.h.b16 %v1747
    %v1977 = vunpack.c.l.b16 %v1748
    %v1978 = vunpack.c.h.b16 %v1748
    %v1979 = vunpack.c.l.b16 %v1749
    %v1980 = vunpack.c.h.b16 %v1749
    %v1981 = vunpack.c.l.b16 %v1750
    %v1982 = vunpack.c.h.b16 %v1750
    %v1983 = vunpack.c.l.b16 %v1751
    %v1984 = vunpack.c.h.b16 %v1751
    %v1985 = vunpack.c.l.b16 %v1752
    %v1986 = vunpack.c.h.b16 %v1752
    %v1987 = vunpack.c.l.b16 %v1753
    %v1988 = vunpack.c.h.b16 %v1753
    %v1989 = vunpack.c.l.b16 %v1754
    %v1990 = vunpack.c.h.b16 %v1754
    %v1991 = vunpack.c.l.b16 %v1755
    %v1992 = vunpack.c.h.b16 %v1755
    %v1993 = vunpack.c.l.b16 %v1756
    %v1994 = vunpack.c.h.b16 %v1756
    %v1995 = vunpack.c.l.b16 %v1757
    %v1996 = vunpack.c.h.b16 %v1757
    %v1997 = vunpack.c.l.b16 %v1758
    %v1998 = vunpack.c.h.b16 %v1758
    %v1999 = vunpack.c.l.b16 %v1759
    %v2000 = vunpack.c.h.b16 %v1759
    %v2001 = vunpack.c.l.b16 %v1760
    %v2002 = vunpack.c.h.b16 %v1760
    %v2003 = vunpack.c.l.b16 %v1761
    %v2004 = vunpack.c.h.b16 %v1761
    %v2005 = vunpack.c.l.b16 %v1762
    %v2006 = vunpack.c.h.b16 %v1762
    %v2007 = vunpack.c.l.b16 %v1763
    %v2008 = vunpack.c.h.b16 %v1763
    %v2009 = vunpack.c.l.b16 %v1764
    %v2010 = vunpack.c.h.b16 %v1764
    %v2011 = vunpack.c.l.b16 %v1765
    %v2012 = vunpack.c.h.b16 %v1765
    %v2013 = vunpack.c.l.b16 %v1766
    %v2014 = vunpack.c.h.b16 %v1766
    %v2015 = vunpack.c.l.b16 %v1767
    %v2016 = vunpack.c.h.b16 %v1767
    %v2017 = vunpack.c.l.b16 %v1768
    %v2018 = vunpack.c.h.b16 %v1768
    %v2019 = vunpack.c.l.b16 %v1769
    %v2020 = vunpack.c.h.b16 %v1769
    %v2021 = vunpack.c.l.b16 %v1770
    %v2022 = vunpack.c.h.b16 %v1770
    %v2023 = vunpack.c.l.b16 %v1771
    %v2024 = vunpack.c.h.b16 %v1771
    %v2025 = vunpack.c.l.b16 %v1772
    %v2026 = vunpack.c.h.b16 %v1772
    %v2027 = vunpack.c.l.b16 %v1773
    %v2028 = vunpack.c.h.b16 %v1773
    %v2029 = vunpack.c.l.b16 %v1774
    %v2030 = vunpack.c.h.b16 %v1774
    %v2031 = vunpack.c.l.b16 %v1775
    %v2032 = vunpack.c.h.b16 %v1775
    %v2033 = vunpack.c.l.b16 %v1776
    %v2034 = vunpack.c.h.b16 %v1776
    %v2035 = vunpack.c.l.b16 %v1777
    %v2036 = vunpack.c.h.b16 %v1777
    %v2037 = vunpack.c.l.b16 %v1778
    %v2038 = vunpack.c.h.b16 %v1778
    %v2039 = vunpack.c.l.b16 %v1779
    %v2040 = vunpack.c.h.b16 %v1779
    %v2041 = vunpack.c.l.b16 %v1780
    %v2042 = vunpack.c.h.b16 %v1780
    %v2043 = vunpack.c.l.b16 %v1781
    %v2044 = vunpack.c.h.b16 %v1781
    %v2045 = vunpack.c.l.b16 %v1782
    %v2046 = vunpack.c.h.b16 %v1782
    %v2047 = vunpack.c.l.b16 %v1783
    %v2048 = vunpack.c.h.b16 %v1783
    %v2049 = vunpack.c.l.b16 %v1784
    %v2050 = vunpack.c.h.b16 %v1784
    %v2051 = vunpack.c.l.b16 %v1785
    %v2052 = vunpack.c.h.b16 %v1785
    %v2053 = vunpack.c.l.b16 %v1786
    %v2054 = vunpack.c.h.b16 %v1786
    %v2055 = vunpack.c.l.b16 %v1787
    %v2056 = vunpack.c.h.b16 %v1787
    %v2057 = vunpack.c.l.b16 %v1788
    %v2058 = vunpack.c.h.b16 %v1788
    %v2059 = vunpack.c.l.b16 %v1789
    %v2060 = vunpack.c.h.b16 %v1789
    %v2061 = vunpack.c.l.b16 %v1790
    %v2062 = vunpack.c.h.b16 %v1790
    %v2063 = vunpack.c.l.b16 %v1791
    %v2064 = vunpack.c.h.b16 %v1791
    %v2065 = vunpack.c.l.b16 %v1792
    %v2066 = vunpack.c.h.b16 %v1792
    %v2067 = vunpack.c.l.b16 %v1793
    %v2068 = vunpack.c.h.b16 %v1793
    %v2069 = vunpack.c.l.b16 %v1794
    %v2070 = vunpack.c.h.b16 %v1794
    %v2071 = vunpack.c.l.b16 %v1795
    %v2072 = vunpack.c.h.b16 %v1795
    %v2073 = vunpack.c.l.b16 %v1796
    %v2074 = vunpack.c.h.b16 %v1796
    %v2075 = vunpack.c.l.b16 %v1797
    %v2076 = vunpack.c.h.b16 %v1797
    %v2077 = vunpack.c.l.b16 %v1798
    %v2078 = vunpack.c.h.b16 %v1798
    %v2079 = vunpack.c.l.b16 %v1799
    %v2080 = vunpack.c.h.b16 %v1799
    %v2081 = vunpack.c.l.b16 %v1800
    %v2082 = vunpack.c.h.b16 %v1800
    %v2083 = vunpack.c.l.b16 %v1801
    %v2084 = vunpack.c.h.b16 %v1801
    %v2085 = vunpack.c.l.b16 %v1802
    %v2086 = vunpack.c.h.b16 %v1802
    %v2087 = vunpack.c.l.b16 %v1803
    %v2088 = vunpack.c.h.b16 %v1803
    %v2089 = vunpack.c.l.b16 %v1804
    %v2090 = vunpack.c.h.b16 %v1804
    %v2091 = vunpack.c.l.b16 %v1805
    %v2092 = vunpack.c.h.b16 %v1805
    %v2093 = vunpack.c.l.b16 %v1806
    %v2094 = vunpack.c.h.b16 %v1806
    %v2095 = vunpack.c.l.b16 %v1807
    %v2096 = vunpack.c.h.b16 %v1807
    %v2097 = vpack.c.b16 %v1911, %v1905
    %v2098 = vpack.c.b16 %v1912, %v1906
    %v2099 = vpack.c.b16 %v1913, %v1907
    %v2100 = vpack.c.b16 %v1914, %v1908
    %v2101 = vpack.c.b16 %v1915, %v1909
    %v2102 = vpack.c.b16 %v1916, %v1910
    %v2103 = vpack.c.b16 %v1923, %v1917
    %v2104 = vpack.c.b16 %v1924, %v1918
    %v2105 = vpack.c.b16 %v1925, %v1919
    %v2106 = vpack.c.b16 %v1926, %v1920
    %v2107 = vpack.c.b16 %v1927, %v1921
    %v2108 = vpack.c.b16 %v1928, %v1922
    %v2109 = vpack.c.b16 %v1935, %v1929
    %v2110 = vpack.c.b16 %v1936, %v1930
    %v2111 = vpack.c.b16 %v1937, %v1931
    %v2112 = vpack.c.b16 %v1938, %v1932
    %v2113 = vpack.c.b16 %v1939, %v1933
    %v2114 = vpack.c.b16 %v1940, %v1934
    %v2115 = vpack.c.b16 %v1947, %v1941
    %v2116 = vpack.c.b16 %v1948, %v1942
    %v2117 = vpack.c.b16 %v1949, %v1943
    %v2118 = vpack.c.b16 %v1950, %v1944
    %v2119 = vpack.c.b16 %v1951, %v1945
    %v2120 = vpack.c.b16 %v1952, %v1946
    %v2121 = vpack.c.b16 %v1959, %v1953
    %v2122 = vpack.c.b16 %v1960, %v1954
    %v2123 = vpack.c.b16 %v1961, %v1955
    %v2124 = vpack.c.b16 %v1962, %v1956
    %v2125 = vpack.c.b16 %v1963, %v1957
    %v2126 = vpack.c.b16 %v1964, %v1958
    %v2127 = vpack.c.b16 %v1971, %v1965
    %v2128 = vpack.c.b16 %v1972, %v1966
    %v2129 = vpack.c.b16 %v1973, %v1967
    %v2130 = vpack.c.b16 %v1974, %v1968
    %v2131 = vpack.c.b16 %v1975, %v1969
    %v2132 = vpack.c.b16 %v1976, %v1970
    %v2133 = vpack.c.b16 %v1983, %v1977
    %v2134 = vpack.c.b16 %v1984, %v1978
    %v2135 = vpack.c.b16 %v1985, %v1979
    %v2136 = vpack.c.b16 %v1986, %v1980
    %v2137 = vpack.c.b16 %v1987, %v1981
    %v2138 = vpack.c.b16 %v1988, %v1982
    %v2139 = vpack.c.b16 %v1995, %v1989
    %v2140 = vpack.c.b16 %v1996, %v1990
    %v2141 = vpack.c.b16 %v1997, %v1991
    %v2142 = vpack.c.b16 %v1998, %v1992
    %v2143 = vpack.c.b16 %v1999, %v1993
    %v2144 = vpack.c.b16 %v2000, %v1994
    %v2145 = vpack.c.b16 %v2007, %v2001
    %v2146 = vpack.c.b16 %v2008, %v2002
    %v2147 = vpack.c.b16 %v2009, %v2003
    %v2148 = vpack.c.b16 %v2010, %v2004
    %v2149 = vpack.c.b16 %v2011, %v2005
    %v2150 = vpack.c.b16 %v2012, %v2006
    %v2151 = vpack.c.b16 %v2019, %v2013
    %v2152 = vpack.c.b16 %v2020, %v2014
    %v2153 = vpack.c.b16 %v2021, %v2015
    %v2154 = vpack.c.b16 %v2022, %v2016
    %v2155 = vpack.c.b16 %v2023, %v2017
    %v2156 = vpack.c.b16 %v2024, %v2018
    %v2157 = vpack.c.b16 %v2031, %v2025
    %v2158 = vpack.c.b16 %v2032, %v2026
    %v2159 = vpack.c.b16 %v2033, %v2027
    %v2160 = vpack.c.b16 %v2034, %v2028
    %v2161 = vpack.c.b16 %v2035, %v2029
    %v2162 = vpack.c.b16 %v2036, %v2030
    %v2163 = vpack.c.b16 %v2043, %v2037
    %v2164 = vpack.c.b16 %v2044, %v2038
    %v2165 = vpack.c.b16 %v2045, %v2039
    %v2166 = vpack.c.b16 %v2046, %v2040
    %v2167 = vpack.c.b16 %v2047, %v2041
    %v2168 = vpack.c.b16 %v2048, %v2042
    %v2169 = vpack.c.b16 %v2055, %v2049
    %v2170 = vpack.c.b16 %v2056, %v2050
    %v2171 = vpack.c.b16 %v2057, %v2051
    %v2172 = vpack.c.b16 %v2058, %v2052
    %v2173 = vpack.c.b16 %v2059, %v2053
    %v2174 = vpack.c.b16 %v2060, %v2054
    %v2175 = vpack.c.b16 %v2067, %v2061
    %v2176 = vpack.c.b16 %v2068, %v2062
    %v2177 = vpack.c.b16 %v2069, %v2063
    %v2178 = vpack.c.b16 %v2070, %v2064
    %v2179 = vpack.c.b16 %v2071, %v2065
    %v2180 = vpack.c.b16 %v2072, %v2066
    %v2181 = vpack.c.b16 %v2079, %v2073
    %v2182 = vpack.c.b16 %v2080, %v2074
    %v2183 = vpack.c.b16 %v2081, %v2075
    %v2184 = vpack.c.b16 %v2082, %v2076
    %v2185 = vpack.c.b16 %v2083, %v2077
    %v2186 = vpack.c.b16 %v2084, %v2078
    %v2187 = vpack.c.b16 %v2091, %v2085
    %v2188 = vpack.c.b16 %v2092, %v2086
    %v2189 = vpack.c.b16 %v2093, %v2087
    %v2190 = vpack.c.b16 %v2094, %v2088
    %v2191 = vpack.c.b16 %v2095, %v2089
    %v2192 = vpack.c.b16 %v2096, %v2090
    %v2290 = vperm.slane %v1808, 0
    %v2291 = vperm.slane %v1808, 1
    %v2292 = vperm.slane %v1808, 2
    %v2293 = vperm.slane %v1808, 3
    %v2294 = vperm.slane %v1808, 4
    %v2295 = vperm.slane %v1808, 5
    %2302 = vmatpush.bf16.msra.mxu0 %v2139
    %2303 = vmatpush.bf16.msra.mxu0 %v2133
    %2304 = vmatpush.bf16.msra.mxu0 %v2127
    %2305 = vmatpush.bf16.msra.mxu0 %v2121
    %2306 = vmatpush.bf16.msra.mxu0 %v2115
    %2307 = vmatpush.bf16.msra.mxu0 %v2109
    %2308 = vmatpush.bf16.msra.mxu0 %v2103
    %2309 = vmatpush.bf16.msra.mxu0 %v2097
    %2310 = vmatmul.bf16.gmra.mxu0 %v1710
    %v2311 = vpop.f32.mrf.mxu0
    %v2312 = vadd.f32 %v2290, %v2311
    %v2313 = vpop.f32.mrf.mxu0
    %2314 = vdwg.mxu0
    %2315 = vmatpush.bf16.msra.mxu0 %v2187
    %2316 = vmatpush.bf16.msra.mxu0 %v2181
    %2317 = vmatpush.bf16.msra.mxu0 %v2175
    %2318 = vmatpush.bf16.msra.mxu0 %v2169
    %2319 = vmatpush.bf16.msra.mxu0 %v2163
    %2320 = vmatpush.bf16.msra.mxu0 %v2157
    %2321 = vmatpush.bf16.msra.mxu0 %v2151
    %2322 = vmatpush.bf16.msra.mxu0 %v2145
    %2323 = vmatmul.bf16.gmra.mxu0 %v1711
    %v2324 = vpop.f32.mrf.mxu0
    %v2325 = vadd.f32 %v2312, %v2324
    %v2326 = vpop.f32.mrf.mxu0
    %2327 = vdwg.mxu0
    %2328 = vmatpush.bf16.msra.mxu0 %v2140
    %2329 = vmatpush.bf16.msra.mxu0 %v2134
    %2330 = vmatpush.bf16.msra.mxu0 %v2128
    %2331 = vmatpush.bf16.msra.mxu0 %v2122
    %2332 = vmatpush.bf16.msra.mxu0 %v2116
    %2333 = vmatpush.bf16.msra.mxu0 %v2110
    %2334 = vmatpush.bf16.msra.mxu0 %v2104
    %2335 = vmatpush.bf16.msra.mxu0 %v2098
    %2336 = vmatmul.bf16.gmra.mxu0 %v1710
    %v2337 = vpop.f32.mrf.mxu0
    %v2338 = vadd.f32 %v2291, %v2337
    %v2339 = vpop.f32.mrf.mxu0
    %2340 = vdwg.mxu0
    %2341 = vmatpush.bf16.msra.mxu0 %v2188
    %2342 = vmatpush.bf16.msra.mxu0 %v2182
    %2343 = vmatpush.bf16.msra.mxu0 %v2176
    %2344 = vmatpush.bf16.msra.mxu0 %v2170
    %2345 = vmatpush.bf16.msra.mxu0 %v2164
    %2346 = vmatpush.bf16.msra.mxu0 %v2158
    %2347 = vmatpush.bf16.msra.mxu0 %v2152
    %2348 = vmatpush.bf16.msra.mxu0 %v2146
    %2349 = vmatmul.bf16.gmra.mxu0 %v1711
    %v2350 = vpop.f32.mrf.mxu0
    %v2351 = vadd.f32 %v2338, %v2350
    %v2352 = vpop.f32.mrf.mxu0
    %2353 = vdwg.mxu0
    %2354 = vmatpush.bf16.msra.mxu0 %v2141
    %2355 = vmatpush.bf16.msra.mxu0 %v2135
    %2356 = vmatpush.bf16.msra.mxu0 %v2129
    %2357 = vmatpush.bf16.msra.mxu0 %v2123
    %2358 = vmatpush.bf16.msra.mxu0 %v2117
    %2359 = vmatpush.bf16.msra.mxu0 %v2111
    %2360 = vmatpush.bf16.msra.mxu0 %v2105
    %2361 = vmatpush.bf16.msra.mxu0 %v2099
    %2362 = vmatmul.bf16.gmra.mxu0 %v1710
    %v2363 = vpop.f32.mrf.mxu0
    %v2364 = vadd.f32 %v2292, %v2363
    %v2365 = vpop.f32.mrf.mxu0
    %2366 = vdwg.mxu0
    %2367 = vmatpush.bf16.msra.mxu0 %v2189
    %2368 = vmatpush.bf16.msra.mxu0 %v2183
    %2369 = vmatpush.bf16.msra.mxu0 %v2177
    %2370 = vmatpush.bf16.msra.mxu0 %v2171
    %2371 = vmatpush.bf16.msra.mxu0 %v2165
    %2372 = vmatpush.bf16.msra.mxu0 %v2159
    %2373 = vmatpush.bf16.msra.mxu0 %v2153
    %2374 = vmatpush.bf16.msra.mxu0 %v2147
    %2375 = vmatmul.bf16.gmra.mxu0 %v1711
    %v2376 = vpop.f32.mrf.mxu0
    %v2377 = vadd.f32 %v2364, %v2376
    %v2378 = vpop.f32.mrf.mxu0
    %2379 = vdwg.mxu0
    %2380 = vmatpush.bf16.msra.mxu0 %v2142
    %2381 = vmatpush.bf16.msra.mxu0 %v2136
    %2382 = vmatpush.bf16.msra.mxu0 %v2130
    %2383 = vmatpush.bf16.msra.mxu0 %v2124
    %2384 = vmatpush.bf16.msra.mxu0 %v2118
    %2385 = vmatpush.bf16.msra.mxu0 %v2112
    %2386 = vmatpush.bf16.msra.mxu0 %v2106
    %2387 = vmatpush.bf16.msra.mxu0 %v2100
    %2388 = vmatmul.bf16.gmra.mxu0 %v1710
    %v2389 = vpop.f32.mrf.mxu0
    %v2390 = vadd.f32 %v2293, %v2389
    %v2391 = vpop.f32.mrf.mxu0
    %2392 = vdwg.mxu0
    %2393 = vmatpush.bf16.msra.mxu0 %v2190
    %2394 = vmatpush.bf16.msra.mxu0 %v2184
    %2395 = vmatpush.bf16.msra.mxu0 %v2178
    %2396 = vmatpush.bf16.msra.mxu0 %v2172
    %2397 = vmatpush.bf16.msra.mxu0 %v2166
    %2398 = vmatpush.bf16.msra.mxu0 %v2160
    %2399 = vmatpush.bf16.msra.mxu0 %v2154
    %2400 = vmatpush.bf16.msra.mxu0 %v2148
    %2401 = vmatmul.bf16.gmra.mxu0 %v1711
    %v2402 = vpop.f32.mrf.mxu0
    %v2403 = vadd.f32 %v2390, %v2402
    %v2404 = vpop.f32.mrf.mxu0
    %2405 = vdwg.mxu0
    %2406 = vmatpush.bf16.msra.mxu0 %v2143
    %2407 = vmatpush.bf16.msra.mxu0 %v2137
    %2408 = vmatpush.bf16.msra.mxu0 %v2131
    %2409 = vmatpush.bf16.msra.mxu0 %v2125
    %2410 = vmatpush.bf16.msra.mxu0 %v2119
    %2411 = vmatpush.bf16.msra.mxu0 %v2113
    %2412 = vmatpush.bf16.msra.mxu0 %v2107
    %2413 = vmatpush.bf16.msra.mxu0 %v2101
    %2414 = vmatmul.bf16.gmra.mxu0 %v1710
    %v2415 = vpop.f32.mrf.mxu0
    %v2416 = vadd.f32 %v2294, %v2415
    %v2417 = vpop.f32.mrf.mxu0
    %2418 = vdwg.mxu0
    %2419 = vmatpush.bf16.msra.mxu0 %v2191
    %2420 = vmatpush.bf16.msra.mxu0 %v2185
    %2421 = vmatpush.bf16.msra.mxu0 %v2179
    %2422 = vmatpush.bf16.msra.mxu0 %v2173
    %2423 = vmatpush.bf16.msra.mxu0 %v2167
    %2424 = vmatpush.bf16.msra.mxu0 %v2161
    %2425 = vmatpush.bf16.msra.mxu0 %v2155
    %2426 = vmatpush.bf16.msra.mxu0 %v2149
    %2427 = vmatmul.bf16.gmra.mxu0 %v1711
    %v2428 = vpop.f32.mrf.mxu0
    %v2429 = vadd.f32 %v2416, %v2428
    %v2430 = vpop.f32.mrf.mxu0
    %2431 = vdwg.mxu0
    %2432 = vmatpush.bf16.msra.mxu0 %v2144
    %2433 = vmatpush.bf16.msra.mxu0 %v2138
    %2434 = vmatpush.bf16.msra.mxu0 %v2132
    %2435 = vmatpush.bf16.msra.mxu0 %v2126
    %2436 = vmatpush.bf16.msra.mxu0 %v2120
    %2437 = vmatpush.bf16.msra.mxu0 %v2114
    %2438 = vmatpush.bf16.msra.mxu0 %v2108
    %2439 = vmatpush.bf16.msra.mxu0 %v2102
    %2440 = vmatmul.bf16.gmra.mxu0 %v1710
    %v2441 = vpop.f32.mrf.mxu0
    %v2442 = vadd.f32 %v2295, %v2441
    %v2443 = vpop.f32.mrf.mxu0
    %2444 = vdwg.mxu0
    %2445 = vmatpush.bf16.msra.mxu0 %v2192
    %2446 = vmatpush.bf16.msra.mxu0 %v2186
    %2447 = vmatpush.bf16.msra.mxu0 %v2180
    %2448 = vmatpush.bf16.msra.mxu0 %v2174
    %2449 = vmatpush.bf16.msra.mxu0 %v2168
    %2450 = vmatpush.bf16.msra.mxu0 %v2162
    %2451 = vmatpush.bf16.msra.mxu0 %v2156
    %2452 = vmatpush.bf16.msra.mxu0 %v2150
    %2453 = vmatmul.bf16.gmra.mxu0 %v1711
    %v2454 = vpop.f32.mrf.mxu0
    %v2455 = vadd.f32 %v2442, %v2454
    %v2456 = vpop.f32.mrf.mxu0
    %2457 = vdwg.mxu0
    %v2460 = vrot.slane %v2351, 7
    %v2461 = vsel %vm1630, %v2325, %v2460
    %v2463 = vadd.f32 %v1704, %v2461
    %v2464 = vxor.u32 %v2463, 2147483648
    %v2465 = vmul.f32 %v2464, 1.442695
    %v2466 = vpow.pop %v2465
    %v2467 = vadd.f32 %v2466, 1.0
    %v2468 = vrcp.pop %v2467
    %v2469 = vmul.f32 %v2467, %v2468
    %v2470 = vsub.f32 1.0, %v2469
    %v2471 = vmul.f32 %v2468, %v2470
    %v2472 = vadd.f32 %v2468, %v2471
    %vm2473 = vweird.f32 %v2467
    %vm2474 = vweird.f32 %v2468
    %vm2475 = vmor %vm2473, %vm2474
    %v2476 = vsel %vm2475, %v2468, %v2472
    %v2477 = vand.u32 2147483647, %v2467
    %vm2478 = vcmp.eq.f32.partialorder %v2477, 8.507059e+37
    %v2479 = vand.u32 %v2467, 2147483648
    %v2480 = vor.u32 1.1754944e-38, %v2479
    %v2481 = vsel %vm2478, %v2480, %v2476
    %v2482 = vmul.f32 1.0, %v2481
    %v2484 = vrot.slane %v1704, 2
    %v2488 = vrot.slane %v2403, 7
    %v2489 = vsel %vm1630, %v2377, %v2488
    %v2491 = vadd.f32 %v2484, %v2489
    %v2492 = vxor.u32 %v2491, 2147483648
    %v2493 = vmul.f32 %v2492, 1.442695
    %v2494 = vpow.pop %v2493
    %v2495 = vadd.f32 %v2494, 1.0
    %v2496 = vrcp.pop %v2495
    %v2497 = vmul.f32 %v2495, %v2496
    %v2498 = vsub.f32 1.0, %v2497
    %v2499 = vmul.f32 %v2496, %v2498
    %v2500 = vadd.f32 %v2496, %v2499
    %vm2501 = vweird.f32 %v2495
    %vm2502 = vweird.f32 %v2496
    %vm2503 = vmor %vm2501, %vm2502
    %v2504 = vsel %vm2503, %v2496, %v2500
    %v2505 = vand.u32 2147483647, %v2495
    %vm2506 = vcmp.eq.f32.partialorder %v2505, 8.507059e+37
    %v2507 = vand.u32 %v2495, 2147483648
    %v2508 = vor.u32 1.1754944e-38, %v2507
    %v2509 = vsel %vm2506, %v2508, %v2504
    %v2510 = vmul.f32 1.0, %v2509
    %v2513 = vrot.slane %v2455, 7
    %v2514 = vsel %vm1630, %v2429, %v2513
    %v2516 = vmul.f32 %v2482, %v2514
    %v2517 = vrot.slane %v1704, 4
    %v2519 = vadd.f32 %v2517, %v2516
    %v2520 = vtanh.pop %v2519
    %v2521 = vsub.f32 1.0, %v2510
    %v2522 = vmul.f32 %v2521, %v2520
    %v2523 = vmul.f32 %v2510, %v1694
    %v2524 = vadd.f32 %v2522, %v2523
    %s2525 = scalar_lea.vmem [#allocation14], 1
    %2526 = vst.msk [vmem:[%s2525] ss:$8 sm:$0x3] %vm1698, %v2524
    %2527 = vst.msk [vmem:[%s2525] ss:$8 sm:$0x0] %vm1698, %v2524
    %s2528 = scalar_lea.vmem [#allocation2], 2
    %v2529 = vld [vmem:[%s2528] ss:$8 sm:$0xf]
    %v2530 = vld [vmem:[%s2528] ss:$8 sm:$0x30]
    %v2531 = vor.u32 %v2529, %v2530
    %v2533 = vperm.slane %v2524, 0
    %v2534 = vperm.slane %v2524, 1
    %v2537 = vpack.c.bf16 %v2533, %v2533
    %v2538 = vpack.c.bf16 %v2534, %v2534
    %v2539 = vld [vmem:[#allocation9] sm:$0xff]
    %v2540 = vld [vmem:[#allocation9 + $0x8] sm:$0xff]
    %v2541 = vld [vmem:[#allocation9 + $0x10] sm:$0xff]
    %v2542 = vld [vmem:[#allocation9 + $0x18] sm:$0xff]
    %v2543 = vld [vmem:[#allocation9 + $0x20] sm:$0xff]
    %v2544 = vld [vmem:[#allocation9 + $0x28] sm:$0xff]
    %v2545 = vld [vmem:[#allocation9 + $0x30] sm:$0xff]
    %v2546 = vld [vmem:[#allocation9 + $0x38] sm:$0xff]
    %v2547 = vld [vmem:[#allocation9 + $0x40] sm:$0xff]
    %v2548 = vld [vmem:[#allocation9 + $0x48] sm:$0xff]
    %v2549 = vld [vmem:[#allocation9 + $0x50] sm:$0xff]
    %v2550 = vld [vmem:[#allocation9 + $0x58] sm:$0xff]
    %v2551 = vld [vmem:[#allocation9 + $0x60] sm:$0xff]
    %v2552 = vld [vmem:[#allocation9 + $0x68] sm:$0xff]
    %v2553 = vld [vmem:[#allocation9 + $0x70] sm:$0xff]
    %v2554 = vld [vmem:[#allocation9 + $0x78] sm:$0xff]
    %v2555 = vld [vmem:[#allocation9 + $0x80] sm:$0xff]
    %v2556 = vld [vmem:[#allocation9 + $0x88] sm:$0xff]
    %v2557 = vld [vmem:[#allocation9 + $0x90] sm:$0xff]
    %v2558 = vld [vmem:[#allocation9 + $0x98] sm:$0xff]
    %v2559 = vld [vmem:[#allocation9 + $0xa0] sm:$0xff]
    %v2560 = vld [vmem:[#allocation9 + $0xa8] sm:$0xff]
    %v2561 = vld [vmem:[#allocation9 + $0xb0] sm:$0xff]
    %v2562 = vld [vmem:[#allocation9 + $0xb8] sm:$0xff]
    %v2563 = vld [vmem:[#allocation9 + $0xc0] sm:$0xff]
    %v2564 = vld [vmem:[#allocation9 + $0xc8] sm:$0xff]
    %v2565 = vld [vmem:[#allocation9 + $0xd0] sm:$0xff]
    %v2566 = vld [vmem:[#allocation9 + $0xd8] sm:$0xff]
    %v2567 = vld [vmem:[#allocation9 + $0xe0] sm:$0xff]
    %v2568 = vld [vmem:[#allocation9 + $0xe8] sm:$0xff]
    %v2569 = vld [vmem:[#allocation9 + $0xf0] sm:$0xff]
    %v2570 = vld [vmem:[#allocation9 + $0xf8] sm:$0xff]
    %v2571 = vld [vmem:[#allocation9 + $0x100] sm:$0xff]
    %v2572 = vld [vmem:[#allocation9 + $0x108] sm:$0xff]
    %v2573 = vld [vmem:[#allocation9 + $0x110] sm:$0xff]
    %v2574 = vld [vmem:[#allocation9 + $0x118] sm:$0xff]
    %v2575 = vld [vmem:[#allocation9 + $0x120] sm:$0xff]
    %v2576 = vld [vmem:[#allocation9 + $0x128] sm:$0xff]
    %v2577 = vld [vmem:[#allocation9 + $0x130] sm:$0xff]
    %v2578 = vld [vmem:[#allocation9 + $0x138] sm:$0xff]
    %v2579 = vld [vmem:[#allocation9 + $0x140] sm:$0xff]
    %v2580 = vld [vmem:[#allocation9 + $0x148] sm:$0xff]
    %v2581 = vld [vmem:[#allocation9 + $0x150] sm:$0xff]
    %v2582 = vld [vmem:[#allocation9 + $0x158] sm:$0xff]
    %v2583 = vld [vmem:[#allocation9 + $0x160] sm:$0xff]
    %v2584 = vld [vmem:[#allocation9 + $0x168] sm:$0xff]
    %v2585 = vld [vmem:[#allocation9 + $0x170] sm:$0xff]
    %v2586 = vld [vmem:[#allocation9 + $0x178] sm:$0xff]
    %v2587 = vld [vmem:[#allocation9 + $0x180] sm:$0xff]
    %v2588 = vld [vmem:[#allocation9 + $0x188] sm:$0xff]
    %v2589 = vld [vmem:[#allocation9 + $0x190] sm:$0xff]
    %v2590 = vld [vmem:[#allocation9 + $0x198] sm:$0xff]
    %v2591 = vld [vmem:[#allocation9 + $0x1a0] sm:$0xff]
    %v2592 = vld [vmem:[#allocation9 + $0x1a8] sm:$0xff]
    %v2593 = vld [vmem:[#allocation9 + $0x1b0] sm:$0xff]
    %v2594 = vld [vmem:[#allocation9 + $0x1b8] sm:$0xff]
    %v2595 = vld [vmem:[#allocation9 + $0x1c0] sm:$0xff]
    %v2596 = vld [vmem:[#allocation9 + $0x1c8] sm:$0xff]
    %v2597 = vld [vmem:[#allocation9 + $0x1d0] sm:$0xff]
    %v2598 = vld [vmem:[#allocation9 + $0x1d8] sm:$0xff]
    %v2599 = vld [vmem:[#allocation9 + $0x1e0] sm:$0xff]
    %v2600 = vld [vmem:[#allocation9 + $0x1e8] sm:$0xff]
    %v2601 = vld [vmem:[#allocation9 + $0x1f0] sm:$0xff]
    %v2602 = vld [vmem:[#allocation9 + $0x1f8] sm:$0xff]
    %v2603 = vld [vmem:[#allocation9 + $0x200] sm:$0xff]
    %v2604 = vld [vmem:[#allocation9 + $0x208] sm:$0xff]
    %v2605 = vld [vmem:[#allocation9 + $0x210] sm:$0xff]
    %v2606 = vld [vmem:[#allocation9 + $0x218] sm:$0xff]
    %v2607 = vld [vmem:[#allocation9 + $0x220] sm:$0xff]
    %v2608 = vld [vmem:[#allocation9 + $0x228] sm:$0xff]
    %v2609 = vld [vmem:[#allocation9 + $0x230] sm:$0xff]
    %v2610 = vld [vmem:[#allocation9 + $0x238] sm:$0xff]
    %v2611 = vld [vmem:[#allocation9 + $0x240] sm:$0xff]
    %v2612 = vld [vmem:[#allocation9 + $0x248] sm:$0xff]
    %v2613 = vld [vmem:[#allocation9 + $0x250] sm:$0xff]
    %v2614 = vld [vmem:[#allocation9 + $0x258] sm:$0xff]
    %v2615 = vld [vmem:[#allocation9 + $0x260] sm:$0xff]
    %v2616 = vld [vmem:[#allocation9 + $0x268] sm:$0xff]
    %v2617 = vld [vmem:[#allocation9 + $0x270] sm:$0xff]
    %v2618 = vld [vmem:[#allocation9 + $0x278] sm:$0xff]
    %v2619 = vld [vmem:[#allocation9 + $0x280] sm:$0xff]
    %v2620 = vld [vmem:[#allocation9 + $0x288] sm:$0xff]
    %v2621 = vld [vmem:[#allocation9 + $0x290] sm:$0xff]
    %v2622 = vld [vmem:[#allocation9 + $0x298] sm:$0xff]
    %v2623 = vld [vmem:[#allocation9 + $0x2a0] sm:$0xff]
    %v2624 = vld [vmem:[#allocation9 + $0x2a8] sm:$0xff]
    %v2625 = vld [vmem:[#allocation9 + $0x2b0] sm:$0xff]
    %v2626 = vld [vmem:[#allocation9 + $0x2b8] sm:$0xff]
    %v2627 = vld [vmem:[#allocation9 + $0x2c0] sm:$0xff]
    %v2628 = vld [vmem:[#allocation9 + $0x2c8] sm:$0xff]
    %v2629 = vld [vmem:[#allocation9 + $0x2d0] sm:$0xff]
    %v2630 = vld [vmem:[#allocation9 + $0x2d8] sm:$0xff]
    %v2631 = vld [vmem:[#allocation9 + $0x2e0] sm:$0xff]
    %v2632 = vld [vmem:[#allocation9 + $0x2e8] sm:$0xff]
    %v2633 = vld [vmem:[#allocation9 + $0x2f0] sm:$0xff]
    %v2634 = vld [vmem:[#allocation9 + $0x2f8] sm:$0xff]
    %v2635 = vld [vmem:[#allocation12] sm:$0x3f]
    %v2732 = vunpack.c.l.b16 %v2539
    %v2733 = vunpack.c.h.b16 %v2539
    %v2734 = vunpack.c.l.b16 %v2540
    %v2735 = vunpack.c.h.b16 %v2540
    %v2736 = vunpack.c.l.b16 %v2541
    %v2737 = vunpack.c.h.b16 %v2541
    %v2738 = vunpack.c.l.b16 %v2542
    %v2739 = vunpack.c.h.b16 %v2542
    %v2740 = vunpack.c.l.b16 %v2543
    %v2741 = vunpack.c.h.b16 %v2543
    %v2742 = vunpack.c.l.b16 %v2544
    %v2743 = vunpack.c.h.b16 %v2544
    %v2744 = vunpack.c.l.b16 %v2545
    %v2745 = vunpack.c.h.b16 %v2545
    %v2746 = vunpack.c.l.b16 %v2546
    %v2747 = vunpack.c.h.b16 %v2546
    %v2748 = vunpack.c.l.b16 %v2547
    %v2749 = vunpack.c.h.b16 %v2547
    %v2750 = vunpack.c.l.b16 %v2548
    %v2751 = vunpack.c.h.b16 %v2548
    %v2752 = vunpack.c.l.b16 %v2549
    %v2753 = vunpack.c.h.b16 %v2549
    %v2754 = vunpack.c.l.b16 %v2550
    %v2755 = vunpack.c.h.b16 %v2550
    %v2756 = vunpack.c.l.b16 %v2551
    %v2757 = vunpack.c.h.b16 %v2551
    %v2758 = vunpack.c.l.b16 %v2552
    %v2759 = vunpack.c.h.b16 %v2552
    %v2760 = vunpack.c.l.b16 %v2553
    %v2761 = vunpack.c.h.b16 %v2553
    %v2762 = vunpack.c.l.b16 %v2554
    %v2763 = vunpack.c.h.b16 %v2554
    %v2764 = vunpack.c.l.b16 %v2555
    %v2765 = vunpack.c.h.b16 %v2555
    %v2766 = vunpack.c.l.b16 %v2556
    %v2767 = vunpack.c.h.b16 %v2556
    %v2768 = vunpack.c.l.b16 %v2557
    %v2769 = vunpack.c.h.b16 %v2557
    %v2770 = vunpack.c.l.b16 %v2558
    %v2771 = vunpack.c.h.b16 %v2558
    %v2772 = vunpack.c.l.b16 %v2559
    %v2773 = vunpack.c.h.b16 %v2559
    %v2774 = vunpack.c.l.b16 %v2560
    %v2775 = vunpack.c.h.b16 %v2560
    %v2776 = vunpack.c.l.b16 %v2561
    %v2777 = vunpack.c.h.b16 %v2561
    %v2778 = vunpack.c.l.b16 %v2562
    %v2779 = vunpack.c.h.b16 %v2562
    %v2780 = vunpack.c.l.b16 %v2563
    %v2781 = vunpack.c.h.b16 %v2563
    %v2782 = vunpack.c.l.b16 %v2564
    %v2783 = vunpack.c.h.b16 %v2564
    %v2784 = vunpack.c.l.b16 %v2565
    %v2785 = vunpack.c.h.b16 %v2565
    %v2786 = vunpack.c.l.b16 %v2566
    %v2787 = vunpack.c.h.b16 %v2566
    %v2788 = vunpack.c.l.b16 %v2567
    %v2789 = vunpack.c.h.b16 %v2567
    %v2790 = vunpack.c.l.b16 %v2568
    %v2791 = vunpack.c.h.b16 %v2568
    %v2792 = vunpack.c.l.b16 %v2569
    %v2793 = vunpack.c.h.b16 %v2569
    %v2794 = vunpack.c.l.b16 %v2570
    %v2795 = vunpack.c.h.b16 %v2570
    %v2796 = vunpack.c.l.b16 %v2571
    %v2797 = vunpack.c.h.b16 %v2571
    %v2798 = vunpack.c.l.b16 %v2572
    %v2799 = vunpack.c.h.b16 %v2572
    %v2800 = vunpack.c.l.b16 %v2573
    %v2801 = vunpack.c.h.b16 %v2573
    %v2802 = vunpack.c.l.b16 %v2574
    %v2803 = vunpack.c.h.b16 %v2574
    %v2804 = vunpack.c.l.b16 %v2575
    %v2805 = vunpack.c.h.b16 %v2575
    %v2806 = vunpack.c.l.b16 %v2576
    %v2807 = vunpack.c.h.b16 %v2576
    %v2808 = vunpack.c.l.b16 %v2577
    %v2809 = vunpack.c.h.b16 %v2577
    %v2810 = vunpack.c.l.b16 %v2578
    %v2811 = vunpack.c.h.b16 %v2578
    %v2812 = vunpack.c.l.b16 %v2579
    %v2813 = vunpack.c.h.b16 %v2579
    %v2814 = vunpack.c.l.b16 %v2580
    %v2815 = vunpack.c.h.b16 %v2580
    %v2816 = vunpack.c.l.b16 %v2581
    %v2817 = vunpack.c.h.b16 %v2581
    %v2818 = vunpack.c.l.b16 %v2582
    %v2819 = vunpack.c.h.b16 %v2582
    %v2820 = vunpack.c.l.b16 %v2583
    %v2821 = vunpack.c.h.b16 %v2583
    %v2822 = vunpack.c.l.b16 %v2584
    %v2823 = vunpack.c.h.b16 %v2584
    %v2824 = vunpack.c.l.b16 %v2585
    %v2825 = vunpack.c.h.b16 %v2585
    %v2826 = vunpack.c.l.b16 %v2586
    %v2827 = vunpack.c.h.b16 %v2586
    %v2828 = vunpack.c.l.b16 %v2587
    %v2829 = vunpack.c.h.b16 %v2587
    %v2830 = vunpack.c.l.b16 %v2588
    %v2831 = vunpack.c.h.b16 %v2588
    %v2832 = vunpack.c.l.b16 %v2589
    %v2833 = vunpack.c.h.b16 %v2589
    %v2834 = vunpack.c.l.b16 %v2590
    %v2835 = vunpack.c.h.b16 %v2590
    %v2836 = vunpack.c.l.b16 %v2591
    %v2837 = vunpack.c.h.b16 %v2591
    %v2838 = vunpack.c.l.b16 %v2592
    %v2839 = vunpack.c.h.b16 %v2592
    %v2840 = vunpack.c.l.b16 %v2593
    %v2841 = vunpack.c.h.b16 %v2593
    %v2842 = vunpack.c.l.b16 %v2594
    %v2843 = vunpack.c.h.b16 %v2594
    %v2844 = vunpack.c.l.b16 %v2595
    %v2845 = vunpack.c.h.b16 %v2595
    %v2846 = vunpack.c.l.b16 %v2596
    %v2847 = vunpack.c.h.b16 %v2596
    %v2848 = vunpack.c.l.b16 %v2597
    %v2849 = vunpack.c.h.b16 %v2597
    %v2850 = vunpack.c.l.b16 %v2598
    %v2851 = vunpack.c.h.b16 %v2598
    %v2852 = vunpack.c.l.b16 %v2599
    %v2853 = vunpack.c.h.b16 %v2599
    %v2854 = vunpack.c.l.b16 %v2600
    %v2855 = vunpack.c.h.b16 %v2600
    %v2856 = vunpack.c.l.b16 %v2601
    %v2857 = vunpack.c.h.b16 %v2601
    %v2858 = vunpack.c.l.b16 %v2602
    %v2859 = vunpack.c.h.b16 %v2602
    %v2860 = vunpack.c.l.b16 %v2603
    %v2861 = vunpack.c.h.b16 %v2603
    %v2862 = vunpack.c.l.b16 %v2604
    %v2863 = vunpack.c.h.b16 %v2604
    %v2864 = vunpack.c.l.b16 %v2605
    %v2865 = vunpack.c.h.b16 %v2605
    %v2866 = vunpack.c.l.b16 %v2606
    %v2867 = vunpack.c.h.b16 %v2606
    %v2868 = vunpack.c.l.b16 %v2607
    %v2869 = vunpack.c.h.b16 %v2607
    %v2870 = vunpack.c.l.b16 %v2608
    %v2871 = vunpack.c.h.b16 %v2608
    %v2872 = vunpack.c.l.b16 %v2609
    %v2873 = vunpack.c.h.b16 %v2609
    %v2874 = vunpack.c.l.b16 %v2610
    %v2875 = vunpack.c.h.b16 %v2610
    %v2876 = vunpack.c.l.b16 %v2611
    %v2877 = vunpack.c.h.b16 %v2611
    %v2878 = vunpack.c.l.b16 %v2612
    %v2879 = vunpack.c.h.b16 %v2612
    %v2880 = vunpack.c.l.b16 %v2613
    %v2881 = vunpack.c.h.b16 %v2613
    %v2882 = vunpack.c.l.b16 %v2614
    %v2883 = vunpack.c.h.b16 %v2614
    %v2884 = vunpack.c.l.b16 %v2615
    %v2885 = vunpack.c.h.b16 %v2615
    %v2886 = vunpack.c.l.b16 %v2616
    %v2887 = vunpack.c.h.b16 %v2616
    %v2888 = vunpack.c.l.b16 %v2617
    %v2889 = vunpack.c.h.b16 %v2617
    %v2890 = vunpack.c.l.b16 %v2618
    %v2891 = vunpack.c.h.b16 %v2618
    %v2892 = vunpack.c.l.b16 %v2619
    %v2893 = vunpack.c.h.b16 %v2619
    %v2894 = vunpack.c.l.b16 %v2620
    %v2895 = vunpack.c.h.b16 %v2620
    %v2896 = vunpack.c.l.b16 %v2621
    %v2897 = vunpack.c.h.b16 %v2621
    %v2898 = vunpack.c.l.b16 %v2622
    %v2899 = vunpack.c.h.b16 %v2622
    %v2900 = vunpack.c.l.b16 %v2623
    %v2901 = vunpack.c.h.b16 %v2623
    %v2902 = vunpack.c.l.b16 %v2624
    %v2903 = vunpack.c.h.b16 %v2624
    %v2904 = vunpack.c.l.b16 %v2625
    %v2905 = vunpack.c.h.b16 %v2625
    %v2906 = vunpack.c.l.b16 %v2626
    %v2907 = vunpack.c.h.b16 %v2626
    %v2908 = vunpack.c.l.b16 %v2627
    %v2909 = vunpack.c.h.b16 %v2627
    %v2910 = vunpack.c.l.b16 %v2628
    %v2911 = vunpack.c.h.b16 %v2628
    %v2912 = vunpack.c.l.b16 %v2629
    %v2913 = vunpack.c.h.b16 %v2629
    %v2914 = vunpack.c.l.b16 %v2630
    %v2915 = vunpack.c.h.b16 %v2630
    %v2916 = vunpack.c.l.b16 %v2631
    %v2917 = vunpack.c.h.b16 %v2631
    %v2918 = vunpack.c.l.b16 %v2632
    %v2919 = vunpack.c.h.b16 %v2632
    %v2920 = vunpack.c.l.b16 %v2633
    %v2921 = vunpack.c.h.b16 %v2633
    %v2922 = vunpack.c.l.b16 %v2634
    %v2923 = vunpack.c.h.b16 %v2634
    %v2924 = vpack.c.b16 %v2738, %v2732
    %v2925 = vpack.c.b16 %v2739, %v2733
    %v2926 = vpack.c.b16 %v2740, %v2734
    %v2927 = vpack.c.b16 %v2741, %v2735
    %v2928 = vpack.c.b16 %v2742, %v2736
    %v2929 = vpack.c.b16 %v2743, %v2737
    %v2930 = vpack.c.b16 %v2750, %v2744
    %v2931 = vpack.c.b16 %v2751, %v2745
    %v2932 = vpack.c.b16 %v2752, %v2746
    %v2933 = vpack.c.b16 %v2753, %v2747
    %v2934 = vpack.c.b16 %v2754, %v2748
    %v2935 = vpack.c.b16 %v2755, %v2749
    %v2936 = vpack.c.b16 %v2762, %v2756
    %v2937 = vpack.c.b16 %v2763, %v2757
    %v2938 = vpack.c.b16 %v2764, %v2758
    %v2939 = vpack.c.b16 %v2765, %v2759
    %v2940 = vpack.c.b16 %v2766, %v2760
    %v2941 = vpack.c.b16 %v2767, %v2761
    %v2942 = vpack.c.b16 %v2774, %v2768
    %v2943 = vpack.c.b16 %v2775, %v2769
    %v2944 = vpack.c.b16 %v2776, %v2770
    %v2945 = vpack.c.b16 %v2777, %v2771
    %v2946 = vpack.c.b16 %v2778, %v2772
    %v2947 = vpack.c.b16 %v2779, %v2773
    %v2948 = vpack.c.b16 %v2786, %v2780
    %v2949 = vpack.c.b16 %v2787, %v2781
    %v2950 = vpack.c.b16 %v2788, %v2782
    %v2951 = vpack.c.b16 %v2789, %v2783
    %v2952 = vpack.c.b16 %v2790, %v2784
    %v2953 = vpack.c.b16 %v2791, %v2785
    %v2954 = vpack.c.b16 %v2798, %v2792
    %v2955 = vpack.c.b16 %v2799, %v2793
    %v2956 = vpack.c.b16 %v2800, %v2794
    %v2957 = vpack.c.b16 %v2801, %v2795
    %v2958 = vpack.c.b16 %v2802, %v2796
    %v2959 = vpack.c.b16 %v2803, %v2797
    %v2960 = vpack.c.b16 %v2810, %v2804
    %v2961 = vpack.c.b16 %v2811, %v2805
    %v2962 = vpack.c.b16 %v2812, %v2806
    %v2963 = vpack.c.b16 %v2813, %v2807
    %v2964 = vpack.c.b16 %v2814, %v2808
    %v2965 = vpack.c.b16 %v2815, %v2809
    %v2966 = vpack.c.b16 %v2822, %v2816
    %v2967 = vpack.c.b16 %v2823, %v2817
    %v2968 = vpack.c.b16 %v2824, %v2818
    %v2969 = vpack.c.b16 %v2825, %v2819
    %v2970 = vpack.c.b16 %v2826, %v2820
    %v2971 = vpack.c.b16 %v2827, %v2821
    %v2972 = vpack.c.b16 %v2834, %v2828
    %v2973 = vpack.c.b16 %v2835, %v2829
    %v2974 = vpack.c.b16 %v2836, %v2830
    %v2975 = vpack.c.b16 %v2837, %v2831
    %v2976 = vpack.c.b16 %v2838, %v2832
    %v2977 = vpack.c.b16 %v2839, %v2833
    %v2978 = vpack.c.b16 %v2846, %v2840
    %v2979 = vpack.c.b16 %v2847, %v2841
    %v2980 = vpack.c.b16 %v2848, %v2842
    %v2981 = vpack.c.b16 %v2849, %v2843
    %v2982 = vpack.c.b16 %v2850, %v2844
    %v2983 = vpack.c.b16 %v2851, %v2845
    %v2984 = vpack.c.b16 %v2858, %v2852
    %v2985 = vpack.c.b16 %v2859, %v2853
    %v2986 = vpack.c.b16 %v2860, %v2854
    %v2987 = vpack.c.b16 %v2861, %v2855
    %v2988 = vpack.c.b16 %v2862, %v2856
    %v2989 = vpack.c.b16 %v2863, %v2857
    %v2990 = vpack.c.b16 %v2870, %v2864
    %v2991 = vpack.c.b16 %v2871, %v2865
    %v2992 = vpack.c.b16 %v2872, %v2866
    %v2993 = vpack.c.b16 %v2873, %v2867
    %v2994 = vpack.c.b16 %v2874, %v2868
    %v2995 = vpack.c.b16 %v2875, %v2869
    %v2996 = vpack.c.b16 %v2882, %v2876
    %v2997 = vpack.c.b16 %v2883, %v2877
    %v2998 = vpack.c.b16 %v2884, %v2878
    %v2999 = vpack.c.b16 %v2885, %v2879
    %v3000 = vpack.c.b16 %v2886, %v2880
    %v3001 = vpack.c.b16 %v2887, %v2881
    %v3002 = vpack.c.b16 %v2894, %v2888
    %v3003 = vpack.c.b16 %v2895, %v2889
    %v3004 = vpack.c.b16 %v2896, %v2890
    %v3005 = vpack.c.b16 %v2897, %v2891
    %v3006 = vpack.c.b16 %v2898, %v2892
    %v3007 = vpack.c.b16 %v2899, %v2893
    %v3008 = vpack.c.b16 %v2906, %v2900
    %v3009 = vpack.c.b16 %v2907, %v2901
    %v3010 = vpack.c.b16 %v2908, %v2902
    %v3011 = vpack.c.b16 %v2909, %v2903
    %v3012 = vpack.c.b16 %v2910, %v2904
    %v3013 = vpack.c.b16 %v2911, %v2905
    %v3014 = vpack.c.b16 %v2918, %v2912
    %v3015 = vpack.c.b16 %v2919, %v2913
    %v3016 = vpack.c.b16 %v2920, %v2914
    %v3017 = vpack.c.b16 %v2921, %v2915
    %v3018 = vpack.c.b16 %v2922, %v2916
    %v3019 = vpack.c.b16 %v2923, %v2917
    %v3117 = vperm.slane %v2635, 0
    %v3118 = vperm.slane %v2635, 1
    %v3119 = vperm.slane %v2635, 2
    %v3120 = vperm.slane %v2635, 3
    %v3121 = vperm.slane %v2635, 4
    %v3122 = vperm.slane %v2635, 5
    %3129 = vmatpush.bf16.msra.mxu0 %v2966
    %3130 = vmatpush.bf16.msra.mxu0 %v2960
    %3131 = vmatpush.bf16.msra.mxu0 %v2954
    %3132 = vmatpush.bf16.msra.mxu0 %v2948
    %3133 = vmatpush.bf16.msra.mxu0 %v2942
    %3134 = vmatpush.bf16.msra.mxu0 %v2936
    %3135 = vmatpush.bf16.msra.mxu0 %v2930
    %3136 = vmatpush.bf16.msra.mxu0 %v2924
    %3137 = vmatmul.bf16.gmra.mxu0 %v2537
    %v3138 = vpop.f32.mrf.mxu0
    %v3139 = vadd.f32 %v3117, %v3138
    %v3140 = vpop.f32.mrf.mxu0
    %3141 = vdwg.mxu0
    %3142 = vmatpush.bf16.msra.mxu0 %v3014
    %3143 = vmatpush.bf16.msra.mxu0 %v3008
    %3144 = vmatpush.bf16.msra.mxu0 %v3002
    %3145 = vmatpush.bf16.msra.mxu0 %v2996
    %3146 = vmatpush.bf16.msra.mxu0 %v2990
    %3147 = vmatpush.bf16.msra.mxu0 %v2984
    %3148 = vmatpush.bf16.msra.mxu0 %v2978
    %3149 = vmatpush.bf16.msra.mxu0 %v2972
    %3150 = vmatmul.bf16.gmra.mxu0 %v2538
    %v3151 = vpop.f32.mrf.mxu0
    %v3152 = vadd.f32 %v3139, %v3151
    %v3153 = vpop.f32.mrf.mxu0
    %3154 = vdwg.mxu0
    %3155 = vmatpush.bf16.msra.mxu0 %v2967
    %3156 = vmatpush.bf16.msra.mxu0 %v2961
    %3157 = vmatpush.bf16.msra.mxu0 %v2955
    %3158 = vmatpush.bf16.msra.mxu0 %v2949
    %3159 = vmatpush.bf16.msra.mxu0 %v2943
    %3160 = vmatpush.bf16.msra.mxu0 %v2937
    %3161 = vmatpush.bf16.msra.mxu0 %v2931
    %3162 = vmatpush.bf16.msra.mxu0 %v2925
    %3163 = vmatmul.bf16.gmra.mxu0 %v2537
    %v3164 = vpop.f32.mrf.mxu0
    %v3165 = vadd.f32 %v3118, %v3164
    %v3166 = vpop.f32.mrf.mxu0
    %3167 = vdwg.mxu0
    %3168 = vmatpush.bf16.msra.mxu0 %v3015
    %3169 = vmatpush.bf16.msra.mxu0 %v3009
    %3170 = vmatpush.bf16.msra.mxu0 %v3003
    %3171 = vmatpush.bf16.msra.mxu0 %v2997
    %3172 = vmatpush.bf16.msra.mxu0 %v2991
    %3173 = vmatpush.bf16.msra.mxu0 %v2985
    %3174 = vmatpush.bf16.msra.mxu0 %v2979
    %3175 = vmatpush.bf16.msra.mxu0 %v2973
    %3176 = vmatmul.bf16.gmra.mxu0 %v2538
    %v3177 = vpop.f32.mrf.mxu0
    %v3178 = vadd.f32 %v3165, %v3177
    %v3179 = vpop.f32.mrf.mxu0
    %3180 = vdwg.mxu0
    %3181 = vmatpush.bf16.msra.mxu0 %v2968
    %3182 = vmatpush.bf16.msra.mxu0 %v2962
    %3183 = vmatpush.bf16.msra.mxu0 %v2956
    %3184 = vmatpush.bf16.msra.mxu0 %v2950
    %3185 = vmatpush.bf16.msra.mxu0 %v2944
    %3186 = vmatpush.bf16.msra.mxu0 %v2938
    %3187 = vmatpush.bf16.msra.mxu0 %v2932
    %3188 = vmatpush.bf16.msra.mxu0 %v2926
    %3189 = vmatmul.bf16.gmra.mxu0 %v2537
    %v3190 = vpop.f32.mrf.mxu0
    %v3191 = vadd.f32 %v3119, %v3190
    %v3192 = vpop.f32.mrf.mxu0
    %3193 = vdwg.mxu0
    %3194 = vmatpush.bf16.msra.mxu0 %v3016
    %3195 = vmatpush.bf16.msra.mxu0 %v3010
    %3196 = vmatpush.bf16.msra.mxu0 %v3004
    %3197 = vmatpush.bf16.msra.mxu0 %v2998
    %3198 = vmatpush.bf16.msra.mxu0 %v2992
    %3199 = vmatpush.bf16.msra.mxu0 %v2986
    %3200 = vmatpush.bf16.msra.mxu0 %v2980
    %3201 = vmatpush.bf16.msra.mxu0 %v2974
    %3202 = vmatmul.bf16.gmra.mxu0 %v2538
    %v3203 = vpop.f32.mrf.mxu0
    %v3204 = vadd.f32 %v3191, %v3203
    %v3205 = vpop.f32.mrf.mxu0
    %3206 = vdwg.mxu0
    %3207 = vmatpush.bf16.msra.mxu0 %v2969
    %3208 = vmatpush.bf16.msra.mxu0 %v2963
    %3209 = vmatpush.bf16.msra.mxu0 %v2957
    %3210 = vmatpush.bf16.msra.mxu0 %v2951
    %3211 = vmatpush.bf16.msra.mxu0 %v2945
    %3212 = vmatpush.bf16.msra.mxu0 %v2939
    %3213 = vmatpush.bf16.msra.mxu0 %v2933
    %3214 = vmatpush.bf16.msra.mxu0 %v2927
    %3215 = vmatmul.bf16.gmra.mxu0 %v2537
    %v3216 = vpop.f32.mrf.mxu0
    %v3217 = vadd.f32 %v3120, %v3216
    %v3218 = vpop.f32.mrf.mxu0
    %3219 = vdwg.mxu0
    %3220 = vmatpush.bf16.msra.mxu0 %v3017
    %3221 = vmatpush.bf16.msra.mxu0 %v3011
    %3222 = vmatpush.bf16.msra.mxu0 %v3005
    %3223 = vmatpush.bf16.msra.mxu0 %v2999
    %3224 = vmatpush.bf16.msra.mxu0 %v2993
    %3225 = vmatpush.bf16.msra.mxu0 %v2987
    %3226 = vmatpush.bf16.msra.mxu0 %v2981
    %3227 = vmatpush.bf16.msra.mxu0 %v2975
    %3228 = vmatmul.bf16.gmra.mxu0 %v2538
    %v3229 = vpop.f32.mrf.mxu0
    %v3230 = vadd.f32 %v3217, %v3229
    %v3231 = vpop.f32.mrf.mxu0
    %3232 = vdwg.mxu0
    %3233 = vmatpush.bf16.msra.mxu0 %v2970
    %3234 = vmatpush.bf16.msra.mxu0 %v2964
    %3235 = vmatpush.bf16.msra.mxu0 %v2958
    %3236 = vmatpush.bf16.msra.mxu0 %v2952
    %3237 = vmatpush.bf16.msra.mxu0 %v2946
    %3238 = vmatpush.bf16.msra.mxu0 %v2940
    %3239 = vmatpush.bf16.msra.mxu0 %v2934
    %3240 = vmatpush.bf16.msra.mxu0 %v2928
    %3241 = vmatmul.bf16.gmra.mxu0 %v2537
    %v3242 = vpop.f32.mrf.mxu0
    %v3243 = vadd.f32 %v3121, %v3242
    %v3244 = vpop.f32.mrf.mxu0
    %3245 = vdwg.mxu0
    %3246 = vmatpush.bf16.msra.mxu0 %v3018
    %3247 = vmatpush.bf16.msra.mxu0 %v3012
    %3248 = vmatpush.bf16.msra.mxu0 %v3006
    %3249 = vmatpush.bf16.msra.mxu0 %v3000
    %3250 = vmatpush.bf16.msra.mxu0 %v2994
    %3251 = vmatpush.bf16.msra.mxu0 %v2988
    %3252 = vmatpush.bf16.msra.mxu0 %v2982
    %3253 = vmatpush.bf16.msra.mxu0 %v2976
    %3254 = vmatmul.bf16.gmra.mxu0 %v2538
    %v3255 = vpop.f32.mrf.mxu0
    %v3256 = vadd.f32 %v3243, %v3255
    %v3257 = vpop.f32.mrf.mxu0
    %3258 = vdwg.mxu0
    %3259 = vmatpush.bf16.msra.mxu0 %v2971
    %3260 = vmatpush.bf16.msra.mxu0 %v2965
    %3261 = vmatpush.bf16.msra.mxu0 %v2959
    %3262 = vmatpush.bf16.msra.mxu0 %v2953
    %3263 = vmatpush.bf16.msra.mxu0 %v2947
    %3264 = vmatpush.bf16.msra.mxu0 %v2941
    %3265 = vmatpush.bf16.msra.mxu0 %v2935
    %3266 = vmatpush.bf16.msra.mxu0 %v2929
    %3267 = vmatmul.bf16.gmra.mxu0 %v2537
    %v3268 = vpop.f32.mrf.mxu0
    %v3269 = vadd.f32 %v3122, %v3268
    %v3270 = vpop.f32.mrf.mxu0
    %3271 = vdwg.mxu0
    %3272 = vmatpush.bf16.msra.mxu0 %v3019
    %3273 = vmatpush.bf16.msra.mxu0 %v3013
    %3274 = vmatpush.bf16.msra.mxu0 %v3007
    %3275 = vmatpush.bf16.msra.mxu0 %v3001
    %3276 = vmatpush.bf16.msra.mxu0 %v2995
    %3277 = vmatpush.bf16.msra.mxu0 %v2989
    %3278 = vmatpush.bf16.msra.mxu0 %v2983
    %3279 = vmatpush.bf16.msra.mxu0 %v2977
    %3280 = vmatmul.bf16.gmra.mxu0 %v2538
    %v3281 = vpop.f32.mrf.mxu0
    %v3282 = vadd.f32 %v3269, %v3281
    %v3283 = vpop.f32.mrf.mxu0
    %3284 = vdwg.mxu0
    %v3287 = vrot.slane %v3178, 7
    %v3288 = vsel %vm1630, %v3152, %v3287
    %v3290 = vadd.f32 %v2531, %v3288
    %v3291 = vxor.u32 %v3290, 2147483648
    %v3292 = vmul.f32 %v3291, 1.442695
    %v3293 = vpow.pop %v3292
    %v3294 = vadd.f32 %v3293, 1.0
    %v3295 = vrcp.pop %v3294
    %v3296 = vmul.f32 %v3294, %v3295
    %v3297 = vsub.f32 1.0, %v3296
    %v3298 = vmul.f32 %v3295, %v3297
    %v3299 = vadd.f32 %v3295, %v3298
    %vm3300 = vweird.f32 %v3294
    %vm3301 = vweird.f32 %v3295
    %vm3302 = vmor %vm3300, %vm3301
    %v3303 = vsel %vm3302, %v3295, %v3299
    %v3304 = vand.u32 2147483647, %v3294
    %vm3305 = vcmp.eq.f32.partialorder %v3304, 8.507059e+37
    %v3306 = vand.u32 %v3294, 2147483648
    %v3307 = vor.u32 1.1754944e-38, %v3306
    %v3308 = vsel %vm3305, %v3307, %v3303
    %v3309 = vmul.f32 1.0, %v3308
    %v3311 = vrot.slane %v2531, 2
    %v3315 = vrot.slane %v3230, 7
    %v3316 = vsel %vm1630, %v3204, %v3315
    %v3318 = vadd.f32 %v3311, %v3316
    %v3319 = vxor.u32 %v3318, 2147483648
    %v3320 = vmul.f32 %v3319, 1.442695
    %v3321 = vpow.pop %v3320
    %v3322 = vadd.f32 %v3321, 1.0
    %v3323 = vrcp.pop %v3322
    %v3324 = vmul.f32 %v3322, %v3323
    %v3325 = vsub.f32 1.0, %v3324
    %v3326 = vmul.f32 %v3323, %v3325
    %v3327 = vadd.f32 %v3323, %v3326
    %vm3328 = vweird.f32 %v3322
    %vm3329 = vweird.f32 %v3323
    %vm3330 = vmor %vm3328, %vm3329
    %v3331 = vsel %vm3330, %v3323, %v3327
    %v3332 = vand.u32 2147483647, %v3322
    %vm3333 = vcmp.eq.f32.partialorder %v3332, 8.507059e+37
    %v3334 = vand.u32 %v3322, 2147483648
    %v3335 = vor.u32 1.1754944e-38, %v3334
    %v3336 = vsel %vm3333, %v3335, %v3331
    %v3337 = vmul.f32 1.0, %v3336
    %v3340 = vrot.slane %v3282, 7
    %v3341 = vsel %vm1630, %v3256, %v3340
    %v3343 = vmul.f32 %v3309, %v3341
    %v3344 = vrot.slane %v2531, 4
    %v3346 = vadd.f32 %v3344, %v3343
    %v3347 = vtanh.pop %v3346
    %v3348 = vsub.f32 1.0, %v3337
    %v3349 = vmul.f32 %v3348, %v3347
    %v3350 = vmul.f32 %v3337, %v2524
    %v3351 = vadd.f32 %v3349, %v3350
    %s3352 = scalar_lea.vmem [#allocation14], 2
    %3353 = vst.msk [vmem:[%s3352] ss:$8 sm:$0x3] %vm1698, %v3351
    %3354 = vst.msk [vmem:[%s3352] ss:$8 sm:$0x0] %vm1698, %v3351
    %s3355 = scalar_lea.vmem [#allocation2], 3
    %v3356 = vld [vmem:[%s3355] ss:$8 sm:$0xf]
    %v3357 = vld [vmem:[%s3355] ss:$8 sm:$0x30]
    %v3358 = vor.u32 %v3356, %v3357
    %v3360 = vperm.slane %v3351, 0
    %v3361 = vperm.slane %v3351, 1
    %v3364 = vpack.c.bf16 %v3360, %v3360
    %v3365 = vpack.c.bf16 %v3361, %v3361
    %v3366 = vld [vmem:[#allocation9] sm:$0xff]
    %v3367 = vld [vmem:[#allocation9 + $0x8] sm:$0xff]
    %v3368 = vld [vmem:[#allocation9 + $0x10] sm:$0xff]
    %v3369 = vld [vmem:[#allocation9 + $0x18] sm:$0xff]
    %v3370 = vld [vmem:[#allocation9 + $0x20] sm:$0xff]
    %v3371 = vld [vmem:[#allocation9 + $0x28] sm:$0xff]
    %v3372 = vld [vmem:[#allocation9 + $0x30] sm:$0xff]
    %v3373 = vld [vmem:[#allocation9 + $0x38] sm:$0xff]
    %v3374 = vld [vmem:[#allocation9 + $0x40] sm:$0xff]
    %v3375 = vld [vmem:[#allocation9 + $0x48] sm:$0xff]
    %v3376 = vld [vmem:[#allocation9 + $0x50] sm:$0xff]
    %v3377 = vld [vmem:[#allocation9 + $0x58] sm:$0xff]
    %v3378 = vld [vmem:[#allocation9 + $0x60] sm:$0xff]
    %v3379 = vld [vmem:[#allocation9 + $0x68] sm:$0xff]
    %v3380 = vld [vmem:[#allocation9 + $0x70] sm:$0xff]
    %v3381 = vld [vmem:[#allocation9 + $0x78] sm:$0xff]
    %v3382 = vld [vmem:[#allocation9 + $0x80] sm:$0xff]
    %v3383 = vld [vmem:[#allocation9 + $0x88] sm:$0xff]
    %v3384 = vld [vmem:[#allocation9 + $0x90] sm:$0xff]
    %v3385 = vld [vmem:[#allocation9 + $0x98] sm:$0xff]
    %v3386 = vld [vmem:[#allocation9 + $0xa0] sm:$0xff]
    %v3387 = vld [vmem:[#allocation9 + $0xa8] sm:$0xff]
    %v3388 = vld [vmem:[#allocation9 + $0xb0] sm:$0xff]
    %v3389 = vld [vmem:[#allocation9 + $0xb8] sm:$0xff]
    %v3390 = vld [vmem:[#allocation9 + $0xc0] sm:$0xff]
    %v3391 = vld [vmem:[#allocation9 + $0xc8] sm:$0xff]
    %v3392 = vld [vmem:[#allocation9 + $0xd0] sm:$0xff]
    %v3393 = vld [vmem:[#allocation9 + $0xd8] sm:$0xff]
    %v3394 = vld [vmem:[#allocation9 + $0xe0] sm:$0xff]
    %v3395 = vld [vmem:[#allocation9 + $0xe8] sm:$0xff]
    %v3396 = vld [vmem:[#allocation9 + $0xf0] sm:$0xff]
    %v3397 = vld [vmem:[#allocation9 + $0xf8] sm:$0xff]
    %v3398 = vld [vmem:[#allocation9 + $0x100] sm:$0xff]
    %v3399 = vld [vmem:[#allocation9 + $0x108] sm:$0xff]
    %v3400 = vld [vmem:[#allocation9 + $0x110] sm:$0xff]
    %v3401 = vld [vmem:[#allocation9 + $0x118] sm:$0xff]
    %v3402 = vld [vmem:[#allocation9 + $0x120] sm:$0xff]
    %v3403 = vld [vmem:[#allocation9 + $0x128] sm:$0xff]
    %v3404 = vld [vmem:[#allocation9 + $0x130] sm:$0xff]
    %v3405 = vld [vmem:[#allocation9 + $0x138] sm:$0xff]
    %v3406 = vld [vmem:[#allocation9 + $0x140] sm:$0xff]
    %v3407 = vld [vmem:[#allocation9 + $0x148] sm:$0xff]
    %v3408 = vld [vmem:[#allocation9 + $0x150] sm:$0xff]
    %v3409 = vld [vmem:[#allocation9 + $0x158] sm:$0xff]
    %v3410 = vld [vmem:[#allocation9 + $0x160] sm:$0xff]
    %v3411 = vld [vmem:[#allocation9 + $0x168] sm:$0xff]
    %v3412 = vld [vmem:[#allocation9 + $0x170] sm:$0xff]
    %v3413 = vld [vmem:[#allocation9 + $0x178] sm:$0xff]
    %v3414 = vld [vmem:[#allocation9 + $0x180] sm:$0xff]
    %v3415 = vld [vmem:[#allocation9 + $0x188] sm:$0xff]
    %v3416 = vld [vmem:[#allocation9 + $0x190] sm:$0xff]
    %v3417 = vld [vmem:[#allocation9 + $0x198] sm:$0xff]
    %v3418 = vld [vmem:[#allocation9 + $0x1a0] sm:$0xff]
    %v3419 = vld [vmem:[#allocation9 + $0x1a8] sm:$0xff]
    %v3420 = vld [vmem:[#allocation9 + $0x1b0] sm:$0xff]
    %v3421 = vld [vmem:[#allocation9 + $0x1b8] sm:$0xff]
    %v3422 = vld [vmem:[#allocation9 + $0x1c0] sm:$0xff]
    %v3423 = vld [vmem:[#allocation9 + $0x1c8] sm:$0xff]
    %v3424 = vld [vmem:[#allocation9 + $0x1d0] sm:$0xff]
    %v3425 = vld [vmem:[#allocation9 + $0x1d8] sm:$0xff]
    %v3426 = vld [vmem:[#allocation9 + $0x1e0] sm:$0xff]
    %v3427 = vld [vmem:[#allocation9 + $0x1e8] sm:$0xff]
    %v3428 = vld [vmem:[#allocation9 + $0x1f0] sm:$0xff]
    %v3429 = vld [vmem:[#allocation9 + $0x1f8] sm:$0xff]
    %v3430 = vld [vmem:[#allocation9 + $0x200] sm:$0xff]
    %v3431 = vld [vmem:[#allocation9 + $0x208] sm:$0xff]
    %v3432 = vld [vmem:[#allocation9 + $0x210] sm:$0xff]
    %v3433 = vld [vmem:[#allocation9 + $0x218] sm:$0xff]
    %v3434 = vld [vmem:[#allocation9 + $0x220] sm:$0xff]
    %v3435 = vld [vmem:[#allocation9 + $0x228] sm:$0xff]
    %v3436 = vld [vmem:[#allocation9 + $0x230] sm:$0xff]
    %v3437 = vld [vmem:[#allocation9 + $0x238] sm:$0xff]
    %v3438 = vld [vmem:[#allocation9 + $0x240] sm:$0xff]
    %v3439 = vld [vmem:[#allocation9 + $0x248] sm:$0xff]
    %v3440 = vld [vmem:[#allocation9 + $0x250] sm:$0xff]
    %v3441 = vld [vmem:[#allocation9 + $0x258] sm:$0xff]
    %v3442 = vld [vmem:[#allocation9 + $0x260] sm:$0xff]
    %v3443 = vld [vmem:[#allocation9 + $0x268] sm:$0xff]
    %v3444 = vld [vmem:[#allocation9 + $0x270] sm:$0xff]
    %v3445 = vld [vmem:[#allocation9 + $0x278] sm:$0xff]
    %v3446 = vld [vmem:[#allocation9 + $0x280] sm:$0xff]
    %v3447 = vld [vmem:[#allocation9 + $0x288] sm:$0xff]
    %v3448 = vld [vmem:[#allocation9 + $0x290] sm:$0xff]
    %v3449 = vld [vmem:[#allocation9 + $0x298] sm:$0xff]
    %v3450 = vld [vmem:[#allocation9 + $0x2a0] sm:$0xff]
    %v3451 = vld [vmem:[#allocation9 + $0x2a8] sm:$0xff]
    %v3452 = vld [vmem:[#allocation9 + $0x2b0] sm:$0xff]
    %v3453 = vld [vmem:[#allocation9 + $0x2b8] sm:$0xff]
    %v3454 = vld [vmem:[#allocation9 + $0x2c0] sm:$0xff]
    %v3455 = vld [vmem:[#allocation9 + $0x2c8] sm:$0xff]
    %v3456 = vld [vmem:[#allocation9 + $0x2d0] sm:$0xff]
    %v3457 = vld [vmem:[#allocation9 + $0x2d8] sm:$0xff]
    %v3458 = vld [vmem:[#allocation9 + $0x2e0] sm:$0xff]
    %v3459 = vld [vmem:[#allocation9 + $0x2e8] sm:$0xff]
    %v3460 = vld [vmem:[#allocation9 + $0x2f0] sm:$0xff]
    %v3461 = vld [vmem:[#allocation9 + $0x2f8] sm:$0xff]
    %v3462 = vld [vmem:[#allocation12] sm:$0x3f]
    %v3559 = vunpack.c.l.b16 %v3366
    %v3560 = vunpack.c.h.b16 %v3366
    %v3561 = vunpack.c.l.b16 %v3367
    %v3562 = vunpack.c.h.b16 %v3367
    %v3563 = vunpack.c.l.b16 %v3368
    %v3564 = vunpack.c.h.b16 %v3368
    %v3565 = vunpack.c.l.b16 %v3369
    %v3566 = vunpack.c.h.b16 %v3369
    %v3567 = vunpack.c.l.b16 %v3370
    %v3568 = vunpack.c.h.b16 %v3370
    %v3569 = vunpack.c.l.b16 %v3371
    %v3570 = vunpack.c.h.b16 %v3371
    %v3571 = vunpack.c.l.b16 %v3372
    %v3572 = vunpack.c.h.b16 %v3372
    %v3573 = vunpack.c.l.b16 %v3373
    %v3574 = vunpack.c.h.b16 %v3373
    %v3575 = vunpack.c.l.b16 %v3374
    %v3576 = vunpack.c.h.b16 %v3374
    %v3577 = vunpack.c.l.b16 %v3375
    %v3578 = vunpack.c.h.b16 %v3375
    %v3579 = vunpack.c.l.b16 %v3376
    %v3580 = vunpack.c.h.b16 %v3376
    %v3581 = vunpack.c.l.b16 %v3377
    %v3582 = vunpack.c.h.b16 %v3377
    %v3583 = vunpack.c.l.b16 %v3378
    %v3584 = vunpack.c.h.b16 %v3378
    %v3585 = vunpack.c.l.b16 %v3379
    %v3586 = vunpack.c.h.b16 %v3379
    %v3587 = vunpack.c.l.b16 %v3380
    %v3588 = vunpack.c.h.b16 %v3380
    %v3589 = vunpack.c.l.b16 %v3381
    %v3590 = vunpack.c.h.b16 %v3381
    %v3591 = vunpack.c.l.b16 %v3382
    %v3592 = vunpack.c.h.b16 %v3382
    %v3593 = vunpack.c.l.b16 %v3383
    %v3594 = vunpack.c.h.b16 %v3383
    %v3595 = vunpack.c.l.b16 %v3384
    %v3596 = vunpack.c.h.b16 %v3384
    %v3597 = vunpack.c.l.b16 %v3385
    %v3598 = vunpack.c.h.b16 %v3385
    %v3599 = vunpack.c.l.b16 %v3386
    %v3600 = vunpack.c.h.b16 %v3386
    %v3601 = vunpack.c.l.b16 %v3387
    %v3602 = vunpack.c.h.b16 %v3387
    %v3603 = vunpack.c.l.b16 %v3388
    %v3604 = vunpack.c.h.b16 %v3388
    %v3605 = vunpack.c.l.b16 %v3389
    %v3606 = vunpack.c.h.b16 %v3389
    %v3607 = vunpack.c.l.b16 %v3390
    %v3608 = vunpack.c.h.b16 %v3390
    %v3609 = vunpack.c.l.b16 %v3391
    %v3610 = vunpack.c.h.b16 %v3391
    %v3611 = vunpack.c.l.b16 %v3392
    %v3612 = vunpack.c.h.b16 %v3392
    %v3613 = vunpack.c.l.b16 %v3393
    %v3614 = vunpack.c.h.b16 %v3393
    %v3615 = vunpack.c.l.b16 %v3394
    %v3616 = vunpack.c.h.b16 %v3394
    %v3617 = vunpack.c.l.b16 %v3395
    %v3618 = vunpack.c.h.b16 %v3395
    %v3619 = vunpack.c.l.b16 %v3396
    %v3620 = vunpack.c.h.b16 %v3396
    %v3621 = vunpack.c.l.b16 %v3397
    %v3622 = vunpack.c.h.b16 %v3397
    %v3623 = vunpack.c.l.b16 %v3398
    %v3624 = vunpack.c.h.b16 %v3398
    %v3625 = vunpack.c.l.b16 %v3399
    %v3626 = vunpack.c.h.b16 %v3399
    %v3627 = vunpack.c.l.b16 %v3400
    %v3628 = vunpack.c.h.b16 %v3400
    %v3629 = vunpack.c.l.b16 %v3401
    %v3630 = vunpack.c.h.b16 %v3401
    %v3631 = vunpack.c.l.b16 %v3402
    %v3632 = vunpack.c.h.b16 %v3402
    %v3633 = vunpack.c.l.b16 %v3403
    %v3634 = vunpack.c.h.b16 %v3403
    %v3635 = vunpack.c.l.b16 %v3404
    %v3636 = vunpack.c.h.b16 %v3404
    %v3637 = vunpack.c.l.b16 %v3405
    %v3638 = vunpack.c.h.b16 %v3405
    %v3639 = vunpack.c.l.b16 %v3406
    %v3640 = vunpack.c.h.b16 %v3406
    %v3641 = vunpack.c.l.b16 %v3407
    %v3642 = vunpack.c.h.b16 %v3407
    %v3643 = vunpack.c.l.b16 %v3408
    %v3644 = vunpack.c.h.b16 %v3408
    %v3645 = vunpack.c.l.b16 %v3409
    %v3646 = vunpack.c.h.b16 %v3409
    %v3647 = vunpack.c.l.b16 %v3410
    %v3648 = vunpack.c.h.b16 %v3410
    %v3649 = vunpack.c.l.b16 %v3411
    %v3650 = vunpack.c.h.b16 %v3411
    %v3651 = vunpack.c.l.b16 %v3412
    %v3652 = vunpack.c.h.b16 %v3412
    %v3653 = vunpack.c.l.b16 %v3413
    %v3654 = vunpack.c.h.b16 %v3413
    %v3655 = vunpack.c.l.b16 %v3414
    %v3656 = vunpack.c.h.b16 %v3414
    %v3657 = vunpack.c.l.b16 %v3415
    %v3658 = vunpack.c.h.b16 %v3415
    %v3659 = vunpack.c.l.b16 %v3416
    %v3660 = vunpack.c.h.b16 %v3416
    %v3661 = vunpack.c.l.b16 %v3417
    %v3662 = vunpack.c.h.b16 %v3417
    %v3663 = vunpack.c.l.b16 %v3418
    %v3664 = vunpack.c.h.b16 %v3418
    %v3665 = vunpack.c.l.b16 %v3419
    %v3666 = vunpack.c.h.b16 %v3419
    %v3667 = vunpack.c.l.b16 %v3420
    %v3668 = vunpack.c.h.b16 %v3420
    %v3669 = vunpack.c.l.b16 %v3421
    %v3670 = vunpack.c.h.b16 %v3421
    %v3671 = vunpack.c.l.b16 %v3422
    %v3672 = vunpack.c.h.b16 %v3422
    %v3673 = vunpack.c.l.b16 %v3423
    %v3674 = vunpack.c.h.b16 %v3423
    %v3675 = vunpack.c.l.b16 %v3424
    %v3676 = vunpack.c.h.b16 %v3424
    %v3677 = vunpack.c.l.b16 %v3425
    %v3678 = vunpack.c.h.b16 %v3425
    %v3679 = vunpack.c.l.b16 %v3426
    %v3680 = vunpack.c.h.b16 %v3426
    %v3681 = vunpack.c.l.b16 %v3427
    %v3682 = vunpack.c.h.b16 %v3427
    %v3683 = vunpack.c.l.b16 %v3428
    %v3684 = vunpack.c.h.b16 %v3428
    %v3685 = vunpack.c.l.b16 %v3429
    %v3686 = vunpack.c.h.b16 %v3429
    %v3687 = vunpack.c.l.b16 %v3430
    %v3688 = vunpack.c.h.b16 %v3430
    %v3689 = vunpack.c.l.b16 %v3431
    %v3690 = vunpack.c.h.b16 %v3431
    %v3691 = vunpack.c.l.b16 %v3432
    %v3692 = vunpack.c.h.b16 %v3432
    %v3693 = vunpack.c.l.b16 %v3433
    %v3694 = vunpack.c.h.b16 %v3433
    %v3695 = vunpack.c.l.b16 %v3434
    %v3696 = vunpack.c.h.b16 %v3434
    %v3697 = vunpack.c.l.b16 %v3435
    %v3698 = vunpack.c.h.b16 %v3435
    %v3699 = vunpack.c.l.b16 %v3436
    %v3700 = vunpack.c.h.b16 %v3436
    %v3701 = vunpack.c.l.b16 %v3437
    %v3702 = vunpack.c.h.b16 %v3437
    %v3703 = vunpack.c.l.b16 %v3438
    %v3704 = vunpack.c.h.b16 %v3438
    %v3705 = vunpack.c.l.b16 %v3439
    %v3706 = vunpack.c.h.b16 %v3439
    %v3707 = vunpack.c.l.b16 %v3440
    %v3708 = vunpack.c.h.b16 %v3440
    %v3709 = vunpack.c.l.b16 %v3441
    %v3710 = vunpack.c.h.b16 %v3441
    %v3711 = vunpack.c.l.b16 %v3442
    %v3712 = vunpack.c.h.b16 %v3442
    %v3713 = vunpack.c.l.b16 %v3443
    %v3714 = vunpack.c.h.b16 %v3443
    %v3715 = vunpack.c.l.b16 %v3444
    %v3716 = vunpack.c.h.b16 %v3444
    %v3717 = vunpack.c.l.b16 %v3445
    %v3718 = vunpack.c.h.b16 %v3445
    %v3719 = vunpack.c.l.b16 %v3446
    %v3720 = vunpack.c.h.b16 %v3446
    %v3721 = vunpack.c.l.b16 %v3447
    %v3722 = vunpack.c.h.b16 %v3447
    %v3723 = vunpack.c.l.b16 %v3448
    %v3724 = vunpack.c.h.b16 %v3448
    %v3725 = vunpack.c.l.b16 %v3449
    %v3726 = vunpack.c.h.b16 %v3449
    %v3727 = vunpack.c.l.b16 %v3450
    %v3728 = vunpack.c.h.b16 %v3450
    %v3729 = vunpack.c.l.b16 %v3451
    %v3730 = vunpack.c.h.b16 %v3451
    %v3731 = vunpack.c.l.b16 %v3452
    %v3732 = vunpack.c.h.b16 %v3452
    %v3733 = vunpack.c.l.b16 %v3453
    %v3734 = vunpack.c.h.b16 %v3453
    %v3735 = vunpack.c.l.b16 %v3454
    %v3736 = vunpack.c.h.b16 %v3454
    %v3737 = vunpack.c.l.b16 %v3455
    %v3738 = vunpack.c.h.b16 %v3455
    %v3739 = vunpack.c.l.b16 %v3456
    %v3740 = vunpack.c.h.b16 %v3456
    %v3741 = vunpack.c.l.b16 %v3457
    %v3742 = vunpack.c.h.b16 %v3457
    %v3743 = vunpack.c.l.b16 %v3458
    %v3744 = vunpack.c.h.b16 %v3458
    %v3745 = vunpack.c.l.b16 %v3459
    %v3746 = vunpack.c.h.b16 %v3459
    %v3747 = vunpack.c.l.b16 %v3460
    %v3748 = vunpack.c.h.b16 %v3460
    %v3749 = vunpack.c.l.b16 %v3461
    %v3750 = vunpack.c.h.b16 %v3461
    %v3751 = vpack.c.b16 %v3565, %v3559
    %v3752 = vpack.c.b16 %v3566, %v3560
    %v3753 = vpack.c.b16 %v3567, %v3561
    %v3754 = vpack.c.b16 %v3568, %v3562
    %v3755 = vpack.c.b16 %v3569, %v3563
    %v3756 = vpack.c.b16 %v3570, %v3564
    %v3757 = vpack.c.b16 %v3577, %v3571
    %v3758 = vpack.c.b16 %v3578, %v3572
    %v3759 = vpack.c.b16 %v3579, %v3573
    %v3760 = vpack.c.b16 %v3580, %v3574
    %v3761 = vpack.c.b16 %v3581, %v3575
    %v3762 = vpack.c.b16 %v3582, %v3576
    %v3763 = vpack.c.b16 %v3589, %v3583
    %v3764 = vpack.c.b16 %v3590, %v3584
    %v3765 = vpack.c.b16 %v3591, %v3585
    %v3766 = vpack.c.b16 %v3592, %v3586
    %v3767 = vpack.c.b16 %v3593, %v3587
    %v3768 = vpack.c.b16 %v3594, %v3588
    %v3769 = vpack.c.b16 %v3601, %v3595
    %v3770 = vpack.c.b16 %v3602, %v3596
    %v3771 = vpack.c.b16 %v3603, %v3597
    %v3772 = vpack.c.b16 %v3604, %v3598
    %v3773 = vpack.c.b16 %v3605, %v3599
    %v3774 = vpack.c.b16 %v3606, %v3600
    %v3775 = vpack.c.b16 %v3613, %v3607
    %v3776 = vpack.c.b16 %v3614, %v3608
    %v3777 = vpack.c.b16 %v3615, %v3609
    %v3778 = vpack.c.b16 %v3616, %v3610
    %v3779 = vpack.c.b16 %v3617, %v3611
    %v3780 = vpack.c.b16 %v3618, %v3612
    %v3781 = vpack.c.b16 %v3625, %v3619
    %v3782 = vpack.c.b16 %v3626, %v3620
    %v3783 = vpack.c.b16 %v3627, %v3621
    %v3784 = vpack.c.b16 %v3628, %v3622
    %v3785 = vpack.c.b16 %v3629, %v3623
    %v3786 = vpack.c.b16 %v3630, %v3624
    %v3787 = vpack.c.b16 %v3637, %v3631
    %v3788 = vpack.c.b16 %v3638, %v3632
    %v3789 = vpack.c.b16 %v3639, %v3633
    %v3790 = vpack.c.b16 %v3640, %v3634
    %v3791 = vpack.c.b16 %v3641, %v3635
    %v3792 = vpack.c.b16 %v3642, %v3636
    %v3793 = vpack.c.b16 %v3649, %v3643
    %v3794 = vpack.c.b16 %v3650, %v3644
    %v3795 = vpack.c.b16 %v3651, %v3645
    %v3796 = vpack.c.b16 %v3652, %v3646
    %v3797 = vpack.c.b16 %v3653, %v3647
    %v3798 = vpack.c.b16 %v3654, %v3648
    %v3799 = vpack.c.b16 %v3661, %v3655
    %v3800 = vpack.c.b16 %v3662, %v3656
    %v3801 = vpack.c.b16 %v3663, %v3657
    %v3802 = vpack.c.b16 %v3664, %v3658
    %v3803 = vpack.c.b16 %v3665, %v3659
    %v3804 = vpack.c.b16 %v3666, %v3660
    %v3805 = vpack.c.b16 %v3673, %v3667
    %v3806 = vpack.c.b16 %v3674, %v3668
    %v3807 = vpack.c.b16 %v3675, %v3669
    %v3808 = vpack.c.b16 %v3676, %v3670
    %v3809 = vpack.c.b16 %v3677, %v3671
    %v3810 = vpack.c.b16 %v3678, %v3672
    %v3811 = vpack.c.b16 %v3685, %v3679
    %v3812 = vpack.c.b16 %v3686, %v3680
    %v3813 = vpack.c.b16 %v3687, %v3681
    %v3814 = vpack.c.b16 %v3688, %v3682
    %v3815 = vpack.c.b16 %v3689, %v3683
    %v3816 = vpack.c.b16 %v3690, %v3684
    %v3817 = vpack.c.b16 %v3697, %v3691
    %v3818 = vpack.c.b16 %v3698, %v3692
    %v3819 = vpack.c.b16 %v3699, %v3693
    %v3820 = vpack.c.b16 %v3700, %v3694
    %v3821 = vpack.c.b16 %v3701, %v3695
    %v3822 = vpack.c.b16 %v3702, %v3696
    %v3823 = vpack.c.b16 %v3709, %v3703
    %v3824 = vpack.c.b16 %v3710, %v3704
    %v3825 = vpack.c.b16 %v3711, %v3705
    %v3826 = vpack.c.b16 %v3712, %v3706
    %v3827 = vpack.c.b16 %v3713, %v3707
    %v3828 = vpack.c.b16 %v3714, %v3708
    %v3829 = vpack.c.b16 %v3721, %v3715
    %v3830 = vpack.c.b16 %v3722, %v3716
    %v3831 = vpack.c.b16 %v3723, %v3717
    %v3832 = vpack.c.b16 %v3724, %v3718
    %v3833 = vpack.c.b16 %v3725, %v3719
    %v3834 = vpack.c.b16 %v3726, %v3720
    %v3835 = vpack.c.b16 %v3733, %v3727
    %v3836 = vpack.c.b16 %v3734, %v3728
    %v3837 = vpack.c.b16 %v3735, %v3729
    %v3838 = vpack.c.b16 %v3736, %v3730
    %v3839 = vpack.c.b16 %v3737, %v3731
    %v3840 = vpack.c.b16 %v3738, %v3732
    %v3841 = vpack.c.b16 %v3745, %v3739
    %v3842 = vpack.c.b16 %v3746, %v3740
    %v3843 = vpack.c.b16 %v3747, %v3741
    %v3844 = vpack.c.b16 %v3748, %v3742
    %v3845 = vpack.c.b16 %v3749, %v3743
    %v3846 = vpack.c.b16 %v3750, %v3744
    %v3944 = vperm.slane %v3462, 0
    %v3945 = vperm.slane %v3462, 1
    %v3946 = vperm.slane %v3462, 2
    %v3947 = vperm.slane %v3462, 3
    %v3948 = vperm.slane %v3462, 4
    %v3949 = vperm.slane %v3462, 5
    %3956 = vmatpush.bf16.msra.mxu0 %v3793
    %3957 = vmatpush.bf16.msra.mxu0 %v3787
    %3958 = vmatpush.bf16.msra.mxu0 %v3781
    %3959 = vmatpush.bf16.msra.mxu0 %v3775
    %3960 = vmatpush.bf16.msra.mxu0 %v3769
    %3961 = vmatpush.bf16.msra.mxu0 %v3763
    %3962 = vmatpush.bf16.msra.mxu0 %v3757
    %3963 = vmatpush.bf16.msra.mxu0 %v3751
    %3964 = vmatmul.bf16.gmra.mxu0 %v3364
    %v3965 = vpop.f32.mrf.mxu0
    %v3966 = vadd.f32 %v3944, %v3965
    %v3967 = vpop.f32.mrf.mxu0
    %3968 = vdwg.mxu0
    %3969 = vmatpush.bf16.msra.mxu0 %v3841
    %3970 = vmatpush.bf16.msra.mxu0 %v3835
    %3971 = vmatpush.bf16.msra.mxu0 %v3829
    %3972 = vmatpush.bf16.msra.mxu0 %v3823
    %3973 = vmatpush.bf16.msra.mxu0 %v3817
    %3974 = vmatpush.bf16.msra.mxu0 %v3811
    %3975 = vmatpush.bf16.msra.mxu0 %v3805
    %3976 = vmatpush.bf16.msra.mxu0 %v3799
    %3977 = vmatmul.bf16.gmra.mxu0 %v3365
    %v3978 = vpop.f32.mrf.mxu0
    %v3979 = vadd.f32 %v3966, %v3978
    %v3980 = vpop.f32.mrf.mxu0
    %3981 = vdwg.mxu0
    %3982 = vmatpush.bf16.msra.mxu0 %v3794
    %3983 = vmatpush.bf16.msra.mxu0 %v3788
    %3984 = vmatpush.bf16.msra.mxu0 %v3782
    %3985 = vmatpush.bf16.msra.mxu0 %v3776
    %3986 = vmatpush.bf16.msra.mxu0 %v3770
    %3987 = vmatpush.bf16.msra.mxu0 %v3764
    %3988 = vmatpush.bf16.msra.mxu0 %v3758
    %3989 = vmatpush.bf16.msra.mxu0 %v3752
    %3990 = vmatmul.bf16.gmra.mxu0 %v3364
    %v3991 = vpop.f32.mrf.mxu0
    %v3992 = vadd.f32 %v3945, %v3991
    %v3993 = vpop.f32.mrf.mxu0
    %3994 = vdwg.mxu0
    %3995 = vmatpush.bf16.msra.mxu0 %v3842
    %3996 = vmatpush.bf16.msra.mxu0 %v3836
    %3997 = vmatpush.bf16.msra.mxu0 %v3830
    %3998 = vmatpush.bf16.msra.mxu0 %v3824
    %3999 = vmatpush.bf16.msra.mxu0 %v3818
    %4000 = vmatpush.bf16.msra.mxu0 %v3812
    %4001 = vmatpush.bf16.msra.mxu0 %v3806
    %4002 = vmatpush.bf16.msra.mxu0 %v3800
    %4003 = vmatmul.bf16.gmra.mxu0 %v3365
    %v4004 = vpop.f32.mrf.mxu0
    %v4005 = vadd.f32 %v3992, %v4004
    %v4006 = vpop.f32.mrf.mxu0
    %4007 = vdwg.mxu0
    %4008 = vmatpush.bf16.msra.mxu0 %v3795
    %4009 = vmatpush.bf16.msra.mxu0 %v3789
    %4010 = vmatpush.bf16.msra.mxu0 %v3783
    %4011 = vmatpush.bf16.msra.mxu0 %v3777
    %4012 = vmatpush.bf16.msra.mxu0 %v3771
    %4013 = vmatpush.bf16.msra.mxu0 %v3765
    %4014 = vmatpush.bf16.msra.mxu0 %v3759
    %4015 = vmatpush.bf16.msra.mxu0 %v3753
    %4016 = vmatmul.bf16.gmra.mxu0 %v3364
    %v4017 = vpop.f32.mrf.mxu0
    %v4018 = vadd.f32 %v3946, %v4017
    %v4019 = vpop.f32.mrf.mxu0
    %4020 = vdwg.mxu0
    %4021 = vmatpush.bf16.msra.mxu0 %v3843
    %4022 = vmatpush.bf16.msra.mxu0 %v3837
    %4023 = vmatpush.bf16.msra.mxu0 %v3831
    %4024 = vmatpush.bf16.msra.mxu0 %v3825
    %4025 = vmatpush.bf16.msra.mxu0 %v3819
    %4026 = vmatpush.bf16.msra.mxu0 %v3813
    %4027 = vmatpush.bf16.msra.mxu0 %v3807
    %4028 = vmatpush.bf16.msra.mxu0 %v3801
    %4029 = vmatmul.bf16.gmra.mxu0 %v3365
    %v4030 = vpop.f32.mrf.mxu0
    %v4031 = vadd.f32 %v4018, %v4030
    %v4032 = vpop.f32.mrf.mxu0
    %4033 = vdwg.mxu0
    %4034 = vmatpush.bf16.msra.mxu0 %v3796
    %4035 = vmatpush.bf16.msra.mxu0 %v3790
    %4036 = vmatpush.bf16.msra.mxu0 %v3784
    %4037 = vmatpush.bf16.msra.mxu0 %v3778
    %4038 = vmatpush.bf16.msra.mxu0 %v3772
    %4039 = vmatpush.bf16.msra.mxu0 %v3766
    %4040 = vmatpush.bf16.msra.mxu0 %v3760
    %4041 = vmatpush.bf16.msra.mxu0 %v3754
    %4042 = vmatmul.bf16.gmra.mxu0 %v3364
    %v4043 = vpop.f32.mrf.mxu0
    %v4044 = vadd.f32 %v3947, %v4043
    %v4045 = vpop.f32.mrf.mxu0
    %4046 = vdwg.mxu0
    %4047 = vmatpush.bf16.msra.mxu0 %v3844
    %4048 = vmatpush.bf16.msra.mxu0 %v3838
    %4049 = vmatpush.bf16.msra.mxu0 %v3832
    %4050 = vmatpush.bf16.msra.mxu0 %v3826
    %4051 = vmatpush.bf16.msra.mxu0 %v3820
    %4052 = vmatpush.bf16.msra.mxu0 %v3814
    %4053 = vmatpush.bf16.msra.mxu0 %v3808
    %4054 = vmatpush.bf16.msra.mxu0 %v3802
    %4055 = vmatmul.bf16.gmra.mxu0 %v3365
    %v4056 = vpop.f32.mrf.mxu0
    %v4057 = vadd.f32 %v4044, %v4056
    %v4058 = vpop.f32.mrf.mxu0
    %4059 = vdwg.mxu0
    %4060 = vmatpush.bf16.msra.mxu0 %v3797
    %4061 = vmatpush.bf16.msra.mxu0 %v3791
    %4062 = vmatpush.bf16.msra.mxu0 %v3785
    %4063 = vmatpush.bf16.msra.mxu0 %v3779
    %4064 = vmatpush.bf16.msra.mxu0 %v3773
    %4065 = vmatpush.bf16.msra.mxu0 %v3767
    %4066 = vmatpush.bf16.msra.mxu0 %v3761
    %4067 = vmatpush.bf16.msra.mxu0 %v3755
    %4068 = vmatmul.bf16.gmra.mxu0 %v3364
    %v4069 = vpop.f32.mrf.mxu0
    %v4070 = vadd.f32 %v3948, %v4069
    %v4071 = vpop.f32.mrf.mxu0
    %4072 = vdwg.mxu0
    %4073 = vmatpush.bf16.msra.mxu0 %v3845
    %4074 = vmatpush.bf16.msra.mxu0 %v3839
    %4075 = vmatpush.bf16.msra.mxu0 %v3833
    %4076 = vmatpush.bf16.msra.mxu0 %v3827
    %4077 = vmatpush.bf16.msra.mxu0 %v3821
    %4078 = vmatpush.bf16.msra.mxu0 %v3815
    %4079 = vmatpush.bf16.msra.mxu0 %v3809
    %4080 = vmatpush.bf16.msra.mxu0 %v3803
    %4081 = vmatmul.bf16.gmra.mxu0 %v3365
    %v4082 = vpop.f32.mrf.mxu0
    %v4083 = vadd.f32 %v4070, %v4082
    %v4084 = vpop.f32.mrf.mxu0
    %4085 = vdwg.mxu0
    %4086 = vmatpush.bf16.msra.mxu0 %v3798
    %4087 = vmatpush.bf16.msra.mxu0 %v3792
    %4088 = vmatpush.bf16.msra.mxu0 %v3786
    %4089 = vmatpush.bf16.msra.mxu0 %v3780
    %4090 = vmatpush.bf16.msra.mxu0 %v3774
    %4091 = vmatpush.bf16.msra.mxu0 %v3768
    %4092 = vmatpush.bf16.msra.mxu0 %v3762
    %4093 = vmatpush.bf16.msra.mxu0 %v3756
    %4094 = vmatmul.bf16.gmra.mxu0 %v3364
    %v4095 = vpop.f32.mrf.mxu0
    %v4096 = vadd.f32 %v3949, %v4095
    %v4097 = vpop.f32.mrf.mxu0
    %4098 = vdwg.mxu0
    %4099 = vmatpush.bf16.msra.mxu0 %v3846
    %4100 = vmatpush.bf16.msra.mxu0 %v3840
    %4101 = vmatpush.bf16.msra.mxu0 %v3834
    %4102 = vmatpush.bf16.msra.mxu0 %v3828
    %4103 = vmatpush.bf16.msra.mxu0 %v3822
    %4104 = vmatpush.bf16.msra.mxu0 %v3816
    %4105 = vmatpush.bf16.msra.mxu0 %v3810
    %4106 = vmatpush.bf16.msra.mxu0 %v3804
    %4107 = vmatmul.bf16.gmra.mxu0 %v3365
    %v4108 = vpop.f32.mrf.mxu0
    %v4109 = vadd.f32 %v4096, %v4108
    %v4110 = vpop.f32.mrf.mxu0
    %4111 = vdwg.mxu0
    %v4114 = vrot.slane %v4005, 7
    %v4115 = vsel %vm1630, %v3979, %v4114
    %v4117 = vadd.f32 %v3358, %v4115
    %v4118 = vxor.u32 %v4117, 2147483648
    %v4119 = vmul.f32 %v4118, 1.442695
    %v4120 = vpow.pop %v4119
    %v4121 = vadd.f32 %v4120, 1.0
    %v4122 = vrcp.pop %v4121
    %v4123 = vmul.f32 %v4121, %v4122
    %v4124 = vsub.f32 1.0, %v4123
    %v4125 = vmul.f32 %v4122, %v4124
    %v4126 = vadd.f32 %v4122, %v4125
    %vm4127 = vweird.f32 %v4121
    %vm4128 = vweird.f32 %v4122
    %vm4129 = vmor %vm4127, %vm4128
    %v4130 = vsel %vm4129, %v4122, %v4126
    %v4131 = vand.u32 2147483647, %v4121
    %vm4132 = vcmp.eq.f32.partialorder %v4131, 8.507059e+37
    %v4133 = vand.u32 %v4121, 2147483648
    %v4134 = vor.u32 1.1754944e-38, %v4133
    %v4135 = vsel %vm4132, %v4134, %v4130
    %v4136 = vmul.f32 1.0, %v4135
    %v4138 = vrot.slane %v3358, 2
    %v4142 = vrot.slane %v4057, 7
    %v4143 = vsel %vm1630, %v4031, %v4142
    %v4145 = vadd.f32 %v4138, %v4143
    %v4146 = vxor.u32 %v4145, 2147483648
    %v4147 = vmul.f32 %v4146, 1.442695
    %v4148 = vpow.pop %v4147
    %v4149 = vadd.f32 %v4148, 1.0
    %v4150 = vrcp.pop %v4149
    %v4151 = vmul.f32 %v4149, %v4150
    %v4152 = vsub.f32 1.0, %v4151
    %v4153 = vmul.f32 %v4150, %v4152
    %v4154 = vadd.f32 %v4150, %v4153
    %vm4155 = vweird.f32 %v4149
    %vm4156 = vweird.f32 %v4150
    %vm4157 = vmor %vm4155, %vm4156
    %v4158 = vsel %vm4157, %v4150, %v4154
    %v4159 = vand.u32 2147483647, %v4149
    %vm4160 = vcmp.eq.f32.partialorder %v4159, 8.507059e+37
    %v4161 = vand.u32 %v4149, 2147483648
    %v4162 = vor.u32 1.1754944e-38, %v4161
    %v4163 = vsel %vm4160, %v4162, %v4158
    %v4164 = vmul.f32 1.0, %v4163
    %v4167 = vrot.slane %v4109, 7
    %v4168 = vsel %vm1630, %v4083, %v4167
    %v4170 = vmul.f32 %v4136, %v4168
    %v4171 = vrot.slane %v3358, 4
    %v4173 = vadd.f32 %v4171, %v4170
    %v4174 = vtanh.pop %v4173
    %v4175 = vsub.f32 1.0, %v4164
    %v4176 = vmul.f32 %v4175, %v4174
    %v4177 = vmul.f32 %v4164, %v3351
    %v4178 = vadd.f32 %v4176, %v4177
    %s4179 = scalar_lea.vmem [#allocation14], 3
    %4180 = vst.msk [vmem:[%s4179] ss:$8 sm:$0x3] %vm1698, %v4178
    %4181 = vst.msk [vmem:[%s4179] ss:$8 sm:$0x0] %vm1698, %v4178
    %s4182 = scalar_lea.vmem [#allocation2], 4
    %v4183 = vld [vmem:[%s4182] ss:$8 sm:$0xf]
    %v4184 = vld [vmem:[%s4182] ss:$8 sm:$0x30]
    %v4185 = vor.u32 %v4183, %v4184
    %v4187 = vperm.slane %v4178, 0
    %v4188 = vperm.slane %v4178, 1
    %v4191 = vpack.c.bf16 %v4187, %v4187
    %v4192 = vpack.c.bf16 %v4188, %v4188
    %v4193 = vld [vmem:[#allocation9] sm:$0xff]
    %v4194 = vld [vmem:[#allocation9 + $0x8] sm:$0xff]
    %v4195 = vld [vmem:[#allocation9 + $0x10] sm:$0xff]
    %v4196 = vld [vmem:[#allocation9 + $0x18] sm:$0xff]
    %v4197 = vld [vmem:[#allocation9 + $0x20] sm:$0xff]
    %v4198 = vld [vmem:[#allocation9 + $0x28] sm:$0xff]
    %v4199 = vld [vmem:[#allocation9 + $0x30] sm:$0xff]
    %v4200 = vld [vmem:[#allocation9 + $0x38] sm:$0xff]
    %v4201 = vld [vmem:[#allocation9 + $0x40] sm:$0xff]
    %v4202 = vld [vmem:[#allocation9 + $0x48] sm:$0xff]
    %v4203 = vld [vmem:[#allocation9 + $0x50] sm:$0xff]
    %v4204 = vld [vmem:[#allocation9 + $0x58] sm:$0xff]
    %v4205 = vld [vmem:[#allocation9 + $0x60] sm:$0xff]
    %v4206 = vld [vmem:[#allocation9 + $0x68] sm:$0xff]
    %v4207 = vld [vmem:[#allocation9 + $0x70] sm:$0xff]
    %v4208 = vld [vmem:[#allocation9 + $0x78] sm:$0xff]
    %v4209 = vld [vmem:[#allocation9 + $0x80] sm:$0xff]
    %v4210 = vld [vmem:[#allocation9 + $0x88] sm:$0xff]
    %v4211 = vld [vmem:[#allocation9 + $0x90] sm:$0xff]
    %v4212 = vld [vmem:[#allocation9 + $0x98] sm:$0xff]
    %v4213 = vld [vmem:[#allocation9 + $0xa0] sm:$0xff]
    %v4214 = vld [vmem:[#allocation9 + $0xa8] sm:$0xff]
    %v4215 = vld [vmem:[#allocation9 + $0xb0] sm:$0xff]
    %v4216 = vld [vmem:[#allocation9 + $0xb8] sm:$0xff]
    %v4217 = vld [vmem:[#allocation9 + $0xc0] sm:$0xff]
    %v4218 = vld [vmem:[#allocation9 + $0xc8] sm:$0xff]
    %v4219 = vld [vmem:[#allocation9 + $0xd0] sm:$0xff]
    %v4220 = vld [vmem:[#allocation9 + $0xd8] sm:$0xff]
    %v4221 = vld [vmem:[#allocation9 + $0xe0] sm:$0xff]
    %v4222 = vld [vmem:[#allocation9 + $0xe8] sm:$0xff]
    %v4223 = vld [vmem:[#allocation9 + $0xf0] sm:$0xff]
    %v4224 = vld [vmem:[#allocation9 + $0xf8] sm:$0xff]
    %v4225 = vld [vmem:[#allocation9 + $0x100] sm:$0xff]
    %v4226 = vld [vmem:[#allocation9 + $0x108] sm:$0xff]
    %v4227 = vld [vmem:[#allocation9 + $0x110] sm:$0xff]
    %v4228 = vld [vmem:[#allocation9 + $0x118] sm:$0xff]
    %v4229 = vld [vmem:[#allocation9 + $0x120] sm:$0xff]
    %v4230 = vld [vmem:[#allocation9 + $0x128] sm:$0xff]
    %v4231 = vld [vmem:[#allocation9 + $0x130] sm:$0xff]
    %v4232 = vld [vmem:[#allocation9 + $0x138] sm:$0xff]
    %v4233 = vld [vmem:[#allocation9 + $0x140] sm:$0xff]
    %v4234 = vld [vmem:[#allocation9 + $0x148] sm:$0xff]
    %v4235 = vld [vmem:[#allocation9 + $0x150] sm:$0xff]
    %v4236 = vld [vmem:[#allocation9 + $0x158] sm:$0xff]
    %v4237 = vld [vmem:[#allocation9 + $0x160] sm:$0xff]
    %v4238 = vld [vmem:[#allocation9 + $0x168] sm:$0xff]
    %v4239 = vld [vmem:[#allocation9 + $0x170] sm:$0xff]
    %v4240 = vld [vmem:[#allocation9 + $0x178] sm:$0xff]
    %v4241 = vld [vmem:[#allocation9 + $0x180] sm:$0xff]
    %v4242 = vld [vmem:[#allocation9 + $0x188] sm:$0xff]
    %v4243 = vld [vmem:[#allocation9 + $0x190] sm:$0xff]
    %v4244 = vld [vmem:[#allocation9 + $0x198] sm:$0xff]
    %v4245 = vld [vmem:[#allocation9 + $0x1a0] sm:$0xff]
    %v4246 = vld [vmem:[#allocation9 + $0x1a8] sm:$0xff]
    %v4247 = vld [vmem:[#allocation9 + $0x1b0] sm:$0xff]
    %v4248 = vld [vmem:[#allocation9 + $0x1b8] sm:$0xff]
    %v4249 = vld [vmem:[#allocation9 + $0x1c0] sm:$0xff]
    %v4250 = vld [vmem:[#allocation9 + $0x1c8] sm:$0xff]
    %v4251 = vld [vmem:[#allocation9 + $0x1d0] sm:$0xff]
    %v4252 = vld [vmem:[#allocation9 + $0x1d8] sm:$0xff]
    %v4253 = vld [vmem:[#allocation9 + $0x1e0] sm:$0xff]
    %v4254 = vld [vmem:[#allocation9 + $0x1e8] sm:$0xff]
    %v4255 = vld [vmem:[#allocation9 + $0x1f0] sm:$0xff]
    %v4256 = vld [vmem:[#allocation9 + $0x1f8] sm:$0xff]
    %v4257 = vld [vmem:[#allocation9 + $0x200] sm:$0xff]
    %v4258 = vld [vmem:[#allocation9 + $0x208] sm:$0xff]
    %v4259 = vld [vmem:[#allocation9 + $0x210] sm:$0xff]
    %v4260 = vld [vmem:[#allocation9 + $0x218] sm:$0xff]
    %v4261 = vld [vmem:[#allocation9 + $0x220] sm:$0xff]
    %v4262 = vld [vmem:[#allocation9 + $0x228] sm:$0xff]
    %v4263 = vld [vmem:[#allocation9 + $0x230] sm:$0xff]
    %v4264 = vld [vmem:[#allocation9 + $0x238] sm:$0xff]
    %v4265 = vld [vmem:[#allocation9 + $0x240] sm:$0xff]
    %v4266 = vld [vmem:[#allocation9 + $0x248] sm:$0xff]
    %v4267 = vld [vmem:[#allocation9 + $0x250] sm:$0xff]
    %v4268 = vld [vmem:[#allocation9 + $0x258] sm:$0xff]
    %v4269 = vld [vmem:[#allocation9 + $0x260] sm:$0xff]
    %v4270 = vld [vmem:[#allocation9 + $0x268] sm:$0xff]
    %v4271 = vld [vmem:[#allocation9 + $0x270] sm:$0xff]
    %v4272 = vld [vmem:[#allocation9 + $0x278] sm:$0xff]
    %v4273 = vld [vmem:[#allocation9 + $0x280] sm:$0xff]
    %v4274 = vld [vmem:[#allocation9 + $0x288] sm:$0xff]
    %v4275 = vld [vmem:[#allocation9 + $0x290] sm:$0xff]
    %v4276 = vld [vmem:[#allocation9 + $0x298] sm:$0xff]
    %v4277 = vld [vmem:[#allocation9 + $0x2a0] sm:$0xff]
    %v4278 = vld [vmem:[#allocation9 + $0x2a8] sm:$0xff]
    %v4279 = vld [vmem:[#allocation9 + $0x2b0] sm:$0xff]
    %v4280 = vld [vmem:[#allocation9 + $0x2b8] sm:$0xff]
    %v4281 = vld [vmem:[#allocation9 + $0x2c0] sm:$0xff]
    %v4282 = vld [vmem:[#allocation9 + $0x2c8] sm:$0xff]
    %v4283 = vld [vmem:[#allocation9 + $0x2d0] sm:$0xff]
    %v4284 = vld [vmem:[#allocation9 + $0x2d8] sm:$0xff]
    %v4285 = vld [vmem:[#allocation9 + $0x2e0] sm:$0xff]
    %v4286 = vld [vmem:[#allocation9 + $0x2e8] sm:$0xff]
    %v4287 = vld [vmem:[#allocation9 + $0x2f0] sm:$0xff]
    %v4288 = vld [vmem:[#allocation9 + $0x2f8] sm:$0xff]
    %v4289 = vld [vmem:[#allocation12] sm:$0x3f]
    %v4386 = vunpack.c.l.b16 %v4193
    %v4387 = vunpack.c.h.b16 %v4193
    %v4388 = vunpack.c.l.b16 %v4194
    %v4389 = vunpack.c.h.b16 %v4194
    %v4390 = vunpack.c.l.b16 %v4195
    %v4391 = vunpack.c.h.b16 %v4195
    %v4392 = vunpack.c.l.b16 %v4196
    %v4393 = vunpack.c.h.b16 %v4196
    %v4394 = vunpack.c.l.b16 %v4197
    %v4395 = vunpack.c.h.b16 %v4197
    %v4396 = vunpack.c.l.b16 %v4198
    %v4397 = vunpack.c.h.b16 %v4198
    %v4398 = vunpack.c.l.b16 %v4199
    %v4399 = vunpack.c.h.b16 %v4199
    %v4400 = vunpack.c.l.b16 %v4200
    %v4401 = vunpack.c.h.b16 %v4200
    %v4402 = vunpack.c.l.b16 %v4201
    %v4403 = vunpack.c.h.b16 %v4201
    %v4404 = vunpack.c.l.b16 %v4202
    %v4405 = vunpack.c.h.b16 %v4202
    %v4406 = vunpack.c.l.b16 %v4203
    %v4407 = vunpack.c.h.b16 %v4203
    %v4408 = vunpack.c.l.b16 %v4204
    %v4409 = vunpack.c.h.b16 %v4204
    %v4410 = vunpack.c.l.b16 %v4205
    %v4411 = vunpack.c.h.b16 %v4205
    %v4412 = vunpack.c.l.b16 %v4206
    %v4413 = vunpack.c.h.b16 %v4206
    %v4414 = vunpack.c.l.b16 %v4207
    %v4415 = vunpack.c.h.b16 %v4207
    %v4416 = vunpack.c.l.b16 %v4208
    %v4417 = vunpack.c.h.b16 %v4208
    %v4418 = vunpack.c.l.b16 %v4209
    %v4419 = vunpack.c.h.b16 %v4209
    %v4420 = vunpack.c.l.b16 %v4210
    %v4421 = vunpack.c.h.b16 %v4210
    %v4422 = vunpack.c.l.b16 %v4211
    %v4423 = vunpack.c.h.b16 %v4211
    %v4424 = vunpack.c.l.b16 %v4212
    %v4425 = vunpack.c.h.b16 %v4212
    %v4426 = vunpack.c.l.b16 %v4213
    %v4427 = vunpack.c.h.b16 %v4213
    %v4428 = vunpack.c.l.b16 %v4214
    %v4429 = vunpack.c.h.b16 %v4214
    %v4430 = vunpack.c.l.b16 %v4215
    %v4431 = vunpack.c.h.b16 %v4215
    %v4432 = vunpack.c.l.b16 %v4216
    %v4433 = vunpack.c.h.b16 %v4216
    %v4434 = vunpack.c.l.b16 %v4217
    %v4435 = vunpack.c.h.b16 %v4217
    %v4436 = vunpack.c.l.b16 %v4218
    %v4437 = vunpack.c.h.b16 %v4218
    %v4438 = vunpack.c.l.b16 %v4219
    %v4439 = vunpack.c.h.b16 %v4219
    %v4440 = vunpack.c.l.b16 %v4220
    %v4441 = vunpack.c.h.b16 %v4220
    %v4442 = vunpack.c.l.b16 %v4221
    %v4443 = vunpack.c.h.b16 %v4221
    %v4444 = vunpack.c.l.b16 %v4222
    %v4445 = vunpack.c.h.b16 %v4222
    %v4446 = vunpack.c.l.b16 %v4223
    %v4447 = vunpack.c.h.b16 %v4223
    %v4448 = vunpack.c.l.b16 %v4224
    %v4449 = vunpack.c.h.b16 %v4224
    %v4450 = vunpack.c.l.b16 %v4225
    %v4451 = vunpack.c.h.b16 %v4225
    %v4452 = vunpack.c.l.b16 %v4226
    %v4453 = vunpack.c.h.b16 %v4226
    %v4454 = vunpack.c.l.b16 %v4227
    %v4455 = vunpack.c.h.b16 %v4227
    %v4456 = vunpack.c.l.b16 %v4228
    %v4457 = vunpack.c.h.b16 %v4228
    %v4458 = vunpack.c.l.b16 %v4229
    %v4459 = vunpack.c.h.b16 %v4229
    %v4460 = vunpack.c.l.b16 %v4230
    %v4461 = vunpack.c.h.b16 %v4230
    %v4462 = vunpack.c.l.b16 %v4231
    %v4463 = vunpack.c.h.b16 %v4231
    %v4464 = vunpack.c.l.b16 %v4232
    %v4465 = vunpack.c.h.b16 %v4232
    %v4466 = vunpack.c.l.b16 %v4233
    %v4467 = vunpack.c.h.b16 %v4233
    %v4468 = vunpack.c.l.b16 %v4234
    %v4469 = vunpack.c.h.b16 %v4234
    %v4470 = vunpack.c.l.b16 %v4235
    %v4471 = vunpack.c.h.b16 %v4235
    %v4472 = vunpack.c.l.b16 %v4236
    %v4473 = vunpack.c.h.b16 %v4236
    %v4474 = vunpack.c.l.b16 %v4237
    %v4475 = vunpack.c.h.b16 %v4237
    %v4476 = vunpack.c.l.b16 %v4238
    %v4477 = vunpack.c.h.b16 %v4238
    %v4478 = vunpack.c.l.b16 %v4239
    %v4479 = vunpack.c.h.b16 %v4239
    %v4480 = vunpack.c.l.b16 %v4240
    %v4481 = vunpack.c.h.b16 %v4240
    %v4482 = vunpack.c.l.b16 %v4241
    %v4483 = vunpack.c.h.b16 %v4241
    %v4484 = vunpack.c.l.b16 %v4242
    %v4485 = vunpack.c.h.b16 %v4242
    %v4486 = vunpack.c.l.b16 %v4243
    %v4487 = vunpack.c.h.b16 %v4243
    %v4488 = vunpack.c.l.b16 %v4244
    %v4489 = vunpack.c.h.b16 %v4244
    %v4490 = vunpack.c.l.b16 %v4245
    %v4491 = vunpack.c.h.b16 %v4245
    %v4492 = vunpack.c.l.b16 %v4246
    %v4493 = vunpack.c.h.b16 %v4246
    %v4494 = vunpack.c.l.b16 %v4247
    %v4495 = vunpack.c.h.b16 %v4247
    %v4496 = vunpack.c.l.b16 %v4248
    %v4497 = vunpack.c.h.b16 %v4248
    %v4498 = vunpack.c.l.b16 %v4249
    %v4499 = vunpack.c.h.b16 %v4249
    %v4500 = vunpack.c.l.b16 %v4250
    %v4501 = vunpack.c.h.b16 %v4250
    %v4502 = vunpack.c.l.b16 %v4251
    %v4503 = vunpack.c.h.b16 %v4251
    %v4504 = vunpack.c.l.b16 %v4252
    %v4505 = vunpack.c.h.b16 %v4252
    %v4506 = vunpack.c.l.b16 %v4253
    %v4507 = vunpack.c.h.b16 %v4253
    %v4508 = vunpack.c.l.b16 %v4254
    %v4509 = vunpack.c.h.b16 %v4254
    %v4510 = vunpack.c.l.b16 %v4255
    %v4511 = vunpack.c.h.b16 %v4255
    %v4512 = vunpack.c.l.b16 %v4256
    %v4513 = vunpack.c.h.b16 %v4256
    %v4514 = vunpack.c.l.b16 %v4257
    %v4515 = vunpack.c.h.b16 %v4257
    %v4516 = vunpack.c.l.b16 %v4258
    %v4517 = vunpack.c.h.b16 %v4258
    %v4518 = vunpack.c.l.b16 %v4259
    %v4519 = vunpack.c.h.b16 %v4259
    %v4520 = vunpack.c.l.b16 %v4260
    %v4521 = vunpack.c.h.b16 %v4260
    %v4522 = vunpack.c.l.b16 %v4261
    %v4523 = vunpack.c.h.b16 %v4261
    %v4524 = vunpack.c.l.b16 %v4262
    %v4525 = vunpack.c.h.b16 %v4262
    %v4526 = vunpack.c.l.b16 %v4263
    %v4527 = vunpack.c.h.b16 %v4263
    %v4528 = vunpack.c.l.b16 %v4264
    %v4529 = vunpack.c.h.b16 %v4264
    %v4530 = vunpack.c.l.b16 %v4265
    %v4531 = vunpack.c.h.b16 %v4265
    %v4532 = vunpack.c.l.b16 %v4266
    %v4533 = vunpack.c.h.b16 %v4266
    %v4534 = vunpack.c.l.b16 %v4267
    %v4535 = vunpack.c.h.b16 %v4267
    %v4536 = vunpack.c.l.b16 %v4268
    %v4537 = vunpack.c.h.b16 %v4268
    %v4538 = vunpack.c.l.b16 %v4269
    %v4539 = vunpack.c.h.b16 %v4269
    %v4540 = vunpack.c.l.b16 %v4270
    %v4541 = vunpack.c.h.b16 %v4270
    %v4542 = vunpack.c.l.b16 %v4271
    %v4543 = vunpack.c.h.b16 %v4271
    %v4544 = vunpack.c.l.b16 %v4272
    %v4545 = vunpack.c.h.b16 %v4272
    %v4546 = vunpack.c.l.b16 %v4273
    %v4547 = vunpack.c.h.b16 %v4273
    %v4548 = vunpack.c.l.b16 %v4274
    %v4549 = vunpack.c.h.b16 %v4274
    %v4550 = vunpack.c.l.b16 %v4275
    %v4551 = vunpack.c.h.b16 %v4275
    %v4552 = vunpack.c.l.b16 %v4276
    %v4553 = vunpack.c.h.b16 %v4276
    %v4554 = vunpack.c.l.b16 %v4277
    %v4555 = vunpack.c.h.b16 %v4277
    %v4556 = vunpack.c.l.b16 %v4278
    %v4557 = vunpack.c.h.b16 %v4278
    %v4558 = vunpack.c.l.b16 %v4279
    %v4559 = vunpack.c.h.b16 %v4279
    %v4560 = vunpack.c.l.b16 %v4280
    %v4561 = vunpack.c.h.b16 %v4280
    %v4562 = vunpack.c.l.b16 %v4281
    %v4563 = vunpack.c.h.b16 %v4281
    %v4564 = vunpack.c.l.b16 %v4282
    %v4565 = vunpack.c.h.b16 %v4282
    %v4566 = vunpack.c.l.b16 %v4283
    %v4567 = vunpack.c.h.b16 %v4283
    %v4568 = vunpack.c.l.b16 %v4284
    %v4569 = vunpack.c.h.b16 %v4284
    %v4570 = vunpack.c.l.b16 %v4285
    %v4571 = vunpack.c.h.b16 %v4285
    %v4572 = vunpack.c.l.b16 %v4286
    %v4573 = vunpack.c.h.b16 %v4286
    %v4574 = vunpack.c.l.b16 %v4287
    %v4575 = vunpack.c.h.b16 %v4287
    %v4576 = vunpack.c.l.b16 %v4288
    %v4577 = vunpack.c.h.b16 %v4288
    %v4578 = vpack.c.b16 %v4392, %v4386
    %v4579 = vpack.c.b16 %v4393, %v4387
    %v4580 = vpack.c.b16 %v4394, %v4388
    %v4581 = vpack.c.b16 %v4395, %v4389
    %v4582 = vpack.c.b16 %v4396, %v4390
    %v4583 = vpack.c.b16 %v4397, %v4391
    %v4584 = vpack.c.b16 %v4404, %v4398
    %v4585 = vpack.c.b16 %v4405, %v4399
    %v4586 = vpack.c.b16 %v4406, %v4400
    %v4587 = vpack.c.b16 %v4407, %v4401
    %v4588 = vpack.c.b16 %v4408, %v4402
    %v4589 = vpack.c.b16 %v4409, %v4403
    %v4590 = vpack.c.b16 %v4416, %v4410
    %v4591 = vpack.c.b16 %v4417, %v4411
    %v4592 = vpack.c.b16 %v4418, %v4412
    %v4593 = vpack.c.b16 %v4419, %v4413
    %v4594 = vpack.c.b16 %v4420, %v4414
    %v4595 = vpack.c.b16 %v4421, %v4415
    %v4596 = vpack.c.b16 %v4428, %v4422
    %v4597 = vpack.c.b16 %v4429, %v4423
    %v4598 = vpack.c.b16 %v4430, %v4424
    %v4599 = vpack.c.b16 %v4431, %v4425
    %v4600 = vpack.c.b16 %v4432, %v4426
    %v4601 = vpack.c.b16 %v4433, %v4427
    %v4602 = vpack.c.b16 %v4440, %v4434
    %v4603 = vpack.c.b16 %v4441, %v4435
    %v4604 = vpack.c.b16 %v4442, %v4436
    %v4605 = vpack.c.b16 %v4443, %v4437
    %v4606 = vpack.c.b16 %v4444, %v4438
    %v4607 = vpack.c.b16 %v4445, %v4439
    %v4608 = vpack.c.b16 %v4452, %v4446
    %v4609 = vpack.c.b16 %v4453, %v4447
    %v4610 = vpack.c.b16 %v4454, %v4448
    %v4611 = vpack.c.b16 %v4455, %v4449
    %v4612 = vpack.c.b16 %v4456, %v4450
    %v4613 = vpack.c.b16 %v4457, %v4451
    %v4614 = vpack.c.b16 %v4464, %v4458
    %v4615 = vpack.c.b16 %v4465, %v4459
    %v4616 = vpack.c.b16 %v4466, %v4460
    %v4617 = vpack.c.b16 %v4467, %v4461
    %v4618 = vpack.c.b16 %v4468, %v4462
    %v4619 = vpack.c.b16 %v4469, %v4463
    %v4620 = vpack.c.b16 %v4476, %v4470
    %v4621 = vpack.c.b16 %v4477, %v4471
    %v4622 = vpack.c.b16 %v4478, %v4472
    %v4623 = vpack.c.b16 %v4479, %v4473
    %v4624 = vpack.c.b16 %v4480, %v4474
    %v4625 = vpack.c.b16 %v4481, %v4475
    %v4626 = vpack.c.b16 %v4488, %v4482
    %v4627 = vpack.c.b16 %v4489, %v4483
    %v4628 = vpack.c.b16 %v4490, %v4484
    %v4629 = vpack.c.b16 %v4491, %v4485
    %v4630 = vpack.c.b16 %v4492, %v4486
    %v4631 = vpack.c.b16 %v4493, %v4487
    %v4632 = vpack.c.b16 %v4500, %v4494
    %v4633 = vpack.c.b16 %v4501, %v4495
    %v4634 = vpack.c.b16 %v4502, %v4496
    %v4635 = vpack.c.b16 %v4503, %v4497
    %v4636 = vpack.c.b16 %v4504, %v4498
    %v4637 = vpack.c.b16 %v4505, %v4499
    %v4638 = vpack.c.b16 %v4512, %v4506
    %v4639 = vpack.c.b16 %v4513, %v4507
    %v4640 = vpack.c.b16 %v4514, %v4508
    %v4641 = vpack.c.b16 %v4515, %v4509
    %v4642 = vpack.c.b16 %v4516, %v4510
    %v4643 = vpack.c.b16 %v4517, %v4511
    %v4644 = vpack.c.b16 %v4524, %v4518
    %v4645 = vpack.c.b16 %v4525, %v4519
    %v4646 = vpack.c.b16 %v4526, %v4520
    %v4647 = vpack.c.b16 %v4527, %v4521
    %v4648 = vpack.c.b16 %v4528, %v4522
    %v4649 = vpack.c.b16 %v4529, %v4523
    %v4650 = vpack.c.b16 %v4536, %v4530
    %v4651 = vpack.c.b16 %v4537, %v4531
    %v4652 = vpack.c.b16 %v4538, %v4532
    %v4653 = vpack.c.b16 %v4539, %v4533
    %v4654 = vpack.c.b16 %v4540, %v4534
    %v4655 = vpack.c.b16 %v4541, %v4535
    %v4656 = vpack.c.b16 %v4548, %v4542
    %v4657 = vpack.c.b16 %v4549, %v4543
    %v4658 = vpack.c.b16 %v4550, %v4544
    %v4659 = vpack.c.b16 %v4551, %v4545
    %v4660 = vpack.c.b16 %v4552, %v4546
    %v4661 = vpack.c.b16 %v4553, %v4547
    %v4662 = vpack.c.b16 %v4560, %v4554
    %v4663 = vpack.c.b16 %v4561, %v4555
    %v4664 = vpack.c.b16 %v4562, %v4556
    %v4665 = vpack.c.b16 %v4563, %v4557
    %v4666 = vpack.c.b16 %v4564, %v4558
    %v4667 = vpack.c.b16 %v4565, %v4559
    %v4668 = vpack.c.b16 %v4572, %v4566
    %v4669 = vpack.c.b16 %v4573, %v4567
    %v4670 = vpack.c.b16 %v4574, %v4568
    %v4671 = vpack.c.b16 %v4575, %v4569
    %v4672 = vpack.c.b16 %v4576, %v4570
    %v4673 = vpack.c.b16 %v4577, %v4571
    %v4771 = vperm.slane %v4289, 0
    %v4772 = vperm.slane %v4289, 1
    %v4773 = vperm.slane %v4289, 2
    %v4774 = vperm.slane %v4289, 3
    %v4775 = vperm.slane %v4289, 4
    %v4776 = vperm.slane %v4289, 5
    %4783 = vmatpush.bf16.msra.mxu0 %v4620
    %4784 = vmatpush.bf16.msra.mxu0 %v4614
    %4785 = vmatpush.bf16.msra.mxu0 %v4608
    %4786 = vmatpush.bf16.msra.mxu0 %v4602
    %4787 = vmatpush.bf16.msra.mxu0 %v4596
    %4788 = vmatpush.bf16.msra.mxu0 %v4590
    %4789 = vmatpush.bf16.msra.mxu0 %v4584
    %4790 = vmatpush.bf16.msra.mxu0 %v4578
    %4791 = vmatmul.bf16.gmra.mxu0 %v4191
    %v4792 = vpop.f32.mrf.mxu0
    %v4793 = vadd.f32 %v4771, %v4792
    %v4794 = vpop.f32.mrf.mxu0
    %4795 = vdwg.mxu0
    %4796 = vmatpush.bf16.msra.mxu0 %v4668
    %4797 = vmatpush.bf16.msra.mxu0 %v4662
    %4798 = vmatpush.bf16.msra.mxu0 %v4656
    %4799 = vmatpush.bf16.msra.mxu0 %v4650
    %4800 = vmatpush.bf16.msra.mxu0 %v4644
    %4801 = vmatpush.bf16.msra.mxu0 %v4638
    %4802 = vmatpush.bf16.msra.mxu0 %v4632
    %4803 = vmatpush.bf16.msra.mxu0 %v4626
    %4804 = vmatmul.bf16.gmra.mxu0 %v4192
    %v4805 = vpop.f32.mrf.mxu0
    %v4806 = vadd.f32 %v4793, %v4805
    %v4807 = vpop.f32.mrf.mxu0
    %4808 = vdwg.mxu0
    %4809 = vmatpush.bf16.msra.mxu0 %v4621
    %4810 = vmatpush.bf16.msra.mxu0 %v4615
    %4811 = vmatpush.bf16.msra.mxu0 %v4609
    %4812 = vmatpush.bf16.msra.mxu0 %v4603
    %4813 = vmatpush.bf16.msra.mxu0 %v4597
    %4814 = vmatpush.bf16.msra.mxu0 %v4591
    %4815 = vmatpush.bf16.msra.mxu0 %v4585
    %4816 = vmatpush.bf16.msra.mxu0 %v4579
    %4817 = vmatmul.bf16.gmra.mxu0 %v4191
    %v4818 = vpop.f32.mrf.mxu0
    %v4819 = vadd.f32 %v4772, %v4818
    %v4820 = vpop.f32.mrf.mxu0
    %4821 = vdwg.mxu0
    %4822 = vmatpush.bf16.msra.mxu0 %v4669
    %4823 = vmatpush.bf16.msra.mxu0 %v4663
    %4824 = vmatpush.bf16.msra.mxu0 %v4657
    %4825 = vmatpush.bf16.msra.mxu0 %v4651
    %4826 = vmatpush.bf16.msra.mxu0 %v4645
    %4827 = vmatpush.bf16.msra.mxu0 %v4639
    %4828 = vmatpush.bf16.msra.mxu0 %v4633
    %4829 = vmatpush.bf16.msra.mxu0 %v4627
    %4830 = vmatmul.bf16.gmra.mxu0 %v4192
    %v4831 = vpop.f32.mrf.mxu0
    %v4832 = vadd.f32 %v4819, %v4831
    %v4833 = vpop.f32.mrf.mxu0
    %4834 = vdwg.mxu0
    %4835 = vmatpush.bf16.msra.mxu0 %v4622
    %4836 = vmatpush.bf16.msra.mxu0 %v4616
    %4837 = vmatpush.bf16.msra.mxu0 %v4610
    %4838 = vmatpush.bf16.msra.mxu0 %v4604
    %4839 = vmatpush.bf16.msra.mxu0 %v4598
    %4840 = vmatpush.bf16.msra.mxu0 %v4592
    %4841 = vmatpush.bf16.msra.mxu0 %v4586
    %4842 = vmatpush.bf16.msra.mxu0 %v4580
    %4843 = vmatmul.bf16.gmra.mxu0 %v4191
    %v4844 = vpop.f32.mrf.mxu0
    %v4845 = vadd.f32 %v4773, %v4844
    %v4846 = vpop.f32.mrf.mxu0
    %4847 = vdwg.mxu0
    %4848 = vmatpush.bf16.msra.mxu0 %v4670
    %4849 = vmatpush.bf16.msra.mxu0 %v4664
    %4850 = vmatpush.bf16.msra.mxu0 %v4658
    %4851 = vmatpush.bf16.msra.mxu0 %v4652
    %4852 = vmatpush.bf16.msra.mxu0 %v4646
    %4853 = vmatpush.bf16.msra.mxu0 %v4640
    %4854 = vmatpush.bf16.msra.mxu0 %v4634
    %4855 = vmatpush.bf16.msra.mxu0 %v4628
    %4856 = vmatmul.bf16.gmra.mxu0 %v4192
    %v4857 = vpop.f32.mrf.mxu0
    %v4858 = vadd.f32 %v4845, %v4857
    %v4859 = vpop.f32.mrf.mxu0
    %4860 = vdwg.mxu0
    %4861 = vmatpush.bf16.msra.mxu0 %v4623
    %4862 = vmatpush.bf16.msra.mxu0 %v4617
    %4863 = vmatpush.bf16.msra.mxu0 %v4611
    %4864 = vmatpush.bf16.msra.mxu0 %v4605
    %4865 = vmatpush.bf16.msra.mxu0 %v4599
    %4866 = vmatpush.bf16.msra.mxu0 %v4593
    %4867 = vmatpush.bf16.msra.mxu0 %v4587
    %4868 = vmatpush.bf16.msra.mxu0 %v4581
    %4869 = vmatmul.bf16.gmra.mxu0 %v4191
    %v4870 = vpop.f32.mrf.mxu0
    %v4871 = vadd.f32 %v4774, %v4870
    %v4872 = vpop.f32.mrf.mxu0
    %4873 = vdwg.mxu0
    %4874 = vmatpush.bf16.msra.mxu0 %v4671
    %4875 = vmatpush.bf16.msra.mxu0 %v4665
    %4876 = vmatpush.bf16.msra.mxu0 %v4659
    %4877 = vmatpush.bf16.msra.mxu0 %v4653
    %4878 = vmatpush.bf16.msra.mxu0 %v4647
    %4879 = vmatpush.bf16.msra.mxu0 %v4641
    %4880 = vmatpush.bf16.msra.mxu0 %v4635
    %4881 = vmatpush.bf16.msra.mxu0 %v4629
    %4882 = vmatmul.bf16.gmra.mxu0 %v4192
    %v4883 = vpop.f32.mrf.mxu0
    %v4884 = vadd.f32 %v4871, %v4883
    %v4885 = vpop.f32.mrf.mxu0
    %4886 = vdwg.mxu0
    %4887 = vmatpush.bf16.msra.mxu0 %v4624
    %4888 = vmatpush.bf16.msra.mxu0 %v4618
    %4889 = vmatpush.bf16.msra.mxu0 %v4612
    %4890 = vmatpush.bf16.msra.mxu0 %v4606
    %4891 = vmatpush.bf16.msra.mxu0 %v4600
    %4892 = vmatpush.bf16.msra.mxu0 %v4594
    %4893 = vmatpush.bf16.msra.mxu0 %v4588
    %4894 = vmatpush.bf16.msra.mxu0 %v4582
    %4895 = vmatmul.bf16.gmra.mxu0 %v4191
    %v4896 = vpop.f32.mrf.mxu0
    %v4897 = vadd.f32 %v4775, %v4896
    %v4898 = vpop.f32.mrf.mxu0
    %4899 = vdwg.mxu0
    %4900 = vmatpush.bf16.msra.mxu0 %v4672
    %4901 = vmatpush.bf16.msra.mxu0 %v4666
    %4902 = vmatpush.bf16.msra.mxu0 %v4660
    %4903 = vmatpush.bf16.msra.mxu0 %v4654
    %4904 = vmatpush.bf16.msra.mxu0 %v4648
    %4905 = vmatpush.bf16.msra.mxu0 %v4642
    %4906 = vmatpush.bf16.msra.mxu0 %v4636
    %4907 = vmatpush.bf16.msra.mxu0 %v4630
    %4908 = vmatmul.bf16.gmra.mxu0 %v4192
    %v4909 = vpop.f32.mrf.mxu0
    %v4910 = vadd.f32 %v4897, %v4909
    %v4911 = vpop.f32.mrf.mxu0
    %4912 = vdwg.mxu0
    %4913 = vmatpush.bf16.msra.mxu0 %v4625
    %4914 = vmatpush.bf16.msra.mxu0 %v4619
    %4915 = vmatpush.bf16.msra.mxu0 %v4613
    %4916 = vmatpush.bf16.msra.mxu0 %v4607
    %4917 = vmatpush.bf16.msra.mxu0 %v4601
    %4918 = vmatpush.bf16.msra.mxu0 %v4595
    %4919 = vmatpush.bf16.msra.mxu0 %v4589
    %4920 = vmatpush.bf16.msra.mxu0 %v4583
    %4921 = vmatmul.bf16.gmra.mxu0 %v4191
    %v4922 = vpop.f32.mrf.mxu0
    %v4923 = vadd.f32 %v4776, %v4922
    %v4924 = vpop.f32.mrf.mxu0
    %4925 = vdwg.mxu0
    %4926 = vmatpush.bf16.msra.mxu0 %v4673
    %4927 = vmatpush.bf16.msra.mxu0 %v4667
    %4928 = vmatpush.bf16.msra.mxu0 %v4661
    %4929 = vmatpush.bf16.msra.mxu0 %v4655
    %4930 = vmatpush.bf16.msra.mxu0 %v4649
    %4931 = vmatpush.bf16.msra.mxu0 %v4643
    %4932 = vmatpush.bf16.msra.mxu0 %v4637
    %4933 = vmatpush.bf16.msra.mxu0 %v4631
    %4934 = vmatmul.bf16.gmra.mxu0 %v4192
    %v4935 = vpop.f32.mrf.mxu0
    %v4936 = vadd.f32 %v4923, %v4935
    %v4937 = vpop.f32.mrf.mxu0
    %4938 = vdwg.mxu0
    %v4941 = vrot.slane %v4832, 7
    %v4942 = vsel %vm1630, %v4806, %v4941
    %v4944 = vadd.f32 %v4185, %v4942
    %v4945 = vxor.u32 %v4944, 2147483648
    %v4946 = vmul.f32 %v4945, 1.442695
    %v4947 = vpow.pop %v4946
    %v4948 = vadd.f32 %v4947, 1.0
    %v4949 = vrcp.pop %v4948
    %v4950 = vmul.f32 %v4948, %v4949
    %v4951 = vsub.f32 1.0, %v4950
    %v4952 = vmul.f32 %v4949, %v4951
    %v4953 = vadd.f32 %v4949, %v4952
    %vm4954 = vweird.f32 %v4948
    %vm4955 = vweird.f32 %v4949
    %vm4956 = vmor %vm4954, %vm4955
    %v4957 = vsel %vm4956, %v4949, %v4953
    %v4958 = vand.u32 2147483647, %v4948
    %vm4959 = vcmp.eq.f32.partialorder %v4958, 8.507059e+37
    %v4960 = vand.u32 %v4948, 2147483648
    %v4961 = vor.u32 1.1754944e-38, %v4960
    %v4962 = vsel %vm4959, %v4961, %v4957
    %v4963 = vmul.f32 1.0, %v4962
    %v4965 = vrot.slane %v4185, 2
    %v4969 = vrot.slane %v4884, 7
    %v4970 = vsel %vm1630, %v4858, %v4969
    %v4972 = vadd.f32 %v4965, %v4970
    %v4973 = vxor.u32 %v4972, 2147483648
    %v4974 = vmul.f32 %v4973, 1.442695
    %v4975 = vpow.pop %v4974
    %v4976 = vadd.f32 %v4975, 1.0
    %v4977 = vrcp.pop %v4976
    %v4978 = vmul.f32 %v4976, %v4977
    %v4979 = vsub.f32 1.0, %v4978
    %v4980 = vmul.f32 %v4977, %v4979
    %v4981 = vadd.f32 %v4977, %v4980
    %vm4982 = vweird.f32 %v4976
    %vm4983 = vweird.f32 %v4977
    %vm4984 = vmor %vm4982, %vm4983
    %v4985 = vsel %vm4984, %v4977, %v4981
    %v4986 = vand.u32 2147483647, %v4976
    %vm4987 = vcmp.eq.f32.partialorder %v4986, 8.507059e+37
    %v4988 = vand.u32 %v4976, 2147483648
    %v4989 = vor.u32 1.1754944e-38, %v4988
    %v4990 = vsel %vm4987, %v4989, %v4985
    %v4991 = vmul.f32 1.0, %v4990
    %v4994 = vrot.slane %v4936, 7
    %v4995 = vsel %vm1630, %v4910, %v4994
    %v4997 = vmul.f32 %v4963, %v4995
    %v4998 = vrot.slane %v4185, 4
    %v5000 = vadd.f32 %v4998, %v4997
    %v5001 = vtanh.pop %v5000
    %v5002 = vsub.f32 1.0, %v4991
    %v5003 = vmul.f32 %v5002, %v5001
    %v5004 = vmul.f32 %v4991, %v4178
    %v5005 = vadd.f32 %v5003, %v5004
    %s5006 = scalar_lea.vmem [#allocation14], 4
    %5007 = vst.msk [vmem:[%s5006] ss:$8 sm:$0x3] %vm1698, %v5005
    %5008 = vst.msk [vmem:[%s5006] ss:$8 sm:$0x0] %vm1698, %v5005
    %s5009 = scalar_lea.vmem [#allocation2], 5
    %v5010 = vld [vmem:[%s5009] ss:$8 sm:$0xf]
    %v5011 = vld [vmem:[%s5009] ss:$8 sm:$0x30]
    %v5012 = vor.u32 %v5010, %v5011
    %v5014 = vperm.slane %v5005, 0
    %v5015 = vperm.slane %v5005, 1
    %v5018 = vpack.c.bf16 %v5014, %v5014
    %v5019 = vpack.c.bf16 %v5015, %v5015
    %v5020 = vld [vmem:[#allocation9] sm:$0xff]
    %v5021 = vld [vmem:[#allocation9 + $0x8] sm:$0xff]
    %v5022 = vld [vmem:[#allocation9 + $0x10] sm:$0xff]
    %v5023 = vld [vmem:[#allocation9 + $0x18] sm:$0xff]
    %v5024 = vld [vmem:[#allocation9 + $0x20] sm:$0xff]
    %v5025 = vld [vmem:[#allocation9 + $0x28] sm:$0xff]
    %v5026 = vld [vmem:[#allocation9 + $0x30] sm:$0xff]
    %v5027 = vld [vmem:[#allocation9 + $0x38] sm:$0xff]
    %v5028 = vld [vmem:[#allocation9 + $0x40] sm:$0xff]
    %v5029 = vld [vmem:[#allocation9 + $0x48] sm:$0xff]
    %v5030 = vld [vmem:[#allocation9 + $0x50] sm:$0xff]
    %v5031 = vld [vmem:[#allocation9 + $0x58] sm:$0xff]
    %v5032 = vld [vmem:[#allocation9 + $0x60] sm:$0xff]
    %v5033 = vld [vmem:[#allocation9 + $0x68] sm:$0xff]
    %v5034 = vld [vmem:[#allocation9 + $0x70] sm:$0xff]
    %v5035 = vld [vmem:[#allocation9 + $0x78] sm:$0xff]
    %v5036 = vld [vmem:[#allocation9 + $0x80] sm:$0xff]
    %v5037 = vld [vmem:[#allocation9 + $0x88] sm:$0xff]
    %v5038 = vld [vmem:[#allocation9 + $0x90] sm:$0xff]
    %v5039 = vld [vmem:[#allocation9 + $0x98] sm:$0xff]
    %v5040 = vld [vmem:[#allocation9 + $0xa0] sm:$0xff]
    %v5041 = vld [vmem:[#allocation9 + $0xa8] sm:$0xff]
    %v5042 = vld [vmem:[#allocation9 + $0xb0] sm:$0xff]
    %v5043 = vld [vmem:[#allocation9 + $0xb8] sm:$0xff]
    %v5044 = vld [vmem:[#allocation9 + $0xc0] sm:$0xff]
    %v5045 = vld [vmem:[#allocation9 + $0xc8] sm:$0xff]
    %v5046 = vld [vmem:[#allocation9 + $0xd0] sm:$0xff]
    %v5047 = vld [vmem:[#allocation9 + $0xd8] sm:$0xff]
    %v5048 = vld [vmem:[#allocation9 + $0xe0] sm:$0xff]
    %v5049 = vld [vmem:[#allocation9 + $0xe8] sm:$0xff]
    %v5050 = vld [vmem:[#allocation9 + $0xf0] sm:$0xff]
    %v5051 = vld [vmem:[#allocation9 + $0xf8] sm:$0xff]
    %v5052 = vld [vmem:[#allocation9 + $0x100] sm:$0xff]
    %v5053 = vld [vmem:[#allocation9 + $0x108] sm:$0xff]
    %v5054 = vld [vmem:[#allocation9 + $0x110] sm:$0xff]
    %v5055 = vld [vmem:[#allocation9 + $0x118] sm:$0xff]
    %v5056 = vld [vmem:[#allocation9 + $0x120] sm:$0xff]
    %v5057 = vld [vmem:[#allocation9 + $0x128] sm:$0xff]
    %v5058 = vld [vmem:[#allocation9 + $0x130] sm:$0xff]
    %v5059 = vld [vmem:[#allocation9 + $0x138] sm:$0xff]
    %v5060 = vld [vmem:[#allocation9 + $0x140] sm:$0xff]
    %v5061 = vld [vmem:[#allocation9 + $0x148] sm:$0xff]
    %v5062 = vld [vmem:[#allocation9 + $0x150] sm:$0xff]
    %v5063 = vld [vmem:[#allocation9 + $0x158] sm:$0xff]
    %v5064 = vld [vmem:[#allocation9 + $0x160] sm:$0xff]
    %v5065 = vld [vmem:[#allocation9 + $0x168] sm:$0xff]
    %v5066 = vld [vmem:[#allocation9 + $0x170] sm:$0xff]
    %v5067 = vld [vmem:[#allocation9 + $0x178] sm:$0xff]
    %v5068 = vld [vmem:[#allocation9 + $0x180] sm:$0xff]
    %v5069 = vld [vmem:[#allocation9 + $0x188] sm:$0xff]
    %v5070 = vld [vmem:[#allocation9 + $0x190] sm:$0xff]
    %v5071 = vld [vmem:[#allocation9 + $0x198] sm:$0xff]
    %v5072 = vld [vmem:[#allocation9 + $0x1a0] sm:$0xff]
    %v5073 = vld [vmem:[#allocation9 + $0x1a8] sm:$0xff]
    %v5074 = vld [vmem:[#allocation9 + $0x1b0] sm:$0xff]
    %v5075 = vld [vmem:[#allocation9 + $0x1b8] sm:$0xff]
    %v5076 = vld [vmem:[#allocation9 + $0x1c0] sm:$0xff]
    %v5077 = vld [vmem:[#allocation9 + $0x1c8] sm:$0xff]
    %v5078 = vld [vmem:[#allocation9 + $0x1d0] sm:$0xff]
    %v5079 = vld [vmem:[#allocation9 + $0x1d8] sm:$0xff]
    %v5080 = vld [vmem:[#allocation9 + $0x1e0] sm:$0xff]
    %v5081 = vld [vmem:[#allocation9 + $0x1e8] sm:$0xff]
    %v5082 = vld [vmem:[#allocation9 + $0x1f0] sm:$0xff]
    %v5083 = vld [vmem:[#allocation9 + $0x1f8] sm:$0xff]
    %v5084 = vld [vmem:[#allocation9 + $0x200] sm:$0xff]
    %v5085 = vld [vmem:[#allocation9 + $0x208] sm:$0xff]
    %v5086 = vld [vmem:[#allocation9 + $0x210] sm:$0xff]
    %v5087 = vld [vmem:[#allocation9 + $0x218] sm:$0xff]
    %v5088 = vld [vmem:[#allocation9 + $0x220] sm:$0xff]
    %v5089 = vld [vmem:[#allocation9 + $0x228] sm:$0xff]
    %v5090 = vld [vmem:[#allocation9 + $0x230] sm:$0xff]
    %v5091 = vld [vmem:[#allocation9 + $0x238] sm:$0xff]
    %v5092 = vld [vmem:[#allocation9 + $0x240] sm:$0xff]
    %v5093 = vld [vmem:[#allocation9 + $0x248] sm:$0xff]
    %v5094 = vld [vmem:[#allocation9 + $0x250] sm:$0xff]
    %v5095 = vld [vmem:[#allocation9 + $0x258] sm:$0xff]
    %v5096 = vld [vmem:[#allocation9 + $0x260] sm:$0xff]
    %v5097 = vld [vmem:[#allocation9 + $0x268] sm:$0xff]
    %v5098 = vld [vmem:[#allocation9 + $0x270] sm:$0xff]
    %v5099 = vld [vmem:[#allocation9 + $0x278] sm:$0xff]
    %v5100 = vld [vmem:[#allocation9 + $0x280] sm:$0xff]
    %v5101 = vld [vmem:[#allocation9 + $0x288] sm:$0xff]
    %v5102 = vld [vmem:[#allocation9 + $0x290] sm:$0xff]
    %v5103 = vld [vmem:[#allocation9 + $0x298] sm:$0xff]
    %v5104 = vld [vmem:[#allocation9 + $0x2a0] sm:$0xff]
    %v5105 = vld [vmem:[#allocation9 + $0x2a8] sm:$0xff]
    %v5106 = vld [vmem:[#allocation9 + $0x2b0] sm:$0xff]
    %v5107 = vld [vmem:[#allocation9 + $0x2b8] sm:$0xff]
    %v5108 = vld [vmem:[#allocation9 + $0x2c0] sm:$0xff]
    %v5109 = vld [vmem:[#allocation9 + $0x2c8] sm:$0xff]
    %v5110 = vld [vmem:[#allocation9 + $0x2d0] sm:$0xff]
    %v5111 = vld [vmem:[#allocation9 + $0x2d8] sm:$0xff]
    %v5112 = vld [vmem:[#allocation9 + $0x2e0] sm:$0xff]
    %v5113 = vld [vmem:[#allocation9 + $0x2e8] sm:$0xff]
    %v5114 = vld [vmem:[#allocation9 + $0x2f0] sm:$0xff]
    %v5115 = vld [vmem:[#allocation9 + $0x2f8] sm:$0xff]
    %v5116 = vld [vmem:[#allocation12] sm:$0x3f]
    %v5213 = vunpack.c.l.b16 %v5020
    %v5214 = vunpack.c.h.b16 %v5020
    %v5215 = vunpack.c.l.b16 %v5021
    %v5216 = vunpack.c.h.b16 %v5021
    %v5217 = vunpack.c.l.b16 %v5022
    %v5218 = vunpack.c.h.b16 %v5022
    %v5219 = vunpack.c.l.b16 %v5023
    %v5220 = vunpack.c.h.b16 %v5023
    %v5221 = vunpack.c.l.b16 %v5024
    %v5222 = vunpack.c.h.b16 %v5024
    %v5223 = vunpack.c.l.b16 %v5025
    %v5224 = vunpack.c.h.b16 %v5025
    %v5225 = vunpack.c.l.b16 %v5026
    %v5226 = vunpack.c.h.b16 %v5026
    %v5227 = vunpack.c.l.b16 %v5027
    %v5228 = vunpack.c.h.b16 %v5027
    %v5229 = vunpack.c.l.b16 %v5028
    %v5230 = vunpack.c.h.b16 %v5028
    %v5231 = vunpack.c.l.b16 %v5029
    %v5232 = vunpack.c.h.b16 %v5029
    %v5233 = vunpack.c.l.b16 %v5030
    %v5234 = vunpack.c.h.b16 %v5030
    %v5235 = vunpack.c.l.b16 %v5031
    %v5236 = vunpack.c.h.b16 %v5031
    %v5237 = vunpack.c.l.b16 %v5032
    %v5238 = vunpack.c.h.b16 %v5032
    %v5239 = vunpack.c.l.b16 %v5033
    %v5240 = vunpack.c.h.b16 %v5033
    %v5241 = vunpack.c.l.b16 %v5034
    %v5242 = vunpack.c.h.b16 %v5034
    %v5243 = vunpack.c.l.b16 %v5035
    %v5244 = vunpack.c.h.b16 %v5035
    %v5245 = vunpack.c.l.b16 %v5036
    %v5246 = vunpack.c.h.b16 %v5036
    %v5247 = vunpack.c.l.b16 %v5037
    %v5248 = vunpack.c.h.b16 %v5037
    %v5249 = vunpack.c.l.b16 %v5038
    %v5250 = vunpack.c.h.b16 %v5038
    %v5251 = vunpack.c.l.b16 %v5039
    %v5252 = vunpack.c.h.b16 %v5039
    %v5253 = vunpack.c.l.b16 %v5040
    %v5254 = vunpack.c.h.b16 %v5040
    %v5255 = vunpack.c.l.b16 %v5041
    %v5256 = vunpack.c.h.b16 %v5041
    %v5257 = vunpack.c.l.b16 %v5042
    %v5258 = vunpack.c.h.b16 %v5042
    %v5259 = vunpack.c.l.b16 %v5043
    %v5260 = vunpack.c.h.b16 %v5043
    %v5261 = vunpack.c.l.b16 %v5044
    %v5262 = vunpack.c.h.b16 %v5044
    %v5263 = vunpack.c.l.b16 %v5045
    %v5264 = vunpack.c.h.b16 %v5045
    %v5265 = vunpack.c.l.b16 %v5046
    %v5266 = vunpack.c.h.b16 %v5046
    %v5267 = vunpack.c.l.b16 %v5047
    %v5268 = vunpack.c.h.b16 %v5047
    %v5269 = vunpack.c.l.b16 %v5048
    %v5270 = vunpack.c.h.b16 %v5048
    %v5271 = vunpack.c.l.b16 %v5049
    %v5272 = vunpack.c.h.b16 %v5049
    %v5273 = vunpack.c.l.b16 %v5050
    %v5274 = vunpack.c.h.b16 %v5050
    %v5275 = vunpack.c.l.b16 %v5051
    %v5276 = vunpack.c.h.b16 %v5051
    %v5277 = vunpack.c.l.b16 %v5052
    %v5278 = vunpack.c.h.b16 %v5052
    %v5279 = vunpack.c.l.b16 %v5053
    %v5280 = vunpack.c.h.b16 %v5053
    %v5281 = vunpack.c.l.b16 %v5054
    %v5282 = vunpack.c.h.b16 %v5054
    %v5283 = vunpack.c.l.b16 %v5055
    %v5284 = vunpack.c.h.b16 %v5055
    %v5285 = vunpack.c.l.b16 %v5056
    %v5286 = vunpack.c.h.b16 %v5056
    %v5287 = vunpack.c.l.b16 %v5057
    %v5288 = vunpack.c.h.b16 %v5057
    %v5289 = vunpack.c.l.b16 %v5058
    %v5290 = vunpack.c.h.b16 %v5058
    %v5291 = vunpack.c.l.b16 %v5059
    %v5292 = vunpack.c.h.b16 %v5059
    %v5293 = vunpack.c.l.b16 %v5060
    %v5294 = vunpack.c.h.b16 %v5060
    %v5295 = vunpack.c.l.b16 %v5061
    %v5296 = vunpack.c.h.b16 %v5061
    %v5297 = vunpack.c.l.b16 %v5062
    %v5298 = vunpack.c.h.b16 %v5062
    %v5299 = vunpack.c.l.b16 %v5063
    %v5300 = vunpack.c.h.b16 %v5063
    %v5301 = vunpack.c.l.b16 %v5064
    %v5302 = vunpack.c.h.b16 %v5064
    %v5303 = vunpack.c.l.b16 %v5065
    %v5304 = vunpack.c.h.b16 %v5065
    %v5305 = vunpack.c.l.b16 %v5066
    %v5306 = vunpack.c.h.b16 %v5066
    %v5307 = vunpack.c.l.b16 %v5067
    %v5308 = vunpack.c.h.b16 %v5067
    %v5309 = vunpack.c.l.b16 %v5068
    %v5310 = vunpack.c.h.b16 %v5068
    %v5311 = vunpack.c.l.b16 %v5069
    %v5312 = vunpack.c.h.b16 %v5069
    %v5313 = vunpack.c.l.b16 %v5070
    %v5314 = vunpack.c.h.b16 %v5070
    %v5315 = vunpack.c.l.b16 %v5071
    %v5316 = vunpack.c.h.b16 %v5071
    %v5317 = vunpack.c.l.b16 %v5072
    %v5318 = vunpack.c.h.b16 %v5072
    %v5319 = vunpack.c.l.b16 %v5073
    %v5320 = vunpack.c.h.b16 %v5073
    %v5321 = vunpack.c.l.b16 %v5074
    %v5322 = vunpack.c.h.b16 %v5074
    %v5323 = vunpack.c.l.b16 %v5075
    %v5324 = vunpack.c.h.b16 %v5075
    %v5325 = vunpack.c.l.b16 %v5076
    %v5326 = vunpack.c.h.b16 %v5076
    %v5327 = vunpack.c.l.b16 %v5077
    %v5328 = vunpack.c.h.b16 %v5077
    %v5329 = vunpack.c.l.b16 %v5078
    %v5330 = vunpack.c.h.b16 %v5078
    %v5331 = vunpack.c.l.b16 %v5079
    %v5332 = vunpack.c.h.b16 %v5079
    %v5333 = vunpack.c.l.b16 %v5080
    %v5334 = vunpack.c.h.b16 %v5080
    %v5335 = vunpack.c.l.b16 %v5081
    %v5336 = vunpack.c.h.b16 %v5081
    %v5337 = vunpack.c.l.b16 %v5082
    %v5338 = vunpack.c.h.b16 %v5082
    %v5339 = vunpack.c.l.b16 %v5083
    %v5340 = vunpack.c.h.b16 %v5083
    %v5341 = vunpack.c.l.b16 %v5084
    %v5342 = vunpack.c.h.b16 %v5084
    %v5343 = vunpack.c.l.b16 %v5085
    %v5344 = vunpack.c.h.b16 %v5085
    %v5345 = vunpack.c.l.b16 %v5086
    %v5346 = vunpack.c.h.b16 %v5086
    %v5347 = vunpack.c.l.b16 %v5087
    %v5348 = vunpack.c.h.b16 %v5087
    %v5349 = vunpack.c.l.b16 %v5088
    %v5350 = vunpack.c.h.b16 %v5088
    %v5351 = vunpack.c.l.b16 %v5089
    %v5352 = vunpack.c.h.b16 %v5089
    %v5353 = vunpack.c.l.b16 %v5090
    %v5354 = vunpack.c.h.b16 %v5090
    %v5355 = vunpack.c.l.b16 %v5091
    %v5356 = vunpack.c.h.b16 %v5091
    %v5357 = vunpack.c.l.b16 %v5092
    %v5358 = vunpack.c.h.b16 %v5092
    %v5359 = vunpack.c.l.b16 %v5093
    %v5360 = vunpack.c.h.b16 %v5093
    %v5361 = vunpack.c.l.b16 %v5094
    %v5362 = vunpack.c.h.b16 %v5094
    %v5363 = vunpack.c.l.b16 %v5095
    %v5364 = vunpack.c.h.b16 %v5095
    %v5365 = vunpack.c.l.b16 %v5096
    %v5366 = vunpack.c.h.b16 %v5096
    %v5367 = vunpack.c.l.b16 %v5097
    %v5368 = vunpack.c.h.b16 %v5097
    %v5369 = vunpack.c.l.b16 %v5098
    %v5370 = vunpack.c.h.b16 %v5098
    %v5371 = vunpack.c.l.b16 %v5099
    %v5372 = vunpack.c.h.b16 %v5099
    %v5373 = vunpack.c.l.b16 %v5100
    %v5374 = vunpack.c.h.b16 %v5100
    %v5375 = vunpack.c.l.b16 %v5101
    %v5376 = vunpack.c.h.b16 %v5101
    %v5377 = vunpack.c.l.b16 %v5102
    %v5378 = vunpack.c.h.b16 %v5102
    %v5379 = vunpack.c.l.b16 %v5103
    %v5380 = vunpack.c.h.b16 %v5103
    %v5381 = vunpack.c.l.b16 %v5104
    %v5382 = vunpack.c.h.b16 %v5104
    %v5383 = vunpack.c.l.b16 %v5105
    %v5384 = vunpack.c.h.b16 %v5105
    %v5385 = vunpack.c.l.b16 %v5106
    %v5386 = vunpack.c.h.b16 %v5106
    %v5387 = vunpack.c.l.b16 %v5107
    %v5388 = vunpack.c.h.b16 %v5107
    %v5389 = vunpack.c.l.b16 %v5108
    %v5390 = vunpack.c.h.b16 %v5108
    %v5391 = vunpack.c.l.b16 %v5109
    %v5392 = vunpack.c.h.b16 %v5109
    %v5393 = vunpack.c.l.b16 %v5110
    %v5394 = vunpack.c.h.b16 %v5110
    %v5395 = vunpack.c.l.b16 %v5111
    %v5396 = vunpack.c.h.b16 %v5111
    %v5397 = vunpack.c.l.b16 %v5112
    %v5398 = vunpack.c.h.b16 %v5112
    %v5399 = vunpack.c.l.b16 %v5113
    %v5400 = vunpack.c.h.b16 %v5113
    %v5401 = vunpack.c.l.b16 %v5114
    %v5402 = vunpack.c.h.b16 %v5114
    %v5403 = vunpack.c.l.b16 %v5115
    %v5404 = vunpack.c.h.b16 %v5115
    %v5405 = vpack.c.b16 %v5219, %v5213
    %v5406 = vpack.c.b16 %v5220, %v5214
    %v5407 = vpack.c.b16 %v5221, %v5215
    %v5408 = vpack.c.b16 %v5222, %v5216
    %v5409 = vpack.c.b16 %v5223, %v5217
    %v5410 = vpack.c.b16 %v5224, %v5218
    %v5411 = vpack.c.b16 %v5231, %v5225
    %v5412 = vpack.c.b16 %v5232, %v5226
    %v5413 = vpack.c.b16 %v5233, %v5227
    %v5414 = vpack.c.b16 %v5234, %v5228
    %v5415 = vpack.c.b16 %v5235, %v5229
    %v5416 = vpack.c.b16 %v5236, %v5230
    %v5417 = vpack.c.b16 %v5243, %v5237
    %v5418 = vpack.c.b16 %v5244, %v5238
    %v5419 = vpack.c.b16 %v5245, %v5239
    %v5420 = vpack.c.b16 %v5246, %v5240
    %v5421 = vpack.c.b16 %v5247, %v5241
    %v5422 = vpack.c.b16 %v5248, %v5242
    %v5423 = vpack.c.b16 %v5255, %v5249
    %v5424 = vpack.c.b16 %v5256, %v5250
    %v5425 = vpack.c.b16 %v5257, %v5251
    %v5426 = vpack.c.b16 %v5258, %v5252
    %v5427 = vpack.c.b16 %v5259, %v5253
    %v5428 = vpack.c.b16 %v5260, %v5254
    %v5429 = vpack.c.b16 %v5267, %v5261
    %v5430 = vpack.c.b16 %v5268, %v5262
    %v5431 = vpack.c.b16 %v5269, %v5263
    %v5432 = vpack.c.b16 %v5270, %v5264
    %v5433 = vpack.c.b16 %v5271, %v5265
    %v5434 = vpack.c.b16 %v5272, %v5266
    %v5435 = vpack.c.b16 %v5279, %v5273
    %v5436 = vpack.c.b16 %v5280, %v5274
    %v5437 = vpack.c.b16 %v5281, %v5275
    %v5438 = vpack.c.b16 %v5282, %v5276
    %v5439 = vpack.c.b16 %v5283, %v5277
    %v5440 = vpack.c.b16 %v5284, %v5278
    %v5441 = vpack.c.b16 %v5291, %v5285
    %v5442 = vpack.c.b16 %v5292, %v5286
    %v5443 = vpack.c.b16 %v5293, %v5287
    %v5444 = vpack.c.b16 %v5294, %v5288
    %v5445 = vpack.c.b16 %v5295, %v5289
    %v5446 = vpack.c.b16 %v5296, %v5290
    %v5447 = vpack.c.b16 %v5303, %v5297
    %v5448 = vpack.c.b16 %v5304, %v5298
    %v5449 = vpack.c.b16 %v5305, %v5299
    %v5450 = vpack.c.b16 %v5306, %v5300
    %v5451 = vpack.c.b16 %v5307, %v5301
    %v5452 = vpack.c.b16 %v5308, %v5302
    %v5453 = vpack.c.b16 %v5315, %v5309
    %v5454 = vpack.c.b16 %v5316, %v5310
    %v5455 = vpack.c.b16 %v5317, %v5311
    %v5456 = vpack.c.b16 %v5318, %v5312
    %v5457 = vpack.c.b16 %v5319, %v5313
    %v5458 = vpack.c.b16 %v5320, %v5314
    %v5459 = vpack.c.b16 %v5327, %v5321
    %v5460 = vpack.c.b16 %v5328, %v5322
    %v5461 = vpack.c.b16 %v5329, %v5323
    %v5462 = vpack.c.b16 %v5330, %v5324
    %v5463 = vpack.c.b16 %v5331, %v5325
    %v5464 = vpack.c.b16 %v5332, %v5326
    %v5465 = vpack.c.b16 %v5339, %v5333
    %v5466 = vpack.c.b16 %v5340, %v5334
    %v5467 = vpack.c.b16 %v5341, %v5335
    %v5468 = vpack.c.b16 %v5342, %v5336
    %v5469 = vpack.c.b16 %v5343, %v5337
    %v5470 = vpack.c.b16 %v5344, %v5338
    %v5471 = vpack.c.b16 %v5351, %v5345
    %v5472 = vpack.c.b16 %v5352, %v5346
    %v5473 = vpack.c.b16 %v5353, %v5347
    %v5474 = vpack.c.b16 %v5354, %v5348
    %v5475 = vpack.c.b16 %v5355, %v5349
    %v5476 = vpack.c.b16 %v5356, %v5350
    %v5477 = vpack.c.b16 %v5363, %v5357
    %v5478 = vpack.c.b16 %v5364, %v5358
    %v5479 = vpack.c.b16 %v5365, %v5359
    %v5480 = vpack.c.b16 %v5366, %v5360
    %v5481 = vpack.c.b16 %v5367, %v5361
    %v5482 = vpack.c.b16 %v5368, %v5362
    %v5483 = vpack.c.b16 %v5375, %v5369
    %v5484 = vpack.c.b16 %v5376, %v5370
    %v5485 = vpack.c.b16 %v5377, %v5371
    %v5486 = vpack.c.b16 %v5378, %v5372
    %v5487 = vpack.c.b16 %v5379, %v5373
    %v5488 = vpack.c.b16 %v5380, %v5374
    %v5489 = vpack.c.b16 %v5387, %v5381
    %v5490 = vpack.c.b16 %v5388, %v5382
    %v5491 = vpack.c.b16 %v5389, %v5383
    %v5492 = vpack.c.b16 %v5390, %v5384
    %v5493 = vpack.c.b16 %v5391, %v5385
    %v5494 = vpack.c.b16 %v5392, %v5386
    %v5495 = vpack.c.b16 %v5399, %v5393
    %v5496 = vpack.c.b16 %v5400, %v5394
    %v5497 = vpack.c.b16 %v5401, %v5395
    %v5498 = vpack.c.b16 %v5402, %v5396
    %v5499 = vpack.c.b16 %v5403, %v5397
    %v5500 = vpack.c.b16 %v5404, %v5398
    %v5598 = vperm.slane %v5116, 0
    %v5599 = vperm.slane %v5116, 1
    %v5600 = vperm.slane %v5116, 2
    %v5601 = vperm.slane %v5116, 3
    %v5602 = vperm.slane %v5116, 4
    %v5603 = vperm.slane %v5116, 5
    %5610 = vmatpush.bf16.msra.mxu0 %v5447
    %5611 = vmatpush.bf16.msra.mxu0 %v5441
    %5612 = vmatpush.bf16.msra.mxu0 %v5435
    %5613 = vmatpush.bf16.msra.mxu0 %v5429
    %5614 = vmatpush.bf16.msra.mxu0 %v5423
    %5615 = vmatpush.bf16.msra.mxu0 %v5417
    %5616 = vmatpush.bf16.msra.mxu0 %v5411
    %5617 = vmatpush.bf16.msra.mxu0 %v5405
    %5618 = vmatmul.bf16.gmra.mxu0 %v5018
    %v5619 = vpop.f32.mrf.mxu0
    %v5620 = vadd.f32 %v5598, %v5619
    %v5621 = vpop.f32.mrf.mxu0
    %5622 = vdwg.mxu0
    %5623 = vmatpush.bf16.msra.mxu0 %v5495
    %5624 = vmatpush.bf16.msra.mxu0 %v5489
    %5625 = vmatpush.bf16.msra.mxu0 %v5483
    %5626 = vmatpush.bf16.msra.mxu0 %v5477
    %5627 = vmatpush.bf16.msra.mxu0 %v5471
    %5628 = vmatpush.bf16.msra.mxu0 %v5465
    %5629 = vmatpush.bf16.msra.mxu0 %v5459
    %5630 = vmatpush.bf16.msra.mxu0 %v5453
    %5631 = vmatmul.bf16.gmra.mxu0 %v5019
    %v5632 = vpop.f32.mrf.mxu0
    %v5633 = vadd.f32 %v5620, %v5632
    %v5634 = vpop.f32.mrf.mxu0
    %5635 = vdwg.mxu0
    %5636 = vmatpush.bf16.msra.mxu0 %v5448
    %5637 = vmatpush.bf16.msra.mxu0 %v5442
    %5638 = vmatpush.bf16.msra.mxu0 %v5436
    %5639 = vmatpush.bf16.msra.mxu0 %v5430
    %5640 = vmatpush.bf16.msra.mxu0 %v5424
    %5641 = vmatpush.bf16.msra.mxu0 %v5418
    %5642 = vmatpush.bf16.msra.mxu0 %v5412
    %5643 = vmatpush.bf16.msra.mxu0 %v5406
    %5644 = vmatmul.bf16.gmra.mxu0 %v5018
    %v5645 = vpop.f32.mrf.mxu0
    %v5646 = vadd.f32 %v5599, %v5645
    %v5647 = vpop.f32.mrf.mxu0
    %5648 = vdwg.mxu0
    %5649 = vmatpush.bf16.msra.mxu0 %v5496
    %5650 = vmatpush.bf16.msra.mxu0 %v5490
    %5651 = vmatpush.bf16.msra.mxu0 %v5484
    %5652 = vmatpush.bf16.msra.mxu0 %v5478
    %5653 = vmatpush.bf16.msra.mxu0 %v5472
    %5654 = vmatpush.bf16.msra.mxu0 %v5466
    %5655 = vmatpush.bf16.msra.mxu0 %v5460
    %5656 = vmatpush.bf16.msra.mxu0 %v5454
    %5657 = vmatmul.bf16.gmra.mxu0 %v5019
    %v5658 = vpop.f32.mrf.mxu0
    %v5659 = vadd.f32 %v5646, %v5658
    %v5660 = vpop.f32.mrf.mxu0
    %5661 = vdwg.mxu0
    %5662 = vmatpush.bf16.msra.mxu0 %v5449
    %5663 = vmatpush.bf16.msra.mxu0 %v5443
    %5664 = vmatpush.bf16.msra.mxu0 %v5437
    %5665 = vmatpush.bf16.msra.mxu0 %v5431
    %5666 = vmatpush.bf16.msra.mxu0 %v5425
    %5667 = vmatpush.bf16.msra.mxu0 %v5419
    %5668 = vmatpush.bf16.msra.mxu0 %v5413
    %5669 = vmatpush.bf16.msra.mxu0 %v5407
    %5670 = vmatmul.bf16.gmra.mxu0 %v5018
    %v5671 = vpop.f32.mrf.mxu0
    %v5672 = vadd.f32 %v5600, %v5671
    %v5673 = vpop.f32.mrf.mxu0
    %5674 = vdwg.mxu0
    %5675 = vmatpush.bf16.msra.mxu0 %v5497
    %5676 = vmatpush.bf16.msra.mxu0 %v5491
    %5677 = vmatpush.bf16.msra.mxu0 %v5485
    %5678 = vmatpush.bf16.msra.mxu0 %v5479
    %5679 = vmatpush.bf16.msra.mxu0 %v5473
    %5680 = vmatpush.bf16.msra.mxu0 %v5467
    %5681 = vmatpush.bf16.msra.mxu0 %v5461
    %5682 = vmatpush.bf16.msra.mxu0 %v5455
    %5683 = vmatmul.bf16.gmra.mxu0 %v5019
    %v5684 = vpop.f32.mrf.mxu0
    %v5685 = vadd.f32 %v5672, %v5684
    %v5686 = vpop.f32.mrf.mxu0
    %5687 = vdwg.mxu0
    %5688 = vmatpush.bf16.msra.mxu0 %v5450
    %5689 = vmatpush.bf16.msra.mxu0 %v5444
    %5690 = vmatpush.bf16.msra.mxu0 %v5438
    %5691 = vmatpush.bf16.msra.mxu0 %v5432
    %5692 = vmatpush.bf16.msra.mxu0 %v5426
    %5693 = vmatpush.bf16.msra.mxu0 %v5420
    %5694 = vmatpush.bf16.msra.mxu0 %v5414
    %5695 = vmatpush.bf16.msra.mxu0 %v5408
    %5696 = vmatmul.bf16.gmra.mxu0 %v5018
    %v5697 = vpop.f32.mrf.mxu0
    %v5698 = vadd.f32 %v5601, %v5697
    %v5699 = vpop.f32.mrf.mxu0
    %5700 = vdwg.mxu0
    %5701 = vmatpush.bf16.msra.mxu0 %v5498
    %5702 = vmatpush.bf16.msra.mxu0 %v5492
    %5703 = vmatpush.bf16.msra.mxu0 %v5486
    %5704 = vmatpush.bf16.msra.mxu0 %v5480
    %5705 = vmatpush.bf16.msra.mxu0 %v5474
    %5706 = vmatpush.bf16.msra.mxu0 %v5468
    %5707 = vmatpush.bf16.msra.mxu0 %v5462
    %5708 = vmatpush.bf16.msra.mxu0 %v5456
    %5709 = vmatmul.bf16.gmra.mxu0 %v5019
    %v5710 = vpop.f32.mrf.mxu0
    %v5711 = vadd.f32 %v5698, %v5710
    %v5712 = vpop.f32.mrf.mxu0
    %5713 = vdwg.mxu0
    %5714 = vmatpush.bf16.msra.mxu0 %v5451
    %5715 = vmatpush.bf16.msra.mxu0 %v5445
    %5716 = vmatpush.bf16.msra.mxu0 %v5439
    %5717 = vmatpush.bf16.msra.mxu0 %v5433
    %5718 = vmatpush.bf16.msra.mxu0 %v5427
    %5719 = vmatpush.bf16.msra.mxu0 %v5421
    %5720 = vmatpush.bf16.msra.mxu0 %v5415
    %5721 = vmatpush.bf16.msra.mxu0 %v5409
    %5722 = vmatmul.bf16.gmra.mxu0 %v5018
    %v5723 = vpop.f32.mrf.mxu0
    %v5724 = vadd.f32 %v5602, %v5723
    %v5725 = vpop.f32.mrf.mxu0
    %5726 = vdwg.mxu0
    %5727 = vmatpush.bf16.msra.mxu0 %v5499
    %5728 = vmatpush.bf16.msra.mxu0 %v5493
    %5729 = vmatpush.bf16.msra.mxu0 %v5487
    %5730 = vmatpush.bf16.msra.mxu0 %v5481
    %5731 = vmatpush.bf16.msra.mxu0 %v5475
    %5732 = vmatpush.bf16.msra.mxu0 %v5469
    %5733 = vmatpush.bf16.msra.mxu0 %v5463
    %5734 = vmatpush.bf16.msra.mxu0 %v5457
    %5735 = vmatmul.bf16.gmra.mxu0 %v5019
    %v5736 = vpop.f32.mrf.mxu0
    %v5737 = vadd.f32 %v5724, %v5736
    %v5738 = vpop.f32.mrf.mxu0
    %5739 = vdwg.mxu0
    %5740 = vmatpush.bf16.msra.mxu0 %v5452
    %5741 = vmatpush.bf16.msra.mxu0 %v5446
    %5742 = vmatpush.bf16.msra.mxu0 %v5440
    %5743 = vmatpush.bf16.msra.mxu0 %v5434
    %5744 = vmatpush.bf16.msra.mxu0 %v5428
    %5745 = vmatpush.bf16.msra.mxu0 %v5422
    %5746 = vmatpush.bf16.msra.mxu0 %v5416
    %5747 = vmatpush.bf16.msra.mxu0 %v5410
    %5748 = vmatmul.bf16.gmra.mxu0 %v5018
    %v5749 = vpop.f32.mrf.mxu0
    %v5750 = vadd.f32 %v5603, %v5749
    %v5751 = vpop.f32.mrf.mxu0
    %5752 = vdwg.mxu0
    %5753 = vmatpush.bf16.msra.mxu0 %v5500
    %5754 = vmatpush.bf16.msra.mxu0 %v5494
    %5755 = vmatpush.bf16.msra.mxu0 %v5488
    %5756 = vmatpush.bf16.msra.mxu0 %v5482
    %5757 = vmatpush.bf16.msra.mxu0 %v5476
    %5758 = vmatpush.bf16.msra.mxu0 %v5470
    %5759 = vmatpush.bf16.msra.mxu0 %v5464
    %5760 = vmatpush.bf16.msra.mxu0 %v5458
    %5761 = vmatmul.bf16.gmra.mxu0 %v5019
    %v5762 = vpop.f32.mrf.mxu0
    %v5763 = vadd.f32 %v5750, %v5762
    %v5764 = vpop.f32.mrf.mxu0
    %5765 = vdwg.mxu0
    %v5768 = vrot.slane %v5659, 7
    %v5769 = vsel %vm1630, %v5633, %v5768
    %v5771 = vadd.f32 %v5012, %v5769
    %v5772 = vxor.u32 %v5771, 2147483648
    %v5773 = vmul.f32 %v5772, 1.442695
    %v5774 = vpow.pop %v5773
    %v5775 = vadd.f32 %v5774, 1.0
    %v5776 = vrcp.pop %v5775
    %v5777 = vmul.f32 %v5775, %v5776
    %v5778 = vsub.f32 1.0, %v5777
    %v5779 = vmul.f32 %v5776, %v5778
    %v5780 = vadd.f32 %v5776, %v5779
    %vm5781 = vweird.f32 %v5775
    %vm5782 = vweird.f32 %v5776
    %vm5783 = vmor %vm5781, %vm5782
    %v5784 = vsel %vm5783, %v5776, %v5780
    %v5785 = vand.u32 2147483647, %v5775
    %vm5786 = vcmp.eq.f32.partialorder %v5785, 8.507059e+37
    %v5787 = vand.u32 %v5775, 2147483648
    %v5788 = vor.u32 1.1754944e-38, %v5787
    %v5789 = vsel %vm5786, %v5788, %v5784
    %v5790 = vmul.f32 1.0, %v5789
    %v5792 = vrot.slane %v5012, 2
    %v5796 = vrot.slane %v5711, 7
    %v5797 = vsel %vm1630, %v5685, %v5796
    %v5799 = vadd.f32 %v5792, %v5797
    %v5800 = vxor.u32 %v5799, 2147483648
    %v5801 = vmul.f32 %v5800, 1.442695
    %v5802 = vpow.pop %v5801
    %v5803 = vadd.f32 %v5802, 1.0
    %v5804 = vrcp.pop %v5803
    %v5805 = vmul.f32 %v5803, %v5804
    %v5806 = vsub.f32 1.0, %v5805
    %v5807 = vmul.f32 %v5804, %v5806
    %v5808 = vadd.f32 %v5804, %v5807
    %vm5809 = vweird.f32 %v5803
    %vm5810 = vweird.f32 %v5804
    %vm5811 = vmor %vm5809, %vm5810
    %v5812 = vsel %vm5811, %v5804, %v5808
    %v5813 = vand.u32 2147483647, %v5803
    %vm5814 = vcmp.eq.f32.partialorder %v5813, 8.507059e+37
    %v5815 = vand.u32 %v5803, 2147483648
    %v5816 = vor.u32 1.1754944e-38, %v5815
    %v5817 = vsel %vm5814, %v5816, %v5812
    %v5818 = vmul.f32 1.0, %v5817
    %v5821 = vrot.slane %v5763, 7
    %v5822 = vsel %vm1630, %v5737, %v5821
    %v5824 = vmul.f32 %v5790, %v5822
    %v5825 = vrot.slane %v5012, 4
    %v5827 = vadd.f32 %v5825, %v5824
    %v5828 = vtanh.pop %v5827
    %v5829 = vsub.f32 1.0, %v5818
    %v5830 = vmul.f32 %v5829, %v5828
    %v5831 = vmul.f32 %v5818, %v5005
    %v5832 = vadd.f32 %v5830, %v5831
    %s5833 = scalar_lea.vmem [#allocation14], 5
    %5834 = vst.msk [vmem:[%s5833] ss:$8 sm:$0x3] %vm1698, %v5832
    %5835 = vst.msk [vmem:[%s5833] ss:$8 sm:$0x0] %vm1698, %v5832
    %s5836 = scalar_lea.vmem [#allocation2], 6
    %v5837 = vld [vmem:[%s5836] ss:$8 sm:$0xf]
    %v5838 = vld [vmem:[%s5836] ss:$8 sm:$0x30]
    %v5839 = vor.u32 %v5837, %v5838
    %v5841 = vperm.slane %v5832, 0
    %v5842 = vperm.slane %v5832, 1
    %v5845 = vpack.c.bf16 %v5841, %v5841
    %v5846 = vpack.c.bf16 %v5842, %v5842
    %v5847 = vld [vmem:[#allocation9] sm:$0xff]
    %v5848 = vld [vmem:[#allocation9 + $0x8] sm:$0xff]
    %v5849 = vld [vmem:[#allocation9 + $0x10] sm:$0xff]
    %v5850 = vld [vmem:[#allocation9 + $0x18] sm:$0xff]
    %v5851 = vld [vmem:[#allocation9 + $0x20] sm:$0xff]
    %v5852 = vld [vmem:[#allocation9 + $0x28] sm:$0xff]
    %v5853 = vld [vmem:[#allocation9 + $0x30] sm:$0xff]
    %v5854 = vld [vmem:[#allocation9 + $0x38] sm:$0xff]
    %v5855 = vld [vmem:[#allocation9 + $0x40] sm:$0xff]
    %v5856 = vld [vmem:[#allocation9 + $0x48] sm:$0xff]
    %v5857 = vld [vmem:[#allocation9 + $0x50] sm:$0xff]
    %v5858 = vld [vmem:[#allocation9 + $0x58] sm:$0xff]
    %v5859 = vld [vmem:[#allocation9 + $0x60] sm:$0xff]
    %v5860 = vld [vmem:[#allocation9 + $0x68] sm:$0xff]
    %v5861 = vld [vmem:[#allocation9 + $0x70] sm:$0xff]
    %v5862 = vld [vmem:[#allocation9 + $0x78] sm:$0xff]
    %v5863 = vld [vmem:[#allocation9 + $0x80] sm:$0xff]
    %v5864 = vld [vmem:[#allocation9 + $0x88] sm:$0xff]
    %v5865 = vld [vmem:[#allocation9 + $0x90] sm:$0xff]
    %v5866 = vld [vmem:[#allocation9 + $0x98] sm:$0xff]
    %v5867 = vld [vmem:[#allocation9 + $0xa0] sm:$0xff]
    %v5868 = vld [vmem:[#allocation9 + $0xa8] sm:$0xff]
    %v5869 = vld [vmem:[#allocation9 + $0xb0] sm:$0xff]
    %v5870 = vld [vmem:[#allocation9 + $0xb8] sm:$0xff]
    %v5871 = vld [vmem:[#allocation9 + $0xc0] sm:$0xff]
    %v5872 = vld [vmem:[#allocation9 + $0xc8] sm:$0xff]
    %v5873 = vld [vmem:[#allocation9 + $0xd0] sm:$0xff]
    %v5874 = vld [vmem:[#allocation9 + $0xd8] sm:$0xff]
    %v5875 = vld [vmem:[#allocation9 + $0xe0] sm:$0xff]
    %v5876 = vld [vmem:[#allocation9 + $0xe8] sm:$0xff]
    %v5877 = vld [vmem:[#allocation9 + $0xf0] sm:$0xff]
    %v5878 = vld [vmem:[#allocation9 + $0xf8] sm:$0xff]
    %v5879 = vld [vmem:[#allocation9 + $0x100] sm:$0xff]
    %v5880 = vld [vmem:[#allocation9 + $0x108] sm:$0xff]
    %v5881 = vld [vmem:[#allocation9 + $0x110] sm:$0xff]
    %v5882 = vld [vmem:[#allocation9 + $0x118] sm:$0xff]
    %v5883 = vld [vmem:[#allocation9 + $0x120] sm:$0xff]
    %v5884 = vld [vmem:[#allocation9 + $0x128] sm:$0xff]
    %v5885 = vld [vmem:[#allocation9 + $0x130] sm:$0xff]
    %v5886 = vld [vmem:[#allocation9 + $0x138] sm:$0xff]
    %v5887 = vld [vmem:[#allocation9 + $0x140] sm:$0xff]
    %v5888 = vld [vmem:[#allocation9 + $0x148] sm:$0xff]
    %v5889 = vld [vmem:[#allocation9 + $0x150] sm:$0xff]
    %v5890 = vld [vmem:[#allocation9 + $0x158] sm:$0xff]
    %v5891 = vld [vmem:[#allocation9 + $0x160] sm:$0xff]
    %v5892 = vld [vmem:[#allocation9 + $0x168] sm:$0xff]
    %v5893 = vld [vmem:[#allocation9 + $0x170] sm:$0xff]
    %v5894 = vld [vmem:[#allocation9 + $0x178] sm:$0xff]
    %v5895 = vld [vmem:[#allocation9 + $0x180] sm:$0xff]
    %v5896 = vld [vmem:[#allocation9 + $0x188] sm:$0xff]
    %v5897 = vld [vmem:[#allocation9 + $0x190] sm:$0xff]
    %v5898 = vld [vmem:[#allocation9 + $0x198] sm:$0xff]
    %v5899 = vld [vmem:[#allocation9 + $0x1a0] sm:$0xff]
    %v5900 = vld [vmem:[#allocation9 + $0x1a8] sm:$0xff]
    %v5901 = vld [vmem:[#allocation9 + $0x1b0] sm:$0xff]
    %v5902 = vld [vmem:[#allocation9 + $0x1b8] sm:$0xff]
    %v5903 = vld [vmem:[#allocation9 + $0x1c0] sm:$0xff]
    %v5904 = vld [vmem:[#allocation9 + $0x1c8] sm:$0xff]
    %v5905 = vld [vmem:[#allocation9 + $0x1d0] sm:$0xff]
    %v5906 = vld [vmem:[#allocation9 + $0x1d8] sm:$0xff]
    %v5907 = vld [vmem:[#allocation9 + $0x1e0] sm:$0xff]
    %v5908 = vld [vmem:[#allocation9 + $0x1e8] sm:$0xff]
    %v5909 = vld [vmem:[#allocation9 + $0x1f0] sm:$0xff]
    %v5910 = vld [vmem:[#allocation9 + $0x1f8] sm:$0xff]
    %v5911 = vld [vmem:[#allocation9 + $0x200] sm:$0xff]
    %v5912 = vld [vmem:[#allocation9 + $0x208] sm:$0xff]
    %v5913 = vld [vmem:[#allocation9 + $0x210] sm:$0xff]
    %v5914 = vld [vmem:[#allocation9 + $0x218] sm:$0xff]
    %v5915 = vld [vmem:[#allocation9 + $0x220] sm:$0xff]
    %v5916 = vld [vmem:[#allocation9 + $0x228] sm:$0xff]
    %v5917 = vld [vmem:[#allocation9 + $0x230] sm:$0xff]
    %v5918 = vld [vmem:[#allocation9 + $0x238] sm:$0xff]
    %v5919 = vld [vmem:[#allocation9 + $0x240] sm:$0xff]
    %v5920 = vld [vmem:[#allocation9 + $0x248] sm:$0xff]
    %v5921 = vld [vmem:[#allocation9 + $0x250] sm:$0xff]
    %v5922 = vld [vmem:[#allocation9 + $0x258] sm:$0xff]
    %v5923 = vld [vmem:[#allocation9 + $0x260] sm:$0xff]
    %v5924 = vld [vmem:[#allocation9 + $0x268] sm:$0xff]
    %v5925 = vld [vmem:[#allocation9 + $0x270] sm:$0xff]
    %v5926 = vld [vmem:[#allocation9 + $0x278] sm:$0xff]
    %v5927 = vld [vmem:[#allocation9 + $0x280] sm:$0xff]
    %v5928 = vld [vmem:[#allocation9 + $0x288] sm:$0xff]
    %v5929 = vld [vmem:[#allocation9 + $0x290] sm:$0xff]
    %v5930 = vld [vmem:[#allocation9 + $0x298] sm:$0xff]
    %v5931 = vld [vmem:[#allocation9 + $0x2a0] sm:$0xff]
    %v5932 = vld [vmem:[#allocation9 + $0x2a8] sm:$0xff]
    %v5933 = vld [vmem:[#allocation9 + $0x2b0] sm:$0xff]
    %v5934 = vld [vmem:[#allocation9 + $0x2b8] sm:$0xff]
    %v5935 = vld [vmem:[#allocation9 + $0x2c0] sm:$0xff]
    %v5936 = vld [vmem:[#allocation9 + $0x2c8] sm:$0xff]
    %v5937 = vld [vmem:[#allocation9 + $0x2d0] sm:$0xff]
    %v5938 = vld [vmem:[#allocation9 + $0x2d8] sm:$0xff]
    %v5939 = vld [vmem:[#allocation9 + $0x2e0] sm:$0xff]
    %v5940 = vld [vmem:[#allocation9 + $0x2e8] sm:$0xff]
    %v5941 = vld [vmem:[#allocation9 + $0x2f0] sm:$0xff]
    %v5942 = vld [vmem:[#allocation9 + $0x2f8] sm:$0xff]
    %v5943 = vld [vmem:[#allocation12] sm:$0x3f]
    %v6040 = vunpack.c.l.b16 %v5847
    %v6041 = vunpack.c.h.b16 %v5847
    %v6042 = vunpack.c.l.b16 %v5848
    %v6043 = vunpack.c.h.b16 %v5848
    %v6044 = vunpack.c.l.b16 %v5849
    %v6045 = vunpack.c.h.b16 %v5849
    %v6046 = vunpack.c.l.b16 %v5850
    %v6047 = vunpack.c.h.b16 %v5850
    %v6048 = vunpack.c.l.b16 %v5851
    %v6049 = vunpack.c.h.b16 %v5851
    %v6050 = vunpack.c.l.b16 %v5852
    %v6051 = vunpack.c.h.b16 %v5852
    %v6052 = vunpack.c.l.b16 %v5853
    %v6053 = vunpack.c.h.b16 %v5853
    %v6054 = vunpack.c.l.b16 %v5854
    %v6055 = vunpack.c.h.b16 %v5854
    %v6056 = vunpack.c.l.b16 %v5855
    %v6057 = vunpack.c.h.b16 %v5855
    %v6058 = vunpack.c.l.b16 %v5856
    %v6059 = vunpack.c.h.b16 %v5856
    %v6060 = vunpack.c.l.b16 %v5857
    %v6061 = vunpack.c.h.b16 %v5857
    %v6062 = vunpack.c.l.b16 %v5858
    %v6063 = vunpack.c.h.b16 %v5858
    %v6064 = vunpack.c.l.b16 %v5859
    %v6065 = vunpack.c.h.b16 %v5859
    %v6066 = vunpack.c.l.b16 %v5860
    %v6067 = vunpack.c.h.b16 %v5860
    %v6068 = vunpack.c.l.b16 %v5861
    %v6069 = vunpack.c.h.b16 %v5861
    %v6070 = vunpack.c.l.b16 %v5862
    %v6071 = vunpack.c.h.b16 %v5862
    %v6072 = vunpack.c.l.b16 %v5863
    %v6073 = vunpack.c.h.b16 %v5863
    %v6074 = vunpack.c.l.b16 %v5864
    %v6075 = vunpack.c.h.b16 %v5864
    %v6076 = vunpack.c.l.b16 %v5865
    %v6077 = vunpack.c.h.b16 %v5865
    %v6078 = vunpack.c.l.b16 %v5866
    %v6079 = vunpack.c.h.b16 %v5866
    %v6080 = vunpack.c.l.b16 %v5867
    %v6081 = vunpack.c.h.b16 %v5867
    %v6082 = vunpack.c.l.b16 %v5868
    %v6083 = vunpack.c.h.b16 %v5868
    %v6084 = vunpack.c.l.b16 %v5869
    %v6085 = vunpack.c.h.b16 %v5869
    %v6086 = vunpack.c.l.b16 %v5870
    %v6087 = vunpack.c.h.b16 %v5870
    %v6088 = vunpack.c.l.b16 %v5871
    %v6089 = vunpack.c.h.b16 %v5871
    %v6090 = vunpack.c.l.b16 %v5872
    %v6091 = vunpack.c.h.b16 %v5872
    %v6092 = vunpack.c.l.b16 %v5873
    %v6093 = vunpack.c.h.b16 %v5873
    %v6094 = vunpack.c.l.b16 %v5874
    %v6095 = vunpack.c.h.b16 %v5874
    %v6096 = vunpack.c.l.b16 %v5875
    %v6097 = vunpack.c.h.b16 %v5875
    %v6098 = vunpack.c.l.b16 %v5876
    %v6099 = vunpack.c.h.b16 %v5876
    %v6100 = vunpack.c.l.b16 %v5877
    %v6101 = vunpack.c.h.b16 %v5877
    %v6102 = vunpack.c.l.b16 %v5878
    %v6103 = vunpack.c.h.b16 %v5878
    %v6104 = vunpack.c.l.b16 %v5879
    %v6105 = vunpack.c.h.b16 %v5879
    %v6106 = vunpack.c.l.b16 %v5880
    %v6107 = vunpack.c.h.b16 %v5880
    %v6108 = vunpack.c.l.b16 %v5881
    %v6109 = vunpack.c.h.b16 %v5881
    %v6110 = vunpack.c.l.b16 %v5882
    %v6111 = vunpack.c.h.b16 %v5882
    %v6112 = vunpack.c.l.b16 %v5883
    %v6113 = vunpack.c.h.b16 %v5883
    %v6114 = vunpack.c.l.b16 %v5884
    %v6115 = vunpack.c.h.b16 %v5884
    %v6116 = vunpack.c.l.b16 %v5885
    %v6117 = vunpack.c.h.b16 %v5885
    %v6118 = vunpack.c.l.b16 %v5886
    %v6119 = vunpack.c.h.b16 %v5886
    %v6120 = vunpack.c.l.b16 %v5887
    %v6121 = vunpack.c.h.b16 %v5887
    %v6122 = vunpack.c.l.b16 %v5888
    %v6123 = vunpack.c.h.b16 %v5888
    %v6124 = vunpack.c.l.b16 %v5889
    %v6125 = vunpack.c.h.b16 %v5889
    %v6126 = vunpack.c.l.b16 %v5890
    %v6127 = vunpack.c.h.b16 %v5890
    %v6128 = vunpack.c.l.b16 %v5891
    %v6129 = vunpack.c.h.b16 %v5891
    %v6130 = vunpack.c.l.b16 %v5892
    %v6131 = vunpack.c.h.b16 %v5892
    %v6132 = vunpack.c.l.b16 %v5893
    %v6133 = vunpack.c.h.b16 %v5893
    %v6134 = vunpack.c.l.b16 %v5894
    %v6135 = vunpack.c.h.b16 %v5894
    %v6136 = vunpack.c.l.b16 %v5895
    %v6137 = vunpack.c.h.b16 %v5895
    %v6138 = vunpack.c.l.b16 %v5896
    %v6139 = vunpack.c.h.b16 %v5896
    %v6140 = vunpack.c.l.b16 %v5897
    %v6141 = vunpack.c.h.b16 %v5897
    %v6142 = vunpack.c.l.b16 %v5898
    %v6143 = vunpack.c.h.b16 %v5898
    %v6144 = vunpack.c.l.b16 %v5899
    %v6145 = vunpack.c.h.b16 %v5899
    %v6146 = vunpack.c.l.b16 %v5900
    %v6147 = vunpack.c.h.b16 %v5900
    %v6148 = vunpack.c.l.b16 %v5901
    %v6149 = vunpack.c.h.b16 %v5901
    %v6150 = vunpack.c.l.b16 %v5902
    %v6151 = vunpack.c.h.b16 %v5902
    %v6152 = vunpack.c.l.b16 %v5903
    %v6153 = vunpack.c.h.b16 %v5903
    %v6154 = vunpack.c.l.b16 %v5904
    %v6155 = vunpack.c.h.b16 %v5904
    %v6156 = vunpack.c.l.b16 %v5905
    %v6157 = vunpack.c.h.b16 %v5905
    %v6158 = vunpack.c.l.b16 %v5906
    %v6159 = vunpack.c.h.b16 %v5906
    %v6160 = vunpack.c.l.b16 %v5907
    %v6161 = vunpack.c.h.b16 %v5907
    %v6162 = vunpack.c.l.b16 %v5908
    %v6163 = vunpack.c.h.b16 %v5908
    %v6164 = vunpack.c.l.b16 %v5909
    %v6165 = vunpack.c.h.b16 %v5909
    %v6166 = vunpack.c.l.b16 %v5910
    %v6167 = vunpack.c.h.b16 %v5910
    %v6168 = vunpack.c.l.b16 %v5911
    %v6169 = vunpack.c.h.b16 %v5911
    %v6170 = vunpack.c.l.b16 %v5912
    %v6171 = vunpack.c.h.b16 %v5912
    %v6172 = vunpack.c.l.b16 %v5913
    %v6173 = vunpack.c.h.b16 %v5913
    %v6174 = vunpack.c.l.b16 %v5914
    %v6175 = vunpack.c.h.b16 %v5914
    %v6176 = vunpack.c.l.b16 %v5915
    %v6177 = vunpack.c.h.b16 %v5915
    %v6178 = vunpack.c.l.b16 %v5916
    %v6179 = vunpack.c.h.b16 %v5916
    %v6180 = vunpack.c.l.b16 %v5917
    %v6181 = vunpack.c.h.b16 %v5917
    %v6182 = vunpack.c.l.b16 %v5918
    %v6183 = vunpack.c.h.b16 %v5918
    %v6184 = vunpack.c.l.b16 %v5919
    %v6185 = vunpack.c.h.b16 %v5919
    %v6186 = vunpack.c.l.b16 %v5920
    %v6187 = vunpack.c.h.b16 %v5920
    %v6188 = vunpack.c.l.b16 %v5921
    %v6189 = vunpack.c.h.b16 %v5921
    %v6190 = vunpack.c.l.b16 %v5922
    %v6191 = vunpack.c.h.b16 %v5922
    %v6192 = vunpack.c.l.b16 %v5923
    %v6193 = vunpack.c.h.b16 %v5923
    %v6194 = vunpack.c.l.b16 %v5924
    %v6195 = vunpack.c.h.b16 %v5924
    %v6196 = vunpack.c.l.b16 %v5925
    %v6197 = vunpack.c.h.b16 %v5925
    %v6198 = vunpack.c.l.b16 %v5926
    %v6199 = vunpack.c.h.b16 %v5926
    %v6200 = vunpack.c.l.b16 %v5927
    %v6201 = vunpack.c.h.b16 %v5927
    %v6202 = vunpack.c.l.b16 %v5928
    %v6203 = vunpack.c.h.b16 %v5928
    %v6204 = vunpack.c.l.b16 %v5929
    %v6205 = vunpack.c.h.b16 %v5929
    %v6206 = vunpack.c.l.b16 %v5930
    %v6207 = vunpack.c.h.b16 %v5930
    %v6208 = vunpack.c.l.b16 %v5931
    %v6209 = vunpack.c.h.b16 %v5931
    %v6210 = vunpack.c.l.b16 %v5932
    %v6211 = vunpack.c.h.b16 %v5932
    %v6212 = vunpack.c.l.b16 %v5933
    %v6213 = vunpack.c.h.b16 %v5933
    %v6214 = vunpack.c.l.b16 %v5934
    %v6215 = vunpack.c.h.b16 %v5934
    %v6216 = vunpack.c.l.b16 %v5935
    %v6217 = vunpack.c.h.b16 %v5935
    %v6218 = vunpack.c.l.b16 %v5936
    %v6219 = vunpack.c.h.b16 %v5936
    %v6220 = vunpack.c.l.b16 %v5937
    %v6221 = vunpack.c.h.b16 %v5937
    %v6222 = vunpack.c.l.b16 %v5938
    %v6223 = vunpack.c.h.b16 %v5938
    %v6224 = vunpack.c.l.b16 %v5939
    %v6225 = vunpack.c.h.b16 %v5939
    %v6226 = vunpack.c.l.b16 %v5940
    %v6227 = vunpack.c.h.b16 %v5940
    %v6228 = vunpack.c.l.b16 %v5941
    %v6229 = vunpack.c.h.b16 %v5941
    %v6230 = vunpack.c.l.b16 %v5942
    %v6231 = vunpack.c.h.b16 %v5942
    %v6232 = vpack.c.b16 %v6046, %v6040
    %v6233 = vpack.c.b16 %v6047, %v6041
    %v6234 = vpack.c.b16 %v6048, %v6042
    %v6235 = vpack.c.b16 %v6049, %v6043
    %v6236 = vpack.c.b16 %v6050, %v6044
    %v6237 = vpack.c.b16 %v6051, %v6045
    %v6238 = vpack.c.b16 %v6058, %v6052
    %v6239 = vpack.c.b16 %v6059, %v6053
    %v6240 = vpack.c.b16 %v6060, %v6054
    %v6241 = vpack.c.b16 %v6061, %v6055
    %v6242 = vpack.c.b16 %v6062, %v6056
    %v6243 = vpack.c.b16 %v6063, %v6057
    %v6244 = vpack.c.b16 %v6070, %v6064
    %v6245 = vpack.c.b16 %v6071, %v6065
    %v6246 = vpack.c.b16 %v6072, %v6066
    %v6247 = vpack.c.b16 %v6073, %v6067
    %v6248 = vpack.c.b16 %v6074, %v6068
    %v6249 = vpack.c.b16 %v6075, %v6069
    %v6250 = vpack.c.b16 %v6082, %v6076
    %v6251 = vpack.c.b16 %v6083, %v6077
    %v6252 = vpack.c.b16 %v6084, %v6078
    %v6253 = vpack.c.b16 %v6085, %v6079
    %v6254 = vpack.c.b16 %v6086, %v6080
    %v6255 = vpack.c.b16 %v6087, %v6081
    %v6256 = vpack.c.b16 %v6094, %v6088
    %v6257 = vpack.c.b16 %v6095, %v6089
    %v6258 = vpack.c.b16 %v6096, %v6090
    %v6259 = vpack.c.b16 %v6097, %v6091
    %v6260 = vpack.c.b16 %v6098, %v6092
    %v6261 = vpack.c.b16 %v6099, %v6093
    %v6262 = vpack.c.b16 %v6106, %v6100
    %v6263 = vpack.c.b16 %v6107, %v6101
    %v6264 = vpack.c.b16 %v6108, %v6102
    %v6265 = vpack.c.b16 %v6109, %v6103
    %v6266 = vpack.c.b16 %v6110, %v6104
    %v6267 = vpack.c.b16 %v6111, %v6105
    %v6268 = vpack.c.b16 %v6118, %v6112
    %v6269 = vpack.c.b16 %v6119, %v6113
    %v6270 = vpack.c.b16 %v6120, %v6114
    %v6271 = vpack.c.b16 %v6121, %v6115
    %v6272 = vpack.c.b16 %v6122, %v6116
    %v6273 = vpack.c.b16 %v6123, %v6117
    %v6274 = vpack.c.b16 %v6130, %v6124
    %v6275 = vpack.c.b16 %v6131, %v6125
    %v6276 = vpack.c.b16 %v6132, %v6126
    %v6277 = vpack.c.b16 %v6133, %v6127
    %v6278 = vpack.c.b16 %v6134, %v6128
    %v6279 = vpack.c.b16 %v6135, %v6129
    %v6280 = vpack.c.b16 %v6142, %v6136
    %v6281 = vpack.c.b16 %v6143, %v6137
    %v6282 = vpack.c.b16 %v6144, %v6138
    %v6283 = vpack.c.b16 %v6145, %v6139
    %v6284 = vpack.c.b16 %v6146, %v6140
    %v6285 = vpack.c.b16 %v6147, %v6141
    %v6286 = vpack.c.b16 %v6154, %v6148
    %v6287 = vpack.c.b16 %v6155, %v6149
    %v6288 = vpack.c.b16 %v6156, %v6150
    %v6289 = vpack.c.b16 %v6157, %v6151
    %v6290 = vpack.c.b16 %v6158, %v6152
    %v6291 = vpack.c.b16 %v6159, %v6153
    %v6292 = vpack.c.b16 %v6166, %v6160
    %v6293 = vpack.c.b16 %v6167, %v6161
    %v6294 = vpack.c.b16 %v6168, %v6162
    %v6295 = vpack.c.b16 %v6169, %v6163
    %v6296 = vpack.c.b16 %v6170, %v6164
    %v6297 = vpack.c.b16 %v6171, %v6165
    %v6298 = vpack.c.b16 %v6178, %v6172
    %v6299 = vpack.c.b16 %v6179, %v6173
    %v6300 = vpack.c.b16 %v6180, %v6174
    %v6301 = vpack.c.b16 %v6181, %v6175
    %v6302 = vpack.c.b16 %v6182, %v6176
    %v6303 = vpack.c.b16 %v6183, %v6177
    %v6304 = vpack.c.b16 %v6190, %v6184
    %v6305 = vpack.c.b16 %v6191, %v6185
    %v6306 = vpack.c.b16 %v6192, %v6186
    %v6307 = vpack.c.b16 %v6193, %v6187
    %v6308 = vpack.c.b16 %v6194, %v6188
    %v6309 = vpack.c.b16 %v6195, %v6189
    %v6310 = vpack.c.b16 %v6202, %v6196
    %v6311 = vpack.c.b16 %v6203, %v6197
    %v6312 = vpack.c.b16 %v6204, %v6198
    %v6313 = vpack.c.b16 %v6205, %v6199
    %v6314 = vpack.c.b16 %v6206, %v6200
    %v6315 = vpack.c.b16 %v6207, %v6201
    %v6316 = vpack.c.b16 %v6214, %v6208
    %v6317 = vpack.c.b16 %v6215, %v6209
    %v6318 = vpack.c.b16 %v6216, %v6210
    %v6319 = vpack.c.b16 %v6217, %v6211
    %v6320 = vpack.c.b16 %v6218, %v6212
    %v6321 = vpack.c.b16 %v6219, %v6213
    %v6322 = vpack.c.b16 %v6226, %v6220
    %v6323 = vpack.c.b16 %v6227, %v6221
    %v6324 = vpack.c.b16 %v6228, %v6222
    %v6325 = vpack.c.b16 %v6229, %v6223
    %v6326 = vpack.c.b16 %v6230, %v6224
    %v6327 = vpack.c.b16 %v6231, %v6225
    %v6425 = vperm.slane %v5943, 0
    %v6426 = vperm.slane %v5943, 1
    %v6427 = vperm.slane %v5943, 2
    %v6428 = vperm.slane %v5943, 3
    %v6429 = vperm.slane %v5943, 4
    %v6430 = vperm.slane %v5943, 5
    %6437 = vmatpush.bf16.msra.mxu0 %v6274
    %6438 = vmatpush.bf16.msra.mxu0 %v6268
    %6439 = vmatpush.bf16.msra.mxu0 %v6262
    %6440 = vmatpush.bf16.msra.mxu0 %v6256
    %6441 = vmatpush.bf16.msra.mxu0 %v6250
    %6442 = vmatpush.bf16.msra.mxu0 %v6244
    %6443 = vmatpush.bf16.msra.mxu0 %v6238
    %6444 = vmatpush.bf16.msra.mxu0 %v6232
    %6445 = vmatmul.bf16.gmra.mxu0 %v5845
    %v6446 = vpop.f32.mrf.mxu0
    %v6447 = vadd.f32 %v6425, %v6446
    %v6448 = vpop.f32.mrf.mxu0
    %6449 = vdwg.mxu0
    %6450 = vmatpush.bf16.msra.mxu0 %v6322
    %6451 = vmatpush.bf16.msra.mxu0 %v6316
    %6452 = vmatpush.bf16.msra.mxu0 %v6310
    %6453 = vmatpush.bf16.msra.mxu0 %v6304
    %6454 = vmatpush.bf16.msra.mxu0 %v6298
    %6455 = vmatpush.bf16.msra.mxu0 %v6292
    %6456 = vmatpush.bf16.msra.mxu0 %v6286
    %6457 = vmatpush.bf16.msra.mxu0 %v6280
    %6458 = vmatmul.bf16.gmra.mxu0 %v5846
    %v6459 = vpop.f32.mrf.mxu0
    %v6460 = vadd.f32 %v6447, %v6459
    %v6461 = vpop.f32.mrf.mxu0
    %6462 = vdwg.mxu0
    %6463 = vmatpush.bf16.msra.mxu0 %v6275
    %6464 = vmatpush.bf16.msra.mxu0 %v6269
    %6465 = vmatpush.bf16.msra.mxu0 %v6263
    %6466 = vmatpush.bf16.msra.mxu0 %v6257
    %6467 = vmatpush.bf16.msra.mxu0 %v6251
    %6468 = vmatpush.bf16.msra.mxu0 %v6245
    %6469 = vmatpush.bf16.msra.mxu0 %v6239
    %6470 = vmatpush.bf16.msra.mxu0 %v6233
    %6471 = vmatmul.bf16.gmra.mxu0 %v5845
    %v6472 = vpop.f32.mrf.mxu0
    %v6473 = vadd.f32 %v6426, %v6472
    %v6474 = vpop.f32.mrf.mxu0
    %6475 = vdwg.mxu0
    %6476 = vmatpush.bf16.msra.mxu0 %v6323
    %6477 = vmatpush.bf16.msra.mxu0 %v6317
    %6478 = vmatpush.bf16.msra.mxu0 %v6311
    %6479 = vmatpush.bf16.msra.mxu0 %v6305
    %6480 = vmatpush.bf16.msra.mxu0 %v6299
    %6481 = vmatpush.bf16.msra.mxu0 %v6293
    %6482 = vmatpush.bf16.msra.mxu0 %v6287
    %6483 = vmatpush.bf16.msra.mxu0 %v6281
    %6484 = vmatmul.bf16.gmra.mxu0 %v5846
    %v6485 = vpop.f32.mrf.mxu0
    %v6486 = vadd.f32 %v6473, %v6485
    %v6487 = vpop.f32.mrf.mxu0
    %6488 = vdwg.mxu0
    %6489 = vmatpush.bf16.msra.mxu0 %v6276
    %6490 = vmatpush.bf16.msra.mxu0 %v6270
    %6491 = vmatpush.bf16.msra.mxu0 %v6264
    %6492 = vmatpush.bf16.msra.mxu0 %v6258
    %6493 = vmatpush.bf16.msra.mxu0 %v6252
    %6494 = vmatpush.bf16.msra.mxu0 %v6246
    %6495 = vmatpush.bf16.msra.mxu0 %v6240
    %6496 = vmatpush.bf16.msra.mxu0 %v6234
    %6497 = vmatmul.bf16.gmra.mxu0 %v5845
    %v6498 = vpop.f32.mrf.mxu0
    %v6499 = vadd.f32 %v6427, %v6498
    %v6500 = vpop.f32.mrf.mxu0
    %6501 = vdwg.mxu0
    %6502 = vmatpush.bf16.msra.mxu0 %v6324
    %6503 = vmatpush.bf16.msra.mxu0 %v6318
    %6504 = vmatpush.bf16.msra.mxu0 %v6312
    %6505 = vmatpush.bf16.msra.mxu0 %v6306
    %6506 = vmatpush.bf16.msra.mxu0 %v6300
    %6507 = vmatpush.bf16.msra.mxu0 %v6294
    %6508 = vmatpush.bf16.msra.mxu0 %v6288
    %6509 = vmatpush.bf16.msra.mxu0 %v6282
    %6510 = vmatmul.bf16.gmra.mxu0 %v5846
    %v6511 = vpop.f32.mrf.mxu0
    %v6512 = vadd.f32 %v6499, %v6511
    %v6513 = vpop.f32.mrf.mxu0
    %6514 = vdwg.mxu0
    %6515 = vmatpush.bf16.msra.mxu0 %v6277
    %6516 = vmatpush.bf16.msra.mxu0 %v6271
    %6517 = vmatpush.bf16.msra.mxu0 %v6265
    %6518 = vmatpush.bf16.msra.mxu0 %v6259
    %6519 = vmatpush.bf16.msra.mxu0 %v6253
    %6520 = vmatpush.bf16.msra.mxu0 %v6247
    %6521 = vmatpush.bf16.msra.mxu0 %v6241
    %6522 = vmatpush.bf16.msra.mxu0 %v6235
    %6523 = vmatmul.bf16.gmra.mxu0 %v5845
    %v6524 = vpop.f32.mrf.mxu0
    %v6525 = vadd.f32 %v6428, %v6524
    %v6526 = vpop.f32.mrf.mxu0
    %6527 = vdwg.mxu0
    %6528 = vmatpush.bf16.msra.mxu0 %v6325
    %6529 = vmatpush.bf16.msra.mxu0 %v6319
    %6530 = vmatpush.bf16.msra.mxu0 %v6313
    %6531 = vmatpush.bf16.msra.mxu0 %v6307
    %6532 = vmatpush.bf16.msra.mxu0 %v6301
    %6533 = vmatpush.bf16.msra.mxu0 %v6295
    %6534 = vmatpush.bf16.msra.mxu0 %v6289
    %6535 = vmatpush.bf16.msra.mxu0 %v6283
    %6536 = vmatmul.bf16.gmra.mxu0 %v5846
    %v6537 = vpop.f32.mrf.mxu0
    %v6538 = vadd.f32 %v6525, %v6537
    %v6539 = vpop.f32.mrf.mxu0
    %6540 = vdwg.mxu0
    %6541 = vmatpush.bf16.msra.mxu0 %v6278
    %6542 = vmatpush.bf16.msra.mxu0 %v6272
    %6543 = vmatpush.bf16.msra.mxu0 %v6266
    %6544 = vmatpush.bf16.msra.mxu0 %v6260
    %6545 = vmatpush.bf16.msra.mxu0 %v6254
    %6546 = vmatpush.bf16.msra.mxu0 %v6248
    %6547 = vmatpush.bf16.msra.mxu0 %v6242
    %6548 = vmatpush.bf16.msra.mxu0 %v6236
    %6549 = vmatmul.bf16.gmra.mxu0 %v5845
    %v6550 = vpop.f32.mrf.mxu0
    %v6551 = vadd.f32 %v6429, %v6550
    %v6552 = vpop.f32.mrf.mxu0
    %6553 = vdwg.mxu0
    %6554 = vmatpush.bf16.msra.mxu0 %v6326
    %6555 = vmatpush.bf16.msra.mxu0 %v6320
    %6556 = vmatpush.bf16.msra.mxu0 %v6314
    %6557 = vmatpush.bf16.msra.mxu0 %v6308
    %6558 = vmatpush.bf16.msra.mxu0 %v6302
    %6559 = vmatpush.bf16.msra.mxu0 %v6296
    %6560 = vmatpush.bf16.msra.mxu0 %v6290
    %6561 = vmatpush.bf16.msra.mxu0 %v6284
    %6562 = vmatmul.bf16.gmra.mxu0 %v5846
    %v6563 = vpop.f32.mrf.mxu0
    %v6564 = vadd.f32 %v6551, %v6563
    %v6565 = vpop.f32.mrf.mxu0
    %6566 = vdwg.mxu0
    %6567 = vmatpush.bf16.msra.mxu0 %v6279
    %6568 = vmatpush.bf16.msra.mxu0 %v6273
    %6569 = vmatpush.bf16.msra.mxu0 %v6267
    %6570 = vmatpush.bf16.msra.mxu0 %v6261
    %6571 = vmatpush.bf16.msra.mxu0 %v6255
    %6572 = vmatpush.bf16.msra.mxu0 %v6249
    %6573 = vmatpush.bf16.msra.mxu0 %v6243
    %6574 = vmatpush.bf16.msra.mxu0 %v6237
    %6575 = vmatmul.bf16.gmra.mxu0 %v5845
    %v6576 = vpop.f32.mrf.mxu0
    %v6577 = vadd.f32 %v6430, %v6576
    %v6578 = vpop.f32.mrf.mxu0
    %6579 = vdwg.mxu0
    %6580 = vmatpush.bf16.msra.mxu0 %v6327
    %6581 = vmatpush.bf16.msra.mxu0 %v6321
    %6582 = vmatpush.bf16.msra.mxu0 %v6315
    %6583 = vmatpush.bf16.msra.mxu0 %v6309
    %6584 = vmatpush.bf16.msra.mxu0 %v6303
    %6585 = vmatpush.bf16.msra.mxu0 %v6297
    %6586 = vmatpush.bf16.msra.mxu0 %v6291
    %6587 = vmatpush.bf16.msra.mxu0 %v6285
    %6588 = vmatmul.bf16.gmra.mxu0 %v5846
    %v6589 = vpop.f32.mrf.mxu0
    %v6590 = vadd.f32 %v6577, %v6589
    %v6591 = vpop.f32.mrf.mxu0
    %6592 = vdwg.mxu0
    %v6595 = vrot.slane %v6486, 7
    %v6596 = vsel %vm1630, %v6460, %v6595
    %v6598 = vadd.f32 %v5839, %v6596
    %v6599 = vxor.u32 %v6598, 2147483648
    %v6600 = vmul.f32 %v6599, 1.442695
    %v6601 = vpow.pop %v6600
    %v6602 = vadd.f32 %v6601, 1.0
    %v6603 = vrcp.pop %v6602
    %v6604 = vmul.f32 %v6602, %v6603
    %v6605 = vsub.f32 1.0, %v6604
    %v6606 = vmul.f32 %v6603, %v6605
    %v6607 = vadd.f32 %v6603, %v6606
    %vm6608 = vweird.f32 %v6602
    %vm6609 = vweird.f32 %v6603
    %vm6610 = vmor %vm6608, %vm6609
    %v6611 = vsel %vm6610, %v6603, %v6607
    %v6612 = vand.u32 2147483647, %v6602
    %vm6613 = vcmp.eq.f32.partialorder %v6612, 8.507059e+37
    %v6614 = vand.u32 %v6602, 2147483648
    %v6615 = vor.u32 1.1754944e-38, %v6614
    %v6616 = vsel %vm6613, %v6615, %v6611
    %v6617 = vmul.f32 1.0, %v6616
    %v6619 = vrot.slane %v5839, 2
    %v6623 = vrot.slane %v6538, 7
    %v6624 = vsel %vm1630, %v6512, %v6623
    %v6626 = vadd.f32 %v6619, %v6624
    %v6627 = vxor.u32 %v6626, 2147483648
    %v6628 = vmul.f32 %v6627, 1.442695
    %v6629 = vpow.pop %v6628
    %v6630 = vadd.f32 %v6629, 1.0
    %v6631 = vrcp.pop %v6630
    %v6632 = vmul.f32 %v6630, %v6631
    %v6633 = vsub.f32 1.0, %v6632
    %v6634 = vmul.f32 %v6631, %v6633
    %v6635 = vadd.f32 %v6631, %v6634
    %vm6636 = vweird.f32 %v6630
    %vm6637 = vweird.f32 %v6631
    %vm6638 = vmor %vm6636, %vm6637
    %v6639 = vsel %vm6638, %v6631, %v6635
    %v6640 = vand.u32 2147483647, %v6630
    %vm6641 = vcmp.eq.f32.partialorder %v6640, 8.507059e+37
    %v6642 = vand.u32 %v6630, 2147483648
    %v6643 = vor.u32 1.1754944e-38, %v6642
    %v6644 = vsel %vm6641, %v6643, %v6639
    %v6645 = vmul.f32 1.0, %v6644
    %v6648 = vrot.slane %v6590, 7
    %v6649 = vsel %vm1630, %v6564, %v6648
    %v6651 = vmul.f32 %v6617, %v6649
    %v6652 = vrot.slane %v5839, 4
    %v6654 = vadd.f32 %v6652, %v6651
    %v6655 = vtanh.pop %v6654
    %v6656 = vsub.f32 1.0, %v6645
    %v6657 = vmul.f32 %v6656, %v6655
    %v6658 = vmul.f32 %v6645, %v5832
    %v6659 = vadd.f32 %v6657, %v6658
    %s6660 = scalar_lea.vmem [#allocation14], 6
    %6661 = vst.msk [vmem:[%s6660] ss:$8 sm:$0x3] %vm1698, %v6659
    %6662 = vst.msk [vmem:[%s6660] ss:$8 sm:$0x0] %vm1698, %v6659
    %s6663 = scalar_lea.vmem [#allocation2], 7
    %v6664 = vld [vmem:[%s6663] ss:$8 sm:$0xf]
    %v6665 = vld [vmem:[%s6663] ss:$8 sm:$0x30]
    %v6666 = vor.u32 %v6664, %v6665
    %v6668 = vperm.slane %v6659, 0
    %v6669 = vperm.slane %v6659, 1
    %v6672 = vpack.c.bf16 %v6668, %v6668
    %v6673 = vpack.c.bf16 %v6669, %v6669
    %v6674 = vld [vmem:[#allocation9] sm:$0xff]
    %v6675 = vld [vmem:[#allocation9 + $0x8] sm:$0xff]
    %v6676 = vld [vmem:[#allocation9 + $0x10] sm:$0xff]
    %v6677 = vld [vmem:[#allocation9 + $0x18] sm:$0xff]
    %v6678 = vld [vmem:[#allocation9 + $0x20] sm:$0xff]
    %v6679 = vld [vmem:[#allocation9 + $0x28] sm:$0xff]
    %v6680 = vld [vmem:[#allocation9 + $0x30] sm:$0xff]
    %v6681 = vld [vmem:[#allocation9 + $0x38] sm:$0xff]
    %v6682 = vld [vmem:[#allocation9 + $0x40] sm:$0xff]
    %v6683 = vld [vmem:[#allocation9 + $0x48] sm:$0xff]
    %v6684 = vld [vmem:[#allocation9 + $0x50] sm:$0xff]
    %v6685 = vld [vmem:[#allocation9 + $0x58] sm:$0xff]
    %v6686 = vld [vmem:[#allocation9 + $0x60] sm:$0xff]
    %v6687 = vld [vmem:[#allocation9 + $0x68] sm:$0xff]
    %v6688 = vld [vmem:[#allocation9 + $0x70] sm:$0xff]
    %v6689 = vld [vmem:[#allocation9 + $0x78] sm:$0xff]
    %v6690 = vld [vmem:[#allocation9 + $0x80] sm:$0xff]
    %v6691 = vld [vmem:[#allocation9 + $0x88] sm:$0xff]
    %v6692 = vld [vmem:[#allocation9 + $0x90] sm:$0xff]
    %v6693 = vld [vmem:[#allocation9 + $0x98] sm:$0xff]
    %v6694 = vld [vmem:[#allocation9 + $0xa0] sm:$0xff]
    %v6695 = vld [vmem:[#allocation9 + $0xa8] sm:$0xff]
    %v6696 = vld [vmem:[#allocation9 + $0xb0] sm:$0xff]
    %v6697 = vld [vmem:[#allocation9 + $0xb8] sm:$0xff]
    %v6698 = vld [vmem:[#allocation9 + $0xc0] sm:$0xff]
    %v6699 = vld [vmem:[#allocation9 + $0xc8] sm:$0xff]
    %v6700 = vld [vmem:[#allocation9 + $0xd0] sm:$0xff]
    %v6701 = vld [vmem:[#allocation9 + $0xd8] sm:$0xff]
    %v6702 = vld [vmem:[#allocation9 + $0xe0] sm:$0xff]
    %v6703 = vld [vmem:[#allocation9 + $0xe8] sm:$0xff]
    %v6704 = vld [vmem:[#allocation9 + $0xf0] sm:$0xff]
    %v6705 = vld [vmem:[#allocation9 + $0xf8] sm:$0xff]
    %v6706 = vld [vmem:[#allocation9 + $0x100] sm:$0xff]
    %v6707 = vld [vmem:[#allocation9 + $0x108] sm:$0xff]
    %v6708 = vld [vmem:[#allocation9 + $0x110] sm:$0xff]
    %v6709 = vld [vmem:[#allocation9 + $0x118] sm:$0xff]
    %v6710 = vld [vmem:[#allocation9 + $0x120] sm:$0xff]
    %v6711 = vld [vmem:[#allocation9 + $0x128] sm:$0xff]
    %v6712 = vld [vmem:[#allocation9 + $0x130] sm:$0xff]
    %v6713 = vld [vmem:[#allocation9 + $0x138] sm:$0xff]
    %v6714 = vld [vmem:[#allocation9 + $0x140] sm:$0xff]
    %v6715 = vld [vmem:[#allocation9 + $0x148] sm:$0xff]
    %v6716 = vld [vmem:[#allocation9 + $0x150] sm:$0xff]
    %v6717 = vld [vmem:[#allocation9 + $0x158] sm:$0xff]
    %v6718 = vld [vmem:[#allocation9 + $0x160] sm:$0xff]
    %v6719 = vld [vmem:[#allocation9 + $0x168] sm:$0xff]
    %v6720 = vld [vmem:[#allocation9 + $0x170] sm:$0xff]
    %v6721 = vld [vmem:[#allocation9 + $0x178] sm:$0xff]
    %v6722 = vld [vmem:[#allocation9 + $0x180] sm:$0xff]
    %v6723 = vld [vmem:[#allocation9 + $0x188] sm:$0xff]
    %v6724 = vld [vmem:[#allocation9 + $0x190] sm:$0xff]
    %v6725 = vld [vmem:[#allocation9 + $0x198] sm:$0xff]
    %v6726 = vld [vmem:[#allocation9 + $0x1a0] sm:$0xff]
    %v6727 = vld [vmem:[#allocation9 + $0x1a8] sm:$0xff]
    %v6728 = vld [vmem:[#allocation9 + $0x1b0] sm:$0xff]
    %v6729 = vld [vmem:[#allocation9 + $0x1b8] sm:$0xff]
    %v6730 = vld [vmem:[#allocation9 + $0x1c0] sm:$0xff]
    %v6731 = vld [vmem:[#allocation9 + $0x1c8] sm:$0xff]
    %v6732 = vld [vmem:[#allocation9 + $0x1d0] sm:$0xff]
    %v6733 = vld [vmem:[#allocation9 + $0x1d8] sm:$0xff]
    %v6734 = vld [vmem:[#allocation9 + $0x1e0] sm:$0xff]
    %v6735 = vld [vmem:[#allocation9 + $0x1e8] sm:$0xff]
    %v6736 = vld [vmem:[#allocation9 + $0x1f0] sm:$0xff]
    %v6737 = vld [vmem:[#allocation9 + $0x1f8] sm:$0xff]
    %v6738 = vld [vmem:[#allocation9 + $0x200] sm:$0xff]
    %v6739 = vld [vmem:[#allocation9 + $0x208] sm:$0xff]
    %v6740 = vld [vmem:[#allocation9 + $0x210] sm:$0xff]
    %v6741 = vld [vmem:[#allocation9 + $0x218] sm:$0xff]
    %v6742 = vld [vmem:[#allocation9 + $0x220] sm:$0xff]
    %v6743 = vld [vmem:[#allocation9 + $0x228] sm:$0xff]
    %v6744 = vld [vmem:[#allocation9 + $0x230] sm:$0xff]
    %v6745 = vld [vmem:[#allocation9 + $0x238] sm:$0xff]
    %v6746 = vld [vmem:[#allocation9 + $0x240] sm:$0xff]
    %v6747 = vld [vmem:[#allocation9 + $0x248] sm:$0xff]
    %v6748 = vld [vmem:[#allocation9 + $0x250] sm:$0xff]
    %v6749 = vld [vmem:[#allocation9 + $0x258] sm:$0xff]
    %v6750 = vld [vmem:[#allocation9 + $0x260] sm:$0xff]
    %v6751 = vld [vmem:[#allocation9 + $0x268] sm:$0xff]
    %v6752 = vld [vmem:[#allocation9 + $0x270] sm:$0xff]
    %v6753 = vld [vmem:[#allocation9 + $0x278] sm:$0xff]
    %v6754 = vld [vmem:[#allocation9 + $0x280] sm:$0xff]
    %v6755 = vld [vmem:[#allocation9 + $0x288] sm:$0xff]
    %v6756 = vld [vmem:[#allocation9 + $0x290] sm:$0xff]
    %v6757 = vld [vmem:[#allocation9 + $0x298] sm:$0xff]
    %v6758 = vld [vmem:[#allocation9 + $0x2a0] sm:$0xff]
    %v6759 = vld [vmem:[#allocation9 + $0x2a8] sm:$0xff]
    %v6760 = vld [vmem:[#allocation9 + $0x2b0] sm:$0xff]
    %v6761 = vld [vmem:[#allocation9 + $0x2b8] sm:$0xff]
    %v6762 = vld [vmem:[#allocation9 + $0x2c0] sm:$0xff]
    %v6763 = vld [vmem:[#allocation9 + $0x2c8] sm:$0xff]
    %v6764 = vld [vmem:[#allocation9 + $0x2d0] sm:$0xff]
    %v6765 = vld [vmem:[#allocation9 + $0x2d8] sm:$0xff]
    %v6766 = vld [vmem:[#allocation9 + $0x2e0] sm:$0xff]
    %v6767 = vld [vmem:[#allocation9 + $0x2e8] sm:$0xff]
    %v6768 = vld [vmem:[#allocation9 + $0x2f0] sm:$0xff]
    %v6769 = vld [vmem:[#allocation9 + $0x2f8] sm:$0xff]
    %v6770 = vld [vmem:[#allocation12] sm:$0x3f]
    %v6867 = vunpack.c.l.b16 %v6674
    %v6868 = vunpack.c.h.b16 %v6674
    %v6869 = vunpack.c.l.b16 %v6675
    %v6870 = vunpack.c.h.b16 %v6675
    %v6871 = vunpack.c.l.b16 %v6676
    %v6872 = vunpack.c.h.b16 %v6676
    %v6873 = vunpack.c.l.b16 %v6677
    %v6874 = vunpack.c.h.b16 %v6677
    %v6875 = vunpack.c.l.b16 %v6678
    %v6876 = vunpack.c.h.b16 %v6678
    %v6877 = vunpack.c.l.b16 %v6679
    %v6878 = vunpack.c.h.b16 %v6679
    %v6879 = vunpack.c.l.b16 %v6680
    %v6880 = vunpack.c.h.b16 %v6680
    %v6881 = vunpack.c.l.b16 %v6681
    %v6882 = vunpack.c.h.b16 %v6681
    %v6883 = vunpack.c.l.b16 %v6682
    %v6884 = vunpack.c.h.b16 %v6682
    %v6885 = vunpack.c.l.b16 %v6683
    %v6886 = vunpack.c.h.b16 %v6683
    %v6887 = vunpack.c.l.b16 %v6684
    %v6888 = vunpack.c.h.b16 %v6684
    %v6889 = vunpack.c.l.b16 %v6685
    %v6890 = vunpack.c.h.b16 %v6685
    %v6891 = vunpack.c.l.b16 %v6686
    %v6892 = vunpack.c.h.b16 %v6686
    %v6893 = vunpack.c.l.b16 %v6687
    %v6894 = vunpack.c.h.b16 %v6687
    %v6895 = vunpack.c.l.b16 %v6688
    %v6896 = vunpack.c.h.b16 %v6688
    %v6897 = vunpack.c.l.b16 %v6689
    %v6898 = vunpack.c.h.b16 %v6689
    %v6899 = vunpack.c.l.b16 %v6690
    %v6900 = vunpack.c.h.b16 %v6690
    %v6901 = vunpack.c.l.b16 %v6691
    %v6902 = vunpack.c.h.b16 %v6691
    %v6903 = vunpack.c.l.b16 %v6692
    %v6904 = vunpack.c.h.b16 %v6692
    %v6905 = vunpack.c.l.b16 %v6693
    %v6906 = vunpack.c.h.b16 %v6693
    %v6907 = vunpack.c.l.b16 %v6694
    %v6908 = vunpack.c.h.b16 %v6694
    %v6909 = vunpack.c.l.b16 %v6695
    %v6910 = vunpack.c.h.b16 %v6695
    %v6911 = vunpack.c.l.b16 %v6696
    %v6912 = vunpack.c.h.b16 %v6696
    %v6913 = vunpack.c.l.b16 %v6697
    %v6914 = vunpack.c.h.b16 %v6697
    %v6915 = vunpack.c.l.b16 %v6698
    %v6916 = vunpack.c.h.b16 %v6698
    %v6917 = vunpack.c.l.b16 %v6699
    %v6918 = vunpack.c.h.b16 %v6699
    %v6919 = vunpack.c.l.b16 %v6700
    %v6920 = vunpack.c.h.b16 %v6700
    %v6921 = vunpack.c.l.b16 %v6701
    %v6922 = vunpack.c.h.b16 %v6701
    %v6923 = vunpack.c.l.b16 %v6702
    %v6924 = vunpack.c.h.b16 %v6702
    %v6925 = vunpack.c.l.b16 %v6703
    %v6926 = vunpack.c.h.b16 %v6703
    %v6927 = vunpack.c.l.b16 %v6704
    %v6928 = vunpack.c.h.b16 %v6704
    %v6929 = vunpack.c.l.b16 %v6705
    %v6930 = vunpack.c.h.b16 %v6705
    %v6931 = vunpack.c.l.b16 %v6706
    %v6932 = vunpack.c.h.b16 %v6706
    %v6933 = vunpack.c.l.b16 %v6707
    %v6934 = vunpack.c.h.b16 %v6707
    %v6935 = vunpack.c.l.b16 %v6708
    %v6936 = vunpack.c.h.b16 %v6708
    %v6937 = vunpack.c.l.b16 %v6709
    %v6938 = vunpack.c.h.b16 %v6709
    %v6939 = vunpack.c.l.b16 %v6710
    %v6940 = vunpack.c.h.b16 %v6710
    %v6941 = vunpack.c.l.b16 %v6711
    %v6942 = vunpack.c.h.b16 %v6711
    %v6943 = vunpack.c.l.b16 %v6712
    %v6944 = vunpack.c.h.b16 %v6712
    %v6945 = vunpack.c.l.b16 %v6713
    %v6946 = vunpack.c.h.b16 %v6713
    %v6947 = vunpack.c.l.b16 %v6714
    %v6948 = vunpack.c.h.b16 %v6714
    %v6949 = vunpack.c.l.b16 %v6715
    %v6950 = vunpack.c.h.b16 %v6715
    %v6951 = vunpack.c.l.b16 %v6716
    %v6952 = vunpack.c.h.b16 %v6716
    %v6953 = vunpack.c.l.b16 %v6717
    %v6954 = vunpack.c.h.b16 %v6717
    %v6955 = vunpack.c.l.b16 %v6718
    %v6956 = vunpack.c.h.b16 %v6718
    %v6957 = vunpack.c.l.b16 %v6719
    %v6958 = vunpack.c.h.b16 %v6719
    %v6959 = vunpack.c.l.b16 %v6720
    %v6960 = vunpack.c.h.b16 %v6720
    %v6961 = vunpack.c.l.b16 %v6721
    %v6962 = vunpack.c.h.b16 %v6721
    %v6963 = vunpack.c.l.b16 %v6722
    %v6964 = vunpack.c.h.b16 %v6722
    %v6965 = vunpack.c.l.b16 %v6723
    %v6966 = vunpack.c.h.b16 %v6723
    %v6967 = vunpack.c.l.b16 %v6724
    %v6968 = vunpack.c.h.b16 %v6724
    %v6969 = vunpack.c.l.b16 %v6725
    %v6970 = vunpack.c.h.b16 %v6725
    %v6971 = vunpack.c.l.b16 %v6726
    %v6972 = vunpack.c.h.b16 %v6726
    %v6973 = vunpack.c.l.b16 %v6727
    %v6974 = vunpack.c.h.b16 %v6727
    %v6975 = vunpack.c.l.b16 %v6728
    %v6976 = vunpack.c.h.b16 %v6728
    %v6977 = vunpack.c.l.b16 %v6729
    %v6978 = vunpack.c.h.b16 %v6729
    %v6979 = vunpack.c.l.b16 %v6730
    %v6980 = vunpack.c.h.b16 %v6730
    %v6981 = vunpack.c.l.b16 %v6731
    %v6982 = vunpack.c.h.b16 %v6731
    %v6983 = vunpack.c.l.b16 %v6732
    %v6984 = vunpack.c.h.b16 %v6732
    %v6985 = vunpack.c.l.b16 %v6733
    %v6986 = vunpack.c.h.b16 %v6733
    %v6987 = vunpack.c.l.b16 %v6734
    %v6988 = vunpack.c.h.b16 %v6734
    %v6989 = vunpack.c.l.b16 %v6735
    %v6990 = vunpack.c.h.b16 %v6735
    %v6991 = vunpack.c.l.b16 %v6736
    %v6992 = vunpack.c.h.b16 %v6736
    %v6993 = vunpack.c.l.b16 %v6737
    %v6994 = vunpack.c.h.b16 %v6737
    %v6995 = vunpack.c.l.b16 %v6738
    %v6996 = vunpack.c.h.b16 %v6738
    %v6997 = vunpack.c.l.b16 %v6739
    %v6998 = vunpack.c.h.b16 %v6739
    %v6999 = vunpack.c.l.b16 %v6740
    %v7000 = vunpack.c.h.b16 %v6740
    %v7001 = vunpack.c.l.b16 %v6741
    %v7002 = vunpack.c.h.b16 %v6741
    %v7003 = vunpack.c.l.b16 %v6742
    %v7004 = vunpack.c.h.b16 %v6742
    %v7005 = vunpack.c.l.b16 %v6743
    %v7006 = vunpack.c.h.b16 %v6743
    %v7007 = vunpack.c.l.b16 %v6744
    %v7008 = vunpack.c.h.b16 %v6744
    %v7009 = vunpack.c.l.b16 %v6745
    %v7010 = vunpack.c.h.b16 %v6745
    %v7011 = vunpack.c.l.b16 %v6746
    %v7012 = vunpack.c.h.b16 %v6746
    %v7013 = vunpack.c.l.b16 %v6747
    %v7014 = vunpack.c.h.b16 %v6747
    %v7015 = vunpack.c.l.b16 %v6748
    %v7016 = vunpack.c.h.b16 %v6748
    %v7017 = vunpack.c.l.b16 %v6749
    %v7018 = vunpack.c.h.b16 %v6749
    %v7019 = vunpack.c.l.b16 %v6750
    %v7020 = vunpack.c.h.b16 %v6750
    %v7021 = vunpack.c.l.b16 %v6751
    %v7022 = vunpack.c.h.b16 %v6751
    %v7023 = vunpack.c.l.b16 %v6752
    %v7024 = vunpack.c.h.b16 %v6752
    %v7025 = vunpack.c.l.b16 %v6753
    %v7026 = vunpack.c.h.b16 %v6753
    %v7027 = vunpack.c.l.b16 %v6754
    %v7028 = vunpack.c.h.b16 %v6754
    %v7029 = vunpack.c.l.b16 %v6755
    %v7030 = vunpack.c.h.b16 %v6755
    %v7031 = vunpack.c.l.b16 %v6756
    %v7032 = vunpack.c.h.b16 %v6756
    %v7033 = vunpack.c.l.b16 %v6757
    %v7034 = vunpack.c.h.b16 %v6757
    %v7035 = vunpack.c.l.b16 %v6758
    %v7036 = vunpack.c.h.b16 %v6758
    %v7037 = vunpack.c.l.b16 %v6759
    %v7038 = vunpack.c.h.b16 %v6759
    %v7039 = vunpack.c.l.b16 %v6760
    %v7040 = vunpack.c.h.b16 %v6760
    %v7041 = vunpack.c.l.b16 %v6761
    %v7042 = vunpack.c.h.b16 %v6761
    %v7043 = vunpack.c.l.b16 %v6762
    %v7044 = vunpack.c.h.b16 %v6762
    %v7045 = vunpack.c.l.b16 %v6763
    %v7046 = vunpack.c.h.b16 %v6763
    %v7047 = vunpack.c.l.b16 %v6764
    %v7048 = vunpack.c.h.b16 %v6764
    %v7049 = vunpack.c.l.b16 %v6765
    %v7050 = vunpack.c.h.b16 %v6765
    %v7051 = vunpack.c.l.b16 %v6766
    %v7052 = vunpack.c.h.b16 %v6766
    %v7053 = vunpack.c.l.b16 %v6767
    %v7054 = vunpack.c.h.b16 %v6767
    %v7055 = vunpack.c.l.b16 %v6768
    %v7056 = vunpack.c.h.b16 %v6768
    %v7057 = vunpack.c.l.b16 %v6769
    %v7058 = vunpack.c.h.b16 %v6769
    %v7059 = vpack.c.b16 %v6873, %v6867
    %v7060 = vpack.c.b16 %v6874, %v6868
    %v7061 = vpack.c.b16 %v6875, %v6869
    %v7062 = vpack.c.b16 %v6876, %v6870
    %v7063 = vpack.c.b16 %v6877, %v6871
    %v7064 = vpack.c.b16 %v6878, %v6872
    %v7065 = vpack.c.b16 %v6885, %v6879
    %v7066 = vpack.c.b16 %v6886, %v6880
    %v7067 = vpack.c.b16 %v6887, %v6881
    %v7068 = vpack.c.b16 %v6888, %v6882
    %v7069 = vpack.c.b16 %v6889, %v6883
    %v7070 = vpack.c.b16 %v6890, %v6884
    %v7071 = vpack.c.b16 %v6897, %v6891
    %v7072 = vpack.c.b16 %v6898, %v6892
    %v7073 = vpack.c.b16 %v6899, %v6893
    %v7074 = vpack.c.b16 %v6900, %v6894
    %v7075 = vpack.c.b16 %v6901, %v6895
    %v7076 = vpack.c.b16 %v6902, %v6896
    %v7077 = vpack.c.b16 %v6909, %v6903
    %v7078 = vpack.c.b16 %v6910, %v6904
    %v7079 = vpack.c.b16 %v6911, %v6905
    %v7080 = vpack.c.b16 %v6912, %v6906
    %v7081 = vpack.c.b16 %v6913, %v6907
    %v7082 = vpack.c.b16 %v6914, %v6908
    %v7083 = vpack.c.b16 %v6921, %v6915
    %v7084 = vpack.c.b16 %v6922, %v6916
    %v7085 = vpack.c.b16 %v6923, %v6917
    %v7086 = vpack.c.b16 %v6924, %v6918
    %v7087 = vpack.c.b16 %v6925, %v6919
    %v7088 = vpack.c.b16 %v6926, %v6920
    %v7089 = vpack.c.b16 %v6933, %v6927
    %v7090 = vpack.c.b16 %v6934, %v6928
    %v7091 = vpack.c.b16 %v6935, %v6929
    %v7092 = vpack.c.b16 %v6936, %v6930
    %v7093 = vpack.c.b16 %v6937, %v6931
    %v7094 = vpack.c.b16 %v6938, %v6932
    %v7095 = vpack.c.b16 %v6945, %v6939
    %v7096 = vpack.c.b16 %v6946, %v6940
    %v7097 = vpack.c.b16 %v6947, %v6941
    %v7098 = vpack.c.b16 %v6948, %v6942
    %v7099 = vpack.c.b16 %v6949, %v6943
    %v7100 = vpack.c.b16 %v6950, %v6944
    %v7101 = vpack.c.b16 %v6957, %v6951
    %v7102 = vpack.c.b16 %v6958, %v6952
    %v7103 = vpack.c.b16 %v6959, %v6953
    %v7104 = vpack.c.b16 %v6960, %v6954
    %v7105 = vpack.c.b16 %v6961, %v6955
    %v7106 = vpack.c.b16 %v6962, %v6956
    %v7107 = vpack.c.b16 %v6969, %v6963
    %v7108 = vpack.c.b16 %v6970, %v6964
    %v7109 = vpack.c.b16 %v6971, %v6965
    %v7110 = vpack.c.b16 %v6972, %v6966
    %v7111 = vpack.c.b16 %v6973, %v6967
    %v7112 = vpack.c.b16 %v6974, %v6968
    %v7113 = vpack.c.b16 %v6981, %v6975
    %v7114 = vpack.c.b16 %v6982, %v6976
    %v7115 = vpack.c.b16 %v6983, %v6977
    %v7116 = vpack.c.b16 %v6984, %v6978
    %v7117 = vpack.c.b16 %v6985, %v6979
    %v7118 = vpack.c.b16 %v6986, %v6980
    %v7119 = vpack.c.b16 %v6993, %v6987
    %v7120 = vpack.c.b16 %v6994, %v6988
    %v7121 = vpack.c.b16 %v6995, %v6989
    %v7122 = vpack.c.b16 %v6996, %v6990
    %v7123 = vpack.c.b16 %v6997, %v6991
    %v7124 = vpack.c.b16 %v6998, %v6992
    %v7125 = vpack.c.b16 %v7005, %v6999
    %v7126 = vpack.c.b16 %v7006, %v7000
    %v7127 = vpack.c.b16 %v7007, %v7001
    %v7128 = vpack.c.b16 %v7008, %v7002
    %v7129 = vpack.c.b16 %v7009, %v7003
    %v7130 = vpack.c.b16 %v7010, %v7004
    %v7131 = vpack.c.b16 %v7017, %v7011
    %v7132 = vpack.c.b16 %v7018, %v7012
    %v7133 = vpack.c.b16 %v7019, %v7013
    %v7134 = vpack.c.b16 %v7020, %v7014
    %v7135 = vpack.c.b16 %v7021, %v7015
    %v7136 = vpack.c.b16 %v7022, %v7016
    %v7137 = vpack.c.b16 %v7029, %v7023
    %v7138 = vpack.c.b16 %v7030, %v7024
    %v7139 = vpack.c.b16 %v7031, %v7025
    %v7140 = vpack.c.b16 %v7032, %v7026
    %v7141 = vpack.c.b16 %v7033, %v7027
    %v7142 = vpack.c.b16 %v7034, %v7028
    %v7143 = vpack.c.b16 %v7041, %v7035
    %v7144 = vpack.c.b16 %v7042, %v7036
    %v7145 = vpack.c.b16 %v7043, %v7037
    %v7146 = vpack.c.b16 %v7044, %v7038
    %v7147 = vpack.c.b16 %v7045, %v7039
    %v7148 = vpack.c.b16 %v7046, %v7040
    %v7149 = vpack.c.b16 %v7053, %v7047
    %v7150 = vpack.c.b16 %v7054, %v7048
    %v7151 = vpack.c.b16 %v7055, %v7049
    %v7152 = vpack.c.b16 %v7056, %v7050
    %v7153 = vpack.c.b16 %v7057, %v7051
    %v7154 = vpack.c.b16 %v7058, %v7052
    %v7252 = vperm.slane %v6770, 0
    %v7253 = vperm.slane %v6770, 1
    %v7254 = vperm.slane %v6770, 2
    %v7255 = vperm.slane %v6770, 3
    %v7256 = vperm.slane %v6770, 4
    %v7257 = vperm.slane %v6770, 5
    %7264 = vmatpush.bf16.msra.mxu0 %v7101
    %7265 = vmatpush.bf16.msra.mxu0 %v7095
    %7266 = vmatpush.bf16.msra.mxu0 %v7089
    %7267 = vmatpush.bf16.msra.mxu0 %v7083
    %7268 = vmatpush.bf16.msra.mxu0 %v7077
    %7269 = vmatpush.bf16.msra.mxu0 %v7071
    %7270 = vmatpush.bf16.msra.mxu0 %v7065
    %7271 = vmatpush.bf16.msra.mxu0 %v7059
    %7272 = vmatmul.bf16.gmra.mxu0 %v6672
    %v7273 = vpop.f32.mrf.mxu0
    %v7274 = vadd.f32 %v7252, %v7273
    %v7275 = vpop.f32.mrf.mxu0
    %7276 = vdwg.mxu0
    %7277 = vmatpush.bf16.msra.mxu0 %v7149
    %7278 = vmatpush.bf16.msra.mxu0 %v7143
    %7279 = vmatpush.bf16.msra.mxu0 %v7137
    %7280 = vmatpush.bf16.msra.mxu0 %v7131
    %7281 = vmatpush.bf16.msra.mxu0 %v7125
    %7282 = vmatpush.bf16.msra.mxu0 %v7119
    %7283 = vmatpush.bf16.msra.mxu0 %v7113
    %7284 = vmatpush.bf16.msra.mxu0 %v7107
    %7285 = vmatmul.bf16.gmra.mxu0 %v6673
    %v7286 = vpop.f32.mrf.mxu0
    %v7287 = vadd.f32 %v7274, %v7286
    %v7288 = vpop.f32.mrf.mxu0
    %7289 = vdwg.mxu0
    %7290 = vmatpush.bf16.msra.mxu0 %v7102
    %7291 = vmatpush.bf16.msra.mxu0 %v7096
    %7292 = vmatpush.bf16.msra.mxu0 %v7090
    %7293 = vmatpush.bf16.msra.mxu0 %v7084
    %7294 = vmatpush.bf16.msra.mxu0 %v7078
    %7295 = vmatpush.bf16.msra.mxu0 %v7072
    %7296 = vmatpush.bf16.msra.mxu0 %v7066
    %7297 = vmatpush.bf16.msra.mxu0 %v7060
    %7298 = vmatmul.bf16.gmra.mxu0 %v6672
    %v7299 = vpop.f32.mrf.mxu0
    %v7300 = vadd.f32 %v7253, %v7299
    %v7301 = vpop.f32.mrf.mxu0
    %7302 = vdwg.mxu0
    %7303 = vmatpush.bf16.msra.mxu0 %v7150
    %7304 = vmatpush.bf16.msra.mxu0 %v7144
    %7305 = vmatpush.bf16.msra.mxu0 %v7138
    %7306 = vmatpush.bf16.msra.mxu0 %v7132
    %7307 = vmatpush.bf16.msra.mxu0 %v7126
    %7308 = vmatpush.bf16.msra.mxu0 %v7120
    %7309 = vmatpush.bf16.msra.mxu0 %v7114
    %7310 = vmatpush.bf16.msra.mxu0 %v7108
    %7311 = vmatmul.bf16.gmra.mxu0 %v6673
    %v7312 = vpop.f32.mrf.mxu0
    %v7313 = vadd.f32 %v7300, %v7312
    %v7314 = vpop.f32.mrf.mxu0
    %7315 = vdwg.mxu0
    %7316 = vmatpush.bf16.msra.mxu0 %v7103
    %7317 = vmatpush.bf16.msra.mxu0 %v7097
    %7318 = vmatpush.bf16.msra.mxu0 %v7091
    %7319 = vmatpush.bf16.msra.mxu0 %v7085
    %7320 = vmatpush.bf16.msra.mxu0 %v7079
    %7321 = vmatpush.bf16.msra.mxu0 %v7073
    %7322 = vmatpush.bf16.msra.mxu0 %v7067
    %7323 = vmatpush.bf16.msra.mxu0 %v7061
    %7324 = vmatmul.bf16.gmra.mxu0 %v6672
    %v7325 = vpop.f32.mrf.mxu0
    %v7326 = vadd.f32 %v7254, %v7325
    %v7327 = vpop.f32.mrf.mxu0
    %7328 = vdwg.mxu0
    %7329 = vmatpush.bf16.msra.mxu0 %v7151
    %7330 = vmatpush.bf16.msra.mxu0 %v7145
    %7331 = vmatpush.bf16.msra.mxu0 %v7139
    %7332 = vmatpush.bf16.msra.mxu0 %v7133
    %7333 = vmatpush.bf16.msra.mxu0 %v7127
    %7334 = vmatpush.bf16.msra.mxu0 %v7121
    %7335 = vmatpush.bf16.msra.mxu0 %v7115
    %7336 = vmatpush.bf16.msra.mxu0 %v7109
    %7337 = vmatmul.bf16.gmra.mxu0 %v6673
    %v7338 = vpop.f32.mrf.mxu0
    %v7339 = vadd.f32 %v7326, %v7338
    %v7340 = vpop.f32.mrf.mxu0
    %7341 = vdwg.mxu0
    %7342 = vmatpush.bf16.msra.mxu0 %v7104
    %7343 = vmatpush.bf16.msra.mxu0 %v7098
    %7344 = vmatpush.bf16.msra.mxu0 %v7092
    %7345 = vmatpush.bf16.msra.mxu0 %v7086
    %7346 = vmatpush.bf16.msra.mxu0 %v7080
    %7347 = vmatpush.bf16.msra.mxu0 %v7074
    %7348 = vmatpush.bf16.msra.mxu0 %v7068
    %7349 = vmatpush.bf16.msra.mxu0 %v7062
    %7350 = vmatmul.bf16.gmra.mxu0 %v6672
    %v7351 = vpop.f32.mrf.mxu0
    %v7352 = vadd.f32 %v7255, %v7351
    %v7353 = vpop.f32.mrf.mxu0
    %7354 = vdwg.mxu0
    %7355 = vmatpush.bf16.msra.mxu0 %v7152
    %7356 = vmatpush.bf16.msra.mxu0 %v7146
    %7357 = vmatpush.bf16.msra.mxu0 %v7140
    %7358 = vmatpush.bf16.msra.mxu0 %v7134
    %7359 = vmatpush.bf16.msra.mxu0 %v7128
    %7360 = vmatpush.bf16.msra.mxu0 %v7122
    %7361 = vmatpush.bf16.msra.mxu0 %v7116
    %7362 = vmatpush.bf16.msra.mxu0 %v7110
    %7363 = vmatmul.bf16.gmra.mxu0 %v6673
    %v7364 = vpop.f32.mrf.mxu0
    %v7365 = vadd.f32 %v7352, %v7364
    %v7366 = vpop.f32.mrf.mxu0
    %7367 = vdwg.mxu0
    %7368 = vmatpush.bf16.msra.mxu0 %v7105
    %7369 = vmatpush.bf16.msra.mxu0 %v7099
    %7370 = vmatpush.bf16.msra.mxu0 %v7093
    %7371 = vmatpush.bf16.msra.mxu0 %v7087
    %7372 = vmatpush.bf16.msra.mxu0 %v7081
    %7373 = vmatpush.bf16.msra.mxu0 %v7075
    %7374 = vmatpush.bf16.msra.mxu0 %v7069
    %7375 = vmatpush.bf16.msra.mxu0 %v7063
    %7376 = vmatmul.bf16.gmra.mxu0 %v6672
    %v7377 = vpop.f32.mrf.mxu0
    %v7378 = vadd.f32 %v7256, %v7377
    %v7379 = vpop.f32.mrf.mxu0
    %7380 = vdwg.mxu0
    %7381 = vmatpush.bf16.msra.mxu0 %v7153
    %7382 = vmatpush.bf16.msra.mxu0 %v7147
    %7383 = vmatpush.bf16.msra.mxu0 %v7141
    %7384 = vmatpush.bf16.msra.mxu0 %v7135
    %7385 = vmatpush.bf16.msra.mxu0 %v7129
    %7386 = vmatpush.bf16.msra.mxu0 %v7123
    %7387 = vmatpush.bf16.msra.mxu0 %v7117
    %7388 = vmatpush.bf16.msra.mxu0 %v7111
    %7389 = vmatmul.bf16.gmra.mxu0 %v6673
    %v7390 = vpop.f32.mrf.mxu0
    %v7391 = vadd.f32 %v7378, %v7390
    %v7392 = vpop.f32.mrf.mxu0
    %7393 = vdwg.mxu0
    %7394 = vmatpush.bf16.msra.mxu0 %v7106
    %7395 = vmatpush.bf16.msra.mxu0 %v7100
    %7396 = vmatpush.bf16.msra.mxu0 %v7094
    %7397 = vmatpush.bf16.msra.mxu0 %v7088
    %7398 = vmatpush.bf16.msra.mxu0 %v7082
    %7399 = vmatpush.bf16.msra.mxu0 %v7076
    %7400 = vmatpush.bf16.msra.mxu0 %v7070
    %7401 = vmatpush.bf16.msra.mxu0 %v7064
    %7402 = vmatmul.bf16.gmra.mxu0 %v6672
    %v7403 = vpop.f32.mrf.mxu0
    %v7404 = vadd.f32 %v7257, %v7403
    %v7405 = vpop.f32.mrf.mxu0
    %7406 = vdwg.mxu0
    %7407 = vmatpush.bf16.msra.mxu0 %v7154
    %7408 = vmatpush.bf16.msra.mxu0 %v7148
    %7409 = vmatpush.bf16.msra.mxu0 %v7142
    %7410 = vmatpush.bf16.msra.mxu0 %v7136
    %7411 = vmatpush.bf16.msra.mxu0 %v7130
    %7412 = vmatpush.bf16.msra.mxu0 %v7124
    %7413 = vmatpush.bf16.msra.mxu0 %v7118
    %7414 = vmatpush.bf16.msra.mxu0 %v7112
    %7415 = vmatmul.bf16.gmra.mxu0 %v6673
    %v7416 = vpop.f32.mrf.mxu0
    %v7417 = vadd.f32 %v7404, %v7416
    %v7418 = vpop.f32.mrf.mxu0
    %7419 = vdwg.mxu0
    %v7422 = vrot.slane %v7313, 7
    %v7423 = vsel %vm1630, %v7287, %v7422
    %v7425 = vadd.f32 %v6666, %v7423
    %v7426 = vxor.u32 %v7425, 2147483648
    %v7427 = vmul.f32 %v7426, 1.442695
    %v7428 = vpow.pop %v7427
    %v7429 = vadd.f32 %v7428, 1.0
    %v7430 = vrcp.pop %v7429
    %v7431 = vmul.f32 %v7429, %v7430
    %v7432 = vsub.f32 1.0, %v7431
    %v7433 = vmul.f32 %v7430, %v7432
    %v7434 = vadd.f32 %v7430, %v7433
    %vm7435 = vweird.f32 %v7429
    %vm7436 = vweird.f32 %v7430
    %vm7437 = vmor %vm7435, %vm7436
    %v7438 = vsel %vm7437, %v7430, %v7434
    %v7439 = vand.u32 2147483647, %v7429
    %vm7440 = vcmp.eq.f32.partialorder %v7439, 8.507059e+37
    %v7441 = vand.u32 %v7429, 2147483648
    %v7442 = vor.u32 1.1754944e-38, %v7441
    %v7443 = vsel %vm7440, %v7442, %v7438
    %v7444 = vmul.f32 1.0, %v7443
    %v7446 = vrot.slane %v6666, 2
    %v7450 = vrot.slane %v7365, 7
    %v7451 = vsel %vm1630, %v7339, %v7450
    %v7453 = vadd.f32 %v7446, %v7451
    %v7454 = vxor.u32 %v7453, 2147483648
    %v7455 = vmul.f32 %v7454, 1.442695
    %v7456 = vpow.pop %v7455
    %v7457 = vadd.f32 %v7456, 1.0
    %v7458 = vrcp.pop %v7457
    %v7459 = vmul.f32 %v7457, %v7458
    %v7460 = vsub.f32 1.0, %v7459
    %v7461 = vmul.f32 %v7458, %v7460
    %v7462 = vadd.f32 %v7458, %v7461
    %vm7463 = vweird.f32 %v7457
    %vm7464 = vweird.f32 %v7458
    %vm7465 = vmor %vm7463, %vm7464
    %v7466 = vsel %vm7465, %v7458, %v7462
    %v7467 = vand.u32 2147483647, %v7457
    %vm7468 = vcmp.eq.f32.partialorder %v7467, 8.507059e+37
    %v7469 = vand.u32 %v7457, 2147483648
    %v7470 = vor.u32 1.1754944e-38, %v7469
    %v7471 = vsel %vm7468, %v7470, %v7466
    %v7472 = vmul.f32 1.0, %v7471
    %v7475 = vrot.slane %v7417, 7
    %v7476 = vsel %vm1630, %v7391, %v7475
    %v7478 = vmul.f32 %v7444, %v7476
    %v7479 = vrot.slane %v6666, 4
    %v7481 = vadd.f32 %v7479, %v7478
    %v7482 = vtanh.pop %v7481
    %v7483 = vsub.f32 1.0, %v7472
    %v7484 = vmul.f32 %v7483, %v7482
    %v7485 = vmul.f32 %v7472, %v6659
    %v7486 = vadd.f32 %v7484, %v7485
    %s7487 = scalar_lea.vmem [#allocation14], 7
    %7488 = vst.msk [vmem:[%s7487] ss:$8 sm:$0x3] %vm1698, %v7486
    %7489 = vst.msk [vmem:[%s7487] ss:$8 sm:$0x0] %vm1698, %v7486
    // Predicated region
    $region50: #{tpu_custom_call.1} parent=1 // pred_check
      _
    $region51: #{tpu_custom_call.1} parent=1 // pred_check_branch
      %7491 = sbr.rel (0) target = $region53
    $region52: #{tpu_custom_call.1} parent=1 // pred_region
      %7493 = vsyncadd [#allocation5], 0
      %s7495 = sshll.u32 [#allocation14], 4
      %s7496 = int_to_ptr.vmem [resolvable:$true] %s7495
      %s7497 = sshll.u32 %s6, 4
      %s7498 = int_to_ptr.hbm [resolvable:$true] %s7497
      %7500 = dma.vmem_to_hbm [thread:$0]  %s7496, 256, %s7498, [#allocation5]
    $region53: #{tpu_custom_call.1} parent=1 // pred_fallthru
      _
    // Predicated region
    $region54: #{tpu_custom_call.1} parent=1 // pred_check
      _
    $region55: #{tpu_custom_call.1} parent=1 // pred_check_branch
      %7502 = sbr.rel (0) target = $region57
    $region56: #{tpu_custom_call.1} parent=1 // pred_region
      %7504 = dma.done [#allocation5], 256
    $region57: #{tpu_custom_call.1} parent=1 // pred_fallthru
      _
    %7505 = vsyncpa [#allocation4], 1
    %7506 = vsyncpa [#allocation7], 1
    %7507 = vsyncpa [#allocation10], 1
    %7508 = vsyncpa [#allocation13], 1
    %7509 = vsyncpa [#allocation5], 1

</llo_original>
